<compile_context>
chip_gen: v7x
topology: tpu7x:2x2x1
jax: 0.10.0
libtpu: 0.0.40
codegen_flags: <defaults>
</compile_context>

<pallas_src>
import functools

import jax
import jax.numpy as jnp
from jax.experimental import pallas as pl
from jax.experimental.pallas import tpu as pltpu


# ----------------------------------------------------------------------------
# VMEM budgeting (generation-aware: 128 MiB VMEM on v5e/v6e, 64 MiB on v7x).
# ----------------------------------------------------------------------------
def _vmem_limit_bytes():
    try:
        cap = int(pltpu.get_tpu_info().vmem_capacity_bytes)
        return min(64 << 20, cap // 2)
    except Exception:
        return None  # fall back to the compiler's default scoped limit


_VMEM_LIMIT = _vmem_limit_bytes()


def _round_up(x, m):
    return (x + m - 1) // m * m


def _pick_cout_tile(c_out, m_pad, n_phase, scratch_budget=4 << 20):
    """Largest C_out tile keeping the f32 y-scratch bounded and the grid >= 2."""
    divisors = [t for t in (128, 64, 32, 16, 8)
                if c_out % t == 0 and c_out // t >= 2]
    for t in divisors:
        if n_phase * t * m_pad * 4 <= scratch_budget:
            return t
    return divisors[-1] if divisors else c_out


def _pick_lane_tile(m_pad, k, n_phase, vmem_limit):
    """Largest M tile (<= 4096) whose double-buffered bf16 patch blocks fit."""
    budget = max((vmem_limit or (32 << 20)) // 3, 4 << 20)
    for t in (4096, 2048, 1024, 512, 256, 128):
        if m_pad % t == 0 and m_pad // t >= 2 and 2 * n_phase * k * t * 2 <= budget:
            return t
    return m_pad


def _check_fused_vmem(n_phase, k, m_pad, c_tile, limit):
    budget = limit or (32 << 20)
    est = (2 * n_phase * k * m_pad * 2          # resident patches^T (bf16, 2 bufs)
           + 2 * n_phase * c_tile * k * 2       # weight blocks
           + 2 * n_phase * c_tile * m_pad * 2   # output blocks (bf16)
           + n_phase * c_tile * m_pad * 4)      # f32 y scratch
    if est > budget:
        raise NotImplementedError(
            f"single-pass fused BN layer needs ~{est >> 20} MiB VMEM "
            f"(budget {budget >> 20} MiB). "
            "TODO(synk): two-pass BN (per-channel sum/sumsq over an M-tiled "
            "'arbitrary' grid) for large batch * ngf.")


# ----------------------------------------------------------------------------
# Pallas kernels
# ----------------------------------------------------------------------------
def _gemm_bn_relu_kernel(wt_ref, pt_ref, g_ref, b_ref, o_ref, y_ref,
                         *, eps, inv_count, n_phase):
    """Per-phase GEMM + fused training-mode BatchNorm (folded affine) + ReLU.

    wt_ref: (P, c_tile, K) bf16    pt_ref: (P, K, Mp) bf16 (resident)
    g_ref/b_ref: (c_tile, 1) f32   o_ref: (P, c_tile, Mp) bf16
    y_ref: VMEM scratch (P, c_tile, Mp) f32
    Padded (zero) M columns contribute 0 to sum/sumsq; dividing by the true
    element count (inv_count) keeps the statistics exact.
    """
    s1 = None
    s2 = None
    for p in range(n_phase):
        y = jnp.dot(wt_ref[p], pt_ref[p], preferred_element_type=jnp.float32)
        y_ref[p] = y
        ps1 = jnp.sum(y, axis=1, keepdims=True)
        ps2 = jnp.sum(y * y, axis=1, keepdims=True)
        s1 = ps1 if s1 is None else s1 + ps1
        s2 = ps2 if s2 is None else s2 + ps2
    mean = s1 * inv_count
    var = jnp.maximum(s2 * inv_count - mean * mean, 0.0)
    scale = g_ref[...] * jax.lax.rsqrt(var + eps)
    shift = b_ref[...] - mean * scale
    for p in range(n_phase):
        o_ref[p] = jnp.maximum(y_ref[p] * scale + shift, 0.0).astype(o_ref.dtype)


def _gemm_tanh_kernel(wt_ref, pt_ref, o_ref, *, n_phase):
    for p in range(n_phase):
        y = jnp.dot(wt_ref[p], pt_ref[p], preferred_element_type=jnp.float32)
        o_ref[p] = jnp.tanh(y).astype(o_ref.dtype)


def _fused_convT_bn_relu(wt_all, pt_all, gamma, beta, m_true, *, eps=1e-5):
    """ConvT-as-GEMM + BatchNorm(batch stats) + ReLU, C_out-tiled 'parallel' grid."""
    n_phase, c_out, k = wt_all.shape
    m_pad = pt_all.shape[2]
    c_tile = _pick_cout_tile(c_out, m_pad, n_phase)
    _check_fused_vmem(n_phase, k, m_pad, c_tile, _VMEM_LIMIT)
    inv_count = 1.0 / float(n_phase * m_true)
    kern = functools.partial(_gemm_bn_relu_kernel, eps=eps,
                             inv_count=inv_count, n_phase=n_phase)
    return pl.pallas_call(
        kern,
        out_shape=jax.ShapeDtypeStruct((n_phase, c_out, m_pad), jnp.bfloat16),
        grid=(c_out // c_tile,),
        in_specs=[
            pl.BlockSpec((n_phase, c_tile, k), lambda i: (0, i, 0)),
            pl.BlockSpec((n_phase, k, m_pad), lambda i: (0, 0, 0)),  # resident
            pl.BlockSpec((c_tile, 1), lambda i: (i, 0)),
            pl.BlockSpec((c_tile, 1), lambda i: (i, 0)),
        ],
        out_specs=pl.BlockSpec((n_phase, c_tile, m_pad), lambda i: (0, i, 0)),
        scratch_shapes=[pltpu.VMEM((n_phase, c_tile, m_pad), jnp.float32)],
        compiler_params=pltpu.CompilerParams(
            dimension_semantics=("parallel",),
            vmem_limit_bytes=_VMEM_LIMIT),
    )(wt_all, pt_all,
      gamma.reshape(c_out, 1).astype(jnp.float32),
      beta.reshape(c_out, 1).astype(jnp.float32))


def _convT_tanh(wt_all, pt_all):
    """ConvT-as-GEMM + tanh, lane-dense M-tiled 'parallel' grid, weights resident."""
    n_phase, c_out, k = wt_all.shape
    m_pad = pt_all.shape[2]
    tn = _pick_lane_tile(m_pad, k, n_phase, _VMEM_LIMIT)
    return pl.pallas_call(
        functools.partial(_gemm_tanh_kernel, n_phase=n_phase),
        out_shape=jax.ShapeDtypeStruct((n_phase, c_out, m_pad), jnp.float32),
        grid=(m_pad // tn,),
        in_specs=[
            pl.BlockSpec((n_phase, c_out, k), lambda i: (0, 0, 0)),  # resident
            pl.BlockSpec((n_phase, k, tn), lambda i: (0, 0, i)),
        ],
        out_specs=pl.BlockSpec((n_phase, c_out, tn), lambda i: (0, 0, i)),
        compiler_params=pltpu.CompilerParams(
            dimension_semantics=("parallel",),
            vmem_limit_bytes=_VMEM_LIMIT),
    )(wt_all, pt_all)


# ----------------------------------------------------------------------------
# Phase-split (sub-pixel) ConvTranspose2d glue.  Activations live in CNHW.
# ----------------------------------------------------------------------------
# For k=4, stride=2, pad=1: output row 2p+r uses taps (dy into 1-padded x, ky):
_TAPS_S2 = {0: ((0, 3), (1, 1)),
            1: ((1, 2), (2, 0))}


def _phase_split_stride2(x_cnhw, w):
    """x: (C_in, N, H, W); w: (C_in, C_out, 4, 4) (PyTorch ConvTranspose2d layout).

    Returns pt_all (4, C_in*4, N*H*W), wt_all (4, C_out, C_in*4); phase index
    r*2+s holds output pixels (2p+r, 2q+s) flattened as (n, p, q).
    """
    c_in, n, h, w_sp = x_cnhw.shape
    c_out = w.shape[1]
    xp = jnp.pad(x_cnhw, ((0, 0), (0, 0), (1, 1), (1, 1)))
    pts, wts = [], []
    for r in (0, 1):
        for s in (0, 1):
            slabs, wrows = [], []
            for dy, ky in _TAPS_S2[r]:
                for dx, kx in _TAPS_S2[s]:
                    slabs.append(xp[:, :, dy:dy + h, dx:dx + w_sp])
                    wrows.append(w[:, :, ky, kx])
            pt = jnp.stack(slabs, axis=1).reshape(c_in * 4, n * h * w_sp)
            wt = jnp.transpose(jnp.stack(wrows, axis=1),
                               (2, 0, 1)).reshape(c_out, c_in * 4)
            pts.append(pt)
            wts.append(wt)
    return jnp.stack(pts), jnp.stack(wts)


def _dense_first_layer(z_cn, w):
    """Layer 1 (1x1 input, stride 1, pad 0): single-phase GEMM form.

    z_cn: (nz, N); w: (nz, C_out, 4, 4) -> pt (1, nz*16, N*16), wt (1, C_out, nz*16).
    (The 16x tap expansion here is FLOP-wasteful but this layer is the smallest
    by far; its weight for output pixel (oy, ox) is w[:, :, oy, ox].)
    """
    nz_, n = z_cn.shape
    c_out = w.shape[1]
    eye = jnp.eye(16, dtype=z_cn.dtype)
    pt = jnp.einsum('cn,tm->ctnm', z_cn, eye).reshape(nz_ * 16, n * 16)
    wt = jnp.transpose(w, (1, 0, 2, 3)).reshape(c_out, nz_ * 16)
    return pt[None], wt[None]


def _pad_m(pt_all, m_true):
    m_pad = _round_up(m_true, 128)
    if m_pad != m_true:
        pt_all = jnp.pad(pt_all, ((0, 0), (0, 0), (0, m_pad - m_true)))
    return pt_all


def first_block(z_nchw, w, gamma, beta):
    n, nz_ = z_nchw.shape[0], z_nchw.shape[1]
    c_out = w.shape[1]
    z_cn = jnp.transpose(z_nchw.reshape(n, nz_), (1, 0)).astype(jnp.bfloat16)
    pt, wt = _dense_first_layer(z_cn, w.astype(jnp.bfloat16))
    m_true = n * 16
    y = _fused_convT_bn_relu(wt, _pad_m(pt, m_true), gamma, beta, m_true)
    return y[0, :, :m_true].reshape(c_out, n, 4, 4)            # CNHW


def conv_t_bn_relu_block(x_cnhw, w, gamma, beta):
    c_in, n, h, w_sp = x_cnhw.shape
    c_out = w.shape[1]
    pt, wt = _phase_split_stride2(x_cnhw.astype(jnp.bfloat16),
                                  w.astype(jnp.bfloat16))
    m_true = n * h * w_sp
    y = _fused_convT_bn_relu(wt, _pad_m(pt, m_true), gamma, beta, m_true)
    y = y[:, :, :m_true].reshape(2, 2, c_out, n, h, w_sp)
    return jnp.transpose(y, (2, 3, 4, 0, 5, 1)).reshape(c_out, n, 2 * h, 2 * w_sp)


def final_tanh_block(x_cnhw, w):
    c_in, n, h, w_sp = x_cnhw.shape
    c_out = w.shape[1]
    pt, wt = _phase_split_stride2(x_cnhw.astype(jnp.bfloat16),
                                  w.astype(jnp.bfloat16))
    m_true = n * h * w_sp
    y = _convT_tanh(wt, _pad_m(pt, m_true))
    y = y[:, :, :m_true].reshape(2, 2, c_out, n, h, w_sp)
    return jnp.transpose(y, (2, 3, 4, 0, 5, 1)).reshape(c_out, n, 2 * h, 2 * w_sp)


# ----------------------------------------------------------------------------
# Generator
# ----------------------------------------------------------------------------
def init_params(key, nz, ngf, nc):
    ks = jax.random.split(key, 9)

    def conv_w(k, cin, cout):
        return 0.02 * jax.random.normal(k, (cin, cout, 4, 4), jnp.float32)

    def bn_p(k, c):
        gamma = 1.0 + 0.02 * jax.random.normal(k, (c,), jnp.float32)
        beta = jnp.zeros((c,), jnp.float32)
        return gamma, beta

    return {
        "w1": conv_w(ks[0], nz, ngf * 8), "bn1": bn_p(ks[1], ngf * 8),
        "w2": conv_w(ks[2], ngf * 8, ngf * 4), "bn2": bn_p(ks[3], ngf * 4),
        "w3": conv_w(ks[4], ngf * 4, ngf * 2), "bn3": bn_p(ks[5], ngf * 2),
        "w4": conv_w(ks[6], ngf * 2, ngf), "bn4": bn_p(ks[7], ngf),
        "w5": conv_w(ks[8], ngf, nc),
    }


def generator_forward(z, params):
    # nn.Sequential path of Generator.forward (self.main(input)); NCHW in/out.
    # TODO(synk): the nn.parallel.data_parallel (ngpu > 1, CUDA) branch has no
    # single-core TPU equivalent; only the self.main(input) path is implemented.
    x = first_block(z, params["w1"], *params["bn1"])            # (8ngf, N, 4, 4)
    x = conv_t_bn_relu_block(x, params["w2"], *params["bn2"])   # (4ngf, N, 8, 8)
    x = conv_t_bn_relu_block(x, params["w3"], *params["bn3"])   # (2ngf, N, 16, 16)
    x = conv_t_bn_relu_block(x, params["w4"], *params["bn4"])   # (ngf, N, 32, 32)
    x = final_tanh_block(x, params["w5"])                       # (nc, N, 64, 64)
    return jnp.transpose(x, (1, 0, 2, 3))                       # CNHW -> NCHW


# ----------------------------------------------------------------------------
# Pure-JAX reference (same bf16 operand precision) used for a self-check.
# ----------------------------------------------------------------------------
def _ref_convT(x, w, stride, pad):
    k = w.shape[2]
    return jax.lax.conv_general_dilated(
        x.astype(jnp.bfloat16),
        jnp.transpose(w[:, :, ::-1, ::-1], (1, 0, 2, 3)).astype(jnp.bfloat16),
        window_strides=(1, 1),
        padding=[(k - 1 - pad,) * 2, (k - 1 - pad,) * 2],
        lhs_dilation=(stride, stride),
        dimension_numbers=('NCHW', 'OIHW', 'NCHW'),
        preferred_element_type=jnp.float32)


def _ref_bn_relu(y, gamma, beta, eps=1e-5):
    mean = jnp.mean(y, axis=(0, 2, 3), keepdims=True)
    var = jnp.mean(jnp.square(y - mean), axis=(0, 2, 3), keepdims=True)
    y = (y - mean) * jax.lax.rsqrt(var + eps)
    y = y * gamma.reshape(1, -1, 1, 1) + beta.reshape(1, -1, 1, 1)
    return jnp.maximum(y, 0.0)


def generator_reference(z, params):
    x = _ref_bn_relu(_ref_convT(z, params["w1"], 1, 0), *params["bn1"]).astype(jnp.bfloat16)
    x = _ref_bn_relu(_ref_convT(x, params["w2"], 2, 1), *params["bn2"]).astype(jnp.bfloat16)
    x = _ref_bn_relu(_ref_convT(x, params["w3"], 2, 1), *params["bn3"]).astype(jnp.bfloat16)
    x = _ref_bn_relu(_ref_convT(x, params["w4"], 2, 1), *params["bn4"]).astype(jnp.bfloat16)
    return jnp.tanh(_ref_convT(x, params["w5"], 2, 1))


if __name__ == "__main__":
    nz, ngf, nc, batch = 32, 16, 3, 2
    key = jax.random.PRNGKey(0)
    k_z, k_p = jax.random.split(key)
    z = jax.random.normal(k_z, (batch, nz, 1, 1), jnp.float32)
    params = init_params(k_p, nz, ngf, nc)

    out = jax.block_until_ready(jax.jit(generator_forward)(z, params))
    ref = jax.block_until_ready(jax.jit(generator_reference)(z, params))

    assert out.shape == (batch, nc, 64, 64)
    assert out.dtype == jnp.float32
    assert bool(jnp.all(jnp.isfinite(out)))
    max_err = float(jnp.max(jnp.abs(out - ref)))
    assert max_err < 1e-1, f"mismatch vs pure-JAX reference: max_err={max_err}"
    print("KERNEL_OK")
</pallas_src>

<mosaic_0001>
module attributes {stable_mosaic.version = 11 : i64} {
  func.func @_gemm_bn_relu_kernel(%arg0: i32, %arg1: memref<1x64x512xbf16, #tpu.memory_space<vmem>>, %arg2: memref<1x512x128xbf16, #tpu.memory_space<vmem>>, %arg3: memref<64x1xf32, #tpu.memory_space<vmem>>, %arg4: memref<64x1xf32, #tpu.memory_space<vmem>>, %arg5: memref<1x64x128xbf16, #tpu.memory_space<vmem>>, %arg6: memref<1x64x128xf32, #tpu.memory_space<vmem>>) attributes {dimension_semantics = [#tpu.dimension_semantics<parallel>], iteration_bounds = array<i64: 2>, scalar_prefetch = 0 : i64, scratch_operands = 1 : i64, tpu.core_type = #tpu.core_type<tc>, window_params = [{transform_indices = @transform_0, window_bounds = array<i64: 1, 64, 512>}, {pipeline_mode = #tpu.pipeline_mode<synchronous>, transform_indices = @transform_1, window_bounds = array<i64: 1, 512, 128>}, {transform_indices = @transform_2, window_bounds = array<i64: 64, 1>}, {transform_indices = @transform_3, window_bounds = array<i64: 64, 1>}, {transform_indices = @transform_4, window_bounds = array<i64: 1, 64, 128>}]} {
    %c0 = arith.constant 0 : index
    %c0_0 = arith.constant 0 : index
    %c0_1 = arith.constant 0 : index
    %0 = vector.load %arg1[%c0, %c0_0, %c0_1] : memref<1x64x512xbf16, #tpu.memory_space<vmem>>, vector<1x64x512xbf16>
    %1 = vector.shape_cast %0 : vector<1x64x512xbf16> to vector<64x512xbf16>
    %c0_2 = arith.constant 0 : index
    %c0_3 = arith.constant 0 : index
    %c0_4 = arith.constant 0 : index
    %2 = vector.load %arg2[%c0_2, %c0_3, %c0_4] : memref<1x512x128xbf16, #tpu.memory_space<vmem>>, vector<1x512x128xbf16>
    %3 = vector.shape_cast %2 : vector<1x512x128xbf16> to vector<512x128xbf16>
    %cst = arith.constant dense<0.000000e+00> : vector<64x128xf32>
    %4 = tpu.matmul %1, %3, %cst {dimension_numbers = #tpu.dot_dimension_numbers<[1], [0], [0], [1], [0, 0, 1, 1], [], []>} : vector<64x512xbf16>, vector<512x128xbf16>, vector<64x128xf32> -> vector<64x128xf32>
    %c0_5 = arith.constant 0 : index
    %c0_6 = arith.constant 0 : index
    %c0_7 = arith.constant 0 : index
    %5 = vector.load %arg6[%c0_5, %c0_6, %c0_7] : memref<1x64x128xf32, #tpu.memory_space<vmem>>, vector<1x64x128xf32>
    %6 = vector.shape_cast %5 : vector<1x64x128xf32> to vector<64x128xf32>
    %7 = vector.shape_cast %4 : vector<64x128xf32> to vector<1x64x128xf32>
    tpu.vector_store %arg6[%c0_5, %c0_6, %c0_7], %7 {strides = array<i32>} : memref<1x64x128xf32, #tpu.memory_space<vmem>>, vector<1x64x128xf32>,
    %cst_8 = arith.constant dense<0.000000e+00> : vector<64xf32>
    %8 = vector.multi_reduction <add>, %4, %cst_8 [1] : vector<64x128xf32> to vector<64xf32>
    %9 = vector.shape_cast %8 : vector<64xf32> to vector<64x1xf32>
    %10 = arith.mulf %4, %4 : vector<64x128xf32>
    %cst_9 = arith.constant dense<0.000000e+00> : vector<64xf32>
    %11 = vector.multi_reduction <add>, %10, %cst_9 [1] : vector<64x128xf32> to vector<64xf32>
    %12 = vector.shape_cast %11 : vector<64xf32> to vector<64x1xf32>
    %cst_10 = arith.constant 3.125000e-02 : f32
    %13 = vector.broadcast %cst_10 : f32 to vector<64x1xf32>
    %14 = arith.mulf %9, %13 : vector<64x1xf32>
    %cst_11 = arith.constant 3.125000e-02 : f32
    %15 = vector.broadcast %cst_11 : f32 to vector<64x1xf32>
    %16 = arith.mulf %12, %15 : vector<64x1xf32>
    %17 = arith.mulf %14, %14 : vector<64x1xf32>
    %18 = arith.subf %16, %17 : vector<64x1xf32>
    %cst_12 = arith.constant 0.000000e+00 : f32
    %19 = vector.broadcast %cst_12 : f32 to vector<64x1xf32>
    %20 = arith.maximumf %18, %19 : vector<64x1xf32>
    %c0_13 = arith.constant 0 : index
    %c0_14 = arith.constant 0 : index
    %21 = vector.load %arg3[%c0_13, %c0_14] : memref<64x1xf32, #tpu.memory_space<vmem>>, vector<64x1xf32>
    %cst_15 = arith.constant 9.99999974E-6 : f32
    %22 = vector.broadcast %cst_15 : f32 to vector<64x1xf32>
    %23 = arith.addf %20, %22 : vector<64x1xf32>
    %24 = math.rsqrt %23 : vector<64x1xf32>
    %25 = arith.mulf %21, %24 : vector<64x1xf32>
    %c0_16 = arith.constant 0 : index
    %c0_17 = arith.constant 0 : index
    %26 = vector.load %arg4[%c0_16, %c0_17] : memref<64x1xf32, #tpu.memory_space<vmem>>, vector<64x1xf32>
    %27 = arith.mulf %14, %25 : vector<64x1xf32>
    %28 = arith.subf %26, %27 : vector<64x1xf32>
    %c0_18 = arith.constant 0 : index
    %c0_19 = arith.constant 0 : index
    %c0_20 = arith.constant 0 : index
    %29 = vector.load %arg6[%c0_18, %c0_19, %c0_20] : memref<1x64x128xf32, #tpu.memory_space<vmem>>, vector<1x64x128xf32>
    %30 = vector.shape_cast %29 : vector<1x64x128xf32> to vector<64x128xf32>
    %31 = vector.broadcast %25 : vector<64x1xf32> to vector<64x128xf32>
    %32 = arith.mulf %30, %31 : vector<64x128xf32>
    %33 = vector.broadcast %28 : vector<64x1xf32> to vector<64x128xf32>
    %34 = arith.addf %32, %33 : vector<64x128xf32>
    %cst_21 = arith.constant 0.000000e+00 : f32
    %35 = vector.broadcast %cst_21 : f32 to vector<64x128xf32>
    %36 = arith.maximumf %34, %35 : vector<64x128xf32>
    %37 = arith.truncf %36 : vector<64x128xf32> to vector<64x128xbf16>
    %c0_22 = arith.constant 0 : index
    %c0_23 = arith.constant 0 : index
    %c0_24 = arith.constant 0 : index
    %38 = vector.load %arg5[%c0_22, %c0_23, %c0_24] : memref<1x64x128xbf16, #tpu.memory_space<vmem>>, vector<1x64x128xbf16>
    %39 = vector.shape_cast %38 : vector<1x64x128xbf16> to vector<64x128xbf16>
    %40 = vector.shape_cast %37 : vector<64x128xbf16> to vector<1x64x128xbf16>
    tpu.vector_store %arg5[%c0_22, %c0_23, %c0_24], %40 {strides = array<i32>} : memref<1x64x128xbf16, #tpu.memory_space<vmem>>, vector<1x64x128xbf16>,
    return
  }
  func.func @transform_0(%arg0: i32) -> (i32, i32, i32) {
    %c0_i32 = arith.constant 0 : i32
    %c0_i32_0 = arith.constant 0 : i32
    %c0_i32_1 = arith.constant 0 : i32
    return %c0_i32, %arg0, %c0_i32_0 : i32, i32, i32
  }
  func.func @transform_1(%arg0: i32) -> (i32, i32, i32) {
    %c0_i32 = arith.constant 0 : i32
    %c0_i32_0 = arith.constant 0 : i32
    %c0_i32_1 = arith.constant 0 : i32
    %c0_i32_2 = arith.constant 0 : i32
    return %c0_i32, %c0_i32_0, %c0_i32_1 : i32, i32, i32
  }
  func.func @transform_2(%arg0: i32) -> (i32, i32) {
    %c0_i32 = arith.constant 0 : i32
    %c0_i32_0 = arith.constant 0 : i32
    return %arg0, %c0_i32 : i32, i32
  }
  func.func @transform_3(%arg0: i32) -> (i32, i32) {
    %c0_i32 = arith.constant 0 : i32
    %c0_i32_0 = arith.constant 0 : i32
    return %arg0, %c0_i32 : i32, i32
  }
  func.func @transform_4(%arg0: i32) -> (i32, i32, i32) {
    %c0_i32 = arith.constant 0 : i32
    %c0_i32_0 = arith.constant 0 : i32
    %c0_i32_1 = arith.constant 0 : i32
    return %c0_i32, %arg0, %c0_i32_0 : i32, i32, i32
  }
}

module attributes {stable_mosaic.version = 11 : i64} {
  func.func @_gemm_bn_relu_kernel(%arg0: i32, %arg1: memref<4x32x512xbf16, #tpu.memory_space<vmem>>, %arg2: memref<4x512x128xbf16, #tpu.memory_space<vmem>>, %arg3: memref<32x1xf32, #tpu.memory_space<vmem>>, %arg4: memref<32x1xf32, #tpu.memory_space<vmem>>, %arg5: memref<4x32x128xbf16, #tpu.memory_space<vmem>>, %arg6: memref<4x32x128xf32, #tpu.memory_space<vmem>>) attributes {dimension_semantics = [#tpu.dimension_semantics<parallel>], iteration_bounds = array<i64: 2>, scalar_prefetch = 0 : i64, scratch_operands = 1 : i64, tpu.core_type = #tpu.core_type<tc>, window_params = [{transform_indices = @transform_0, window_bounds = array<i64: 4, 32, 512>}, {pipeline_mode = #tpu.pipeline_mode<synchronous>, transform_indices = @transform_1, window_bounds = array<i64: 4, 512, 128>}, {transform_indices = @transform_2, window_bounds = array<i64: 32, 1>}, {transform_indices = @transform_3, window_bounds = array<i64: 32, 1>}, {transform_indices = @transform_4, window_bounds = array<i64: 4, 32, 128>}]} {
    %c0 = arith.constant 0 : index
    %c0_0 = arith.constant 0 : index
    %c0_1 = arith.constant 0 : index
    %0 = vector.load %arg1[%c0, %c0_0, %c0_1] : memref<4x32x512xbf16, #tpu.memory_space<vmem>>, vector<1x32x512xbf16>
    %1 = vector.shape_cast %0 : vector<1x32x512xbf16> to vector<32x512xbf16>
    %c0_2 = arith.constant 0 : index
    %c0_3 = arith.constant 0 : index
    %c0_4 = arith.constant 0 : index
    %2 = vector.load %arg2[%c0_2, %c0_3, %c0_4] : memref<4x512x128xbf16, #tpu.memory_space<vmem>>, vector<1x512x128xbf16>
    %3 = vector.shape_cast %2 : vector<1x512x128xbf16> to vector<512x128xbf16>
    %cst = arith.constant dense<0.000000e+00> : vector<32x128xf32>
    %4 = tpu.matmul %1, %3, %cst {dimension_numbers = #tpu.dot_dimension_numbers<[1], [0], [0], [1], [0, 0, 1, 1], [], []>} : vector<32x512xbf16>, vector<512x128xbf16>, vector<32x128xf32> -> vector<32x128xf32>
    %c0_5 = arith.constant 0 : index
    %c0_6 = arith.constant 0 : index
    %c0_7 = arith.constant 0 : index
    %5 = vector.load %arg6[%c0_5, %c0_6, %c0_7] : memref<4x32x128xf32, #tpu.memory_space<vmem>>, vector<1x32x128xf32>
    %6 = vector.shape_cast %5 : vector<1x32x128xf32> to vector<32x128xf32>
    %7 = vector.shape_cast %4 : vector<32x128xf32> to vector<1x32x128xf32>
    tpu.vector_store %arg6[%c0_5, %c0_6, %c0_7], %7 {strides = array<i32>} : memref<4x32x128xf32, #tpu.memory_space<vmem>>, vector<1x32x128xf32>,
    %cst_8 = arith.constant dense<0.000000e+00> : vector<32xf32>
    %8 = vector.multi_reduction <add>, %4, %cst_8 [1] : vector<32x128xf32> to vector<32xf32>
    %9 = vector.shape_cast %8 : vector<32xf32> to vector<32x1xf32>
    %10 = arith.mulf %4, %4 : vector<32x128xf32>
    %cst_9 = arith.constant dense<0.000000e+00> : vector<32xf32>
    %11 = vector.multi_reduction <add>, %10, %cst_9 [1] : vector<32x128xf32> to vector<32xf32>
    %12 = vector.shape_cast %11 : vector<32xf32> to vector<32x1xf32>
    %c1 = arith.constant 1 : index
    %c0_10 = arith.constant 0 : index
    %c0_11 = arith.constant 0 : index
    %13 = vector.load %arg1[%c1, %c0_10, %c0_11] : memref<4x32x512xbf16, #tpu.memory_space<vmem>>, vector<1x32x512xbf16>
    %14 = vector.shape_cast %13 : vector<1x32x512xbf16> to vector<32x512xbf16>
    %c1_12 = arith.constant 1 : index
    %c0_13 = arith.constant 0 : index
    %c0_14 = arith.constant 0 : index
    %15 = vector.load %arg2[%c1_12, %c0_13, %c0_14] : memref<4x512x128xbf16, #tpu.memory_space<vmem>>, vector<1x512x128xbf16>
    %16 = vector.shape_cast %15 : vector<1x512x128xbf16> to vector<512x128xbf16>
    %cst_15 = arith.constant dense<0.000000e+00> : vector<32x128xf32>
    %17 = tpu.matmul %14, %16, %cst_15 {dimension_numbers = #tpu.dot_dimension_numbers<[1], [0], [0], [1], [0, 0, 1, 1], [], []>} : vector<32x512xbf16>, vector<512x128xbf16>, vector<32x128xf32> -> vector<32x128xf32>
    %c1_16 = arith.constant 1 : index
    %c0_17 = arith.constant 0 : index
    %c0_18 = arith.constant 0 : index
    %18 = vector.load %arg6[%c1_16, %c0_17, %c0_18] : memref<4x32x128xf32, #tpu.memory_space<vmem>>, vector<1x32x128xf32>
    %19 = vector.shape_cast %18 : vector<1x32x128xf32> to vector<32x128xf32>
    %20 = vector.shape_cast %17 : vector<32x128xf32> to vector<1x32x128xf32>
    tpu.vector_store %arg6[%c1_16, %c0_17, %c0_18], %20 {strides = array<i32>} : memref<4x32x128xf32, #tpu.memory_space<vmem>>, vector<1x32x128xf32>,
    %cst_19 = arith.constant dense<0.000000e+00> : vector<32xf32>
    %21 = vector.multi_reduction <add>, %17, %cst_19 [1] : vector<32x128xf32> to vector<32xf32>
    %22 = vector.shape_cast %21 : vector<32xf32> to vector<32x1xf32>
    %23 = arith.mulf %17, %17 : vector<32x128xf32>
    %cst_20 = arith.constant dense<0.000000e+00> : vector<32xf32>
    %24 = vector.multi_reduction <add>, %23, %cst_20 [1] : vector<32x128xf32> to vector<32xf32>
    %25 = vector.shape_cast %24 : vector<32xf32> to vector<32x1xf32>
    %26 = arith.addf %9, %22 : vector<32x1xf32>
    %27 = arith.addf %12, %25 : vector<32x1xf32>
    %c2 = arith.constant 2 : index
    %c0_21 = arith.constant 0 : index
    %c0_22 = arith.constant 0 : index
    %28 = vector.load %arg1[%c2, %c0_21, %c0_22] : memref<4x32x512xbf16, #tpu.memory_space<vmem>>, vector<1x32x512xbf16>
    %29 = vector.shape_cast %28 : vector<1x32x512xbf16> to vector<32x512xbf16>
    %c2_23 = arith.constant 2 : index
    %c0_24 = arith.constant 0 : index
    %c0_25 = arith.constant 0 : index
    %30 = vector.load %arg2[%c2_23, %c0_24, %c0_25] : memref<4x512x128xbf16, #tpu.memory_space<vmem>>, vector<1x512x128xbf16>
    %31 = vector.shape_cast %30 : vector<1x512x128xbf16> to vector<512x128xbf16>
    %cst_26 = arith.constant dense<0.000000e+00> : vector<32x128xf32>
    %32 = tpu.matmul %29, %31, %cst_26 {dimension_numbers = #tpu.dot_dimension_numbers<[1], [0], [0], [1], [0, 0, 1, 1], [], []>} : vector<32x512xbf16>, vector<512x128xbf16>, vector<32x128xf32> -> vector<32x128xf32>
    %c2_27 = arith.constant 2 : index
    %c0_28 = arith.constant 0 : index
    %c0_29 = arith.constant 0 : index
    %33 = vector.load %arg6[%c2_27, %c0_28, %c0_29] : memref<4x32x128xf32, #tpu.memory_space<vmem>>, vector<1x32x128xf32>
    %34 = vector.shape_cast %33 : vector<1x32x128xf32> to vector<32x128xf32>
    %35 = vector.shape_cast %32 : vector<32x128xf32> to vector<1x32x128xf32>
    tpu.vector_store %arg6[%c2_27, %c0_28, %c0_29], %35 {strides = array<i32>} : memref<4x32x128xf32, #tpu.memory_space<vmem>>, vector<1x32x128xf32>,
    %cst_30 = arith.constant dense<0.000000e+00> : vector<32xf32>
    %36 = vector.multi_reduction <add>, %32, %cst_30 [1] : vector<32x128xf32> to vector<32xf32>
    %37 = vector.shape_cast %36 : vector<32xf32> to vector<32x1xf32>
    %38 = arith.mulf %32, %32 : vector<32x128xf32>
    %cst_31 = arith.constant dense<0.000000e+00> : vector<32xf32>
    %39 = vector.multi_reduction <add>, %38, %cst_31 [1] : vector<32x128xf32> to vector<32xf32>
    %40 = vector.shape_cast %39 : vector<32xf32> to vector<32x1xf32>
    %41 = arith.addf %26, %37 : vector<32x1xf32>
    %42 = arith.addf %27, %40 : vector<32x1xf32>
    %c3 = arith.constant 3 : index
    %c0_32 = arith.constant 0 : index
    %c0_33 = arith.constant 0 : index
    %43 = vector.load %arg1[%c3, %c0_32, %c0_33] : memref<4x32x512xbf16, #tpu.memory_space<vmem>>, vector<1x32x512xbf16>
    %44 = vector.shape_cast %43 : vector<1x32x512xbf16> to vector<32x512xbf16>
    %c3_34 = arith.constant 3 : index
    %c0_35 = arith.constant 0 : index
    %c0_36 = arith.constant 0 : index
    %45 = vector.load %arg2[%c3_34, %c0_35, %c0_36] : memref<4x512x128xbf16, #tpu.memory_space<vmem>>, vector<1x512x128xbf16>
    %46 = vector.shape_cast %45 : vector<1x512x128xbf16> to vector<512x128xbf16>
    %cst_37 = arith.constant dense<0.000000e+00> : vector<32x128xf32>
    %47 = tpu.matmul %44, %46, %cst_37 {dimension_numbers = #tpu.dot_dimension_numbers<[1], [0], [0], [1], [0, 0, 1, 1], [], []>} : vector<32x512xbf16>, vector<512x128xbf16>, vector<32x128xf32> -> vector<32x128xf32>
    %c3_38 = arith.constant 3 : index
    %c0_39 = arith.constant 0 : index
    %c0_40 = arith.constant 0 : index
    %48 = vector.load %arg6[%c3_38, %c0_39, %c0_40] : memref<4x32x128xf32, #tpu.memory_space<vmem>>, vector<1x32x128xf32>
    %49 = vector.shape_cast %48 : vector<1x32x128xf32> to vector<32x128xf32>
    %50 = vector.shape_cast %47 : vector<32x128xf32> to vector<1x32x128xf32>
    tpu.vector_store %arg6[%c3_38, %c0_39, %c0_40], %50 {strides = array<i32>} : memref<4x32x128xf32, #tpu.memory_space<vmem>>, vector<1x32x128xf32>,
    %cst_41 = arith.constant dense<0.000000e+00> : vector<32xf32>
    %51 = vector.multi_reduction <add>, %47, %cst_41 [1] : vector<32x128xf32> to vector<32xf32>
    %52 = vector.shape_cast %51 : vector<32xf32> to vector<32x1xf32>
    %53 = arith.mulf %47, %47 : vector<32x128xf32>
    %cst_42 = arith.constant dense<0.000000e+00> : vector<32xf32>
    %54 = vector.multi_reduction <add>, %53, %cst_42 [1] : vector<32x128xf32> to vector<32xf32>
    %55 = vector.shape_cast %54 : vector<32xf32> to vector<32x1xf32>
    %56 = arith.addf %41, %52 : vector<32x1xf32>
    %57 = arith.addf %42, %55 : vector<32x1xf32>
    %cst_43 = arith.constant 7.812500e-03 : f32
    %58 = vector.broadcast %cst_43 : f32 to vector<32x1xf32>
    %59 = arith.mulf %56, %58 : vector<32x1xf32>
    %cst_44 = arith.constant 7.812500e-03 : f32
    %60 = vector.broadcast %cst_44 : f32 to vector<32x1xf32>
    %61 = arith.mulf %57, %60 : vector<32x1xf32>
    %62 = arith.mulf %59, %59 : vector<32x1xf32>
    %63 = arith.subf %61, %62 : vector<32x1xf32>
    %cst_45 = arith.constant 0.000000e+00 : f32
    %64 = vector.broadcast %cst_45 : f32 to vector<32x1xf32>
    %65 = arith.maximumf %63, %64 : vector<32x1xf32>
    %c0_46 = arith.constant 0 : index
    %c0_47 = arith.constant 0 : index
    %66 = vector.load %arg3[%c0_46, %c0_47] : memref<32x1xf32, #tpu.memory_space<vmem>>, vector<32x1xf32>
    %cst_48 = arith.constant 9.99999974E-6 : f32
    %67 = vector.broadcast %cst_48 : f32 to vector<32x1xf32>
    %68 = arith.addf %65, %67 : vector<32x1xf32>
    %69 = math.rsqrt %68 : vector<32x1xf32>
    %70 = arith.mulf %66, %69 : vector<32x1xf32>
    %c0_49 = arith.constant 0 : index
    %c0_50 = arith.constant 0 : index
    %71 = vector.load %arg4[%c0_49, %c0_50] : memref<32x1xf32, #tpu.memory_space<vmem>>, vector<32x1xf32>
    %72 = arith.mulf %59, %70 : vector<32x1xf32>
    %73 = arith.subf %71, %72 : vector<32x1xf32>
    %c0_51 = arith.constant 0 : index
    %c0_52 = arith.constant 0 : index
    %c0_53 = arith.constant 0 : index
    %74 = vector.load %arg6[%c0_51, %c0_52, %c0_53] : memref<4x32x128xf32, #tpu.memory_space<vmem>>, vector<1x32x128xf32>
    %75 = vector.shape_cast %74 : vector<1x32x128xf32> to vector<32x128xf32>
    %76 = vector.broadcast %70 : vector<32x1xf32> to vector<32x128xf32>
    %77 = arith.mulf %75, %76 : vector<32x128xf32>
    %78 = vector.broadcast %73 : vector<32x1xf32> to vector<32x128xf32>
    %79 = arith.addf %77, %78 : vector<32x128xf32>
    %cst_54 = arith.constant 0.000000e+00 : f32
    %80 = vector.broadcast %cst_54 : f32 to vector<32x128xf32>
    %81 = arith.maximumf %79, %80 : vector<32x128xf32>
    %82 = arith.truncf %81 : vector<32x128xf32> to vector<32x128xbf16>
    %c0_55 = arith.constant 0 : index
    %c0_56 = arith.constant 0 : index
    %c0_57 = arith.constant 0 : index
    %83 = vector.load %arg5[%c0_55, %c0_56, %c0_57] : memref<4x32x128xbf16, #tpu.memory_space<vmem>>, vector<1x32x128xbf16>
    %84 = vector.shape_cast %83 : vector<1x32x128xbf16> to vector<32x128xbf16>
    %85 = vector.shape_cast %82 : vector<32x128xbf16> to vector<1x32x128xbf16>
    tpu.vector_store %arg5[%c0_55, %c0_56, %c0_57], %85 {strides = array<i32>} : memref<4x32x128xbf16, #tpu.memory_space<vmem>>, vector<1x32x128xbf16>,
    %c1_58 = arith.constant 1 : index
    %c0_59 = arith.constant 0 : index
    %c0_60 = arith.constant 0 : index
    %86 = vector.load %arg6[%c1_58, %c0_59, %c0_60] : memref<4x32x128xf32, #tpu.memory_space<vmem>>, vector<1x32x128xf32>
    %87 = vector.shape_cast %86 : vector<1x32x128xf32> to vector<32x128xf32>
    %88 = vector.broadcast %70 : vector<32x1xf32> to vector<32x128xf32>
    %89 = arith.mulf %87, %88 : vector<32x128xf32>
    %90 = vector.broadcast %73 : vector<32x1xf32> to vector<32x128xf32>
    %91 = arith.addf %89, %90 : vector<32x128xf32>
    %cst_61 = arith.constant 0.000000e+00 : f32
    %92 = vector.broadcast %cst_61 : f32 to vector<32x128xf32>
    %93 = arith.maximumf %91, %92 : vector<32x128xf32>
    %94 = arith.truncf %93 : vector<32x128xf32> to vector<32x128xbf16>
    %c1_62 = arith.constant 1 : index
    %c0_63 = arith.constant 0 : index
    %c0_64 = arith.constant 0 : index
    %95 = vector.load %arg5[%c1_62, %c0_63, %c0_64] : memref<4x32x128xbf16, #tpu.memory_space<vmem>>, vector<1x32x128xbf16>
    %96 = vector.shape_cast %95 : vector<1x32x128xbf16> to vector<32x128xbf16>
    %97 = vector.shape_cast %94 : vector<32x128xbf16> to vector<1x32x128xbf16>
    tpu.vector_store %arg5[%c1_62, %c0_63, %c0_64], %97 {strides = array<i32>} : memref<4x32x128xbf16, #tpu.memory_space<vmem>>, vector<1x32x128xbf16>,
    %c2_65 = arith.constant 2 : index
    %c0_66 = arith.constant 0 : index
    %c0_67 = arith.constant 0 : index
    %98 = vector.load %arg6[%c2_65, %c0_66, %c0_67] : memref<4x32x128xf32, #tpu.memory_space<vmem>>, vector<1x32x128xf32>
    %99 = vector.shape_cast %98 : vector<1x32x128xf32> to vector<32x128xf32>
    %100 = vector.broadcast %70 : vector<32x1xf32> to vector<32x128xf32>
    %101 = arith.mulf %99, %100 : vector<32x128xf32>
    %102 = vector.broadcast %73 : vector<32x1xf32> to vector<32x128xf32>
    %103 = arith.addf %101, %102 : vector<32x128xf32>
    %cst_68 = arith.constant 0.000000e+00 : f32
    %104 = vector.broadcast %cst_68 : f32 to vector<32x128xf32>
    %105 = arith.maximumf %103, %104 : vector<32x128xf32>
    %106 = arith.truncf %105 : vector<32x128xf32> to vector<32x128xbf16>
    %c2_69 = arith.constant 2 : index
    %c0_70 = arith.constant 0 : index
    %c0_71 = arith.constant 0 : index
    %107 = vector.load %arg5[%c2_69, %c0_70, %c0_71] : memref<4x32x128xbf16, #tpu.memory_space<vmem>>, vector<1x32x128xbf16>
    %108 = vector.shape_cast %107 : vector<1x32x128xbf16> to vector<32x128xbf16>
    %109 = vector.shape_cast %106 : vector<32x128xbf16> to vector<1x32x128xbf16>
    tpu.vector_store %arg5[%c2_69, %c0_70, %c0_71], %109 {strides = array<i32>} : memref<4x32x128xbf16, #tpu.memory_space<vmem>>, vector<1x32x128xbf16>,
    %c3_72 = arith.constant 3 : index
    %c0_73 = arith.constant 0 : index
    %c0_74 = arith.constant 0 : index
    %110 = vector.load %arg6[%c3_72, %c0_73, %c0_74] : memref<4x32x128xf32, #tpu.memory_space<vmem>>, vector<1x32x128xf32>
    %111 = vector.shape_cast %110 : vector<1x32x128xf32> to vector<32x128xf32>
    %112 = vector.broadcast %70 : vector<32x1xf32> to vector<32x128xf32>
    %113 = arith.mulf %111, %112 : vector<32x128xf32>
    %114 = vector.broadcast %73 : vector<32x1xf32> to vector<32x128xf32>
    %115 = arith.addf %113, %114 : vector<32x128xf32>
    %cst_75 = arith.constant 0.000000e+00 : f32
    %116 = vector.broadcast %cst_75 : f32 to vector<32x128xf32>
    %117 = arith.maximumf %115, %116 : vector<32x128xf32>
    %118 = arith.truncf %117 : vector<32x128xf32> to vector<32x128xbf16>
    %c3_76 = arith.constant 3 : index
    %c0_77 = arith.constant 0 : index
    %c0_78 = arith.constant 0 : index
    %119 = vector.load %arg5[%c3_76, %c0_77, %c0_78] : memref<4x32x128xbf16, #tpu.memory_space<vmem>>, vector<1x32x128xbf16>
    %120 = vector.shape_cast %119 : vector<1x32x128xbf16> to vector<32x128xbf16>
    %121 = vector.shape_cast %118 : vector<32x128xbf16> to vector<1x32x128xbf16>
    tpu.vector_store %arg5[%c3_76, %c0_77, %c0_78], %121 {strides = array<i32>} : memref<4x32x128xbf16, #tpu.memory_space<vmem>>, vector<1x32x128xbf16>,
    return
  }
  func.func @transform_0(%arg0: i32) -> (i32, i32, i32) {
    %c0_i32 = arith.constant 0 : i32
    %c0_i32_0 = arith.constant 0 : i32
    %c0_i32_1 = arith.constant 0 : i32
    return %c0_i32, %arg0, %c0_i32_0 : i32, i32, i32
  }
  func.func @transform_1(%arg0: i32) -> (i32, i32, i32) {
    %c0_i32 = arith.constant 0 : i32
    %c0_i32_0 = arith.constant 0 : i32
    %c0_i32_1 = arith.constant 0 : i32
    %c0_i32_2 = arith.constant 0 : i32
    return %c0_i32, %c0_i32_0, %c0_i32_1 : i32, i32, i32
  }
  func.func @transform_2(%arg0: i32) -> (i32, i32) {
    %c0_i32 = arith.constant 0 : i32
    %c0_i32_0 = arith.constant 0 : i32
    return %arg0, %c0_i32 : i32, i32
  }
  func.func @transform_3(%arg0: i32) -> (i32, i32) {
    %c0_i32 = arith.constant 0 : i32
    %c0_i32_0 = arith.constant 0 : i32
    return %arg0, %c0_i32 : i32, i32
  }
  func.func @transform_4(%arg0: i32) -> (i32, i32, i32) {
    %c0_i32 = arith.constant 0 : i32
    %c0_i32_0 = arith.constant 0 : i32
    %c0_i32_1 = arith.constant 0 : i32
    return %c0_i32, %arg0, %c0_i32_0 : i32, i32, i32
  }
}

module attributes {stable_mosaic.version = 11 : i64} {
  func.func @_gemm_bn_relu_kernel(%arg0: i32, %arg1: memref<4x16x256xbf16, #tpu.memory_space<vmem>>, %arg2: memref<4x256x128xbf16, #tpu.memory_space<vmem>>, %arg3: memref<16x1xf32, #tpu.memory_space<vmem>>, %arg4: memref<16x1xf32, #tpu.memory_space<vmem>>, %arg5: memref<4x16x128xbf16, #tpu.memory_space<vmem>>, %arg6: memref<4x16x128xf32, #tpu.memory_space<vmem>>) attributes {dimension_semantics = [#tpu.dimension_semantics<parallel>], iteration_bounds = array<i64: 2>, scalar_prefetch = 0 : i64, scratch_operands = 1 : i64, tpu.core_type = #tpu.core_type<tc>, window_params = [{transform_indices = @transform_0, window_bounds = array<i64: 4, 16, 256>}, {pipeline_mode = #tpu.pipeline_mode<synchronous>, transform_indices = @transform_1, window_bounds = array<i64: 4, 256, 128>}, {transform_indices = @transform_2, window_bounds = array<i64: 16, 1>}, {transform_indices = @transform_3, window_bounds = array<i64: 16, 1>}, {transform_indices = @transform_4, window_bounds = array<i64: 4, 16, 128>}]} {
    %c0 = arith.constant 0 : index
    %c0_0 = arith.constant 0 : index
    %c0_1 = arith.constant 0 : index
    %0 = vector.load %arg1[%c0, %c0_0, %c0_1] : memref<4x16x256xbf16, #tpu.memory_space<vmem>>, vector<1x16x256xbf16>
    %1 = vector.shape_cast %0 : vector<1x16x256xbf16> to vector<16x256xbf16>
    %c0_2 = arith.constant 0 : index
    %c0_3 = arith.constant 0 : index
    %c0_4 = arith.constant 0 : index
    %2 = vector.load %arg2[%c0_2, %c0_3, %c0_4] : memref<4x256x128xbf16, #tpu.memory_space<vmem>>, vector<1x256x128xbf16>
    %3 = vector.shape_cast %2 : vector<1x256x128xbf16> to vector<256x128xbf16>
    %cst = arith.constant dense<0.000000e+00> : vector<16x128xf32>
    %4 = tpu.matmul %1, %3, %cst {dimension_numbers = #tpu.dot_dimension_numbers<[1], [0], [0], [1], [0, 0, 1, 1], [], []>} : vector<16x256xbf16>, vector<256x128xbf16>, vector<16x128xf32> -> vector<16x128xf32>
    %c0_5 = arith.constant 0 : index
    %c0_6 = arith.constant 0 : index
    %c0_7 = arith.constant 0 : index
    %5 = vector.load %arg6[%c0_5, %c0_6, %c0_7] : memref<4x16x128xf32, #tpu.memory_space<vmem>>, vector<1x16x128xf32>
    %6 = vector.shape_cast %5 : vector<1x16x128xf32> to vector<16x128xf32>
    %7 = vector.shape_cast %4 : vector<16x128xf32> to vector<1x16x128xf32>
    tpu.vector_store %arg6[%c0_5, %c0_6, %c0_7], %7 {strides = array<i32>} : memref<4x16x128xf32, #tpu.memory_space<vmem>>, vector<1x16x128xf32>,
    %cst_8 = arith.constant dense<0.000000e+00> : vector<16xf32>
    %8 = vector.multi_reduction <add>, %4, %cst_8 [1] : vector<16x128xf32> to vector<16xf32>
    %9 = vector.shape_cast %8 : vector<16xf32> to vector<16x1xf32>
    %10 = arith.mulf %4, %4 : vector<16x128xf32>
    %cst_9 = arith.constant dense<0.000000e+00> : vector<16xf32>
    %11 = vector.multi_reduction <add>, %10, %cst_9 [1] : vector<16x128xf32> to vector<16xf32>
    %12 = vector.shape_cast %11 : vector<16xf32> to vector<16x1xf32>
    %c1 = arith.constant 1 : index
    %c0_10 = arith.constant 0 : index
    %c0_11 = arith.constant 0 : index
    %13 = vector.load %arg1[%c1, %c0_10, %c0_11] : memref<4x16x256xbf16, #tpu.memory_space<vmem>>, vector<1x16x256xbf16>
    %14 = vector.shape_cast %13 : vector<1x16x256xbf16> to vector<16x256xbf16>
    %c1_12 = arith.constant 1 : index
    %c0_13 = arith.constant 0 : index
    %c0_14 = arith.constant 0 : index
    %15 = vector.load %arg2[%c1_12, %c0_13, %c0_14] : memref<4x256x128xbf16, #tpu.memory_space<vmem>>, vector<1x256x128xbf16>
    %16 = vector.shape_cast %15 : vector<1x256x128xbf16> to vector<256x128xbf16>
    %cst_15 = arith.constant dense<0.000000e+00> : vector<16x128xf32>
    %17 = tpu.matmul %14, %16, %cst_15 {dimension_numbers = #tpu.dot_dimension_numbers<[1], [0], [0], [1], [0, 0, 1, 1], [], []>} : vector<16x256xbf16>, vector<256x128xbf16>, vector<16x128xf32> -> vector<16x128xf32>
    %c1_16 = arith.constant 1 : index
    %c0_17 = arith.constant 0 : index
    %c0_18 = arith.constant 0 : index
    %18 = vector.load %arg6[%c1_16, %c0_17, %c0_18] : memref<4x16x128xf32, #tpu.memory_space<vmem>>, vector<1x16x128xf32>
    %19 = vector.shape_cast %18 : vector<1x16x128xf32> to vector<16x128xf32>
    %20 = vector.shape_cast %17 : vector<16x128xf32> to vector<1x16x128xf32>
    tpu.vector_store %arg6[%c1_16, %c0_17, %c0_18], %20 {strides = array<i32>} : memref<4x16x128xf32, #tpu.memory_space<vmem>>, vector<1x16x128xf32>,
    %cst_19 = arith.constant dense<0.000000e+00> : vector<16xf32>
    %21 = vector.multi_reduction <add>, %17, %cst_19 [1] : vector<16x128xf32> to vector<16xf32>
    %22 = vector.shape_cast %21 : vector<16xf32> to vector<16x1xf32>
    %23 = arith.mulf %17, %17 : vector<16x128xf32>
    %cst_20 = arith.constant dense<0.000000e+00> : vector<16xf32>
    %24 = vector.multi_reduction <add>, %23, %cst_20 [1] : vector<16x128xf32> to vector<16xf32>
    %25 = vector.shape_cast %24 : vector<16xf32> to vector<16x1xf32>
    %26 = arith.addf %9, %22 : vector<16x1xf32>
    %27 = arith.addf %12, %25 : vector<16x1xf32>
    %c2 = arith.constant 2 : index
    %c0_21 = arith.constant 0 : index
    %c0_22 = arith.constant 0 : index
    %28 = vector.load %arg1[%c2, %c0_21, %c0_22] : memref<4x16x256xbf16, #tpu.memory_space<vmem>>, vector<1x16x256xbf16>
    %29 = vector.shape_cast %28 : vector<1x16x256xbf16> to vector<16x256xbf16>
    %c2_23 = arith.constant 2 : index
    %c0_24 = arith.constant 0 : index
    %c0_25 = arith.constant 0 : index
    %30 = vector.load %arg2[%c2_23, %c0_24, %c0_25] : memref<4x256x128xbf16, #tpu.memory_space<vmem>>, vector<1x256x128xbf16>
    %31 = vector.shape_cast %30 : vector<1x256x128xbf16> to vector<256x128xbf16>
    %cst_26 = arith.constant dense<0.000000e+00> : vector<16x128xf32>
    %32 = tpu.matmul %29, %31, %cst_26 {dimension_numbers = #tpu.dot_dimension_numbers<[1], [0], [0], [1], [0, 0, 1, 1], [], []>} : vector<16x256xbf16>, vector<256x128xbf16>, vector<16x128xf32> -> vector<16x128xf32>
    %c2_27 = arith.constant 2 : index
    %c0_28 = arith.constant 0 : index
    %c0_29 = arith.constant 0 : index
    %33 = vector.load %arg6[%c2_27, %c0_28, %c0_29] : memref<4x16x128xf32, #tpu.memory_space<vmem>>, vector<1x16x128xf32>
    %34 = vector.shape_cast %33 : vector<1x16x128xf32> to vector<16x128xf32>
    %35 = vector.shape_cast %32 : vector<16x128xf32> to vector<1x16x128xf32>
    tpu.vector_store %arg6[%c2_27, %c0_28, %c0_29], %35 {strides = array<i32>} : memref<4x16x128xf32, #tpu.memory_space<vmem>>, vector<1x16x128xf32>,
    %cst_30 = arith.constant dense<0.000000e+00> : vector<16xf32>
    %36 = vector.multi_reduction <add>, %32, %cst_30 [1] : vector<16x128xf32> to vector<16xf32>
    %37 = vector.shape_cast %36 : vector<16xf32> to vector<16x1xf32>
    %38 = arith.mulf %32, %32 : vector<16x128xf32>
    %cst_31 = arith.constant dense<0.000000e+00> : vector<16xf32>
    %39 = vector.multi_reduction <add>, %38, %cst_31 [1] : vector<16x128xf32> to vector<16xf32>
    %40 = vector.shape_cast %39 : vector<16xf32> to vector<16x1xf32>
    %41 = arith.addf %26, %37 : vector<16x1xf32>
    %42 = arith.addf %27, %40 : vector<16x1xf32>
    %c3 = arith.constant 3 : index
    %c0_32 = arith.constant 0 : index
    %c0_33 = arith.constant 0 : index
    %43 = vector.load %arg1[%c3, %c0_32, %c0_33] : memref<4x16x256xbf16, #tpu.memory_space<vmem>>, vector<1x16x256xbf16>
    %44 = vector.shape_cast %43 : vector<1x16x256xbf16> to vector<16x256xbf16>
    %c3_34 = arith.constant 3 : index
    %c0_35 = arith.constant 0 : index
    %c0_36 = arith.constant 0 : index
    %45 = vector.load %arg2[%c3_34, %c0_35, %c0_36] : memref<4x256x128xbf16, #tpu.memory_space<vmem>>, vector<1x256x128xbf16>
    %46 = vector.shape_cast %45 : vector<1x256x128xbf16> to vector<256x128xbf16>
    %cst_37 = arith.constant dense<0.000000e+00> : vector<16x128xf32>
    %47 = tpu.matmul %44, %46, %cst_37 {dimension_numbers = #tpu.dot_dimension_numbers<[1], [0], [0], [1], [0, 0, 1, 1], [], []>} : vector<16x256xbf16>, vector<256x128xbf16>, vector<16x128xf32> -> vector<16x128xf32>
    %c3_38 = arith.constant 3 : index
    %c0_39 = arith.constant 0 : index
    %c0_40 = arith.constant 0 : index
    %48 = vector.load %arg6[%c3_38, %c0_39, %c0_40] : memref<4x16x128xf32, #tpu.memory_space<vmem>>, vector<1x16x128xf32>
    %49 = vector.shape_cast %48 : vector<1x16x128xf32> to vector<16x128xf32>
    %50 = vector.shape_cast %47 : vector<16x128xf32> to vector<1x16x128xf32>
    tpu.vector_store %arg6[%c3_38, %c0_39, %c0_40], %50 {strides = array<i32>} : memref<4x16x128xf32, #tpu.memory_space<vmem>>, vector<1x16x128xf32>,
    %cst_41 = arith.constant dense<0.000000e+00> : vector<16xf32>
    %51 = vector.multi_reduction <add>, %47, %cst_41 [1] : vector<16x128xf32> to vector<16xf32>
    %52 = vector.shape_cast %51 : vector<16xf32> to vector<16x1xf32>
    %53 = arith.mulf %47, %47 : vector<16x128xf32>
    %cst_42 = arith.constant dense<0.000000e+00> : vector<16xf32>
    %54 = vector.multi_reduction <add>, %53, %cst_42 [1] : vector<16x128xf32> to vector<16xf32>
    %55 = vector.shape_cast %54 : vector<16xf32> to vector<16x1xf32>
    %56 = arith.addf %41, %52 : vector<16x1xf32>
    %57 = arith.addf %42, %55 : vector<16x1xf32>
    %cst_43 = arith.constant 0.001953125 : f32
    %58 = vector.broadcast %cst_43 : f32 to vector<16x1xf32>
    %59 = arith.mulf %56, %58 : vector<16x1xf32>
    %cst_44 = arith.constant 0.001953125 : f32
    %60 = vector.broadcast %cst_44 : f32 to vector<16x1xf32>
    %61 = arith.mulf %57, %60 : vector<16x1xf32>
    %62 = arith.mulf %59, %59 : vector<16x1xf32>
    %63 = arith.subf %61, %62 : vector<16x1xf32>
    %cst_45 = arith.constant 0.000000e+00 : f32
    %64 = vector.broadcast %cst_45 : f32 to vector<16x1xf32>
    %65 = arith.maximumf %63, %64 : vector<16x1xf32>
    %c0_46 = arith.constant 0 : index
    %c0_47 = arith.constant 0 : index
    %66 = vector.load %arg3[%c0_46, %c0_47] : memref<16x1xf32, #tpu.memory_space<vmem>>, vector<16x1xf32>
    %cst_48 = arith.constant 9.99999974E-6 : f32
    %67 = vector.broadcast %cst_48 : f32 to vector<16x1xf32>
    %68 = arith.addf %65, %67 : vector<16x1xf32>
    %69 = math.rsqrt %68 : vector<16x1xf32>
    %70 = arith.mulf %66, %69 : vector<16x1xf32>
    %c0_49 = arith.constant 0 : index
    %c0_50 = arith.constant 0 : index
    %71 = vector.load %arg4[%c0_49, %c0_50] : memref<16x1xf32, #tpu.memory_space<vmem>>, vector<16x1xf32>
    %72 = arith.mulf %59, %70 : vector<16x1xf32>
    %73 = arith.subf %71, %72 : vector<16x1xf32>
    %c0_51 = arith.constant 0 : index
    %c0_52 = arith.constant 0 : index
    %c0_53 = arith.constant 0 : index
    %74 = vector.load %arg6[%c0_51, %c0_52, %c0_53] : memref<4x16x128xf32, #tpu.memory_space<vmem>>, vector<1x16x128xf32>
    %75 = vector.shape_cast %74 : vector<1x16x128xf32> to vector<16x128xf32>
    %76 = vector.broadcast %70 : vector<16x1xf32> to vector<16x128xf32>
    %77 = arith.mulf %75, %76 : vector<16x128xf32>
    %78 = vector.broadcast %73 : vector<16x1xf32> to vector<16x128xf32>
    %79 = arith.addf %77, %78 : vector<16x128xf32>
    %cst_54 = arith.constant 0.000000e+00 : f32
    %80 = vector.broadcast %cst_54 : f32 to vector<16x128xf32>
    %81 = arith.maximumf %79, %80 : vector<16x128xf32>
    %82 = arith.truncf %81 : vector<16x128xf32> to vector<16x128xbf16>
    %c0_55 = arith.constant 0 : index
    %c0_56 = arith.constant 0 : index
    %c0_57 = arith.constant 0 : index
    %83 = vector.load %arg5[%c0_55, %c0_56, %c0_57] : memref<4x16x128xbf16, #tpu.memory_space<vmem>>, vector<1x16x128xbf16>
    %84 = vector.shape_cast %83 : vector<1x16x128xbf16> to vector<16x128xbf16>
    %85 = vector.shape_cast %82 : vector<16x128xbf16> to vector<1x16x128xbf16>
    tpu.vector_store %arg5[%c0_55, %c0_56, %c0_57], %85 {strides = array<i32>} : memref<4x16x128xbf16, #tpu.memory_space<vmem>>, vector<1x16x128xbf16>,
    %c1_58 = arith.constant 1 : index
    %c0_59 = arith.constant 0 : index
    %c0_60 = arith.constant 0 : index
    %86 = vector.load %arg6[%c1_58, %c0_59, %c0_60] : memref<4x16x128xf32, #tpu.memory_space<vmem>>, vector<1x16x128xf32>
    %87 = vector.shape_cast %86 : vector<1x16x128xf32> to vector<16x128xf32>
    %88 = vector.broadcast %70 : vector<16x1xf32> to vector<16x128xf32>
    %89 = arith.mulf %87, %88 : vector<16x128xf32>
    %90 = vector.broadcast %73 : vector<16x1xf32> to vector<16x128xf32>
    %91 = arith.addf %89, %90 : vector<16x128xf32>
    %cst_61 = arith.constant 0.000000e+00 : f32
    %92 = vector.broadcast %cst_61 : f32 to vector<16x128xf32>
    %93 = arith.maximumf %91, %92 : vector<16x128xf32>
    %94 = arith.truncf %93 : vector<16x128xf32> to vector<16x128xbf16>
    %c1_62 = arith.constant 1 : index
    %c0_63 = arith.constant 0 : index
    %c0_64 = arith.constant 0 : index
    %95 = vector.load %arg5[%c1_62, %c0_63, %c0_64] : memref<4x16x128xbf16, #tpu.memory_space<vmem>>, vector<1x16x128xbf16>
    %96 = vector.shape_cast %95 : vector<1x16x128xbf16> to vector<16x128xbf16>
    %97 = vector.shape_cast %94 : vector<16x128xbf16> to vector<1x16x128xbf16>
    tpu.vector_store %arg5[%c1_62, %c0_63, %c0_64], %97 {strides = array<i32>} : memref<4x16x128xbf16, #tpu.memory_space<vmem>>, vector<1x16x128xbf16>,
    %c2_65 = arith.constant 2 : index
    %c0_66 = arith.constant 0 : index
    %c0_67 = arith.constant 0 : index
    %98 = vector.load %arg6[%c2_65, %c0_66, %c0_67] : memref<4x16x128xf32, #tpu.memory_space<vmem>>, vector<1x16x128xf32>
    %99 = vector.shape_cast %98 : vector<1x16x128xf32> to vector<16x128xf32>
    %100 = vector.broadcast %70 : vector<16x1xf32> to vector<16x128xf32>
    %101 = arith.mulf %99, %100 : vector<16x128xf32>
    %102 = vector.broadcast %73 : vector<16x1xf32> to vector<16x128xf32>
    %103 = arith.addf %101, %102 : vector<16x128xf32>
    %cst_68 = arith.constant 0.000000e+00 : f32
    %104 = vector.broadcast %cst_68 : f32 to vector<16x128xf32>
    %105 = arith.maximumf %103, %104 : vector<16x128xf32>
    %106 = arith.truncf %105 : vector<16x128xf32> to vector<16x128xbf16>
    %c2_69 = arith.constant 2 : index
    %c0_70 = arith.constant 0 : index
    %c0_71 = arith.constant 0 : index
    %107 = vector.load %arg5[%c2_69, %c0_70, %c0_71] : memref<4x16x128xbf16, #tpu.memory_space<vmem>>, vector<1x16x128xbf16>
    %108 = vector.shape_cast %107 : vector<1x16x128xbf16> to vector<16x128xbf16>
    %109 = vector.shape_cast %106 : vector<16x128xbf16> to vector<1x16x128xbf16>
    tpu.vector_store %arg5[%c2_69, %c0_70, %c0_71], %109 {strides = array<i32>} : memref<4x16x128xbf16, #tpu.memory_space<vmem>>, vector<1x16x128xbf16>,
    %c3_72 = arith.constant 3 : index
    %c0_73 = arith.constant 0 : index
    %c0_74 = arith.constant 0 : index
    %110 = vector.load %arg6[%c3_72, %c0_73, %c0_74] : memref<4x16x128xf32, #tpu.memory_space<vmem>>, vector<1x16x128xf32>
    %111 = vector.shape_cast %110 : vector<1x16x128xf32> to vector<16x128xf32>
    %112 = vector.broadcast %70 : vector<16x1xf32> to vector<16x128xf32>
    %113 = arith.mulf %111, %112 : vector<16x128xf32>
    %114 = vector.broadcast %73 : vector<16x1xf32> to vector<16x128xf32>
    %115 = arith.addf %113, %114 : vector<16x128xf32>
    %cst_75 = arith.constant 0.000000e+00 : f32
    %116 = vector.broadcast %cst_75 : f32 to vector<16x128xf32>
    %117 = arith.maximumf %115, %116 : vector<16x128xf32>
    %118 = arith.truncf %117 : vector<16x128xf32> to vector<16x128xbf16>
    %c3_76 = arith.constant 3 : index
    %c0_77 = arith.constant 0 : index
    %c0_78 = arith.constant 0 : index
    %119 = vector.load %arg5[%c3_76, %c0_77, %c0_78] : memref<4x16x128xbf16, #tpu.memory_space<vmem>>, vector<1x16x128xbf16>
    %120 = vector.shape_cast %119 : vector<1x16x128xbf16> to vector<16x128xbf16>
    %121 = vector.shape_cast %118 : vector<16x128xbf16> to vector<1x16x128xbf16>
    tpu.vector_store %arg5[%c3_76, %c0_77, %c0_78], %121 {strides = array<i32>} : memref<4x16x128xbf16, #tpu.memory_space<vmem>>, vector<1x16x128xbf16>,
    return
  }
  func.func @transform_0(%arg0: i32) -> (i32, i32, i32) {
    %c0_i32 = arith.constant 0 : i32
    %c0_i32_0 = arith.constant 0 : i32
    %c0_i32_1 = arith.constant 0 : i32
    return %c0_i32, %arg0, %c0_i32_0 : i32, i32, i32
  }
  func.func @transform_1(%arg0: i32) -> (i32, i32, i32) {
    %c0_i32 = arith.constant 0 : i32
    %c0_i32_0 = arith.constant 0 : i32
    %c0_i32_1 = arith.constant 0 : i32
    %c0_i32_2 = arith.constant 0 : i32
    return %c0_i32, %c0_i32_0, %c0_i32_1 : i32, i32, i32
  }
  func.func @transform_2(%arg0: i32) -> (i32, i32) {
    %c0_i32 = arith.constant 0 : i32
    %c0_i32_0 = arith.constant 0 : i32
    return %arg0, %c0_i32 : i32, i32
  }
  func.func @transform_3(%arg0: i32) -> (i32, i32) {
    %c0_i32 = arith.constant 0 : i32
    %c0_i32_0 = arith.constant 0 : i32
    return %arg0, %c0_i32 : i32, i32
  }
  func.func @transform_4(%arg0: i32) -> (i32, i32, i32) {
    %c0_i32 = arith.constant 0 : i32
    %c0_i32_0 = arith.constant 0 : i32
    %c0_i32_1 = arith.constant 0 : i32
    return %c0_i32, %arg0, %c0_i32_0 : i32, i32, i32
  }
}

module attributes {stable_mosaic.version = 11 : i64} {
  func.func @_gemm_bn_relu_kernel(%arg0: i32, %arg1: memref<4x8x128xbf16, #tpu.memory_space<vmem>>, %arg2: memref<4x128x512xbf16, #tpu.memory_space<vmem>>, %arg3: memref<8x1xf32, #tpu.memory_space<vmem>>, %arg4: memref<8x1xf32, #tpu.memory_space<vmem>>, %arg5: memref<4x8x512xbf16, #tpu.memory_space<vmem>>, %arg6: memref<4x8x512xf32, #tpu.memory_space<vmem>>) attributes {dimension_semantics = [#tpu.dimension_semantics<parallel>], iteration_bounds = array<i64: 2>, scalar_prefetch = 0 : i64, scratch_operands = 1 : i64, tpu.core_type = #tpu.core_type<tc>, window_params = [{transform_indices = @transform_0, window_bounds = array<i64: 4, 8, 128>}, {pipeline_mode = #tpu.pipeline_mode<synchronous>, transform_indices = @transform_1, window_bounds = array<i64: 4, 128, 512>}, {transform_indices = @transform_2, window_bounds = array<i64: 8, 1>}, {transform_indices = @transform_3, window_bounds = array<i64: 8, 1>}, {transform_indices = @transform_4, window_bounds = array<i64: 4, 8, 512>}]} {
    %c0 = arith.constant 0 : index
    %c0_0 = arith.constant 0 : index
    %c0_1 = arith.constant 0 : index
    %0 = vector.load %arg1[%c0, %c0_0, %c0_1] : memref<4x8x128xbf16, #tpu.memory_space<vmem>>, vector<1x8x128xbf16>
    %1 = vector.shape_cast %0 : vector<1x8x128xbf16> to vector<8x128xbf16>
    %c0_2 = arith.constant 0 : index
    %c0_3 = arith.constant 0 : index
    %c0_4 = arith.constant 0 : index
    %2 = vector.load %arg2[%c0_2, %c0_3, %c0_4] : memref<4x128x512xbf16, #tpu.memory_space<vmem>>, vector<1x128x512xbf16>
    %3 = vector.shape_cast %2 : vector<1x128x512xbf16> to vector<128x512xbf16>
    %cst = arith.constant dense<0.000000e+00> : vector<8x512xf32>
    %4 = tpu.matmul %1, %3, %cst {dimension_numbers = #tpu.dot_dimension_numbers<[1], [0], [0], [1], [0, 0, 1, 1], [], []>} : vector<8x128xbf16>, vector<128x512xbf16>, vector<8x512xf32> -> vector<8x512xf32>
    %c0_5 = arith.constant 0 : index
    %c0_6 = arith.constant 0 : index
    %c0_7 = arith.constant 0 : index
    %5 = vector.load %arg6[%c0_5, %c0_6, %c0_7] : memref<4x8x512xf32, #tpu.memory_space<vmem>>, vector<1x8x512xf32>
    %6 = vector.shape_cast %5 : vector<1x8x512xf32> to vector<8x512xf32>
    %7 = vector.shape_cast %4 : vector<8x512xf32> to vector<1x8x512xf32>
    tpu.vector_store %arg6[%c0_5, %c0_6, %c0_7], %7 {strides = array<i32>} : memref<4x8x512xf32, #tpu.memory_space<vmem>>, vector<1x8x512xf32>,
    %cst_8 = arith.constant dense<0.000000e+00> : vector<8xf32>
    %8 = vector.multi_reduction <add>, %4, %cst_8 [1] : vector<8x512xf32> to vector<8xf32>
    %9 = vector.shape_cast %8 : vector<8xf32> to vector<8x1xf32>
    %10 = arith.mulf %4, %4 : vector<8x512xf32>
    %cst_9 = arith.constant dense<0.000000e+00> : vector<8xf32>
    %11 = vector.multi_reduction <add>, %10, %cst_9 [1] : vector<8x512xf32> to vector<8xf32>
    %12 = vector.shape_cast %11 : vector<8xf32> to vector<8x1xf32>
    %c1 = arith.constant 1 : index
    %c0_10 = arith.constant 0 : index
    %c0_11 = arith.constant 0 : index
    %13 = vector.load %arg1[%c1, %c0_10, %c0_11] : memref<4x8x128xbf16, #tpu.memory_space<vmem>>, vector<1x8x128xbf16>
    %14 = vector.shape_cast %13 : vector<1x8x128xbf16> to vector<8x128xbf16>
    %c1_12 = arith.constant 1 : index
    %c0_13 = arith.constant 0 : index
    %c0_14 = arith.constant 0 : index
    %15 = vector.load %arg2[%c1_12, %c0_13, %c0_14] : memref<4x128x512xbf16, #tpu.memory_space<vmem>>, vector<1x128x512xbf16>
    %16 = vector.shape_cast %15 : vector<1x128x512xbf16> to vector<128x512xbf16>
    %cst_15 = arith.constant dense<0.000000e+00> : vector<8x512xf32>
    %17 = tpu.matmul %14, %16, %cst_15 {dimension_numbers = #tpu.dot_dimension_numbers<[1], [0], [0], [1], [0, 0, 1, 1], [], []>} : vector<8x128xbf16>, vector<128x512xbf16>, vector<8x512xf32> -> vector<8x512xf32>
    %c1_16 = arith.constant 1 : index
    %c0_17 = arith.constant 0 : index
    %c0_18 = arith.constant 0 : index
    %18 = vector.load %arg6[%c1_16, %c0_17, %c0_18] : memref<4x8x512xf32, #tpu.memory_space<vmem>>, vector<1x8x512xf32>
    %19 = vector.shape_cast %18 : vector<1x8x512xf32> to vector<8x512xf32>
    %20 = vector.shape_cast %17 : vector<8x512xf32> to vector<1x8x512xf32>
    tpu.vector_store %arg6[%c1_16, %c0_17, %c0_18], %20 {strides = array<i32>} : memref<4x8x512xf32, #tpu.memory_space<vmem>>, vector<1x8x512xf32>,
    %cst_19 = arith.constant dense<0.000000e+00> : vector<8xf32>
    %21 = vector.multi_reduction <add>, %17, %cst_19 [1] : vector<8x512xf32> to vector<8xf32>
    %22 = vector.shape_cast %21 : vector<8xf32> to vector<8x1xf32>
    %23 = arith.mulf %17, %17 : vector<8x512xf32>
    %cst_20 = arith.constant dense<0.000000e+00> : vector<8xf32>
    %24 = vector.multi_reduction <add>, %23, %cst_20 [1] : vector<8x512xf32> to vector<8xf32>
    %25 = vector.shape_cast %24 : vector<8xf32> to vector<8x1xf32>
    %26 = arith.addf %9, %22 : vector<8x1xf32>
    %27 = arith.addf %12, %25 : vector<8x1xf32>
    %c2 = arith.constant 2 : index
    %c0_21 = arith.constant 0 : index
    %c0_22 = arith.constant 0 : index
    %28 = vector.load %arg1[%c2, %c0_21, %c0_22] : memref<4x8x128xbf16, #tpu.memory_space<vmem>>, vector<1x8x128xbf16>
    %29 = vector.shape_cast %28 : vector<1x8x128xbf16> to vector<8x128xbf16>
    %c2_23 = arith.constant 2 : index
    %c0_24 = arith.constant 0 : index
    %c0_25 = arith.constant 0 : index
    %30 = vector.load %arg2[%c2_23, %c0_24, %c0_25] : memref<4x128x512xbf16, #tpu.memory_space<vmem>>, vector<1x128x512xbf16>
    %31 = vector.shape_cast %30 : vector<1x128x512xbf16> to vector<128x512xbf16>
    %cst_26 = arith.constant dense<0.000000e+00> : vector<8x512xf32>
    %32 = tpu.matmul %29, %31, %cst_26 {dimension_numbers = #tpu.dot_dimension_numbers<[1], [0], [0], [1], [0, 0, 1, 1], [], []>} : vector<8x128xbf16>, vector<128x512xbf16>, vector<8x512xf32> -> vector<8x512xf32>
    %c2_27 = arith.constant 2 : index
    %c0_28 = arith.constant 0 : index
    %c0_29 = arith.constant 0 : index
    %33 = vector.load %arg6[%c2_27, %c0_28, %c0_29] : memref<4x8x512xf32, #tpu.memory_space<vmem>>, vector<1x8x512xf32>
    %34 = vector.shape_cast %33 : vector<1x8x512xf32> to vector<8x512xf32>
    %35 = vector.shape_cast %32 : vector<8x512xf32> to vector<1x8x512xf32>
    tpu.vector_store %arg6[%c2_27, %c0_28, %c0_29], %35 {strides = array<i32>} : memref<4x8x512xf32, #tpu.memory_space<vmem>>, vector<1x8x512xf32>,
    %cst_30 = arith.constant dense<0.000000e+00> : vector<8xf32>
    %36 = vector.multi_reduction <add>, %32, %cst_30 [1] : vector<8x512xf32> to vector<8xf32>
    %37 = vector.shape_cast %36 : vector<8xf32> to vector<8x1xf32>
    %38 = arith.mulf %32, %32 : vector<8x512xf32>
    %cst_31 = arith.constant dense<0.000000e+00> : vector<8xf32>
    %39 = vector.multi_reduction <add>, %38, %cst_31 [1] : vector<8x512xf32> to vector<8xf32>
    %40 = vector.shape_cast %39 : vector<8xf32> to vector<8x1xf32>
    %41 = arith.addf %26, %37 : vector<8x1xf32>
    %42 = arith.addf %27, %40 : vector<8x1xf32>
    %c3 = arith.constant 3 : index
    %c0_32 = arith.constant 0 : index
    %c0_33 = arith.constant 0 : index
    %43 = vector.load %arg1[%c3, %c0_32, %c0_33] : memref<4x8x128xbf16, #tpu.memory_space<vmem>>, vector<1x8x128xbf16>
    %44 = vector.shape_cast %43 : vector<1x8x128xbf16> to vector<8x128xbf16>
    %c3_34 = arith.constant 3 : index
    %c0_35 = arith.constant 0 : index
    %c0_36 = arith.constant 0 : index
    %45 = vector.load %arg2[%c3_34, %c0_35, %c0_36] : memref<4x128x512xbf16, #tpu.memory_space<vmem>>, vector<1x128x512xbf16>
    %46 = vector.shape_cast %45 : vector<1x128x512xbf16> to vector<128x512xbf16>
    %cst_37 = arith.constant dense<0.000000e+00> : vector<8x512xf32>
    %47 = tpu.matmul %44, %46, %cst_37 {dimension_numbers = #tpu.dot_dimension_numbers<[1], [0], [0], [1], [0, 0, 1, 1], [], []>} : vector<8x128xbf16>, vector<128x512xbf16>, vector<8x512xf32> -> vector<8x512xf32>
    %c3_38 = arith.constant 3 : index
    %c0_39 = arith.constant 0 : index
    %c0_40 = arith.constant 0 : index
    %48 = vector.load %arg6[%c3_38, %c0_39, %c0_40] : memref<4x8x512xf32, #tpu.memory_space<vmem>>, vector<1x8x512xf32>
    %49 = vector.shape_cast %48 : vector<1x8x512xf32> to vector<8x512xf32>
    %50 = vector.shape_cast %47 : vector<8x512xf32> to vector<1x8x512xf32>
    tpu.vector_store %arg6[%c3_38, %c0_39, %c0_40], %50 {strides = array<i32>} : memref<4x8x512xf32, #tpu.memory_space<vmem>>, vector<1x8x512xf32>,
    %cst_41 = arith.constant dense<0.000000e+00> : vector<8xf32>
    %51 = vector.multi_reduction <add>, %47, %cst_41 [1] : vector<8x512xf32> to vector<8xf32>
    %52 = vector.shape_cast %51 : vector<8xf32> to vector<8x1xf32>
    %53 = arith.mulf %47, %47 : vector<8x512xf32>
    %cst_42 = arith.constant dense<0.000000e+00> : vector<8xf32>
    %54 = vector.multi_reduction <add>, %53, %cst_42 [1] : vector<8x512xf32> to vector<8xf32>
    %55 = vector.shape_cast %54 : vector<8xf32> to vector<8x1xf32>
    %56 = arith.addf %41, %52 : vector<8x1xf32>
    %57 = arith.addf %42, %55 : vector<8x1xf32>
    %cst_43 = arith.constant 4.8828125E-4 : f32
    %58 = vector.broadcast %cst_43 : f32 to vector<8x1xf32>
    %59 = arith.mulf %56, %58 : vector<8x1xf32>
    %cst_44 = arith.constant 4.8828125E-4 : f32
    %60 = vector.broadcast %cst_44 : f32 to vector<8x1xf32>
    %61 = arith.mulf %57, %60 : vector<8x1xf32>
    %62 = arith.mulf %59, %59 : vector<8x1xf32>
    %63 = arith.subf %61, %62 : vector<8x1xf32>
    %cst_45 = arith.constant 0.000000e+00 : f32
    %64 = vector.broadcast %cst_45 : f32 to vector<8x1xf32>
    %65 = arith.maximumf %63, %64 : vector<8x1xf32>
    %c0_46 = arith.constant 0 : index
    %c0_47 = arith.constant 0 : index
    %66 = vector.load %arg3[%c0_46, %c0_47] : memref<8x1xf32, #tpu.memory_space<vmem>>, vector<8x1xf32>
    %cst_48 = arith.constant 9.99999974E-6 : f32
    %67 = vector.broadcast %cst_48 : f32 to vector<8x1xf32>
    %68 = arith.addf %65, %67 : vector<8x1xf32>
    %69 = math.rsqrt %68 : vector<8x1xf32>
    %70 = arith.mulf %66, %69 : vector<8x1xf32>
    %c0_49 = arith.constant 0 : index
    %c0_50 = arith.constant 0 : index
    %71 = vector.load %arg4[%c0_49, %c0_50] : memref<8x1xf32, #tpu.memory_space<vmem>>, vector<8x1xf32>
    %72 = arith.mulf %59, %70 : vector<8x1xf32>
    %73 = arith.subf %71, %72 : vector<8x1xf32>
    %c0_51 = arith.constant 0 : index
    %c0_52 = arith.constant 0 : index
    %c0_53 = arith.constant 0 : index
    %74 = vector.load %arg6[%c0_51, %c0_52, %c0_53] : memref<4x8x512xf32, #tpu.memory_space<vmem>>, vector<1x8x512xf32>
    %75 = vector.shape_cast %74 : vector<1x8x512xf32> to vector<8x512xf32>
    %76 = vector.broadcast %70 : vector<8x1xf32> to vector<8x512xf32>
    %77 = arith.mulf %75, %76 : vector<8x512xf32>
    %78 = vector.broadcast %73 : vector<8x1xf32> to vector<8x512xf32>
    %79 = arith.addf %77, %78 : vector<8x512xf32>
    %cst_54 = arith.constant 0.000000e+00 : f32
    %80 = vector.broadcast %cst_54 : f32 to vector<8x512xf32>
    %81 = arith.maximumf %79, %80 : vector<8x512xf32>
    %82 = arith.truncf %81 : vector<8x512xf32> to vector<8x512xbf16>
    %c0_55 = arith.constant 0 : index
    %c0_56 = arith.constant 0 : index
    %c0_57 = arith.constant 0 : index
    %83 = vector.load %arg5[%c0_55, %c0_56, %c0_57] : memref<4x8x512xbf16, #tpu.memory_space<vmem>>, vector<1x8x512xbf16>
    %84 = vector.shape_cast %83 : vector<1x8x512xbf16> to vector<8x512xbf16>
    %85 = vector.shape_cast %82 : vector<8x512xbf16> to vector<1x8x512xbf16>
    tpu.vector_store %arg5[%c0_55, %c0_56, %c0_57], %85 {strides = array<i32>} : memref<4x8x512xbf16, #tpu.memory_space<vmem>>, vector<1x8x512xbf16>,
    %c1_58 = arith.constant 1 : index
    %c0_59 = arith.constant 0 : index
    %c0_60 = arith.constant 0 : index
    %86 = vector.load %arg6[%c1_58, %c0_59, %c0_60] : memref<4x8x512xf32, #tpu.memory_space<vmem>>, vector<1x8x512xf32>
    %87 = vector.shape_cast %86 : vector<1x8x512xf32> to vector<8x512xf32>
    %88 = vector.broadcast %70 : vector<8x1xf32> to vector<8x512xf32>
    %89 = arith.mulf %87, %88 : vector<8x512xf32>
    %90 = vector.broadcast %73 : vector<8x1xf32> to vector<8x512xf32>
    %91 = arith.addf %89, %90 : vector<8x512xf32>
    %cst_61 = arith.constant 0.000000e+00 : f32
    %92 = vector.broadcast %cst_61 : f32 to vector<8x512xf32>
    %93 = arith.maximumf %91, %92 : vector<8x512xf32>
    %94 = arith.truncf %93 : vector<8x512xf32> to vector<8x512xbf16>
    %c1_62 = arith.constant 1 : index
    %c0_63 = arith.constant 0 : index
    %c0_64 = arith.constant 0 : index
    %95 = vector.load %arg5[%c1_62, %c0_63, %c0_64] : memref<4x8x512xbf16, #tpu.memory_space<vmem>>, vector<1x8x512xbf16>
    %96 = vector.shape_cast %95 : vector<1x8x512xbf16> to vector<8x512xbf16>
    %97 = vector.shape_cast %94 : vector<8x512xbf16> to vector<1x8x512xbf16>
    tpu.vector_store %arg5[%c1_62, %c0_63, %c0_64], %97 {strides = array<i32>} : memref<4x8x512xbf16, #tpu.memory_space<vmem>>, vector<1x8x512xbf16>,
    %c2_65 = arith.constant 2 : index
    %c0_66 = arith.constant 0 : index
    %c0_67 = arith.constant 0 : index
    %98 = vector.load %arg6[%c2_65, %c0_66, %c0_67] : memref<4x8x512xf32, #tpu.memory_space<vmem>>, vector<1x8x512xf32>
    %99 = vector.shape_cast %98 : vector<1x8x512xf32> to vector<8x512xf32>
    %100 = vector.broadcast %70 : vector<8x1xf32> to vector<8x512xf32>
    %101 = arith.mulf %99, %100 : vector<8x512xf32>
    %102 = vector.broadcast %73 : vector<8x1xf32> to vector<8x512xf32>
    %103 = arith.addf %101, %102 : vector<8x512xf32>
    %cst_68 = arith.constant 0.000000e+00 : f32
    %104 = vector.broadcast %cst_68 : f32 to vector<8x512xf32>
    %105 = arith.maximumf %103, %104 : vector<8x512xf32>
    %106 = arith.truncf %105 : vector<8x512xf32> to vector<8x512xbf16>
    %c2_69 = arith.constant 2 : index
    %c0_70 = arith.constant 0 : index
    %c0_71 = arith.constant 0 : index
    %107 = vector.load %arg5[%c2_69, %c0_70, %c0_71] : memref<4x8x512xbf16, #tpu.memory_space<vmem>>, vector<1x8x512xbf16>
    %108 = vector.shape_cast %107 : vector<1x8x512xbf16> to vector<8x512xbf16>
    %109 = vector.shape_cast %106 : vector<8x512xbf16> to vector<1x8x512xbf16>
    tpu.vector_store %arg5[%c2_69, %c0_70, %c0_71], %109 {strides = array<i32>} : memref<4x8x512xbf16, #tpu.memory_space<vmem>>, vector<1x8x512xbf16>,
    %c3_72 = arith.constant 3 : index
    %c0_73 = arith.constant 0 : index
    %c0_74 = arith.constant 0 : index
    %110 = vector.load %arg6[%c3_72, %c0_73, %c0_74] : memref<4x8x512xf32, #tpu.memory_space<vmem>>, vector<1x8x512xf32>
    %111 = vector.shape_cast %110 : vector<1x8x512xf32> to vector<8x512xf32>
    %112 = vector.broadcast %70 : vector<8x1xf32> to vector<8x512xf32>
    %113 = arith.mulf %111, %112 : vector<8x512xf32>
    %114 = vector.broadcast %73 : vector<8x1xf32> to vector<8x512xf32>
    %115 = arith.addf %113, %114 : vector<8x512xf32>
    %cst_75 = arith.constant 0.000000e+00 : f32
    %116 = vector.broadcast %cst_75 : f32 to vector<8x512xf32>
    %117 = arith.maximumf %115, %116 : vector<8x512xf32>
    %118 = arith.truncf %117 : vector<8x512xf32> to vector<8x512xbf16>
    %c3_76 = arith.constant 3 : index
    %c0_77 = arith.constant 0 : index
    %c0_78 = arith.constant 0 : index
    %119 = vector.load %arg5[%c3_76, %c0_77, %c0_78] : memref<4x8x512xbf16, #tpu.memory_space<vmem>>, vector<1x8x512xbf16>
    %120 = vector.shape_cast %119 : vector<1x8x512xbf16> to vector<8x512xbf16>
    %121 = vector.shape_cast %118 : vector<8x512xbf16> to vector<1x8x512xbf16>
    tpu.vector_store %arg5[%c3_76, %c0_77, %c0_78], %121 {strides = array<i32>} : memref<4x8x512xbf16, #tpu.memory_space<vmem>>, vector<1x8x512xbf16>,
    return
  }
  func.func @transform_0(%arg0: i32) -> (i32, i32, i32) {
    %c0_i32 = arith.constant 0 : i32
    %c0_i32_0 = arith.constant 0 : i32
    %c0_i32_1 = arith.constant 0 : i32
    return %c0_i32, %arg0, %c0_i32_0 : i32, i32, i32
  }
  func.func @transform_1(%arg0: i32) -> (i32, i32, i32) {
    %c0_i32 = arith.constant 0 : i32
    %c0_i32_0 = arith.constant 0 : i32
    %c0_i32_1 = arith.constant 0 : i32
    %c0_i32_2 = arith.constant 0 : i32
    return %c0_i32, %c0_i32_0, %c0_i32_1 : i32, i32, i32
  }
  func.func @transform_2(%arg0: i32) -> (i32, i32) {
    %c0_i32 = arith.constant 0 : i32
    %c0_i32_0 = arith.constant 0 : i32
    return %arg0, %c0_i32 : i32, i32
  }
  func.func @transform_3(%arg0: i32) -> (i32, i32) {
    %c0_i32 = arith.constant 0 : i32
    %c0_i32_0 = arith.constant 0 : i32
    return %arg0, %c0_i32 : i32, i32
  }
  func.func @transform_4(%arg0: i32) -> (i32, i32, i32) {
    %c0_i32 = arith.constant 0 : i32
    %c0_i32_0 = arith.constant 0 : i32
    %c0_i32_1 = arith.constant 0 : i32
    return %c0_i32, %arg0, %c0_i32_0 : i32, i32, i32
  }
}

module attributes {stable_mosaic.version = 11 : i64} {
  func.func @_gemm_tanh_kernel(%arg0: i32, %arg1: memref<4x3x64xbf16, #tpu.memory_space<vmem>>, %arg2: memref<4x64x1024xbf16, #tpu.memory_space<vmem>>, %arg3: memref<4x3x1024xf32, #tpu.memory_space<vmem>>) attributes {dimension_semantics = [#tpu.dimension_semantics<parallel>], iteration_bounds = array<i64: 2>, scalar_prefetch = 0 : i64, scratch_operands = 0 : i64, tpu.core_type = #tpu.core_type<tc>, window_params = [{pipeline_mode = #tpu.pipeline_mode<synchronous>, transform_indices = @transform_0, window_bounds = array<i64: 4, 3, 64>}, {transform_indices = @transform_1, window_bounds = array<i64: 4, 64, 1024>}, {transform_indices = @transform_2, window_bounds = array<i64: 4, 3, 1024>}]} {
    %c0 = arith.constant 0 : index
    %c0_0 = arith.constant 0 : index
    %c0_1 = arith.constant 0 : index
    %0 = vector.load %arg1[%c0, %c0_0, %c0_1] : memref<4x3x64xbf16, #tpu.memory_space<vmem>>, vector<1x3x64xbf16>
    %1 = vector.shape_cast %0 : vector<1x3x64xbf16> to vector<3x64xbf16>
    %c0_2 = arith.constant 0 : index
    %c0_3 = arith.constant 0 : index
    %c0_4 = arith.constant 0 : index
    %2 = vector.load %arg2[%c0_2, %c0_3, %c0_4] : memref<4x64x1024xbf16, #tpu.memory_space<vmem>>, vector<1x64x1024xbf16>
    %3 = vector.shape_cast %2 : vector<1x64x1024xbf16> to vector<64x1024xbf16>
    %cst = arith.constant dense<0.000000e+00> : vector<3x1024xf32>
    %4 = tpu.matmul %1, %3, %cst {dimension_numbers = #tpu.dot_dimension_numbers<[1], [0], [0], [1], [0, 0, 1, 1], [], []>} : vector<3x64xbf16>, vector<64x1024xbf16>, vector<3x1024xf32> -> vector<3x1024xf32>
    %5 = math.tanh %4 : vector<3x1024xf32>
    %c0_5 = arith.constant 0 : index
    %c0_6 = arith.constant 0 : index
    %c0_7 = arith.constant 0 : index
    %6 = vector.load %arg3[%c0_5, %c0_6, %c0_7] : memref<4x3x1024xf32, #tpu.memory_space<vmem>>, vector<1x3x1024xf32>
    %7 = vector.shape_cast %6 : vector<1x3x1024xf32> to vector<3x1024xf32>
    %8 = vector.shape_cast %5 : vector<3x1024xf32> to vector<1x3x1024xf32>
    tpu.vector_store %arg3[%c0_5, %c0_6, %c0_7], %8 {strides = array<i32>} : memref<4x3x1024xf32, #tpu.memory_space<vmem>>, vector<1x3x1024xf32>,
    %c1 = arith.constant 1 : index
    %c0_8 = arith.constant 0 : index
    %c0_9 = arith.constant 0 : index
    %9 = vector.load %arg1[%c1, %c0_8, %c0_9] : memref<4x3x64xbf16, #tpu.memory_space<vmem>>, vector<1x3x64xbf16>
    %10 = vector.shape_cast %9 : vector<1x3x64xbf16> to vector<3x64xbf16>
    %c1_10 = arith.constant 1 : index
    %c0_11 = arith.constant 0 : index
    %c0_12 = arith.constant 0 : index
    %11 = vector.load %arg2[%c1_10, %c0_11, %c0_12] : memref<4x64x1024xbf16, #tpu.memory_space<vmem>>, vector<1x64x1024xbf16>
    %12 = vector.shape_cast %11 : vector<1x64x1024xbf16> to vector<64x1024xbf16>
    %cst_13 = arith.constant dense<0.000000e+00> : vector<3x1024xf32>
    %13 = tpu.matmul %10, %12, %cst_13 {dimension_numbers = #tpu.dot_dimension_numbers<[1], [0], [0], [1], [0, 0, 1, 1], [], []>} : vector<3x64xbf16>, vector<64x1024xbf16>, vector<3x1024xf32> -> vector<3x1024xf32>
    %14 = math.tanh %13 : vector<3x1024xf32>
    %c1_14 = arith.constant 1 : index
    %c0_15 = arith.constant 0 : index
    %c0_16 = arith.constant 0 : index
    %15 = vector.load %arg3[%c1_14, %c0_15, %c0_16] : memref<4x3x1024xf32, #tpu.memory_space<vmem>>, vector<1x3x1024xf32>
    %16 = vector.shape_cast %15 : vector<1x3x1024xf32> to vector<3x1024xf32>
    %17 = vector.shape_cast %14 : vector<3x1024xf32> to vector<1x3x1024xf32>
    tpu.vector_store %arg3[%c1_14, %c0_15, %c0_16], %17 {strides = array<i32>} : memref<4x3x1024xf32, #tpu.memory_space<vmem>>, vector<1x3x1024xf32>,
    %c2 = arith.constant 2 : index
    %c0_17 = arith.constant 0 : index
    %c0_18 = arith.constant 0 : index
    %18 = vector.load %arg1[%c2, %c0_17, %c0_18] : memref<4x3x64xbf16, #tpu.memory_space<vmem>>, vector<1x3x64xbf16>
    %19 = vector.shape_cast %18 : vector<1x3x64xbf16> to vector<3x64xbf16>
    %c2_19 = arith.constant 2 : index
    %c0_20 = arith.constant 0 : index
    %c0_21 = arith.constant 0 : index
    %20 = vector.load %arg2[%c2_19, %c0_20, %c0_21] : memref<4x64x1024xbf16, #tpu.memory_space<vmem>>, vector<1x64x1024xbf16>
    %21 = vector.shape_cast %20 : vector<1x64x1024xbf16> to vector<64x1024xbf16>
    %cst_22 = arith.constant dense<0.000000e+00> : vector<3x1024xf32>
    %22 = tpu.matmul %19, %21, %cst_22 {dimension_numbers = #tpu.dot_dimension_numbers<[1], [0], [0], [1], [0, 0, 1, 1], [], []>} : vector<3x64xbf16>, vector<64x1024xbf16>, vector<3x1024xf32> -> vector<3x1024xf32>
    %23 = math.tanh %22 : vector<3x1024xf32>
    %c2_23 = arith.constant 2 : index
    %c0_24 = arith.constant 0 : index
    %c0_25 = arith.constant 0 : index
    %24 = vector.load %arg3[%c2_23, %c0_24, %c0_25] : memref<4x3x1024xf32, #tpu.memory_space<vmem>>, vector<1x3x1024xf32>
    %25 = vector.shape_cast %24 : vector<1x3x1024xf32> to vector<3x1024xf32>
    %26 = vector.shape_cast %23 : vector<3x1024xf32> to vector<1x3x1024xf32>
    tpu.vector_store %arg3[%c2_23, %c0_24, %c0_25], %26 {strides = array<i32>} : memref<4x3x1024xf32, #tpu.memory_space<vmem>>, vector<1x3x1024xf32>,
    %c3 = arith.constant 3 : index
    %c0_26 = arith.constant 0 : index
    %c0_27 = arith.constant 0 : index
    %27 = vector.load %arg1[%c3, %c0_26, %c0_27] : memref<4x3x64xbf16, #tpu.memory_space<vmem>>, vector<1x3x64xbf16>
    %28 = vector.shape_cast %27 : vector<1x3x64xbf16> to vector<3x64xbf16>
    %c3_28 = arith.constant 3 : index
    %c0_29 = arith.constant 0 : index
    %c0_30 = arith.constant 0 : index
    %29 = vector.load %arg2[%c3_28, %c0_29, %c0_30] : memref<4x64x1024xbf16, #tpu.memory_space<vmem>>, vector<1x64x1024xbf16>
    %30 = vector.shape_cast %29 : vector<1x64x1024xbf16> to vector<64x1024xbf16>
    %cst_31 = arith.constant dense<0.000000e+00> : vector<3x1024xf32>
    %31 = tpu.matmul %28, %30, %cst_31 {dimension_numbers = #tpu.dot_dimension_numbers<[1], [0], [0], [1], [0, 0, 1, 1], [], []>} : vector<3x64xbf16>, vector<64x1024xbf16>, vector<3x1024xf32> -> vector<3x1024xf32>
    %32 = math.tanh %31 : vector<3x1024xf32>
    %c3_32 = arith.constant 3 : index
    %c0_33 = arith.constant 0 : index
    %c0_34 = arith.constant 0 : index
    %33 = vector.load %arg3[%c3_32, %c0_33, %c0_34] : memref<4x3x1024xf32, #tpu.memory_space<vmem>>, vector<1x3x1024xf32>
    %34 = vector.shape_cast %33 : vector<1x3x1024xf32> to vector<3x1024xf32>
    %35 = vector.shape_cast %32 : vector<3x1024xf32> to vector<1x3x1024xf32>
    tpu.vector_store %arg3[%c3_32, %c0_33, %c0_34], %35 {strides = array<i32>} : memref<4x3x1024xf32, #tpu.memory_space<vmem>>, vector<1x3x1024xf32>,
    return
  }
  func.func @transform_0(%arg0: i32) -> (i32, i32, i32) {
    %c0_i32 = arith.constant 0 : i32
    %c0_i32_0 = arith.constant 0 : i32
    %c0_i32_1 = arith.constant 0 : i32
    %c0_i32_2 = arith.constant 0 : i32
    return %c0_i32, %c0_i32_0, %c0_i32_1 : i32, i32, i32
  }
  func.func @transform_1(%arg0: i32) -> (i32, i32, i32) {
    %c0_i32 = arith.constant 0 : i32
    %c0_i32_0 = arith.constant 0 : i32
    %c0_i32_1 = arith.constant 0 : i32
    return %c0_i32, %c0_i32_0, %arg0 : i32, i32, i32
  }
  func.func @transform_2(%arg0: i32) -> (i32, i32, i32) {
    %c0_i32 = arith.constant 0 : i32
    %c0_i32_0 = arith.constant 0 : i32
    %c0_i32_1 = arith.constant 0 : i32
    return %c0_i32, %c0_i32_0, %arg0 : i32, i32, i32
  }
}

</mosaic_0001>

<llo_original>
// kernel: generator_forward.5
$region0: #{generator_forward.5}
  #allocation0 [shape = 'u32[]', space=smem, size = 0x4, offset = 0x4, fixed_abs, tag = 'smem constant byte address 0x4 - core index']
  #allocation1 [shape = 'u32[144,128]{1,0:T(1,128)}', space=vmem, size = 0x12000, scoped, tag = 'internal scratch']
  #allocation2 [shape = 'f32[1,64,128]{2,1,0:T(8,128)}', space=vmem, size = 0x8000, scoped, tag = 'scratch operand']
  %s0 = inlined_call_operand.vmem [shape: bf16[1,128,512], index: 0, kind: input, shape index: {}]
  %s1 = inlined_call_operand.vmem [shape: bf16[1,512,128], index: 1, kind: input, shape index: {}]
  %s2 = inlined_call_operand.vmem [shape: f32[128,1], index: 2, kind: input, shape index: {}]
  %s3 = inlined_call_operand.vmem [shape: f32[128,1], index: 3, kind: input, shape index: {}]
  %s4 = inlined_call_operand.vmem [shape: bf16[1,128,128], index: 4, kind: output, shape index: {}]
  %s5 = sld [smem:[#allocation0]]
  $region49: #{generator_forward.5} parent=0
    _
  %s7 = ssub.s32 1, %s5
  %s8 = scalar_select 0, %s7, %s5
  loop: start=0, step=1, limit=4
  $region2: #{generator_forward.5} parent=0 // loop_pre_header
    _
  $region3: #{generator_forward.5} parent=0 // loop_header
    %s10 = sphi 0, %s14
    %p11 = scmp.ge.s32.totalorder %s10, 4
    %s20 = sphi 0, %s22
    %s23 = sphi 0, %s20
    %s24 = sphi 0, %s23
    %s40 = sphi 0, %s24
    %s44 = sphi 0, %s44
    %s46 = sphi 0, %s44
    %s47 = sphi 0, %s46
    %s61 = sphi 0, %s47
    %s67 = sphi 0, %s69
    %s70 = sphi 0, %s67
    %s71 = sphi 0, %s70
    %s87 = sphi 0, %s71
    %s93 = sphi 0, %s95
    %s96 = sphi 0, %s93
    %s97 = sphi 0, %s96
    %s113 = sphi 0, %s97
    %s119 = sphi 0, %s121
    %s122 = sphi 0, %s119
    %s123 = sphi 0, %s122
    %s139 = sphi 0, %s123
  $region4: #{generator_forward.5} parent=0 // loop_header_branch
    %13 = sbr.rel (%p11) target = $region8
  $region5: #{generator_forward.5} parent=0 // loop_body
    %s15 = ssub.s32 %s10, 1
    %s16 = ssub.s32 %s10, 2
    %s17 = sadd.s32 %s10, 1
    %s18 = ssub.s32 %s10, %s17
    %p19 = scmp.eq.s32.totalorder %s18, 0
    %s21 = sadd.s32 %s20, 1
    %s22 = scalar_select %p19, %s20, %s21
    %p25 = pneg %p19
    %p26 = scmp.eq.s32.totalorder %s10, 1
    %p27 = por %p25, %p26
    %p28 = scmp.ne.s32.totalorder %s20, %s23
    %p29 = scmp.eq.s32.totalorder %s10, 0
    %p30 = por %p28, %p29
    %p31 = scmp.ne.s32.totalorder %s20, %s23
    %p32 = scmp.eq.s32.totalorder %s15, 1
    %p33 = por %p31, %p32
    %p34 = scmp.ne.s32.totalorder %s23, %s24
    %p35 = scmp.eq.s32.totalorder %s15, 0
    %p36 = por %p34, %p35
    %p37 = scmp.ne.s32.totalorder %s23, %s24
    %p38 = scmp.eq.s32.totalorder %s16, 1
    %p39 = por %p37, %p38
    %p41 = scmp.ne.s32.totalorder %s24, %s40
    %p42 = scmp.eq.s32.totalorder %s16, 0
    %p43 = por %p41, %p42
    %s45 = sadd.s32 %s44, 1
    %p48 = scmp.eq.s32.totalorder %s10, 1
    %p49 = scmp.ne.s32.totalorder %s44, %s46
    %p50 = scmp.eq.s32.totalorder %s10, 0
    %p51 = por %p49, %p50
    %p52 = scmp.ne.s32.totalorder %s44, %s46
    %p53 = scmp.eq.s32.totalorder %s15, 1
    %p54 = por %p52, %p53
    %p55 = scmp.ne.s32.totalorder %s46, %s47
    %p56 = scmp.eq.s32.totalorder %s15, 0
    %p57 = por %p55, %p56
    %p58 = scmp.ne.s32.totalorder %s46, %s47
    %p59 = scmp.eq.s32.totalorder %s16, 1
    %p60 = por %p58, %p59
    %p62 = scmp.ne.s32.totalorder %s47, %s61
    %p63 = scmp.eq.s32.totalorder %s16, 0
    %p64 = por %p62, %p63
    %s65 = ssub.s32 %s10, %s17
    %p66 = scmp.eq.s32.totalorder %s65, 0
    %s68 = sadd.s32 %s67, 1
    %s69 = scalar_select %p66, %s67, %s68
    %p72 = pneg %p66
    %p73 = scmp.eq.s32.totalorder %s10, 1
    %p74 = por %p72, %p73
    %p75 = scmp.ne.s32.totalorder %s67, %s70
    %p76 = scmp.eq.s32.totalorder %s10, 0
    %p77 = por %p75, %p76
    %p78 = scmp.ne.s32.totalorder %s67, %s70
    %p79 = scmp.eq.s32.totalorder %s15, 1
    %p80 = por %p78, %p79
    %p81 = scmp.ne.s32.totalorder %s70, %s71
    %p82 = scmp.eq.s32.totalorder %s15, 0
    %p83 = por %p81, %p82
    %p84 = scmp.ne.s32.totalorder %s70, %s71
    %p85 = scmp.eq.s32.totalorder %s16, 1
    %p86 = por %p84, %p85
    %p88 = scmp.ne.s32.totalorder %s71, %s87
    %p89 = scmp.eq.s32.totalorder %s16, 0
    %p90 = por %p88, %p89
    %s91 = ssub.s32 %s10, %s17
    %p92 = scmp.eq.s32.totalorder %s91, 0
    %s94 = sadd.s32 %s93, 1
    %s95 = scalar_select %p92, %s93, %s94
    %p98 = pneg %p92
    %p99 = scmp.eq.s32.totalorder %s10, 1
    %p100 = por %p98, %p99
    %p101 = scmp.ne.s32.totalorder %s93, %s96
    %p102 = scmp.eq.s32.totalorder %s10, 0
    %p103 = por %p101, %p102
    %p104 = scmp.ne.s32.totalorder %s93, %s96
    %p105 = scmp.eq.s32.totalorder %s15, 1
    %p106 = por %p104, %p105
    %p107 = scmp.ne.s32.totalorder %s96, %s97
    %p108 = scmp.eq.s32.totalorder %s15, 0
    %p109 = por %p107, %p108
    %p110 = scmp.ne.s32.totalorder %s96, %s97
    %p111 = scmp.eq.s32.totalorder %s16, 1
    %p112 = por %p110, %p111
    %p114 = scmp.ne.s32.totalorder %s97, %s113
    %p115 = scmp.eq.s32.totalorder %s16, 0
    %p116 = por %p114, %p115
    %s117 = ssub.s32 %s10, %s17
    %p118 = scmp.eq.s32.totalorder %s117, 0
    %s120 = sadd.s32 %s119, 1
    %s121 = scalar_select %p118, %s119, %s120
    %p124 = pneg %p118
    %p125 = scmp.eq.s32.totalorder %s10, 1
    %p126 = por %p124, %p125
    %p127 = scmp.ne.s32.totalorder %s119, %s122
    %p128 = scmp.eq.s32.totalorder %s10, 0
    %p129 = por %p127, %p128
    %p130 = scmp.ne.s32.totalorder %s119, %s122
    %p131 = scmp.eq.s32.totalorder %s15, 1
    %p132 = por %p130, %p131
    %p133 = scmp.ne.s32.totalorder %s122, %s123
    %p134 = scmp.eq.s32.totalorder %s15, 0
    %p135 = por %p133, %p134
    %p136 = scmp.ne.s32.totalorder %s122, %s123
    %p137 = scmp.eq.s32.totalorder %s16, 1
    %p138 = por %p136, %p137
    %p140 = scmp.ne.s32.totalorder %s123, %s139
    %p141 = scmp.eq.s32.totalorder %s16, 0
    %p142 = por %p140, %p141
    %p143 = scmp.le.s32.totalorder 1, %s10
    %p144 = scmp.lt.s32.totalorder %s10, 3
    %p145 = pnand %p143, %p144
    %p146 = pneg %p145
    // Predicated region
    $region9: #{generator_forward.5} parent=5 // pred_check
      _
    $region10: #{generator_forward.5} parent=5 // pred_check_branch
      %148 = sbr.rel (%p145) target = $region12
    $region11: #{generator_forward.5} parent=5 // pred_region
      %s149 = ssub.s32 %s10, 1
      // Predicated region
      $region13: #{generator_forward.5} parent=11 // pred_check
        %p150 = pneg %p57
      $region14: #{generator_forward.5} parent=11 // pred_check_branch
        %152 = sbr.rel (%p150) target = $region16
      $region15: #{generator_forward.5} parent=11 // pred_region
        _
      $region16: #{generator_forward.5} parent=11 // pred_fallthru
        _
    $region12: #{generator_forward.5} parent=5 // pred_fallthru
      _
    %p153 = scmp.lt.s32.totalorder %s10, 2
    // Predicated region
    $region17: #{generator_forward.5} parent=5 // pred_check
      %p154 = pneg %p153
    $region18: #{generator_forward.5} parent=5 // pred_check_branch
      %156 = sbr.rel (%p154) target = $region20
    $region19: #{generator_forward.5} parent=5 // pred_region
      // Predicated region
      $region21: #{generator_forward.5} parent=19 // pred_check
        %p157 = pneg %p30
      $region22: #{generator_forward.5} parent=19 // pred_check_branch
        %159 = sbr.rel (%p157) target = $region24
      $region23: #{generator_forward.5} parent=19 // pred_region
        %s160 = smul.u32 8, %s10
        %p161 = scmp.lt.s32.totalorder %s160, 15
        %s162 = scalar_select %p161, %s160, 15
        %s163 = smul.addr %s162, 4
        %s164 = smul.addr %s163, 4
        %s165 = scalar_lea.vmem %s0, %s164
        %s166 = smul.u32 8, %s10
      $region24: #{generator_forward.5} parent=19 // pred_fallthru
        _
      // Predicated region
      $region25: #{generator_forward.5} parent=19 // pred_check
        %p167 = pneg %p77
      $region26: #{generator_forward.5} parent=19 // pred_check_branch
        %169 = sbr.rel (%p167) target = $region28
      $region27: #{generator_forward.5} parent=19 // pred_region
        %s170 = smul.u32 8, %s10
        %p171 = scmp.lt.s32.totalorder %s170, 15
        %s172 = scalar_select %p171, %s170, 15
        %s173 = smul.addr %s172, 8
        %s174 = scalar_lea.vmem %s2, %s173
        %s175 = smul.u32 8, %s10
      $region28: #{generator_forward.5} parent=19 // pred_fallthru
        _
      // Predicated region
      $region29: #{generator_forward.5} parent=19 // pred_check
        %p176 = pneg %p103
      $region30: #{generator_forward.5} parent=19 // pred_check_branch
        %178 = sbr.rel (%p176) target = $region32
      $region31: #{generator_forward.5} parent=19 // pred_region
        %s179 = smul.u32 8, %s10
        %p180 = scmp.lt.s32.totalorder %s179, 15
        %s181 = scalar_select %p180, %s179, 15
        %s182 = smul.addr %s181, 8
        %s183 = scalar_lea.vmem %s3, %s182
        %s184 = smul.u32 8, %s10
      $region32: #{generator_forward.5} parent=19 // pred_fallthru
        _
    $region20: #{generator_forward.5} parent=5 // pred_fallthru
      _
    %p185 = scmp.le.s32.totalorder 1, %s10
    %p186 = scmp.lt.s32.totalorder %s10, 3
    %p187 = pnand %p185, %p186
    %p188 = pneg %p187
    // Predicated region
    $region33: #{generator_forward.5} parent=5 // pred_check
      _
    $region34: #{generator_forward.5} parent=5 // pred_check_branch
      %190 = sbr.rel (%p187) target = $region36
    $region35: #{generator_forward.5} parent=5 // pred_region
      %s191 = ssub.s32 %s10, 1
      %s192 = smul.u32 8, %s15
      %p193 = scmp.lt.s32.totalorder %s192, 15
      %s194 = scalar_select %p193, %s192, 15
      %s195 = smul.addr %s194, 4
      %s196 = smul.addr %s195, 4
      %s197 = scalar_lea.vmem %s0, %s196
      %p198 = pneg %p36
      %p199 = pneg %p33
      %p200 = pneg %p57
      %p201 = pneg %p54
      %s202 = smul.u32 8, %s15
      %p203 = scmp.lt.s32.totalorder %s202, 15
      %s204 = scalar_select %p203, %s202, 15
      %s205 = smul.addr %s204, 8
      %s206 = scalar_lea.vmem %s2, %s205
      %p207 = pneg %p83
      %p208 = pneg %p80
      %s209 = smul.u32 8, %s15
      %p210 = scmp.lt.s32.totalorder %s209, 15
      %s211 = scalar_select %p210, %s209, 15
      %s212 = smul.addr %s211, 8
      %s213 = scalar_lea.vmem %s3, %s212
      %p214 = pneg %p109
      %p215 = pneg %p106
      %p216 = pneg %p135
      %p217 = pneg %p132
      %s218 = smul.u32 8, %s15
      %p219 = scmp.lt.s32.totalorder %s218, 15
      %s220 = scalar_select %p219, %s218, 15
      %s221 = smul.addr %s220, 4
      %s222 = scalar_lea.vmem %s4, %s221
      %s223 = smul.u32 8, %s15
      %p224 = scmp.lt.s32.totalorder %s223, 15
      %s225 = scalar_select %p224, %s223, 15
      %s226 = smul.addr %s225, 4
      %s227 = smul.addr %s226, 4
      %s228 = scalar_lea.vmem %s0, %s227
      %s229 = smul.u32 8, %s15
      %s230 = smul.u32 8, %s15
      %p231 = scmp.lt.s32.totalorder %s230, 15
      %s232 = scalar_select %p231, %s230, 15
      %s233 = smul.addr %s232, 8
      %s234 = scalar_lea.vmem %s2, %s233
      %s235 = smul.u32 8, %s15
      %s236 = smul.u32 8, %s15
      %p237 = scmp.lt.s32.totalorder %s236, 15
      %s238 = scalar_select %p237, %s236, 15
      %s239 = smul.addr %s238, 8
      %s240 = scalar_lea.vmem %s3, %s239
      %s241 = smul.u32 8, %s15
      %s242 = smul.u32 8, %s15
      %p243 = scmp.lt.s32.totalorder %s242, 15
      %s244 = scalar_select %p243, %s242, 15
      %s245 = smul.addr %s244, 4
      %s246 = scalar_lea.vmem %s4, %s245
      %s247 = smul.u32 8, %s15
      %v249 = vld [vmem:[%s228] sm:$0xff]
      %v250 = vld [vmem:[%s228 + $0x8] sm:$0xff]
      %v251 = vld [vmem:[%s228 + $0x10] sm:$0xff]
      %v252 = vld [vmem:[%s228 + $0x18] sm:$0xff]
      %v253 = vld [vmem:[%s228 + $0x20] sm:$0xff]
      %v254 = vld [vmem:[%s228 + $0x28] sm:$0xff]
      %v255 = vld [vmem:[%s228 + $0x30] sm:$0xff]
      %v256 = vld [vmem:[%s228 + $0x38] sm:$0xff]
      %v257 = vld [vmem:[%s228 + $0x40] sm:$0xff]
      %v258 = vld [vmem:[%s228 + $0x48] sm:$0xff]
      %v259 = vld [vmem:[%s228 + $0x50] sm:$0xff]
      %v260 = vld [vmem:[%s228 + $0x58] sm:$0xff]
      %v261 = vld [vmem:[%s228 + $0x60] sm:$0xff]
      %v262 = vld [vmem:[%s228 + $0x68] sm:$0xff]
      %v263 = vld [vmem:[%s228 + $0x70] sm:$0xff]
      %v264 = vld [vmem:[%s228 + $0x78] sm:$0xff]
      %v265 = vld [vmem:[%s1] sm:$0xf]
      %v266 = vld [vmem:[%s1 + $0x4] sm:$0xf]
      %v267 = vld [vmem:[%s1 + $0x8] sm:$0xf]
      %v268 = vld [vmem:[%s1 + $0xc] sm:$0xf]
      %v269 = vld [vmem:[%s1 + $0x10] sm:$0xf]
      %v270 = vld [vmem:[%s1 + $0x14] sm:$0xf]
      %v271 = vld [vmem:[%s1 + $0x18] sm:$0xf]
      %v272 = vld [vmem:[%s1 + $0x1c] sm:$0xf]
      %v273 = vld [vmem:[%s1 + $0x20] sm:$0xf]
      %v274 = vld [vmem:[%s1 + $0x24] sm:$0xf]
      %v275 = vld [vmem:[%s1 + $0x28] sm:$0xf]
      %v276 = vld [vmem:[%s1 + $0x2c] sm:$0xf]
      %v277 = vld [vmem:[%s1 + $0x30] sm:$0xf]
      %v278 = vld [vmem:[%s1 + $0x34] sm:$0xf]
      %v279 = vld [vmem:[%s1 + $0x38] sm:$0xf]
      %v280 = vld [vmem:[%s1 + $0x3c] sm:$0xf]
      %v281 = vld [vmem:[%s1 + $0x40] sm:$0xf]
      %v282 = vld [vmem:[%s1 + $0x44] sm:$0xf]
      %v283 = vld [vmem:[%s1 + $0x48] sm:$0xf]
      %v284 = vld [vmem:[%s1 + $0x4c] sm:$0xf]
      %v285 = vld [vmem:[%s1 + $0x50] sm:$0xf]
      %v286 = vld [vmem:[%s1 + $0x54] sm:$0xf]
      %v287 = vld [vmem:[%s1 + $0x58] sm:$0xf]
      %v288 = vld [vmem:[%s1 + $0x5c] sm:$0xf]
      %v289 = vld [vmem:[%s1 + $0x60] sm:$0xf]
      %v290 = vld [vmem:[%s1 + $0x64] sm:$0xf]
      %v291 = vld [vmem:[%s1 + $0x68] sm:$0xf]
      %v292 = vld [vmem:[%s1 + $0x6c] sm:$0xf]
      %v293 = vld [vmem:[%s1 + $0x70] sm:$0xf]
      %v294 = vld [vmem:[%s1 + $0x74] sm:$0xf]
      %v295 = vld [vmem:[%s1 + $0x78] sm:$0xf]
      %v296 = vld [vmem:[%s1 + $0x7c] sm:$0xf]
      %v297 = vld [vmem:[%s1 + $0x80] sm:$0xf]
      %v298 = vld [vmem:[%s1 + $0x84] sm:$0xf]
      %v299 = vld [vmem:[%s1 + $0x88] sm:$0xf]
      %v300 = vld [vmem:[%s1 + $0x8c] sm:$0xf]
      %v301 = vld [vmem:[%s1 + $0x90] sm:$0xf]
      %v302 = vld [vmem:[%s1 + $0x94] sm:$0xf]
      %v303 = vld [vmem:[%s1 + $0x98] sm:$0xf]
      %v304 = vld [vmem:[%s1 + $0x9c] sm:$0xf]
      %v305 = vld [vmem:[%s1 + $0xa0] sm:$0xf]
      %v306 = vld [vmem:[%s1 + $0xa4] sm:$0xf]
      %v307 = vld [vmem:[%s1 + $0xa8] sm:$0xf]
      %v308 = vld [vmem:[%s1 + $0xac] sm:$0xf]
      %v309 = vld [vmem:[%s1 + $0xb0] sm:$0xf]
      %v310 = vld [vmem:[%s1 + $0xb4] sm:$0xf]
      %v311 = vld [vmem:[%s1 + $0xb8] sm:$0xf]
      %v312 = vld [vmem:[%s1 + $0xbc] sm:$0xf]
      %v313 = vld [vmem:[%s1 + $0xc0] sm:$0xf]
      %v314 = vld [vmem:[%s1 + $0xc4] sm:$0xf]
      %v315 = vld [vmem:[%s1 + $0xc8] sm:$0xf]
      %v316 = vld [vmem:[%s1 + $0xcc] sm:$0xf]
      %v317 = vld [vmem:[%s1 + $0xd0] sm:$0xf]
      %v318 = vld [vmem:[%s1 + $0xd4] sm:$0xf]
      %v319 = vld [vmem:[%s1 + $0xd8] sm:$0xf]
      %v320 = vld [vmem:[%s1 + $0xdc] sm:$0xf]
      %v321 = vld [vmem:[%s1 + $0xe0] sm:$0xf]
      %v322 = vld [vmem:[%s1 + $0xe4] sm:$0xf]
      %v323 = vld [vmem:[%s1 + $0xe8] sm:$0xf]
      %v324 = vld [vmem:[%s1 + $0xec] sm:$0xf]
      %v325 = vld [vmem:[%s1 + $0xf0] sm:$0xf]
      %v326 = vld [vmem:[%s1 + $0xf4] sm:$0xf]
      %v327 = vld [vmem:[%s1 + $0xf8] sm:$0xf]
      %v328 = vld [vmem:[%s1 + $0xfc] sm:$0xf]
      %v345 = vunpack.c.l.b16 %v249
      %v346 = vunpack.c.h.b16 %v249
      %v347 = vunpack.c.l.b16 %v250
      %v348 = vunpack.c.h.b16 %v250
      %v349 = vunpack.c.l.b16 %v251
      %v350 = vunpack.c.h.b16 %v251
      %v351 = vunpack.c.l.b16 %v252
      %v352 = vunpack.c.h.b16 %v252
      %v353 = vunpack.c.l.b16 %v253
      %v354 = vunpack.c.h.b16 %v253
      %v355 = vunpack.c.l.b16 %v254
      %v356 = vunpack.c.h.b16 %v254
      %v357 = vunpack.c.l.b16 %v255
      %v358 = vunpack.c.h.b16 %v255
      %v359 = vunpack.c.l.b16 %v256
      %v360 = vunpack.c.h.b16 %v256
      %v361 = vunpack.c.l.b16 %v257
      %v362 = vunpack.c.h.b16 %v257
      %v363 = vunpack.c.l.b16 %v258
      %v364 = vunpack.c.h.b16 %v258
      %v365 = vunpack.c.l.b16 %v259
      %v366 = vunpack.c.h.b16 %v259
      %v367 = vunpack.c.l.b16 %v260
      %v368 = vunpack.c.h.b16 %v260
      %v369 = vunpack.c.l.b16 %v261
      %v370 = vunpack.c.h.b16 %v261
      %v371 = vunpack.c.l.b16 %v262
      %v372 = vunpack.c.h.b16 %v262
      %v373 = vunpack.c.l.b16 %v263
      %v374 = vunpack.c.h.b16 %v263
      %v375 = vunpack.c.l.b16 %v264
      %v376 = vunpack.c.h.b16 %v264
      %v377 = vpack.c.b16 %v349, %v345
      %v378 = vpack.c.b16 %v350, %v346
      %v379 = vpack.c.b16 %v351, %v347
      %v380 = vpack.c.b16 %v352, %v348
      %v381 = vpack.c.b16 %v357, %v353
      %v382 = vpack.c.b16 %v358, %v354
      %v383 = vpack.c.b16 %v359, %v355
      %v384 = vpack.c.b16 %v360, %v356
      %v385 = vpack.c.b16 %v365, %v361
      %v386 = vpack.c.b16 %v366, %v362
      %v387 = vpack.c.b16 %v367, %v363
      %v388 = vpack.c.b16 %v368, %v364
      %v389 = vpack.c.b16 %v373, %v369
      %v390 = vpack.c.b16 %v374, %v370
      %v391 = vpack.c.b16 %v375, %v371
      %v392 = vpack.c.b16 %v376, %v372
      %v473 = vunpack.c.l.b16 %v265
      %v474 = vunpack.c.l.b16 %v266
      %v475 = vunpack.c.l.b16 %v267
      %v476 = vunpack.c.l.b16 %v268
      %v477 = vunpack.c.l.b16 %v269
      %v478 = vunpack.c.l.b16 %v270
      %v479 = vunpack.c.l.b16 %v271
      %v480 = vunpack.c.l.b16 %v272
      %v481 = vunpack.c.l.b16 %v273
      %v482 = vunpack.c.l.b16 %v274
      %v483 = vunpack.c.l.b16 %v275
      %v484 = vunpack.c.l.b16 %v276
      %v485 = vunpack.c.l.b16 %v277
      %v486 = vunpack.c.l.b16 %v278
      %v487 = vunpack.c.l.b16 %v279
      %v488 = vunpack.c.l.b16 %v280
      %v489 = vunpack.c.l.b16 %v281
      %v490 = vunpack.c.l.b16 %v282
      %v491 = vunpack.c.l.b16 %v283
      %v492 = vunpack.c.l.b16 %v284
      %v493 = vunpack.c.l.b16 %v285
      %v494 = vunpack.c.l.b16 %v286
      %v495 = vunpack.c.l.b16 %v287
      %v496 = vunpack.c.l.b16 %v288
      %v497 = vunpack.c.l.b16 %v289
      %v498 = vunpack.c.l.b16 %v290
      %v499 = vunpack.c.l.b16 %v291
      %v500 = vunpack.c.l.b16 %v292
      %v501 = vunpack.c.l.b16 %v293
      %v502 = vunpack.c.l.b16 %v294
      %v503 = vunpack.c.l.b16 %v295
      %v504 = vunpack.c.l.b16 %v296
      %v505 = vunpack.c.l.b16 %v297
      %v506 = vunpack.c.l.b16 %v298
      %v507 = vunpack.c.l.b16 %v299
      %v508 = vunpack.c.l.b16 %v300
      %v509 = vunpack.c.l.b16 %v301
      %v510 = vunpack.c.l.b16 %v302
      %v511 = vunpack.c.l.b16 %v303
      %v512 = vunpack.c.l.b16 %v304
      %v513 = vunpack.c.l.b16 %v305
      %v514 = vunpack.c.l.b16 %v306
      %v515 = vunpack.c.l.b16 %v307
      %v516 = vunpack.c.l.b16 %v308
      %v517 = vunpack.c.l.b16 %v309
      %v518 = vunpack.c.l.b16 %v310
      %v519 = vunpack.c.l.b16 %v311
      %v520 = vunpack.c.l.b16 %v312
      %v521 = vunpack.c.l.b16 %v313
      %v522 = vunpack.c.l.b16 %v314
      %v523 = vunpack.c.l.b16 %v315
      %v524 = vunpack.c.l.b16 %v316
      %v525 = vunpack.c.l.b16 %v317
      %v526 = vunpack.c.l.b16 %v318
      %v527 = vunpack.c.l.b16 %v319
      %v528 = vunpack.c.l.b16 %v320
      %v529 = vunpack.c.l.b16 %v321
      %v530 = vunpack.c.l.b16 %v322
      %v531 = vunpack.c.l.b16 %v323
      %v532 = vunpack.c.l.b16 %v324
      %v533 = vunpack.c.l.b16 %v325
      %v534 = vunpack.c.l.b16 %v326
      %v535 = vunpack.c.l.b16 %v327
      %v536 = vunpack.c.l.b16 %v328
      %v537 = vpack.c.b16 %v474, %v473
      %v538 = vpack.c.b16 %v476, %v475
      %v539 = vpack.c.b16 %v478, %v477
      %v540 = vpack.c.b16 %v480, %v479
      %v541 = vpack.c.b16 %v482, %v481
      %v542 = vpack.c.b16 %v484, %v483
      %v543 = vpack.c.b16 %v486, %v485
      %v544 = vpack.c.b16 %v488, %v487
      %v545 = vpack.c.b16 %v490, %v489
      %v546 = vpack.c.b16 %v492, %v491
      %v547 = vpack.c.b16 %v494, %v493
      %v548 = vpack.c.b16 %v496, %v495
      %v549 = vpack.c.b16 %v498, %v497
      %v550 = vpack.c.b16 %v500, %v499
      %v551 = vpack.c.b16 %v502, %v501
      %v552 = vpack.c.b16 %v504, %v503
      %v553 = vpack.c.b16 %v506, %v505
      %v554 = vpack.c.b16 %v508, %v507
      %v555 = vpack.c.b16 %v510, %v509
      %v556 = vpack.c.b16 %v512, %v511
      %v557 = vpack.c.b16 %v514, %v513
      %v558 = vpack.c.b16 %v516, %v515
      %v559 = vpack.c.b16 %v518, %v517
      %v560 = vpack.c.b16 %v520, %v519
      %v561 = vpack.c.b16 %v522, %v521
      %v562 = vpack.c.b16 %v524, %v523
      %v563 = vpack.c.b16 %v526, %v525
      %v564 = vpack.c.b16 %v528, %v527
      %v565 = vpack.c.b16 %v530, %v529
      %v566 = vpack.c.b16 %v532, %v531
      %v567 = vpack.c.b16 %v534, %v533
      %v568 = vpack.c.b16 %v536, %v535
      %601 = vmatprep.subr.bf16.mxu0 0
      %602 = vmatpush1.bf16.msra.mxu0 %v537
      %603 = vmatprep.subr.bf16.mxu0 0
      %604 = vmatpush1.bf16.msra.mxu0 %v538
      %605 = vmatprep.subr.bf16.mxu0 0
      %606 = vmatpush1.bf16.msra.mxu0 %v539
      %607 = vmatprep.subr.bf16.mxu0 0
      %608 = vmatpush1.bf16.msra.mxu0 %v540
      %609 = vmatprep.subr.bf16.mxu0 0
      %610 = vmatpush1.bf16.msra.mxu0 %v541
      %611 = vmatprep.subr.bf16.mxu0 0
      %612 = vmatpush1.bf16.msra.mxu0 %v542
      %613 = vmatprep.subr.bf16.mxu0 0
      %614 = vmatpush1.bf16.msra.mxu0 %v543
      %615 = vmatprep.subr.bf16.mxu0 0
      %616 = vmatpush1.bf16.msra.mxu0 %v544
      %617 = vmatprep.subr.bf16.mxu0 0
      %618 = vmatpush1.bf16.msra.mxu0 %v545
      %619 = vmatprep.subr.bf16.mxu0 0
      %620 = vmatpush1.bf16.msra.mxu0 %v546
      %621 = vmatprep.subr.bf16.mxu0 0
      %622 = vmatpush1.bf16.msra.mxu0 %v547
      %623 = vmatprep.subr.bf16.mxu0 0
      %624 = vmatpush1.bf16.msra.mxu0 %v548
      %625 = vmatprep.subr.bf16.mxu0 0
      %626 = vmatpush1.bf16.msra.mxu0 %v549
      %627 = vmatprep.subr.bf16.mxu0 0
      %628 = vmatpush1.bf16.msra.mxu0 %v550
      %629 = vmatprep.subr.bf16.mxu0 0
      %630 = vmatpush1.bf16.msra.mxu0 %v551
      %631 = vmatprep.subr.bf16.mxu0 0
      %632 = vmatpush1.bf16.msra.mxu0 %v552
      %633 = vmatprep.mubr.bf16.mxu0 %v378
      %634 = vmatmul.mubr.bf16.gmra.mrb[0].mxu0 %v377
      %v635 = vpop.f32.mrb[0].mxu0
      %v636 = vadd.f32 0.0, %v635
      %v637 = vpop.f32.mrb[0].mxu0
      %v638 = vpop.f32.mrb[0].mxu0
      %v639 = vadd.f32 0.0, %v638
      %v640 = vpop.f32.mrb[0].mxu0
      %641 = vmatprep.mubr.bf16.mxu0 %v382
      %642 = vmatmul.mubr.bf16.gmra.mrb[0].mxu0 %v381
      %v643 = vpop.f32.mrb[0].mxu0
      %v644 = vadd.f32 0.0, %v643
      %v645 = vpop.f32.mrb[0].mxu0
      %v646 = vpop.f32.mrb[0].mxu0
      %v647 = vadd.f32 0.0, %v646
      %v648 = vpop.f32.mrb[0].mxu0
      %649 = vmatprep.mubr.bf16.mxu0 %v386
      %650 = vmatmul.mubr.bf16.gmra.mrb[0].mxu0 %v385
      %v651 = vpop.f32.mrb[0].mxu0
      %v652 = vadd.f32 0.0, %v651
      %v653 = vpop.f32.mrb[0].mxu0
      %v654 = vpop.f32.mrb[0].mxu0
      %v655 = vadd.f32 0.0, %v654
      %v656 = vpop.f32.mrb[0].mxu0
      %657 = vmatprep.mubr.bf16.mxu0 %v390
      %658 = vmatmul.mubr.bf16.gmra.mrb[0].mxu0 %v389
      %v659 = vpop.f32.mrb[0].mxu0
      %v660 = vadd.f32 0.0, %v659
      %v661 = vpop.f32.mrb[0].mxu0
      %v662 = vpop.f32.mrb[0].mxu0
      %v663 = vadd.f32 0.0, %v662
      %v664 = vpop.f32.mrb[0].mxu0
      %665 = vdwg.mxu0
      %666 = vmatprep.subr.bf16.mxu0 0
      %667 = vmatpush1.bf16.msra.mxu0 %v553
      %668 = vmatprep.subr.bf16.mxu0 0
      %669 = vmatpush1.bf16.msra.mxu0 %v554
      %670 = vmatprep.subr.bf16.mxu0 0
      %671 = vmatpush1.bf16.msra.mxu0 %v555
      %672 = vmatprep.subr.bf16.mxu0 0
      %673 = vmatpush1.bf16.msra.mxu0 %v556
      %674 = vmatprep.subr.bf16.mxu0 0
      %675 = vmatpush1.bf16.msra.mxu0 %v557
      %676 = vmatprep.subr.bf16.mxu0 0
      %677 = vmatpush1.bf16.msra.mxu0 %v558
      %678 = vmatprep.subr.bf16.mxu0 0
      %679 = vmatpush1.bf16.msra.mxu0 %v559
      %680 = vmatprep.subr.bf16.mxu0 0
      %681 = vmatpush1.bf16.msra.mxu0 %v560
      %682 = vmatprep.subr.bf16.mxu0 0
      %683 = vmatpush1.bf16.msra.mxu0 %v561
      %684 = vmatprep.subr.bf16.mxu0 0
      %685 = vmatpush1.bf16.msra.mxu0 %v562
      %686 = vmatprep.subr.bf16.mxu0 0
      %687 = vmatpush1.bf16.msra.mxu0 %v563
      %688 = vmatprep.subr.bf16.mxu0 0
      %689 = vmatpush1.bf16.msra.mxu0 %v564
      %690 = vmatprep.subr.bf16.mxu0 0
      %691 = vmatpush1.bf16.msra.mxu0 %v565
      %692 = vmatprep.subr.bf16.mxu0 0
      %693 = vmatpush1.bf16.msra.mxu0 %v566
      %694 = vmatprep.subr.bf16.mxu0 0
      %695 = vmatpush1.bf16.msra.mxu0 %v567
      %696 = vmatprep.subr.bf16.mxu0 0
      %697 = vmatpush1.bf16.msra.mxu0 %v568
      %698 = vmatprep.mubr.bf16.mxu0 %v380
      %699 = vmatmul.mubr.bf16.gmra.mrb[0].mxu0 %v379
      %v700 = vpop.f32.mrb[0].mxu0
      %v701 = vadd.f32 %v636, %v700
      %v702 = vpop.f32.mrb[0].mxu0
      %v703 = vpop.f32.mrb[0].mxu0
      %v704 = vadd.f32 %v639, %v703
      %v705 = vpop.f32.mrb[0].mxu0
      %706 = vmatprep.mubr.bf16.mxu0 %v384
      %707 = vmatmul.mubr.bf16.gmra.mrb[0].mxu0 %v383
      %v708 = vpop.f32.mrb[0].mxu0
      %v709 = vadd.f32 %v644, %v708
      %v710 = vpop.f32.mrb[0].mxu0
      %v711 = vpop.f32.mrb[0].mxu0
      %v712 = vadd.f32 %v647, %v711
      %v713 = vpop.f32.mrb[0].mxu0
      %714 = vmatprep.mubr.bf16.mxu0 %v388
      %715 = vmatmul.mubr.bf16.gmra.mrb[0].mxu0 %v387
      %v716 = vpop.f32.mrb[0].mxu0
      %v717 = vadd.f32 %v652, %v716
      %v718 = vpop.f32.mrb[0].mxu0
      %v719 = vpop.f32.mrb[0].mxu0
      %v720 = vadd.f32 %v655, %v719
      %v721 = vpop.f32.mrb[0].mxu0
      %722 = vmatprep.mubr.bf16.mxu0 %v392
      %723 = vmatmul.mubr.bf16.gmra.mrb[0].mxu0 %v391
      %v724 = vpop.f32.mrb[0].mxu0
      %v725 = vadd.f32 %v660, %v724
      %v726 = vpop.f32.mrb[0].mxu0
      %v727 = vpop.f32.mrb[0].mxu0
      %v728 = vadd.f32 %v663, %v727
      %v729 = vpop.f32.mrb[0].mxu0
      %730 = vdwg.mxu0
      %731 = vst [vmem:[#allocation2] sm:$0xff] %v701
      %732 = vst [vmem:[#allocation2 + $0x8] sm:$0xff] %v704
      %733 = vst [vmem:[#allocation2 + $0x10] sm:$0xff] %v709
      %734 = vst [vmem:[#allocation2 + $0x18] sm:$0xff] %v712
      %735 = vst [vmem:[#allocation2 + $0x20] sm:$0xff] %v717
      %736 = vst [vmem:[#allocation2 + $0x28] sm:$0xff] %v720
      %737 = vst [vmem:[#allocation2 + $0x30] sm:$0xff] %v725
      %738 = vst [vmem:[#allocation2 + $0x38] sm:$0xff] %v728
      %739 = vadd.xlane.f32.xlu0 %v701
      %v740 = vpop.xlane.xlu0 %739
      %741 = vadd.xlane.f32.xlu0 %v704
      %v742 = vpop.xlane.xlu0 %741
      %743 = vadd.xlane.f32.xlu0 %v709
      %v744 = vpop.xlane.xlu0 %743
      %745 = vadd.xlane.f32.xlu0 %v712
      %v746 = vpop.xlane.xlu0 %745
      %747 = vadd.xlane.f32.xlu0 %v717
      %v748 = vpop.xlane.xlu0 %747
      %749 = vadd.xlane.f32.xlu0 %v720
      %v750 = vpop.xlane.xlu0 %749
      %751 = vadd.xlane.f32.xlu0 %v725
      %v752 = vpop.xlane.xlu0 %751
      %753 = vadd.xlane.f32.xlu0 %v728
      %v754 = vpop.xlane.xlu0 %753
      %v755 = vmul.f32 %v701, %v701
      %v756 = vmul.f32 %v704, %v704
      %v757 = vmul.f32 %v709, %v709
      %v758 = vmul.f32 %v712, %v712
      %v759 = vmul.f32 %v717, %v717
      %v760 = vmul.f32 %v720, %v720
      %v761 = vmul.f32 %v725, %v725
      %v762 = vmul.f32 %v728, %v728
      %763 = vadd.xlane.f32.xlu0 %v755
      %v764 = vpop.xlane.xlu0 %763
      %765 = vadd.xlane.f32.xlu0 %v756
      %v766 = vpop.xlane.xlu0 %765
      %767 = vadd.xlane.f32.xlu0 %v757
      %v768 = vpop.xlane.xlu0 %767
      %769 = vadd.xlane.f32.xlu0 %v758
      %v770 = vpop.xlane.xlu0 %769
      %771 = vadd.xlane.f32.xlu0 %v759
      %v772 = vpop.xlane.xlu0 %771
      %773 = vadd.xlane.f32.xlu0 %v760
      %v774 = vpop.xlane.xlu0 %773
      %775 = vadd.xlane.f32.xlu0 %v761
      %v776 = vpop.xlane.xlu0 %775
      %777 = vadd.xlane.f32.xlu0 %v762
      %v778 = vpop.xlane.xlu0 %777
      %v779 = vmul.f32 %v740, 0.03125
      %v780 = vmul.f32 %v742, 0.03125
      %v781 = vmul.f32 %v744, 0.03125
      %v782 = vmul.f32 %v746, 0.03125
      %v783 = vmul.f32 %v748, 0.03125
      %v784 = vmul.f32 %v750, 0.03125
      %v785 = vmul.f32 %v752, 0.03125
      %v786 = vmul.f32 %v754, 0.03125
      %v787 = vmul.f32 %v764, 0.03125
      %v788 = vmul.f32 %v766, 0.03125
      %v789 = vmul.f32 %v768, 0.03125
      %v790 = vmul.f32 %v770, 0.03125
      %v791 = vmul.f32 %v772, 0.03125
      %v792 = vmul.f32 %v774, 0.03125
      %v793 = vmul.f32 %v776, 0.03125
      %v794 = vmul.f32 %v778, 0.03125
      %v795 = vmul.f32 %v779, %v779
      %v796 = vmul.f32 %v780, %v780
      %v797 = vmul.f32 %v781, %v781
      %v798 = vmul.f32 %v782, %v782
      %v799 = vmul.f32 %v783, %v783
      %v800 = vmul.f32 %v784, %v784
      %v801 = vmul.f32 %v785, %v785
      %v802 = vmul.f32 %v786, %v786
      %v803 = vsub.f32 %v787, %v795
      %v804 = vsub.f32 %v788, %v796
      %v805 = vsub.f32 %v789, %v797
      %v806 = vsub.f32 %v790, %v798
      %v807 = vsub.f32 %v791, %v799
      %v808 = vsub.f32 %v792, %v800
      %v809 = vsub.f32 %v793, %v801
      %v810 = vsub.f32 %v794, %v802
      %v811 = vmax.f32 %v803, 0.0
      %v812 = vmax.f32 %v804, 0.0
      %v813 = vmax.f32 %v805, 0.0
      %v814 = vmax.f32 %v806, 0.0
      %v815 = vmax.f32 %v807, 0.0
      %v816 = vmax.f32 %v808, 0.0
      %v817 = vmax.f32 %v809, 0.0
      %v818 = vmax.f32 %v810, 0.0
      %v819 = vld [vmem:[%s234] sm:$0xff]
      %v820 = vld [vmem:[%s234 + $0x8] sm:$0xff]
      %v821 = vld [vmem:[%s234 + $0x10] sm:$0xff]
      %v822 = vld [vmem:[%s234 + $0x18] sm:$0xff]
      %v823 = vld [vmem:[%s234 + $0x20] sm:$0xff]
      %v824 = vld [vmem:[%s234 + $0x28] sm:$0xff]
      %v825 = vld [vmem:[%s234 + $0x30] sm:$0xff]
      %v826 = vld [vmem:[%s234 + $0x38] sm:$0xff]
      %v827 = vadd.f32 %v811, 1e-05
      %v828 = vadd.f32 %v812, 1e-05
      %v829 = vadd.f32 %v813, 1e-05
      %v830 = vadd.f32 %v814, 1e-05
      %v831 = vadd.f32 %v815, 1e-05
      %v832 = vadd.f32 %v816, 1e-05
      %v833 = vadd.f32 %v817, 1e-05
      %v834 = vadd.f32 %v818, 1e-05
      %v835 = vrsqrt.pop %v827
      %v836 = vrsqrt.pop %v828
      %v837 = vrsqrt.pop %v829
      %v838 = vrsqrt.pop %v830
      %v839 = vrsqrt.pop %v831
      %v840 = vrsqrt.pop %v832
      %v841 = vrsqrt.pop %v833
      %v842 = vrsqrt.pop %v834
      %v843 = vmul.f32 %v819, %v835
      %v844 = vmul.f32 %v820, %v836
      %v845 = vmul.f32 %v821, %v837
      %v846 = vmul.f32 %v822, %v838
      %v847 = vmul.f32 %v823, %v839
      %v848 = vmul.f32 %v824, %v840
      %v849 = vmul.f32 %v825, %v841
      %v850 = vmul.f32 %v826, %v842
      %v851 = vld [vmem:[%s240] sm:$0xff]
      %v852 = vld [vmem:[%s240 + $0x8] sm:$0xff]
      %v853 = vld [vmem:[%s240 + $0x10] sm:$0xff]
      %v854 = vld [vmem:[%s240 + $0x18] sm:$0xff]
      %v855 = vld [vmem:[%s240 + $0x20] sm:$0xff]
      %v856 = vld [vmem:[%s240 + $0x28] sm:$0xff]
      %v857 = vld [vmem:[%s240 + $0x30] sm:$0xff]
      %v858 = vld [vmem:[%s240 + $0x38] sm:$0xff]
      %v859 = vmul.f32 %v779, %v843
      %v860 = vmul.f32 %v780, %v844
      %v861 = vmul.f32 %v781, %v845
      %v862 = vmul.f32 %v782, %v846
      %v863 = vmul.f32 %v783, %v847
      %v864 = vmul.f32 %v784, %v848
      %v865 = vmul.f32 %v785, %v849
      %v866 = vmul.f32 %v786, %v850
      %v867 = vsub.f32 %v851, %v859
      %v868 = vsub.f32 %v852, %v860
      %v869 = vsub.f32 %v853, %v861
      %v870 = vsub.f32 %v854, %v862
      %v871 = vsub.f32 %v855, %v863
      %v872 = vsub.f32 %v856, %v864
      %v873 = vsub.f32 %v857, %v865
      %v874 = vsub.f32 %v858, %v866
      %v875 = vld [vmem:[#allocation2] sm:$0xff]
      %v876 = vld [vmem:[#allocation2 + $0x8] sm:$0xff]
      %v877 = vld [vmem:[#allocation2 + $0x10] sm:$0xff]
      %v878 = vld [vmem:[#allocation2 + $0x18] sm:$0xff]
      %v879 = vld [vmem:[#allocation2 + $0x20] sm:$0xff]
      %v880 = vld [vmem:[#allocation2 + $0x28] sm:$0xff]
      %v881 = vld [vmem:[#allocation2 + $0x30] sm:$0xff]
      %v882 = vld [vmem:[#allocation2 + $0x38] sm:$0xff]
      %884 = vset.pattern.permute.xlu0 0
      %885 = vperm.xlu0 %884, %v843
      %v886 = vpop.permute.xlu0 %885
      %889 = vset.pattern.permute.xlu0 0
      %890 = vperm.xlu0 %889, %v844
      %v891 = vpop.permute.xlu0 %890
      %894 = vset.pattern.permute.xlu0 0
      %895 = vperm.xlu0 %894, %v845
      %v896 = vpop.permute.xlu0 %895
      %899 = vset.pattern.permute.xlu0 0
      %900 = vperm.xlu0 %899, %v846
      %v901 = vpop.permute.xlu0 %900
      %904 = vset.pattern.permute.xlu0 0
      %905 = vperm.xlu0 %904, %v847
      %v906 = vpop.permute.xlu0 %905
      %909 = vset.pattern.permute.xlu0 0
      %910 = vperm.xlu0 %909, %v848
      %v911 = vpop.permute.xlu0 %910
      %914 = vset.pattern.permute.xlu0 0
      %915 = vperm.xlu0 %914, %v849
      %v916 = vpop.permute.xlu0 %915
      %919 = vset.pattern.permute.xlu0 0
      %920 = vperm.xlu0 %919, %v850
      %v921 = vpop.permute.xlu0 %920
      %v923 = vmul.f32 %v875, %v886
      %v924 = vmul.f32 %v876, %v891
      %v925 = vmul.f32 %v877, %v896
      %v926 = vmul.f32 %v878, %v901
      %v927 = vmul.f32 %v879, %v906
      %v928 = vmul.f32 %v880, %v911
      %v929 = vmul.f32 %v881, %v916
      %v930 = vmul.f32 %v882, %v921
      %932 = vset.pattern.permute.xlu0 0
      %933 = vperm.xlu0 %932, %v867
      %v934 = vpop.permute.xlu0 %933
      %937 = vset.pattern.permute.xlu0 0
      %938 = vperm.xlu0 %937, %v868
      %v939 = vpop.permute.xlu0 %938
      %942 = vset.pattern.permute.xlu0 0
      %943 = vperm.xlu0 %942, %v869
      %v944 = vpop.permute.xlu0 %943
      %947 = vset.pattern.permute.xlu0 0
      %948 = vperm.xlu0 %947, %v870
      %v949 = vpop.permute.xlu0 %948
      %952 = vset.pattern.permute.xlu0 0
      %953 = vperm.xlu0 %952, %v871
      %v954 = vpop.permute.xlu0 %953
      %957 = vset.pattern.permute.xlu0 0
      %958 = vperm.xlu0 %957, %v872
      %v959 = vpop.permute.xlu0 %958
      %962 = vset.pattern.permute.xlu0 0
      %963 = vperm.xlu0 %962, %v873
      %v964 = vpop.permute.xlu0 %963
      %967 = vset.pattern.permute.xlu0 0
      %968 = vperm.xlu0 %967, %v874
      %v969 = vpop.permute.xlu0 %968
      %v971 = vadd.f32 %v923, %v934
      %v972 = vadd.f32 %v924, %v939
      %v973 = vadd.f32 %v925, %v944
      %v974 = vadd.f32 %v926, %v949
      %v975 = vadd.f32 %v927, %v954
      %v976 = vadd.f32 %v928, %v959
      %v977 = vadd.f32 %v929, %v964
      %v978 = vadd.f32 %v930, %v969
      %v979 = vmax.f32 %v971, 0.0
      %v980 = vmax.f32 %v972, 0.0
      %v981 = vmax.f32 %v973, 0.0
      %v982 = vmax.f32 %v974, 0.0
      %v983 = vmax.f32 %v975, 0.0
      %v984 = vmax.f32 %v976, 0.0
      %v985 = vmax.f32 %v977, 0.0
      %v986 = vmax.f32 %v978, 0.0
      %v987 = vpack.c.bf16 %v980, %v979
      %v988 = vpack.c.bf16 %v982, %v981
      %v989 = vpack.c.bf16 %v984, %v983
      %v990 = vpack.c.bf16 %v986, %v985
      %v995 = vunpack.c.l.b16 %v987
      %v996 = vunpack.c.h.b16 %v987
      %v997 = vunpack.c.l.b16 %v988
      %v998 = vunpack.c.h.b16 %v988
      %v999 = vunpack.c.l.b16 %v989
      %v1000 = vunpack.c.h.b16 %v989
      %v1001 = vunpack.c.l.b16 %v990
      %v1002 = vunpack.c.h.b16 %v990
      %v1003 = vpack.c.b16 %v995, %v995
      %v1004 = vpack.c.b16 %v996, %v996
      %v1005 = vpack.c.b16 %v997, %v997
      %v1006 = vpack.c.b16 %v998, %v998
      %v1007 = vpack.c.b16 %v999, %v999
      %v1008 = vpack.c.b16 %v1000, %v1000
      %v1009 = vpack.c.b16 %v1001, %v1001
      %v1010 = vpack.c.b16 %v1002, %v1002
      %1019 = vst [vmem:[%s246] sm:$0xf] %v1003
      %1020 = vst [vmem:[%s246 + $0x4] sm:$0xf] %v1004
      %1021 = vst [vmem:[%s246 + $0x8] sm:$0xf] %v1005
      %1022 = vst [vmem:[%s246 + $0xc] sm:$0xf] %v1006
      %1023 = vst [vmem:[%s246 + $0x10] sm:$0xf] %v1007
      %1024 = vst [vmem:[%s246 + $0x14] sm:$0xf] %v1008
      %1025 = vst [vmem:[%s246 + $0x18] sm:$0xf] %v1009
      %1026 = vst [vmem:[%s246 + $0x1c] sm:$0xf] %v1010
      %s1027 = smul.u32 8, %s15
      %p1028 = scmp.lt.s32.totalorder %s1027, 15
      %s1029 = scalar_select %p1028, %s1027, 15
      %s1030 = smul.addr %s1029, 4
      %s1031 = scalar_lea.vmem %s4, %s1030
      // Predicated region
      $region37: #{generator_forward.5} parent=35 // pred_check
        %p1032 = pneg %p132
      $region38: #{generator_forward.5} parent=35 // pred_check_branch
        %1034 = sbr.rel (%p1032) target = $region40
      $region39: #{generator_forward.5} parent=35 // pred_region
        %s1035 = smul.u32 8, %s15
      $region40: #{generator_forward.5} parent=35 // pred_fallthru
        _
    $region36: #{generator_forward.5} parent=5 // pred_fallthru
      _
    %p1036 = scmp.le.s32.totalorder 2, %s10
    // Predicated region
    $region41: #{generator_forward.5} parent=5 // pred_check
      %p1037 = pneg %p1036
    $region42: #{generator_forward.5} parent=5 // pred_check_branch
      %1039 = sbr.rel (%p1037) target = $region44
    $region43: #{generator_forward.5} parent=5 // pred_region
      %s1040 = ssub.s32 %s10, 2
      // Predicated region
      $region45: #{generator_forward.5} parent=43 // pred_check
        %p1041 = pneg %p138
      $region46: #{generator_forward.5} parent=43 // pred_check_branch
        %1043 = sbr.rel (%p1041) target = $region48
      $region47: #{generator_forward.5} parent=43 // pred_region
        %s1044 = smul.u32 8, %s16
        %p1045 = scmp.lt.s32.totalorder %s1044, 15
        %s1046 = scalar_select %p1045, %s1044, 15
        %s1047 = smul.addr %s1046, 4
        %s1048 = scalar_lea.vmem %s4, %s1047
      $region48: #{generator_forward.5} parent=43 // pred_fallthru
        _
    $region44: #{generator_forward.5} parent=5 // pred_fallthru
      _
  $region6: #{generator_forward.5} parent=0 // loop_footer
    %s14 = sadd.s32 1, %s10
  $region7: #{generator_forward.5} parent=0 // loop_footer_branch
    %9 = sbr.rel target = $region3
  $region8: #{generator_forward.5} parent=0 // loop_exit
    _

// kernel: generator_forward.6
$region0: #{generator_forward.6}
  #allocation0 [shape = 'u32[]', space=smem, size = 0x4, offset = 0x4, fixed_abs, tag = 'smem constant byte address 0x4 - core index']
  #allocation1 [shape = 'u32[144,128]{1,0:T(1,128)}', space=vmem, size = 0x12000, scoped, tag = 'internal scratch']
  #allocation2 [shape = 'f32[4,32,128]{2,1,0:T(8,128)}', space=vmem, size = 0x10000, scoped, tag = 'scratch operand']
  %s0 = inlined_call_operand.vmem [shape: bf16[4,64,512], index: 0, kind: input, shape index: {}]
  %s1 = inlined_call_operand.vmem [shape: bf16[4,512,128], index: 1, kind: input, shape index: {}]
  %s2 = inlined_call_operand.vmem [shape: f32[64,1], index: 2, kind: input, shape index: {}]
  %s3 = inlined_call_operand.vmem [shape: f32[64,1], index: 3, kind: input, shape index: {}]
  %s4 = inlined_call_operand.vmem [shape: bf16[4,64,128], index: 4, kind: output, shape index: {}]
  %s5 = sld [smem:[#allocation0]]
  $region109: #{generator_forward.6} parent=0
    _
  %s7 = ssub.s32 1, %s5
  %s8 = scalar_select 0, %s7, %s5
  $region1: #{generator_forward.6} parent=0
    #allocation3 [shape = 'u8[262144]{0}', space=vmem, size = 0x40000, scoped, tag = 'input window, operand 0']
    #allocation4 [shape = 'u8[65536]{0}', space=vmem, size = 0x10000, scoped, tag = 'output window, operand 0']
    loop: start=0, step=1, limit=4
    $region2: #{generator_forward.6} parent=1 // loop_pre_header
      _
    $region3: #{generator_forward.6} parent=1 // loop_header
      %s10 = sphi 0, %s14
      %p11 = scmp.ge.s32.totalorder %s10, 4
      %s20 = sphi 0, %s22
      %s23 = sphi 0, %s20
      %s24 = sphi 0, %s23
      %s40 = sphi 0, %s24
      %s44 = sphi 0, %s44
      %s46 = sphi 0, %s44
      %s47 = sphi 0, %s46
      %s61 = sphi 0, %s47
      %s67 = sphi 0, %s69
      %s70 = sphi 0, %s67
      %s71 = sphi 0, %s70
      %s87 = sphi 0, %s71
      %s93 = sphi 0, %s95
      %s96 = sphi 0, %s93
      %s97 = sphi 0, %s96
      %s113 = sphi 0, %s97
      %s119 = sphi 0, %s121
      %s122 = sphi 0, %s119
      %s123 = sphi 0, %s122
      %s139 = sphi 0, %s123
    $region4: #{generator_forward.6} parent=1 // loop_header_branch
      %13 = sbr.rel (%p11) target = $region8
    $region5: #{generator_forward.6} parent=1 // loop_body
      %s15 = ssub.s32 %s10, 1
      %s16 = ssub.s32 %s10, 2
      %s17 = sadd.s32 %s10, 1
      %s18 = ssub.s32 %s10, %s17
      %p19 = scmp.eq.s32.totalorder %s18, 0
      %s21 = sadd.s32 %s20, 1
      %s22 = scalar_select %p19, %s20, %s21
      %p25 = pneg %p19
      %p26 = scmp.eq.s32.totalorder %s10, 1
      %p27 = por %p25, %p26
      %p28 = scmp.ne.s32.totalorder %s20, %s23
      %p29 = scmp.eq.s32.totalorder %s10, 0
      %p30 = por %p28, %p29
      %p31 = scmp.ne.s32.totalorder %s20, %s23
      %p32 = scmp.eq.s32.totalorder %s15, 1
      %p33 = por %p31, %p32
      %p34 = scmp.ne.s32.totalorder %s23, %s24
      %p35 = scmp.eq.s32.totalorder %s15, 0
      %p36 = por %p34, %p35
      %p37 = scmp.ne.s32.totalorder %s23, %s24
      %p38 = scmp.eq.s32.totalorder %s16, 1
      %p39 = por %p37, %p38
      %p41 = scmp.ne.s32.totalorder %s24, %s40
      %p42 = scmp.eq.s32.totalorder %s16, 0
      %p43 = por %p41, %p42
      %s45 = sadd.s32 %s44, 1
      %p48 = scmp.eq.s32.totalorder %s10, 1
      %p49 = scmp.ne.s32.totalorder %s44, %s46
      %p50 = scmp.eq.s32.totalorder %s10, 0
      %p51 = por %p49, %p50
      %p52 = scmp.ne.s32.totalorder %s44, %s46
      %p53 = scmp.eq.s32.totalorder %s15, 1
      %p54 = por %p52, %p53
      %p55 = scmp.ne.s32.totalorder %s46, %s47
      %p56 = scmp.eq.s32.totalorder %s15, 0
      %p57 = por %p55, %p56
      %p58 = scmp.ne.s32.totalorder %s46, %s47
      %p59 = scmp.eq.s32.totalorder %s16, 1
      %p60 = por %p58, %p59
      %p62 = scmp.ne.s32.totalorder %s47, %s61
      %p63 = scmp.eq.s32.totalorder %s16, 0
      %p64 = por %p62, %p63
      %s65 = ssub.s32 %s10, %s17
      %p66 = scmp.eq.s32.totalorder %s65, 0
      %s68 = sadd.s32 %s67, 1
      %s69 = scalar_select %p66, %s67, %s68
      %p72 = pneg %p66
      %p73 = scmp.eq.s32.totalorder %s10, 1
      %p74 = por %p72, %p73
      %p75 = scmp.ne.s32.totalorder %s67, %s70
      %p76 = scmp.eq.s32.totalorder %s10, 0
      %p77 = por %p75, %p76
      %p78 = scmp.ne.s32.totalorder %s67, %s70
      %p79 = scmp.eq.s32.totalorder %s15, 1
      %p80 = por %p78, %p79
      %p81 = scmp.ne.s32.totalorder %s70, %s71
      %p82 = scmp.eq.s32.totalorder %s15, 0
      %p83 = por %p81, %p82
      %p84 = scmp.ne.s32.totalorder %s70, %s71
      %p85 = scmp.eq.s32.totalorder %s16, 1
      %p86 = por %p84, %p85
      %p88 = scmp.ne.s32.totalorder %s71, %s87
      %p89 = scmp.eq.s32.totalorder %s16, 0
      %p90 = por %p88, %p89
      %s91 = ssub.s32 %s10, %s17
      %p92 = scmp.eq.s32.totalorder %s91, 0
      %s94 = sadd.s32 %s93, 1
      %s95 = scalar_select %p92, %s93, %s94
      %p98 = pneg %p92
      %p99 = scmp.eq.s32.totalorder %s10, 1
      %p100 = por %p98, %p99
      %p101 = scmp.ne.s32.totalorder %s93, %s96
      %p102 = scmp.eq.s32.totalorder %s10, 0
      %p103 = por %p101, %p102
      %p104 = scmp.ne.s32.totalorder %s93, %s96
      %p105 = scmp.eq.s32.totalorder %s15, 1
      %p106 = por %p104, %p105
      %p107 = scmp.ne.s32.totalorder %s96, %s97
      %p108 = scmp.eq.s32.totalorder %s15, 0
      %p109 = por %p107, %p108
      %p110 = scmp.ne.s32.totalorder %s96, %s97
      %p111 = scmp.eq.s32.totalorder %s16, 1
      %p112 = por %p110, %p111
      %p114 = scmp.ne.s32.totalorder %s97, %s113
      %p115 = scmp.eq.s32.totalorder %s16, 0
      %p116 = por %p114, %p115
      %s117 = ssub.s32 %s10, %s17
      %p118 = scmp.eq.s32.totalorder %s117, 0
      %s120 = sadd.s32 %s119, 1
      %s121 = scalar_select %p118, %s119, %s120
      %p124 = pneg %p118
      %p125 = scmp.eq.s32.totalorder %s10, 1
      %p126 = por %p124, %p125
      %p127 = scmp.ne.s32.totalorder %s119, %s122
      %p128 = scmp.eq.s32.totalorder %s10, 0
      %p129 = por %p127, %p128
      %p130 = scmp.ne.s32.totalorder %s119, %s122
      %p131 = scmp.eq.s32.totalorder %s15, 1
      %p132 = por %p130, %p131
      %p133 = scmp.ne.s32.totalorder %s122, %s123
      %p134 = scmp.eq.s32.totalorder %s15, 0
      %p135 = por %p133, %p134
      %p136 = scmp.ne.s32.totalorder %s122, %s123
      %p137 = scmp.eq.s32.totalorder %s16, 1
      %p138 = por %p136, %p137
      %p140 = scmp.ne.s32.totalorder %s123, %s139
      %p141 = scmp.eq.s32.totalorder %s16, 0
      %p142 = por %p140, %p141
      %p143 = scmp.le.s32.totalorder 1, %s10
      %p144 = scmp.lt.s32.totalorder %s10, 3
      %p145 = pnand %p143, %p144
      %p146 = pneg %p145
      // Predicated region
      $region9: #{generator_forward.6} parent=5 // pred_check
        _
      $region10: #{generator_forward.6} parent=5 // pred_check_branch
        %148 = sbr.rel (%p145) target = $region12
      $region11: #{generator_forward.6} parent=5 // pred_region
        %s149 = ssub.s32 %s10, 1
        // Predicated region
        $region13: #{generator_forward.6} parent=11 // pred_check
          %p150 = pneg %p57
        $region14: #{generator_forward.6} parent=11 // pred_check_branch
          %152 = sbr.rel (%p150) target = $region16
        $region15: #{generator_forward.6} parent=11 // pred_region
          _
        $region16: #{generator_forward.6} parent=11 // pred_fallthru
          _
      $region12: #{generator_forward.6} parent=5 // pred_fallthru
        _
      %p153 = scmp.lt.s32.totalorder %s10, 2
      // Predicated region
      $region17: #{generator_forward.6} parent=5 // pred_check
        %p154 = pneg %p153
      $region18: #{generator_forward.6} parent=5 // pred_check_branch
        %156 = sbr.rel (%p154) target = $region20
      $region19: #{generator_forward.6} parent=5 // pred_region
        // Predicated region
        $region21: #{generator_forward.6} parent=19 // pred_check
          %p157 = pneg %p30
        $region22: #{generator_forward.6} parent=19 // pred_check_branch
          %159 = sbr.rel (%p157) target = $region24
        $region23: #{generator_forward.6} parent=19 // pred_region
          %s160 = sand.u32 %s20, 1
          %s161 = sand.u32 %s20, 1
          %s162 = smul.addr %s161, 256
          %s163 = scalar_lea.vmem [#allocation3], %s162
          %s164 = smul.u32 4, %s10
          %s165 = smul.addr %s164, 4
          %s166 = smul.addr %s165, 4
          %s167 = scalar_lea.vmem %s0, %s166
          // Predicated region
          $region25: #{generator_forward.6} parent=23 // pred_check
            _
          $region26: #{generator_forward.6} parent=23 // pred_check_branch
            %169 = sbr.rel (0) target = $region28
          $region27: #{generator_forward.6} parent=23 // pred_region
            // Predicated region
            $region29: #{generator_forward.6} parent=27 // pred_check
              _
            $region30: #{generator_forward.6} parent=27 // pred_check_branch
              %171 = sbr.rel (0) target = $region32
            $region31: #{generator_forward.6} parent=27 // pred_region
              loop: start=0, step=1, limit=1
              $region33: #{generator_forward.6} parent=31 // loop_pre_header
                _
              $region34: #{generator_forward.6} parent=31 // loop_header
                %s173 = sphi 0, %s177
                %p174 = scmp.ge.s32.totalorder %s173, 1
                %s178 = sphi %s167, %s167
                %s179 = sphi %s163, %s163
              $region35: #{generator_forward.6} parent=31 // loop_header_branch
                %176 = sbr.rel (%p174) target = $region39
              $region36: #{generator_forward.6} parent=31 // loop_body
                %v180 = vld [vmem:[%s178] sm:$0xff]
                %181 = vst [vmem:[%s179] sm:$0xff] %v180
                %v182 = vld [vmem:[%s178 + $0x8] sm:$0xff]
                %183 = vst [vmem:[%s179 + $0x8] sm:$0xff] %v182
                %v184 = vld [vmem:[%s178 + $0x10] sm:$0xff]
                %185 = vst [vmem:[%s179 + $0x10] sm:$0xff] %v184
                %v186 = vld [vmem:[%s178 + $0x18] sm:$0xff]
                %187 = vst [vmem:[%s179 + $0x18] sm:$0xff] %v186
                %v188 = vld [vmem:[%s178 + $0x20] sm:$0xff]
                %189 = vst [vmem:[%s179 + $0x20] sm:$0xff] %v188
                %v190 = vld [vmem:[%s178 + $0x28] sm:$0xff]
                %191 = vst [vmem:[%s179 + $0x28] sm:$0xff] %v190
                %v192 = vld [vmem:[%s178 + $0x30] sm:$0xff]
                %193 = vst [vmem:[%s179 + $0x30] sm:$0xff] %v192
                %v194 = vld [vmem:[%s178 + $0x38] sm:$0xff]
                %195 = vst [vmem:[%s179 + $0x38] sm:$0xff] %v194
                %v196 = vld [vmem:[%s178 + $0x80] sm:$0xff]
                %197 = vst [vmem:[%s179 + $0x40] sm:$0xff] %v196
                %v198 = vld [vmem:[%s178 + $0x88] sm:$0xff]
                %199 = vst [vmem:[%s179 + $0x48] sm:$0xff] %v198
                %v200 = vld [vmem:[%s178 + $0x90] sm:$0xff]
                %201 = vst [vmem:[%s179 + $0x50] sm:$0xff] %v200
                %v202 = vld [vmem:[%s178 + $0x98] sm:$0xff]
                %203 = vst [vmem:[%s179 + $0x58] sm:$0xff] %v202
                %v204 = vld [vmem:[%s178 + $0xa0] sm:$0xff]
                %205 = vst [vmem:[%s179 + $0x60] sm:$0xff] %v204
                %v206 = vld [vmem:[%s178 + $0xa8] sm:$0xff]
                %207 = vst [vmem:[%s179 + $0x68] sm:$0xff] %v206
                %v208 = vld [vmem:[%s178 + $0xb0] sm:$0xff]
                %209 = vst [vmem:[%s179 + $0x70] sm:$0xff] %v208
                %v210 = vld [vmem:[%s178 + $0xb8] sm:$0xff]
                %211 = vst [vmem:[%s179 + $0x78] sm:$0xff] %v210
                %v212 = vld [vmem:[%s178 + $0x100] sm:$0xff]
                %213 = vst [vmem:[%s179 + $0x80] sm:$0xff] %v212
                %v214 = vld [vmem:[%s178 + $0x108] sm:$0xff]
                %215 = vst [vmem:[%s179 + $0x88] sm:$0xff] %v214
                %v216 = vld [vmem:[%s178 + $0x110] sm:$0xff]
                %217 = vst [vmem:[%s179 + $0x90] sm:$0xff] %v216
                %v218 = vld [vmem:[%s178 + $0x118] sm:$0xff]
                %219 = vst [vmem:[%s179 + $0x98] sm:$0xff] %v218
                %v220 = vld [vmem:[%s178 + $0x120] sm:$0xff]
                %221 = vst [vmem:[%s179 + $0xa0] sm:$0xff] %v220
                %v222 = vld [vmem:[%s178 + $0x128] sm:$0xff]
                %223 = vst [vmem:[%s179 + $0xa8] sm:$0xff] %v222
                %v224 = vld [vmem:[%s178 + $0x130] sm:$0xff]
                %225 = vst [vmem:[%s179 + $0xb0] sm:$0xff] %v224
                %v226 = vld [vmem:[%s178 + $0x138] sm:$0xff]
                %227 = vst [vmem:[%s179 + $0xb8] sm:$0xff] %v226
                %v228 = vld [vmem:[%s178 + $0x180] sm:$0xff]
                %229 = vst [vmem:[%s179 + $0xc0] sm:$0xff] %v228
                %v230 = vld [vmem:[%s178 + $0x188] sm:$0xff]
                %231 = vst [vmem:[%s179 + $0xc8] sm:$0xff] %v230
                %v232 = vld [vmem:[%s178 + $0x190] sm:$0xff]
                %233 = vst [vmem:[%s179 + $0xd0] sm:$0xff] %v232
                %v234 = vld [vmem:[%s178 + $0x198] sm:$0xff]
                %235 = vst [vmem:[%s179 + $0xd8] sm:$0xff] %v234
                %v236 = vld [vmem:[%s178 + $0x1a0] sm:$0xff]
                %237 = vst [vmem:[%s179 + $0xe0] sm:$0xff] %v236
                %v238 = vld [vmem:[%s178 + $0x1a8] sm:$0xff]
                %239 = vst [vmem:[%s179 + $0xe8] sm:$0xff] %v238
                %v240 = vld [vmem:[%s178 + $0x1b0] sm:$0xff]
                %241 = vst [vmem:[%s179 + $0xf0] sm:$0xff] %v240
                %v242 = vld [vmem:[%s178 + $0x1b8] sm:$0xff]
                %243 = vst [vmem:[%s179 + $0xf8] sm:$0xff] %v242
              $region37: #{generator_forward.6} parent=31 // loop_footer
                %s177 = sadd.s32 1, %s173
              $region38: #{generator_forward.6} parent=31 // loop_footer_branch
                %172 = sbr.rel target = $region34
              $region39: #{generator_forward.6} parent=31 // loop_exit
                _
            $region32: #{generator_forward.6} parent=27 // pred_fallthru
              _
            // Predicated region
            $region40: #{generator_forward.6} parent=27 // pred_check
              _
            $region41: #{generator_forward.6} parent=27 // pred_check_branch
              %245 = sbr.rel target = $region43
            $region42: #{generator_forward.6} parent=27 // pred_region
              _
            $region43: #{generator_forward.6} parent=27 // pred_fallthru
              _
          $region28: #{generator_forward.6} parent=23 // pred_fallthru
            _
          %246 = vnop
        $region24: #{generator_forward.6} parent=19 // pred_fallthru
          _
        // Predicated region
        $region44: #{generator_forward.6} parent=19 // pred_check
          %p247 = pneg %p77
        $region45: #{generator_forward.6} parent=19 // pred_check_branch
          %249 = sbr.rel (%p247) target = $region47
        $region46: #{generator_forward.6} parent=19 // pred_region
          %s250 = smul.u32 4, %s10
          %p251 = scmp.lt.s32.totalorder %s250, 7
          %s252 = scalar_select %p251, %s250, 7
          %s253 = smul.addr %s252, 8
          %s254 = scalar_lea.vmem %s2, %s253
          %s255 = smul.u32 4, %s10
        $region47: #{generator_forward.6} parent=19 // pred_fallthru
          _
        // Predicated region
        $region48: #{generator_forward.6} parent=19 // pred_check
          %p256 = pneg %p103
        $region49: #{generator_forward.6} parent=19 // pred_check_branch
          %258 = sbr.rel (%p256) target = $region51
        $region50: #{generator_forward.6} parent=19 // pred_region
          %s259 = smul.u32 4, %s10
          %p260 = scmp.lt.s32.totalorder %s259, 7
          %s261 = scalar_select %p260, %s259, 7
          %s262 = smul.addr %s261, 8
          %s263 = scalar_lea.vmem %s3, %s262
          %s264 = smul.u32 4, %s10
        $region51: #{generator_forward.6} parent=19 // pred_fallthru
          _
      $region20: #{generator_forward.6} parent=5 // pred_fallthru
        _
      %p265 = scmp.le.s32.totalorder 1, %s10
      %p266 = scmp.lt.s32.totalorder %s10, 3
      %p267 = pnand %p265, %p266
      %p268 = pneg %p267
      // Predicated region
      $region52: #{generator_forward.6} parent=5 // pred_check
        _
      $region53: #{generator_forward.6} parent=5 // pred_check_branch
        %270 = sbr.rel (%p267) target = $region55
      $region54: #{generator_forward.6} parent=5 // pred_region
        %s271 = ssub.s32 %s10, 1
        %s272 = sand.u32 %s23, 1
        %s273 = sand.u32 %s23, 1
        %s274 = smul.addr %s273, 256
        %s275 = scalar_lea.vmem [#allocation3], %s274
        // Predicated region
        $region56: #{generator_forward.6} parent=54 // pred_check
          %p276 = pneg %p36
        $region57: #{generator_forward.6} parent=54 // pred_check_branch
          %278 = sbr.rel (%p276) target = $region59
        $region58: #{generator_forward.6} parent=54 // pred_region
          _
        $region59: #{generator_forward.6} parent=54 // pred_fallthru
          _
        %s279 = sand.u32 %s23, 1
        %s280 = sand.u32 %s23, 1
        %s281 = smul.addr %s280, 256
        %s282 = scalar_lea.vmem [#allocation3], %s281
        %p283 = pneg %p36
        %p284 = pneg %p33
        %p285 = pneg %p57
        %p286 = pneg %p54
        %s287 = smul.u32 4, %s15
        %p288 = scmp.lt.s32.totalorder %s287, 7
        %s289 = scalar_select %p288, %s287, 7
        %s290 = smul.addr %s289, 8
        %s291 = scalar_lea.vmem %s2, %s290
        %p292 = pneg %p83
        %p293 = pneg %p80
        %s294 = smul.u32 4, %s15
        %p295 = scmp.lt.s32.totalorder %s294, 7
        %s296 = scalar_select %p295, %s294, 7
        %s297 = smul.addr %s296, 8
        %s298 = scalar_lea.vmem %s3, %s297
        %p299 = pneg %p109
        %p300 = pneg %p106
        %p301 = pneg %p135
        %p302 = pneg %p132
        %s303 = sand.u32 %s122, 1
        %s304 = sand.u32 %s122, 1
        %s305 = smul.addr %s304, 64
        %s306 = scalar_lea.vmem [#allocation4], %s305
        %s307 = smul.u32 4, %s15
        %s308 = smul.u32 4, %s15
        %p309 = scmp.lt.s32.totalorder %s308, 7
        %s310 = scalar_select %p309, %s308, 7
        %s311 = smul.addr %s310, 8
        %s312 = scalar_lea.vmem %s2, %s311
        %s313 = smul.u32 4, %s15
        %s314 = smul.u32 4, %s15
        %p315 = scmp.lt.s32.totalorder %s314, 7
        %s316 = scalar_select %p315, %s314, 7
        %s317 = smul.addr %s316, 8
        %s318 = scalar_lea.vmem %s3, %s317
        %s319 = smul.u32 4, %s15
        %s320 = smul.u32 4, %s15
        %v322 = vld [vmem:[%s275] sm:$0xff]
        %v323 = vld [vmem:[%s275 + $0x8] sm:$0xff]
        %v324 = vld [vmem:[%s275 + $0x10] sm:$0xff]
        %v325 = vld [vmem:[%s275 + $0x18] sm:$0xff]
        %v326 = vld [vmem:[%s275 + $0x20] sm:$0xff]
        %v327 = vld [vmem:[%s275 + $0x28] sm:$0xff]
        %v328 = vld [vmem:[%s275 + $0x30] sm:$0xff]
        %v329 = vld [vmem:[%s275 + $0x38] sm:$0xff]
        %v330 = vld [vmem:[%s1] sm:$0xf]
        %v331 = vld [vmem:[%s1 + $0x4] sm:$0xf]
        %v332 = vld [vmem:[%s1 + $0x8] sm:$0xf]
        %v333 = vld [vmem:[%s1 + $0xc] sm:$0xf]
        %v334 = vld [vmem:[%s1 + $0x10] sm:$0xf]
        %v335 = vld [vmem:[%s1 + $0x14] sm:$0xf]
        %v336 = vld [vmem:[%s1 + $0x18] sm:$0xf]
        %v337 = vld [vmem:[%s1 + $0x1c] sm:$0xf]
        %v338 = vld [vmem:[%s1 + $0x20] sm:$0xf]
        %v339 = vld [vmem:[%s1 + $0x24] sm:$0xf]
        %v340 = vld [vmem:[%s1 + $0x28] sm:$0xf]
        %v341 = vld [vmem:[%s1 + $0x2c] sm:$0xf]
        %v342 = vld [vmem:[%s1 + $0x30] sm:$0xf]
        %v343 = vld [vmem:[%s1 + $0x34] sm:$0xf]
        %v344 = vld [vmem:[%s1 + $0x38] sm:$0xf]
        %v345 = vld [vmem:[%s1 + $0x3c] sm:$0xf]
        %v346 = vld [vmem:[%s1 + $0x40] sm:$0xf]
        %v347 = vld [vmem:[%s1 + $0x44] sm:$0xf]
        %v348 = vld [vmem:[%s1 + $0x48] sm:$0xf]
        %v349 = vld [vmem:[%s1 + $0x4c] sm:$0xf]
        %v350 = vld [vmem:[%s1 + $0x50] sm:$0xf]
        %v351 = vld [vmem:[%s1 + $0x54] sm:$0xf]
        %v352 = vld [vmem:[%s1 + $0x58] sm:$0xf]
        %v353 = vld [vmem:[%s1 + $0x5c] sm:$0xf]
        %v354 = vld [vmem:[%s1 + $0x60] sm:$0xf]
        %v355 = vld [vmem:[%s1 + $0x64] sm:$0xf]
        %v356 = vld [vmem:[%s1 + $0x68] sm:$0xf]
        %v357 = vld [vmem:[%s1 + $0x6c] sm:$0xf]
        %v358 = vld [vmem:[%s1 + $0x70] sm:$0xf]
        %v359 = vld [vmem:[%s1 + $0x74] sm:$0xf]
        %v360 = vld [vmem:[%s1 + $0x78] sm:$0xf]
        %v361 = vld [vmem:[%s1 + $0x7c] sm:$0xf]
        %v362 = vld [vmem:[%s1 + $0x80] sm:$0xf]
        %v363 = vld [vmem:[%s1 + $0x84] sm:$0xf]
        %v364 = vld [vmem:[%s1 + $0x88] sm:$0xf]
        %v365 = vld [vmem:[%s1 + $0x8c] sm:$0xf]
        %v366 = vld [vmem:[%s1 + $0x90] sm:$0xf]
        %v367 = vld [vmem:[%s1 + $0x94] sm:$0xf]
        %v368 = vld [vmem:[%s1 + $0x98] sm:$0xf]
        %v369 = vld [vmem:[%s1 + $0x9c] sm:$0xf]
        %v370 = vld [vmem:[%s1 + $0xa0] sm:$0xf]
        %v371 = vld [vmem:[%s1 + $0xa4] sm:$0xf]
        %v372 = vld [vmem:[%s1 + $0xa8] sm:$0xf]
        %v373 = vld [vmem:[%s1 + $0xac] sm:$0xf]
        %v374 = vld [vmem:[%s1 + $0xb0] sm:$0xf]
        %v375 = vld [vmem:[%s1 + $0xb4] sm:$0xf]
        %v376 = vld [vmem:[%s1 + $0xb8] sm:$0xf]
        %v377 = vld [vmem:[%s1 + $0xbc] sm:$0xf]
        %v378 = vld [vmem:[%s1 + $0xc0] sm:$0xf]
        %v379 = vld [vmem:[%s1 + $0xc4] sm:$0xf]
        %v380 = vld [vmem:[%s1 + $0xc8] sm:$0xf]
        %v381 = vld [vmem:[%s1 + $0xcc] sm:$0xf]
        %v382 = vld [vmem:[%s1 + $0xd0] sm:$0xf]
        %v383 = vld [vmem:[%s1 + $0xd4] sm:$0xf]
        %v384 = vld [vmem:[%s1 + $0xd8] sm:$0xf]
        %v385 = vld [vmem:[%s1 + $0xdc] sm:$0xf]
        %v386 = vld [vmem:[%s1 + $0xe0] sm:$0xf]
        %v387 = vld [vmem:[%s1 + $0xe4] sm:$0xf]
        %v388 = vld [vmem:[%s1 + $0xe8] sm:$0xf]
        %v389 = vld [vmem:[%s1 + $0xec] sm:$0xf]
        %v390 = vld [vmem:[%s1 + $0xf0] sm:$0xf]
        %v391 = vld [vmem:[%s1 + $0xf4] sm:$0xf]
        %v392 = vld [vmem:[%s1 + $0xf8] sm:$0xf]
        %v393 = vld [vmem:[%s1 + $0xfc] sm:$0xf]
        %v402 = vunpack.c.l.b16 %v322
        %v403 = vunpack.c.h.b16 %v322
        %v404 = vunpack.c.l.b16 %v323
        %v405 = vunpack.c.h.b16 %v323
        %v406 = vunpack.c.l.b16 %v324
        %v407 = vunpack.c.h.b16 %v324
        %v408 = vunpack.c.l.b16 %v325
        %v409 = vunpack.c.h.b16 %v325
        %v410 = vunpack.c.l.b16 %v326
        %v411 = vunpack.c.h.b16 %v326
        %v412 = vunpack.c.l.b16 %v327
        %v413 = vunpack.c.h.b16 %v327
        %v414 = vunpack.c.l.b16 %v328
        %v415 = vunpack.c.h.b16 %v328
        %v416 = vunpack.c.l.b16 %v329
        %v417 = vunpack.c.h.b16 %v329
        %v418 = vpack.c.b16 %v406, %v402
        %v419 = vpack.c.b16 %v407, %v403
        %v420 = vpack.c.b16 %v408, %v404
        %v421 = vpack.c.b16 %v409, %v405
        %v422 = vpack.c.b16 %v414, %v410
        %v423 = vpack.c.b16 %v415, %v411
        %v424 = vpack.c.b16 %v416, %v412
        %v425 = vpack.c.b16 %v417, %v413
        %v498 = vunpack.c.l.b16 %v330
        %v499 = vunpack.c.l.b16 %v331
        %v500 = vunpack.c.l.b16 %v332
        %v501 = vunpack.c.l.b16 %v333
        %v502 = vunpack.c.l.b16 %v334
        %v503 = vunpack.c.l.b16 %v335
        %v504 = vunpack.c.l.b16 %v336
        %v505 = vunpack.c.l.b16 %v337
        %v506 = vunpack.c.l.b16 %v338
        %v507 = vunpack.c.l.b16 %v339
        %v508 = vunpack.c.l.b16 %v340
        %v509 = vunpack.c.l.b16 %v341
        %v510 = vunpack.c.l.b16 %v342
        %v511 = vunpack.c.l.b16 %v343
        %v512 = vunpack.c.l.b16 %v344
        %v513 = vunpack.c.l.b16 %v345
        %v514 = vunpack.c.l.b16 %v346
        %v515 = vunpack.c.l.b16 %v347
        %v516 = vunpack.c.l.b16 %v348
        %v517 = vunpack.c.l.b16 %v349
        %v518 = vunpack.c.l.b16 %v350
        %v519 = vunpack.c.l.b16 %v351
        %v520 = vunpack.c.l.b16 %v352
        %v521 = vunpack.c.l.b16 %v353
        %v522 = vunpack.c.l.b16 %v354
        %v523 = vunpack.c.l.b16 %v355
        %v524 = vunpack.c.l.b16 %v356
        %v525 = vunpack.c.l.b16 %v357
        %v526 = vunpack.c.l.b16 %v358
        %v527 = vunpack.c.l.b16 %v359
        %v528 = vunpack.c.l.b16 %v360
        %v529 = vunpack.c.l.b16 %v361
        %v530 = vunpack.c.l.b16 %v362
        %v531 = vunpack.c.l.b16 %v363
        %v532 = vunpack.c.l.b16 %v364
        %v533 = vunpack.c.l.b16 %v365
        %v534 = vunpack.c.l.b16 %v366
        %v535 = vunpack.c.l.b16 %v367
        %v536 = vunpack.c.l.b16 %v368
        %v537 = vunpack.c.l.b16 %v369
        %v538 = vunpack.c.l.b16 %v370
        %v539 = vunpack.c.l.b16 %v371
        %v540 = vunpack.c.l.b16 %v372
        %v541 = vunpack.c.l.b16 %v373
        %v542 = vunpack.c.l.b16 %v374
        %v543 = vunpack.c.l.b16 %v375
        %v544 = vunpack.c.l.b16 %v376
        %v545 = vunpack.c.l.b16 %v377
        %v546 = vunpack.c.l.b16 %v378
        %v547 = vunpack.c.l.b16 %v379
        %v548 = vunpack.c.l.b16 %v380
        %v549 = vunpack.c.l.b16 %v381
        %v550 = vunpack.c.l.b16 %v382
        %v551 = vunpack.c.l.b16 %v383
        %v552 = vunpack.c.l.b16 %v384
        %v553 = vunpack.c.l.b16 %v385
        %v554 = vunpack.c.l.b16 %v386
        %v555 = vunpack.c.l.b16 %v387
        %v556 = vunpack.c.l.b16 %v388
        %v557 = vunpack.c.l.b16 %v389
        %v558 = vunpack.c.l.b16 %v390
        %v559 = vunpack.c.l.b16 %v391
        %v560 = vunpack.c.l.b16 %v392
        %v561 = vunpack.c.l.b16 %v393
        %v562 = vpack.c.b16 %v499, %v498
        %v563 = vpack.c.b16 %v501, %v500
        %v564 = vpack.c.b16 %v503, %v502
        %v565 = vpack.c.b16 %v505, %v504
        %v566 = vpack.c.b16 %v507, %v506
        %v567 = vpack.c.b16 %v509, %v508
        %v568 = vpack.c.b16 %v511, %v510
        %v569 = vpack.c.b16 %v513, %v512
        %v570 = vpack.c.b16 %v515, %v514
        %v571 = vpack.c.b16 %v517, %v516
        %v572 = vpack.c.b16 %v519, %v518
        %v573 = vpack.c.b16 %v521, %v520
        %v574 = vpack.c.b16 %v523, %v522
        %v575 = vpack.c.b16 %v525, %v524
        %v576 = vpack.c.b16 %v527, %v526
        %v577 = vpack.c.b16 %v529, %v528
        %v578 = vpack.c.b16 %v531, %v530
        %v579 = vpack.c.b16 %v533, %v532
        %v580 = vpack.c.b16 %v535, %v534
        %v581 = vpack.c.b16 %v537, %v536
        %v582 = vpack.c.b16 %v539, %v538
        %v583 = vpack.c.b16 %v541, %v540
        %v584 = vpack.c.b16 %v543, %v542
        %v585 = vpack.c.b16 %v545, %v544
        %v586 = vpack.c.b16 %v547, %v546
        %v587 = vpack.c.b16 %v549, %v548
        %v588 = vpack.c.b16 %v551, %v550
        %v589 = vpack.c.b16 %v553, %v552
        %v590 = vpack.c.b16 %v555, %v554
        %v591 = vpack.c.b16 %v557, %v556
        %v592 = vpack.c.b16 %v559, %v558
        %v593 = vpack.c.b16 %v561, %v560
        %626 = vmatprep.subr.bf16.mxu0 0
        %627 = vmatpush1.bf16.msra.mxu0 %v562
        %628 = vmatprep.subr.bf16.mxu0 0
        %629 = vmatpush1.bf16.msra.mxu0 %v563
        %630 = vmatprep.subr.bf16.mxu0 0
        %631 = vmatpush1.bf16.msra.mxu0 %v564
        %632 = vmatprep.subr.bf16.mxu0 0
        %633 = vmatpush1.bf16.msra.mxu0 %v565
        %634 = vmatprep.subr.bf16.mxu0 0
        %635 = vmatpush1.bf16.msra.mxu0 %v566
        %636 = vmatprep.subr.bf16.mxu0 0
        %637 = vmatpush1.bf16.msra.mxu0 %v567
        %638 = vmatprep.subr.bf16.mxu0 0
        %639 = vmatpush1.bf16.msra.mxu0 %v568
        %640 = vmatprep.subr.bf16.mxu0 0
        %641 = vmatpush1.bf16.msra.mxu0 %v569
        %642 = vmatprep.subr.bf16.mxu0 0
        %643 = vmatpush1.bf16.msra.mxu0 %v570
        %644 = vmatprep.subr.bf16.mxu0 0
        %645 = vmatpush1.bf16.msra.mxu0 %v571
        %646 = vmatprep.subr.bf16.mxu0 0
        %647 = vmatpush1.bf16.msra.mxu0 %v572
        %648 = vmatprep.subr.bf16.mxu0 0
        %649 = vmatpush1.bf16.msra.mxu0 %v573
        %650 = vmatprep.subr.bf16.mxu0 0
        %651 = vmatpush1.bf16.msra.mxu0 %v574
        %652 = vmatprep.subr.bf16.mxu0 0
        %653 = vmatpush1.bf16.msra.mxu0 %v575
        %654 = vmatprep.subr.bf16.mxu0 0
        %655 = vmatpush1.bf16.msra.mxu0 %v576
        %656 = vmatprep.subr.bf16.mxu0 0
        %657 = vmatpush1.bf16.msra.mxu0 %v577
        %658 = vmatprep.mubr.bf16.mxu0 %v419
        %659 = vmatmul.mubr.bf16.gmra.mrb[0].mxu0 %v418
        %v660 = vpop.f32.mrb[0].mxu0
        %v661 = vadd.f32 0.0, %v660
        %v662 = vpop.f32.mrb[0].mxu0
        %v663 = vpop.f32.mrb[0].mxu0
        %v664 = vadd.f32 0.0, %v663
        %v665 = vpop.f32.mrb[0].mxu0
        %666 = vmatprep.mubr.bf16.mxu0 %v423
        %667 = vmatmul.mubr.bf16.gmra.mrb[0].mxu0 %v422
        %v668 = vpop.f32.mrb[0].mxu0
        %v669 = vadd.f32 0.0, %v668
        %v670 = vpop.f32.mrb[0].mxu0
        %v671 = vpop.f32.mrb[0].mxu0
        %v672 = vadd.f32 0.0, %v671
        %v673 = vpop.f32.mrb[0].mxu0
        %674 = vdwg.mxu0
        %675 = vmatprep.subr.bf16.mxu0 0
        %676 = vmatpush1.bf16.msra.mxu0 %v578
        %677 = vmatprep.subr.bf16.mxu0 0
        %678 = vmatpush1.bf16.msra.mxu0 %v579
        %679 = vmatprep.subr.bf16.mxu0 0
        %680 = vmatpush1.bf16.msra.mxu0 %v580
        %681 = vmatprep.subr.bf16.mxu0 0
        %682 = vmatpush1.bf16.msra.mxu0 %v581
        %683 = vmatprep.subr.bf16.mxu0 0
        %684 = vmatpush1.bf16.msra.mxu0 %v582
        %685 = vmatprep.subr.bf16.mxu0 0
        %686 = vmatpush1.bf16.msra.mxu0 %v583
        %687 = vmatprep.subr.bf16.mxu0 0
        %688 = vmatpush1.bf16.msra.mxu0 %v584
        %689 = vmatprep.subr.bf16.mxu0 0
        %690 = vmatpush1.bf16.msra.mxu0 %v585
        %691 = vmatprep.subr.bf16.mxu0 0
        %692 = vmatpush1.bf16.msra.mxu0 %v586
        %693 = vmatprep.subr.bf16.mxu0 0
        %694 = vmatpush1.bf16.msra.mxu0 %v587
        %695 = vmatprep.subr.bf16.mxu0 0
        %696 = vmatpush1.bf16.msra.mxu0 %v588
        %697 = vmatprep.subr.bf16.mxu0 0
        %698 = vmatpush1.bf16.msra.mxu0 %v589
        %699 = vmatprep.subr.bf16.mxu0 0
        %700 = vmatpush1.bf16.msra.mxu0 %v590
        %701 = vmatprep.subr.bf16.mxu0 0
        %702 = vmatpush1.bf16.msra.mxu0 %v591
        %703 = vmatprep.subr.bf16.mxu0 0
        %704 = vmatpush1.bf16.msra.mxu0 %v592
        %705 = vmatprep.subr.bf16.mxu0 0
        %706 = vmatpush1.bf16.msra.mxu0 %v593
        %707 = vmatprep.mubr.bf16.mxu0 %v421
        %708 = vmatmul.mubr.bf16.gmra.mrb[0].mxu0 %v420
        %v709 = vpop.f32.mrb[0].mxu0
        %v710 = vadd.f32 %v661, %v709
        %v711 = vpop.f32.mrb[0].mxu0
        %v712 = vpop.f32.mrb[0].mxu0
        %v713 = vadd.f32 %v664, %v712
        %v714 = vpop.f32.mrb[0].mxu0
        %715 = vmatprep.mubr.bf16.mxu0 %v425
        %716 = vmatmul.mubr.bf16.gmra.mrb[0].mxu0 %v424
        %v717 = vpop.f32.mrb[0].mxu0
        %v718 = vadd.f32 %v669, %v717
        %v719 = vpop.f32.mrb[0].mxu0
        %v720 = vpop.f32.mrb[0].mxu0
        %v721 = vadd.f32 %v672, %v720
        %v722 = vpop.f32.mrb[0].mxu0
        %723 = vdwg.mxu0
        %724 = vst [vmem:[#allocation2] sm:$0xff] %v710
        %725 = vst [vmem:[#allocation2 + $0x8] sm:$0xff] %v713
        %726 = vst [vmem:[#allocation2 + $0x10] sm:$0xff] %v718
        %727 = vst [vmem:[#allocation2 + $0x18] sm:$0xff] %v721
        %728 = vadd.xlane.f32.xlu0 %v710
        %v729 = vpop.xlane.xlu0 %728
        %730 = vadd.xlane.f32.xlu0 %v713
        %v731 = vpop.xlane.xlu0 %730
        %732 = vadd.xlane.f32.xlu0 %v718
        %v733 = vpop.xlane.xlu0 %732
        %734 = vadd.xlane.f32.xlu0 %v721
        %v735 = vpop.xlane.xlu0 %734
        %v736 = vmul.f32 %v710, %v710
        %v737 = vmul.f32 %v713, %v713
        %v738 = vmul.f32 %v718, %v718
        %v739 = vmul.f32 %v721, %v721
        %740 = vadd.xlane.f32.xlu0 %v736
        %v741 = vpop.xlane.xlu0 %740
        %742 = vadd.xlane.f32.xlu0 %v737
        %v743 = vpop.xlane.xlu0 %742
        %744 = vadd.xlane.f32.xlu0 %v738
        %v745 = vpop.xlane.xlu0 %744
        %746 = vadd.xlane.f32.xlu0 %v739
        %v747 = vpop.xlane.xlu0 %746
        %s748 = scalar_lea.vmem %s275, 64 [#allocation3]
        %v749 = vld [vmem:[%s748] sm:$0xff]
        %v750 = vld [vmem:[%s748 + $0x8] sm:$0xff]
        %v751 = vld [vmem:[%s748 + $0x10] sm:$0xff]
        %v752 = vld [vmem:[%s748 + $0x18] sm:$0xff]
        %v753 = vld [vmem:[%s748 + $0x20] sm:$0xff]
        %v754 = vld [vmem:[%s748 + $0x28] sm:$0xff]
        %v755 = vld [vmem:[%s748 + $0x30] sm:$0xff]
        %v756 = vld [vmem:[%s748 + $0x38] sm:$0xff]
        %s757 = scalar_lea.vmem %s1, 256
        %v758 = vld [vmem:[%s757] sm:$0xf]
        %v759 = vld [vmem:[%s757 + $0x4] sm:$0xf]
        %v760 = vld [vmem:[%s757 + $0x8] sm:$0xf]
        %v761 = vld [vmem:[%s757 + $0xc] sm:$0xf]
        %v762 = vld [vmem:[%s757 + $0x10] sm:$0xf]
        %v763 = vld [vmem:[%s757 + $0x14] sm:$0xf]
        %v764 = vld [vmem:[%s757 + $0x18] sm:$0xf]
        %v765 = vld [vmem:[%s757 + $0x1c] sm:$0xf]
        %v766 = vld [vmem:[%s757 + $0x20] sm:$0xf]
        %v767 = vld [vmem:[%s757 + $0x24] sm:$0xf]
        %v768 = vld [vmem:[%s757 + $0x28] sm:$0xf]
        %v769 = vld [vmem:[%s757 + $0x2c] sm:$0xf]
        %v770 = vld [vmem:[%s757 + $0x30] sm:$0xf]
        %v771 = vld [vmem:[%s757 + $0x34] sm:$0xf]
        %v772 = vld [vmem:[%s757 + $0x38] sm:$0xf]
        %v773 = vld [vmem:[%s757 + $0x3c] sm:$0xf]
        %v774 = vld [vmem:[%s757 + $0x40] sm:$0xf]
        %v775 = vld [vmem:[%s757 + $0x44] sm:$0xf]
        %v776 = vld [vmem:[%s757 + $0x48] sm:$0xf]
        %v777 = vld [vmem:[%s757 + $0x4c] sm:$0xf]
        %v778 = vld [vmem:[%s757 + $0x50] sm:$0xf]
        %v779 = vld [vmem:[%s757 + $0x54] sm:$0xf]
        %v780 = vld [vmem:[%s757 + $0x58] sm:$0xf]
        %v781 = vld [vmem:[%s757 + $0x5c] sm:$0xf]
        %v782 = vld [vmem:[%s757 + $0x60] sm:$0xf]
        %v783 = vld [vmem:[%s757 + $0x64] sm:$0xf]
        %v784 = vld [vmem:[%s757 + $0x68] sm:$0xf]
        %v785 = vld [vmem:[%s757 + $0x6c] sm:$0xf]
        %v786 = vld [vmem:[%s757 + $0x70] sm:$0xf]
        %v787 = vld [vmem:[%s757 + $0x74] sm:$0xf]
        %v788 = vld [vmem:[%s757 + $0x78] sm:$0xf]
        %v789 = vld [vmem:[%s757 + $0x7c] sm:$0xf]
        %v790 = vld [vmem:[%s757 + $0x80] sm:$0xf]
        %v791 = vld [vmem:[%s757 + $0x84] sm:$0xf]
        %v792 = vld [vmem:[%s757 + $0x88] sm:$0xf]
        %v793 = vld [vmem:[%s757 + $0x8c] sm:$0xf]
        %v794 = vld [vmem:[%s757 + $0x90] sm:$0xf]
        %v795 = vld [vmem:[%s757 + $0x94] sm:$0xf]
        %v796 = vld [vmem:[%s757 + $0x98] sm:$0xf]
        %v797 = vld [vmem:[%s757 + $0x9c] sm:$0xf]
        %v798 = vld [vmem:[%s757 + $0xa0] sm:$0xf]
        %v799 = vld [vmem:[%s757 + $0xa4] sm:$0xf]
        %v800 = vld [vmem:[%s757 + $0xa8] sm:$0xf]
        %v801 = vld [vmem:[%s757 + $0xac] sm:$0xf]
        %v802 = vld [vmem:[%s757 + $0xb0] sm:$0xf]
        %v803 = vld [vmem:[%s757 + $0xb4] sm:$0xf]
        %v804 = vld [vmem:[%s757 + $0xb8] sm:$0xf]
        %v805 = vld [vmem:[%s757 + $0xbc] sm:$0xf]
        %v806 = vld [vmem:[%s757 + $0xc0] sm:$0xf]
        %v807 = vld [vmem:[%s757 + $0xc4] sm:$0xf]
        %v808 = vld [vmem:[%s757 + $0xc8] sm:$0xf]
        %v809 = vld [vmem:[%s757 + $0xcc] sm:$0xf]
        %v810 = vld [vmem:[%s757 + $0xd0] sm:$0xf]
        %v811 = vld [vmem:[%s757 + $0xd4] sm:$0xf]
        %v812 = vld [vmem:[%s757 + $0xd8] sm:$0xf]
        %v813 = vld [vmem:[%s757 + $0xdc] sm:$0xf]
        %v814 = vld [vmem:[%s757 + $0xe0] sm:$0xf]
        %v815 = vld [vmem:[%s757 + $0xe4] sm:$0xf]
        %v816 = vld [vmem:[%s757 + $0xe8] sm:$0xf]
        %v817 = vld [vmem:[%s757 + $0xec] sm:$0xf]
        %v818 = vld [vmem:[%s757 + $0xf0] sm:$0xf]
        %v819 = vld [vmem:[%s757 + $0xf4] sm:$0xf]
        %v820 = vld [vmem:[%s757 + $0xf8] sm:$0xf]
        %v821 = vld [vmem:[%s757 + $0xfc] sm:$0xf]
        %v830 = vunpack.c.l.b16 %v749
        %v831 = vunpack.c.h.b16 %v749
        %v832 = vunpack.c.l.b16 %v750
        %v833 = vunpack.c.h.b16 %v750
        %v834 = vunpack.c.l.b16 %v751
        %v835 = vunpack.c.h.b16 %v751
        %v836 = vunpack.c.l.b16 %v752
        %v837 = vunpack.c.h.b16 %v752
        %v838 = vunpack.c.l.b16 %v753
        %v839 = vunpack.c.h.b16 %v753
        %v840 = vunpack.c.l.b16 %v754
        %v841 = vunpack.c.h.b16 %v754
        %v842 = vunpack.c.l.b16 %v755
        %v843 = vunpack.c.h.b16 %v755
        %v844 = vunpack.c.l.b16 %v756
        %v845 = vunpack.c.h.b16 %v756
        %v846 = vpack.c.b16 %v834, %v830
        %v847 = vpack.c.b16 %v835, %v831
        %v848 = vpack.c.b16 %v836, %v832
        %v849 = vpack.c.b16 %v837, %v833
        %v850 = vpack.c.b16 %v842, %v838
        %v851 = vpack.c.b16 %v843, %v839
        %v852 = vpack.c.b16 %v844, %v840
        %v853 = vpack.c.b16 %v845, %v841
        %v926 = vunpack.c.l.b16 %v758
        %v927 = vunpack.c.l.b16 %v759
        %v928 = vunpack.c.l.b16 %v760
        %v929 = vunpack.c.l.b16 %v761
        %v930 = vunpack.c.l.b16 %v762
        %v931 = vunpack.c.l.b16 %v763
        %v932 = vunpack.c.l.b16 %v764
        %v933 = vunpack.c.l.b16 %v765
        %v934 = vunpack.c.l.b16 %v766
        %v935 = vunpack.c.l.b16 %v767
        %v936 = vunpack.c.l.b16 %v768
        %v937 = vunpack.c.l.b16 %v769
        %v938 = vunpack.c.l.b16 %v770
        %v939 = vunpack.c.l.b16 %v771
        %v940 = vunpack.c.l.b16 %v772
        %v941 = vunpack.c.l.b16 %v773
        %v942 = vunpack.c.l.b16 %v774
        %v943 = vunpack.c.l.b16 %v775
        %v944 = vunpack.c.l.b16 %v776
        %v945 = vunpack.c.l.b16 %v777
        %v946 = vunpack.c.l.b16 %v778
        %v947 = vunpack.c.l.b16 %v779
        %v948 = vunpack.c.l.b16 %v780
        %v949 = vunpack.c.l.b16 %v781
        %v950 = vunpack.c.l.b16 %v782
        %v951 = vunpack.c.l.b16 %v783
        %v952 = vunpack.c.l.b16 %v784
        %v953 = vunpack.c.l.b16 %v785
        %v954 = vunpack.c.l.b16 %v786
        %v955 = vunpack.c.l.b16 %v787
        %v956 = vunpack.c.l.b16 %v788
        %v957 = vunpack.c.l.b16 %v789
        %v958 = vunpack.c.l.b16 %v790
        %v959 = vunpack.c.l.b16 %v791
        %v960 = vunpack.c.l.b16 %v792
        %v961 = vunpack.c.l.b16 %v793
        %v962 = vunpack.c.l.b16 %v794
        %v963 = vunpack.c.l.b16 %v795
        %v964 = vunpack.c.l.b16 %v796
        %v965 = vunpack.c.l.b16 %v797
        %v966 = vunpack.c.l.b16 %v798
        %v967 = vunpack.c.l.b16 %v799
        %v968 = vunpack.c.l.b16 %v800
        %v969 = vunpack.c.l.b16 %v801
        %v970 = vunpack.c.l.b16 %v802
        %v971 = vunpack.c.l.b16 %v803
        %v972 = vunpack.c.l.b16 %v804
        %v973 = vunpack.c.l.b16 %v805
        %v974 = vunpack.c.l.b16 %v806
        %v975 = vunpack.c.l.b16 %v807
        %v976 = vunpack.c.l.b16 %v808
        %v977 = vunpack.c.l.b16 %v809
        %v978 = vunpack.c.l.b16 %v810
        %v979 = vunpack.c.l.b16 %v811
        %v980 = vunpack.c.l.b16 %v812
        %v981 = vunpack.c.l.b16 %v813
        %v982 = vunpack.c.l.b16 %v814
        %v983 = vunpack.c.l.b16 %v815
        %v984 = vunpack.c.l.b16 %v816
        %v985 = vunpack.c.l.b16 %v817
        %v986 = vunpack.c.l.b16 %v818
        %v987 = vunpack.c.l.b16 %v819
        %v988 = vunpack.c.l.b16 %v820
        %v989 = vunpack.c.l.b16 %v821
        %v990 = vpack.c.b16 %v927, %v926
        %v991 = vpack.c.b16 %v929, %v928
        %v992 = vpack.c.b16 %v931, %v930
        %v993 = vpack.c.b16 %v933, %v932
        %v994 = vpack.c.b16 %v935, %v934
        %v995 = vpack.c.b16 %v937, %v936
        %v996 = vpack.c.b16 %v939, %v938
        %v997 = vpack.c.b16 %v941, %v940
        %v998 = vpack.c.b16 %v943, %v942
        %v999 = vpack.c.b16 %v945, %v944
        %v1000 = vpack.c.b16 %v947, %v946
        %v1001 = vpack.c.b16 %v949, %v948
        %v1002 = vpack.c.b16 %v951, %v950
        %v1003 = vpack.c.b16 %v953, %v952
        %v1004 = vpack.c.b16 %v955, %v954
        %v1005 = vpack.c.b16 %v957, %v956
        %v1006 = vpack.c.b16 %v959, %v958
        %v1007 = vpack.c.b16 %v961, %v960
        %v1008 = vpack.c.b16 %v963, %v962
        %v1009 = vpack.c.b16 %v965, %v964
        %v1010 = vpack.c.b16 %v967, %v966
        %v1011 = vpack.c.b16 %v969, %v968
        %v1012 = vpack.c.b16 %v971, %v970
        %v1013 = vpack.c.b16 %v973, %v972
        %v1014 = vpack.c.b16 %v975, %v974
        %v1015 = vpack.c.b16 %v977, %v976
        %v1016 = vpack.c.b16 %v979, %v978
        %v1017 = vpack.c.b16 %v981, %v980
        %v1018 = vpack.c.b16 %v983, %v982
        %v1019 = vpack.c.b16 %v985, %v984
        %v1020 = vpack.c.b16 %v987, %v986
        %v1021 = vpack.c.b16 %v989, %v988
        %1054 = vmatprep.subr.bf16.mxu0 0
        %1055 = vmatpush1.bf16.msra.mxu0 %v990
        %1056 = vmatprep.subr.bf16.mxu0 0
        %1057 = vmatpush1.bf16.msra.mxu0 %v991
        %1058 = vmatprep.subr.bf16.mxu0 0
        %1059 = vmatpush1.bf16.msra.mxu0 %v992
        %1060 = vmatprep.subr.bf16.mxu0 0
        %1061 = vmatpush1.bf16.msra.mxu0 %v993
        %1062 = vmatprep.subr.bf16.mxu0 0
        %1063 = vmatpush1.bf16.msra.mxu0 %v994
        %1064 = vmatprep.subr.bf16.mxu0 0
        %1065 = vmatpush1.bf16.msra.mxu0 %v995
        %1066 = vmatprep.subr.bf16.mxu0 0
        %1067 = vmatpush1.bf16.msra.mxu0 %v996
        %1068 = vmatprep.subr.bf16.mxu0 0
        %1069 = vmatpush1.bf16.msra.mxu0 %v997
        %1070 = vmatprep.subr.bf16.mxu0 0
        %1071 = vmatpush1.bf16.msra.mxu0 %v998
        %1072 = vmatprep.subr.bf16.mxu0 0
        %1073 = vmatpush1.bf16.msra.mxu0 %v999
        %1074 = vmatprep.subr.bf16.mxu0 0
        %1075 = vmatpush1.bf16.msra.mxu0 %v1000
        %1076 = vmatprep.subr.bf16.mxu0 0
        %1077 = vmatpush1.bf16.msra.mxu0 %v1001
        %1078 = vmatprep.subr.bf16.mxu0 0
        %1079 = vmatpush1.bf16.msra.mxu0 %v1002
        %1080 = vmatprep.subr.bf16.mxu0 0
        %1081 = vmatpush1.bf16.msra.mxu0 %v1003
        %1082 = vmatprep.subr.bf16.mxu0 0
        %1083 = vmatpush1.bf16.msra.mxu0 %v1004
        %1084 = vmatprep.subr.bf16.mxu0 0
        %1085 = vmatpush1.bf16.msra.mxu0 %v1005
        %1086 = vmatprep.mubr.bf16.mxu0 %v847
        %1087 = vmatmul.mubr.bf16.gmra.mrb[0].mxu0 %v846
        %v1088 = vpop.f32.mrb[0].mxu0
        %v1089 = vadd.f32 0.0, %v1088
        %v1090 = vpop.f32.mrb[0].mxu0
        %v1091 = vpop.f32.mrb[0].mxu0
        %v1092 = vadd.f32 0.0, %v1091
        %v1093 = vpop.f32.mrb[0].mxu0
        %1094 = vmatprep.mubr.bf16.mxu0 %v851
        %1095 = vmatmul.mubr.bf16.gmra.mrb[0].mxu0 %v850
        %v1096 = vpop.f32.mrb[0].mxu0
        %v1097 = vadd.f32 0.0, %v1096
        %v1098 = vpop.f32.mrb[0].mxu0
        %v1099 = vpop.f32.mrb[0].mxu0
        %v1100 = vadd.f32 0.0, %v1099
        %v1101 = vpop.f32.mrb[0].mxu0
        %1102 = vdwg.mxu0
        %1103 = vmatprep.subr.bf16.mxu0 0
        %1104 = vmatpush1.bf16.msra.mxu0 %v1006
        %1105 = vmatprep.subr.bf16.mxu0 0
        %1106 = vmatpush1.bf16.msra.mxu0 %v1007
        %1107 = vmatprep.subr.bf16.mxu0 0
        %1108 = vmatpush1.bf16.msra.mxu0 %v1008
        %1109 = vmatprep.subr.bf16.mxu0 0
        %1110 = vmatpush1.bf16.msra.mxu0 %v1009
        %1111 = vmatprep.subr.bf16.mxu0 0
        %1112 = vmatpush1.bf16.msra.mxu0 %v1010
        %1113 = vmatprep.subr.bf16.mxu0 0
        %1114 = vmatpush1.bf16.msra.mxu0 %v1011
        %1115 = vmatprep.subr.bf16.mxu0 0
        %1116 = vmatpush1.bf16.msra.mxu0 %v1012
        %1117 = vmatprep.subr.bf16.mxu0 0
        %1118 = vmatpush1.bf16.msra.mxu0 %v1013
        %1119 = vmatprep.subr.bf16.mxu0 0
        %1120 = vmatpush1.bf16.msra.mxu0 %v1014
        %1121 = vmatprep.subr.bf16.mxu0 0
        %1122 = vmatpush1.bf16.msra.mxu0 %v1015
        %1123 = vmatprep.subr.bf16.mxu0 0
        %1124 = vmatpush1.bf16.msra.mxu0 %v1016
        %1125 = vmatprep.subr.bf16.mxu0 0
        %1126 = vmatpush1.bf16.msra.mxu0 %v1017
        %1127 = vmatprep.subr.bf16.mxu0 0
        %1128 = vmatpush1.bf16.msra.mxu0 %v1018
        %1129 = vmatprep.subr.bf16.mxu0 0
        %1130 = vmatpush1.bf16.msra.mxu0 %v1019
        %1131 = vmatprep.subr.bf16.mxu0 0
        %1132 = vmatpush1.bf16.msra.mxu0 %v1020
        %1133 = vmatprep.subr.bf16.mxu0 0
        %1134 = vmatpush1.bf16.msra.mxu0 %v1021
        %1135 = vmatprep.mubr.bf16.mxu0 %v849
        %1136 = vmatmul.mubr.bf16.gmra.mrb[0].mxu0 %v848
        %v1137 = vpop.f32.mrb[0].mxu0
        %v1138 = vadd.f32 %v1089, %v1137
        %v1139 = vpop.f32.mrb[0].mxu0
        %v1140 = vpop.f32.mrb[0].mxu0
        %v1141 = vadd.f32 %v1092, %v1140
        %v1142 = vpop.f32.mrb[0].mxu0
        %1143 = vmatprep.mubr.bf16.mxu0 %v853
        %1144 = vmatmul.mubr.bf16.gmra.mrb[0].mxu0 %v852
        %v1145 = vpop.f32.mrb[0].mxu0
        %v1146 = vadd.f32 %v1097, %v1145
        %v1147 = vpop.f32.mrb[0].mxu0
        %v1148 = vpop.f32.mrb[0].mxu0
        %v1149 = vadd.f32 %v1100, %v1148
        %v1150 = vpop.f32.mrb[0].mxu0
        %1151 = vdwg.mxu0
        %s1152 = scalar_lea.vmem [#allocation2], 32
        %1153 = vst [vmem:[%s1152] sm:$0xff] %v1138
        %1154 = vst [vmem:[%s1152 + $0x8] sm:$0xff] %v1141
        %1155 = vst [vmem:[%s1152 + $0x10] sm:$0xff] %v1146
        %1156 = vst [vmem:[%s1152 + $0x18] sm:$0xff] %v1149
        %1157 = vadd.xlane.f32.xlu0 %v1138
        %v1158 = vpop.xlane.xlu0 %1157
        %1159 = vadd.xlane.f32.xlu0 %v1141
        %v1160 = vpop.xlane.xlu0 %1159
        %1161 = vadd.xlane.f32.xlu0 %v1146
        %v1162 = vpop.xlane.xlu0 %1161
        %1163 = vadd.xlane.f32.xlu0 %v1149
        %v1164 = vpop.xlane.xlu0 %1163
        %v1165 = vmul.f32 %v1138, %v1138
        %v1166 = vmul.f32 %v1141, %v1141
        %v1167 = vmul.f32 %v1146, %v1146
        %v1168 = vmul.f32 %v1149, %v1149
        %1169 = vadd.xlane.f32.xlu0 %v1165
        %v1170 = vpop.xlane.xlu0 %1169
        %1171 = vadd.xlane.f32.xlu0 %v1166
        %v1172 = vpop.xlane.xlu0 %1171
        %1173 = vadd.xlane.f32.xlu0 %v1167
        %v1174 = vpop.xlane.xlu0 %1173
        %1175 = vadd.xlane.f32.xlu0 %v1168
        %v1176 = vpop.xlane.xlu0 %1175
        %v1177 = vadd.f32 %v729, %v1158
        %v1178 = vadd.f32 %v731, %v1160
        %v1179 = vadd.f32 %v733, %v1162
        %v1180 = vadd.f32 %v735, %v1164
        %v1181 = vadd.f32 %v741, %v1170
        %v1182 = vadd.f32 %v743, %v1172
        %v1183 = vadd.f32 %v745, %v1174
        %v1184 = vadd.f32 %v747, %v1176
        %s1185 = scalar_lea.vmem %s275, 128 [#allocation3]
        %v1186 = vld [vmem:[%s1185] sm:$0xff]
        %v1187 = vld [vmem:[%s1185 + $0x8] sm:$0xff]
        %v1188 = vld [vmem:[%s1185 + $0x10] sm:$0xff]
        %v1189 = vld [vmem:[%s1185 + $0x18] sm:$0xff]
        %v1190 = vld [vmem:[%s1185 + $0x20] sm:$0xff]
        %v1191 = vld [vmem:[%s1185 + $0x28] sm:$0xff]
        %v1192 = vld [vmem:[%s1185 + $0x30] sm:$0xff]
        %v1193 = vld [vmem:[%s1185 + $0x38] sm:$0xff]
        %s1194 = scalar_lea.vmem %s1, 512
        %v1195 = vld [vmem:[%s1194] sm:$0xf]
        %v1196 = vld [vmem:[%s1194 + $0x4] sm:$0xf]
        %v1197 = vld [vmem:[%s1194 + $0x8] sm:$0xf]
        %v1198 = vld [vmem:[%s1194 + $0xc] sm:$0xf]
        %v1199 = vld [vmem:[%s1194 + $0x10] sm:$0xf]
        %v1200 = vld [vmem:[%s1194 + $0x14] sm:$0xf]
        %v1201 = vld [vmem:[%s1194 + $0x18] sm:$0xf]
        %v1202 = vld [vmem:[%s1194 + $0x1c] sm:$0xf]
        %v1203 = vld [vmem:[%s1194 + $0x20] sm:$0xf]
        %v1204 = vld [vmem:[%s1194 + $0x24] sm:$0xf]
        %v1205 = vld [vmem:[%s1194 + $0x28] sm:$0xf]
        %v1206 = vld [vmem:[%s1194 + $0x2c] sm:$0xf]
        %v1207 = vld [vmem:[%s1194 + $0x30] sm:$0xf]
        %v1208 = vld [vmem:[%s1194 + $0x34] sm:$0xf]
        %v1209 = vld [vmem:[%s1194 + $0x38] sm:$0xf]
        %v1210 = vld [vmem:[%s1194 + $0x3c] sm:$0xf]
        %v1211 = vld [vmem:[%s1194 + $0x40] sm:$0xf]
        %v1212 = vld [vmem:[%s1194 + $0x44] sm:$0xf]
        %v1213 = vld [vmem:[%s1194 + $0x48] sm:$0xf]
        %v1214 = vld [vmem:[%s1194 + $0x4c] sm:$0xf]
        %v1215 = vld [vmem:[%s1194 + $0x50] sm:$0xf]
        %v1216 = vld [vmem:[%s1194 + $0x54] sm:$0xf]
        %v1217 = vld [vmem:[%s1194 + $0x58] sm:$0xf]
        %v1218 = vld [vmem:[%s1194 + $0x5c] sm:$0xf]
        %v1219 = vld [vmem:[%s1194 + $0x60] sm:$0xf]
        %v1220 = vld [vmem:[%s1194 + $0x64] sm:$0xf]
        %v1221 = vld [vmem:[%s1194 + $0x68] sm:$0xf]
        %v1222 = vld [vmem:[%s1194 + $0x6c] sm:$0xf]
        %v1223 = vld [vmem:[%s1194 + $0x70] sm:$0xf]
        %v1224 = vld [vmem:[%s1194 + $0x74] sm:$0xf]
        %v1225 = vld [vmem:[%s1194 + $0x78] sm:$0xf]
        %v1226 = vld [vmem:[%s1194 + $0x7c] sm:$0xf]
        %v1227 = vld [vmem:[%s1194 + $0x80] sm:$0xf]
        %v1228 = vld [vmem:[%s1194 + $0x84] sm:$0xf]
        %v1229 = vld [vmem:[%s1194 + $0x88] sm:$0xf]
        %v1230 = vld [vmem:[%s1194 + $0x8c] sm:$0xf]
        %v1231 = vld [vmem:[%s1194 + $0x90] sm:$0xf]
        %v1232 = vld [vmem:[%s1194 + $0x94] sm:$0xf]
        %v1233 = vld [vmem:[%s1194 + $0x98] sm:$0xf]
        %v1234 = vld [vmem:[%s1194 + $0x9c] sm:$0xf]
        %v1235 = vld [vmem:[%s1194 + $0xa0] sm:$0xf]
        %v1236 = vld [vmem:[%s1194 + $0xa4] sm:$0xf]
        %v1237 = vld [vmem:[%s1194 + $0xa8] sm:$0xf]
        %v1238 = vld [vmem:[%s1194 + $0xac] sm:$0xf]
        %v1239 = vld [vmem:[%s1194 + $0xb0] sm:$0xf]
        %v1240 = vld [vmem:[%s1194 + $0xb4] sm:$0xf]
        %v1241 = vld [vmem:[%s1194 + $0xb8] sm:$0xf]
        %v1242 = vld [vmem:[%s1194 + $0xbc] sm:$0xf]
        %v1243 = vld [vmem:[%s1194 + $0xc0] sm:$0xf]
        %v1244 = vld [vmem:[%s1194 + $0xc4] sm:$0xf]
        %v1245 = vld [vmem:[%s1194 + $0xc8] sm:$0xf]
        %v1246 = vld [vmem:[%s1194 + $0xcc] sm:$0xf]
        %v1247 = vld [vmem:[%s1194 + $0xd0] sm:$0xf]
        %v1248 = vld [vmem:[%s1194 + $0xd4] sm:$0xf]
        %v1249 = vld [vmem:[%s1194 + $0xd8] sm:$0xf]
        %v1250 = vld [vmem:[%s1194 + $0xdc] sm:$0xf]
        %v1251 = vld [vmem:[%s1194 + $0xe0] sm:$0xf]
        %v1252 = vld [vmem:[%s1194 + $0xe4] sm:$0xf]
        %v1253 = vld [vmem:[%s1194 + $0xe8] sm:$0xf]
        %v1254 = vld [vmem:[%s1194 + $0xec] sm:$0xf]
        %v1255 = vld [vmem:[%s1194 + $0xf0] sm:$0xf]
        %v1256 = vld [vmem:[%s1194 + $0xf4] sm:$0xf]
        %v1257 = vld [vmem:[%s1194 + $0xf8] sm:$0xf]
        %v1258 = vld [vmem:[%s1194 + $0xfc] sm:$0xf]
        %v1267 = vunpack.c.l.b16 %v1186
        %v1268 = vunpack.c.h.b16 %v1186
        %v1269 = vunpack.c.l.b16 %v1187
        %v1270 = vunpack.c.h.b16 %v1187
        %v1271 = vunpack.c.l.b16 %v1188
        %v1272 = vunpack.c.h.b16 %v1188
        %v1273 = vunpack.c.l.b16 %v1189
        %v1274 = vunpack.c.h.b16 %v1189
        %v1275 = vunpack.c.l.b16 %v1190
        %v1276 = vunpack.c.h.b16 %v1190
        %v1277 = vunpack.c.l.b16 %v1191
        %v1278 = vunpack.c.h.b16 %v1191
        %v1279 = vunpack.c.l.b16 %v1192
        %v1280 = vunpack.c.h.b16 %v1192
        %v1281 = vunpack.c.l.b16 %v1193
        %v1282 = vunpack.c.h.b16 %v1193
        %v1283 = vpack.c.b16 %v1271, %v1267
        %v1284 = vpack.c.b16 %v1272, %v1268
        %v1285 = vpack.c.b16 %v1273, %v1269
        %v1286 = vpack.c.b16 %v1274, %v1270
        %v1287 = vpack.c.b16 %v1279, %v1275
        %v1288 = vpack.c.b16 %v1280, %v1276
        %v1289 = vpack.c.b16 %v1281, %v1277
        %v1290 = vpack.c.b16 %v1282, %v1278
        %v1363 = vunpack.c.l.b16 %v1195
        %v1364 = vunpack.c.l.b16 %v1196
        %v1365 = vunpack.c.l.b16 %v1197
        %v1366 = vunpack.c.l.b16 %v1198
        %v1367 = vunpack.c.l.b16 %v1199
        %v1368 = vunpack.c.l.b16 %v1200
        %v1369 = vunpack.c.l.b16 %v1201
        %v1370 = vunpack.c.l.b16 %v1202
        %v1371 = vunpack.c.l.b16 %v1203
        %v1372 = vunpack.c.l.b16 %v1204
        %v1373 = vunpack.c.l.b16 %v1205
        %v1374 = vunpack.c.l.b16 %v1206
        %v1375 = vunpack.c.l.b16 %v1207
        %v1376 = vunpack.c.l.b16 %v1208
        %v1377 = vunpack.c.l.b16 %v1209
        %v1378 = vunpack.c.l.b16 %v1210
        %v1379 = vunpack.c.l.b16 %v1211
        %v1380 = vunpack.c.l.b16 %v1212
        %v1381 = vunpack.c.l.b16 %v1213
        %v1382 = vunpack.c.l.b16 %v1214
        %v1383 = vunpack.c.l.b16 %v1215
        %v1384 = vunpack.c.l.b16 %v1216
        %v1385 = vunpack.c.l.b16 %v1217
        %v1386 = vunpack.c.l.b16 %v1218
        %v1387 = vunpack.c.l.b16 %v1219
        %v1388 = vunpack.c.l.b16 %v1220
        %v1389 = vunpack.c.l.b16 %v1221
        %v1390 = vunpack.c.l.b16 %v1222
        %v1391 = vunpack.c.l.b16 %v1223
        %v1392 = vunpack.c.l.b16 %v1224
        %v1393 = vunpack.c.l.b16 %v1225
        %v1394 = vunpack.c.l.b16 %v1226
        %v1395 = vunpack.c.l.b16 %v1227
        %v1396 = vunpack.c.l.b16 %v1228
        %v1397 = vunpack.c.l.b16 %v1229
        %v1398 = vunpack.c.l.b16 %v1230
        %v1399 = vunpack.c.l.b16 %v1231
        %v1400 = vunpack.c.l.b16 %v1232
        %v1401 = vunpack.c.l.b16 %v1233
        %v1402 = vunpack.c.l.b16 %v1234
        %v1403 = vunpack.c.l.b16 %v1235
        %v1404 = vunpack.c.l.b16 %v1236
        %v1405 = vunpack.c.l.b16 %v1237
        %v1406 = vunpack.c.l.b16 %v1238
        %v1407 = vunpack.c.l.b16 %v1239
        %v1408 = vunpack.c.l.b16 %v1240
        %v1409 = vunpack.c.l.b16 %v1241
        %v1410 = vunpack.c.l.b16 %v1242
        %v1411 = vunpack.c.l.b16 %v1243
        %v1412 = vunpack.c.l.b16 %v1244
        %v1413 = vunpack.c.l.b16 %v1245
        %v1414 = vunpack.c.l.b16 %v1246
        %v1415 = vunpack.c.l.b16 %v1247
        %v1416 = vunpack.c.l.b16 %v1248
        %v1417 = vunpack.c.l.b16 %v1249
        %v1418 = vunpack.c.l.b16 %v1250
        %v1419 = vunpack.c.l.b16 %v1251
        %v1420 = vunpack.c.l.b16 %v1252
        %v1421 = vunpack.c.l.b16 %v1253
        %v1422 = vunpack.c.l.b16 %v1254
        %v1423 = vunpack.c.l.b16 %v1255
        %v1424 = vunpack.c.l.b16 %v1256
        %v1425 = vunpack.c.l.b16 %v1257
        %v1426 = vunpack.c.l.b16 %v1258
        %v1427 = vpack.c.b16 %v1364, %v1363
        %v1428 = vpack.c.b16 %v1366, %v1365
        %v1429 = vpack.c.b16 %v1368, %v1367
        %v1430 = vpack.c.b16 %v1370, %v1369
        %v1431 = vpack.c.b16 %v1372, %v1371
        %v1432 = vpack.c.b16 %v1374, %v1373
        %v1433 = vpack.c.b16 %v1376, %v1375
        %v1434 = vpack.c.b16 %v1378, %v1377
        %v1435 = vpack.c.b16 %v1380, %v1379
        %v1436 = vpack.c.b16 %v1382, %v1381
        %v1437 = vpack.c.b16 %v1384, %v1383
        %v1438 = vpack.c.b16 %v1386, %v1385
        %v1439 = vpack.c.b16 %v1388, %v1387
        %v1440 = vpack.c.b16 %v1390, %v1389
        %v1441 = vpack.c.b16 %v1392, %v1391
        %v1442 = vpack.c.b16 %v1394, %v1393
        %v1443 = vpack.c.b16 %v1396, %v1395
        %v1444 = vpack.c.b16 %v1398, %v1397
        %v1445 = vpack.c.b16 %v1400, %v1399
        %v1446 = vpack.c.b16 %v1402, %v1401
        %v1447 = vpack.c.b16 %v1404, %v1403
        %v1448 = vpack.c.b16 %v1406, %v1405
        %v1449 = vpack.c.b16 %v1408, %v1407
        %v1450 = vpack.c.b16 %v1410, %v1409
        %v1451 = vpack.c.b16 %v1412, %v1411
        %v1452 = vpack.c.b16 %v1414, %v1413
        %v1453 = vpack.c.b16 %v1416, %v1415
        %v1454 = vpack.c.b16 %v1418, %v1417
        %v1455 = vpack.c.b16 %v1420, %v1419
        %v1456 = vpack.c.b16 %v1422, %v1421
        %v1457 = vpack.c.b16 %v1424, %v1423
        %v1458 = vpack.c.b16 %v1426, %v1425
        %1491 = vmatprep.subr.bf16.mxu0 0
        %1492 = vmatpush1.bf16.msra.mxu0 %v1427
        %1493 = vmatprep.subr.bf16.mxu0 0
        %1494 = vmatpush1.bf16.msra.mxu0 %v1428
        %1495 = vmatprep.subr.bf16.mxu0 0
        %1496 = vmatpush1.bf16.msra.mxu0 %v1429
        %1497 = vmatprep.subr.bf16.mxu0 0
        %1498 = vmatpush1.bf16.msra.mxu0 %v1430
        %1499 = vmatprep.subr.bf16.mxu0 0
        %1500 = vmatpush1.bf16.msra.mxu0 %v1431
        %1501 = vmatprep.subr.bf16.mxu0 0
        %1502 = vmatpush1.bf16.msra.mxu0 %v1432
        %1503 = vmatprep.subr.bf16.mxu0 0
        %1504 = vmatpush1.bf16.msra.mxu0 %v1433
        %1505 = vmatprep.subr.bf16.mxu0 0
        %1506 = vmatpush1.bf16.msra.mxu0 %v1434
        %1507 = vmatprep.subr.bf16.mxu0 0
        %1508 = vmatpush1.bf16.msra.mxu0 %v1435
        %1509 = vmatprep.subr.bf16.mxu0 0
        %1510 = vmatpush1.bf16.msra.mxu0 %v1436
        %1511 = vmatprep.subr.bf16.mxu0 0
        %1512 = vmatpush1.bf16.msra.mxu0 %v1437
        %1513 = vmatprep.subr.bf16.mxu0 0
        %1514 = vmatpush1.bf16.msra.mxu0 %v1438
        %1515 = vmatprep.subr.bf16.mxu0 0
        %1516 = vmatpush1.bf16.msra.mxu0 %v1439
        %1517 = vmatprep.subr.bf16.mxu0 0
        %1518 = vmatpush1.bf16.msra.mxu0 %v1440
        %1519 = vmatprep.subr.bf16.mxu0 0
        %1520 = vmatpush1.bf16.msra.mxu0 %v1441
        %1521 = vmatprep.subr.bf16.mxu0 0
        %1522 = vmatpush1.bf16.msra.mxu0 %v1442
        %1523 = vmatprep.mubr.bf16.mxu0 %v1284
        %1524 = vmatmul.mubr.bf16.gmra.mrb[0].mxu0 %v1283
        %v1525 = vpop.f32.mrb[0].mxu0
        %v1526 = vadd.f32 0.0, %v1525
        %v1527 = vpop.f32.mrb[0].mxu0
        %v1528 = vpop.f32.mrb[0].mxu0
        %v1529 = vadd.f32 0.0, %v1528
        %v1530 = vpop.f32.mrb[0].mxu0
        %1531 = vmatprep.mubr.bf16.mxu0 %v1288
        %1532 = vmatmul.mubr.bf16.gmra.mrb[0].mxu0 %v1287
        %v1533 = vpop.f32.mrb[0].mxu0
        %v1534 = vadd.f32 0.0, %v1533
        %v1535 = vpop.f32.mrb[0].mxu0
        %v1536 = vpop.f32.mrb[0].mxu0
        %v1537 = vadd.f32 0.0, %v1536
        %v1538 = vpop.f32.mrb[0].mxu0
        %1539 = vdwg.mxu0
        %1540 = vmatprep.subr.bf16.mxu0 0
        %1541 = vmatpush1.bf16.msra.mxu0 %v1443
        %1542 = vmatprep.subr.bf16.mxu0 0
        %1543 = vmatpush1.bf16.msra.mxu0 %v1444
        %1544 = vmatprep.subr.bf16.mxu0 0
        %1545 = vmatpush1.bf16.msra.mxu0 %v1445
        %1546 = vmatprep.subr.bf16.mxu0 0
        %1547 = vmatpush1.bf16.msra.mxu0 %v1446
        %1548 = vmatprep.subr.bf16.mxu0 0
        %1549 = vmatpush1.bf16.msra.mxu0 %v1447
        %1550 = vmatprep.subr.bf16.mxu0 0
        %1551 = vmatpush1.bf16.msra.mxu0 %v1448
        %1552 = vmatprep.subr.bf16.mxu0 0
        %1553 = vmatpush1.bf16.msra.mxu0 %v1449
        %1554 = vmatprep.subr.bf16.mxu0 0
        %1555 = vmatpush1.bf16.msra.mxu0 %v1450
        %1556 = vmatprep.subr.bf16.mxu0 0
        %1557 = vmatpush1.bf16.msra.mxu0 %v1451
        %1558 = vmatprep.subr.bf16.mxu0 0
        %1559 = vmatpush1.bf16.msra.mxu0 %v1452
        %1560 = vmatprep.subr.bf16.mxu0 0
        %1561 = vmatpush1.bf16.msra.mxu0 %v1453
        %1562 = vmatprep.subr.bf16.mxu0 0
        %1563 = vmatpush1.bf16.msra.mxu0 %v1454
        %1564 = vmatprep.subr.bf16.mxu0 0
        %1565 = vmatpush1.bf16.msra.mxu0 %v1455
        %1566 = vmatprep.subr.bf16.mxu0 0
        %1567 = vmatpush1.bf16.msra.mxu0 %v1456
        %1568 = vmatprep.subr.bf16.mxu0 0
        %1569 = vmatpush1.bf16.msra.mxu0 %v1457
        %1570 = vmatprep.subr.bf16.mxu0 0
        %1571 = vmatpush1.bf16.msra.mxu0 %v1458
        %1572 = vmatprep.mubr.bf16.mxu0 %v1286
        %1573 = vmatmul.mubr.bf16.gmra.mrb[0].mxu0 %v1285
        %v1574 = vpop.f32.mrb[0].mxu0
        %v1575 = vadd.f32 %v1526, %v1574
        %v1576 = vpop.f32.mrb[0].mxu0
        %v1577 = vpop.f32.mrb[0].mxu0
        %v1578 = vadd.f32 %v1529, %v1577
        %v1579 = vpop.f32.mrb[0].mxu0
        %1580 = vmatprep.mubr.bf16.mxu0 %v1290
        %1581 = vmatmul.mubr.bf16.gmra.mrb[0].mxu0 %v1289
        %v1582 = vpop.f32.mrb[0].mxu0
        %v1583 = vadd.f32 %v1534, %v1582
        %v1584 = vpop.f32.mrb[0].mxu0
        %v1585 = vpop.f32.mrb[0].mxu0
        %v1586 = vadd.f32 %v1537, %v1585
        %v1587 = vpop.f32.mrb[0].mxu0
        %1588 = vdwg.mxu0
        %s1589 = scalar_lea.vmem [#allocation2], 64
        %1590 = vst [vmem:[%s1589] sm:$0xff] %v1575
        %1591 = vst [vmem:[%s1589 + $0x8] sm:$0xff] %v1578
        %1592 = vst [vmem:[%s1589 + $0x10] sm:$0xff] %v1583
        %1593 = vst [vmem:[%s1589 + $0x18] sm:$0xff] %v1586
        %1594 = vadd.xlane.f32.xlu0 %v1575
        %v1595 = vpop.xlane.xlu0 %1594
        %1596 = vadd.xlane.f32.xlu0 %v1578
        %v1597 = vpop.xlane.xlu0 %1596
        %1598 = vadd.xlane.f32.xlu0 %v1583
        %v1599 = vpop.xlane.xlu0 %1598
        %1600 = vadd.xlane.f32.xlu0 %v1586
        %v1601 = vpop.xlane.xlu0 %1600
        %v1602 = vmul.f32 %v1575, %v1575
        %v1603 = vmul.f32 %v1578, %v1578
        %v1604 = vmul.f32 %v1583, %v1583
        %v1605 = vmul.f32 %v1586, %v1586
        %1606 = vadd.xlane.f32.xlu0 %v1602
        %v1607 = vpop.xlane.xlu0 %1606
        %1608 = vadd.xlane.f32.xlu0 %v1603
        %v1609 = vpop.xlane.xlu0 %1608
        %1610 = vadd.xlane.f32.xlu0 %v1604
        %v1611 = vpop.xlane.xlu0 %1610
        %1612 = vadd.xlane.f32.xlu0 %v1605
        %v1613 = vpop.xlane.xlu0 %1612
        %v1614 = vadd.f32 %v1177, %v1595
        %v1615 = vadd.f32 %v1178, %v1597
        %v1616 = vadd.f32 %v1179, %v1599
        %v1617 = vadd.f32 %v1180, %v1601
        %v1618 = vadd.f32 %v1181, %v1607
        %v1619 = vadd.f32 %v1182, %v1609
        %v1620 = vadd.f32 %v1183, %v1611
        %v1621 = vadd.f32 %v1184, %v1613
        %s1622 = scalar_lea.vmem %s275, 192 [#allocation3]
        %v1623 = vld [vmem:[%s1622] sm:$0xff]
        %v1624 = vld [vmem:[%s1622 + $0x8] sm:$0xff]
        %v1625 = vld [vmem:[%s1622 + $0x10] sm:$0xff]
        %v1626 = vld [vmem:[%s1622 + $0x18] sm:$0xff]
        %v1627 = vld [vmem:[%s1622 + $0x20] sm:$0xff]
        %v1628 = vld [vmem:[%s1622 + $0x28] sm:$0xff]
        %v1629 = vld [vmem:[%s1622 + $0x30] sm:$0xff]
        %v1630 = vld [vmem:[%s1622 + $0x38] sm:$0xff]
        %s1631 = scalar_lea.vmem %s1, 768
        %v1632 = vld [vmem:[%s1631] sm:$0xf]
        %v1633 = vld [vmem:[%s1631 + $0x4] sm:$0xf]
        %v1634 = vld [vmem:[%s1631 + $0x8] sm:$0xf]
        %v1635 = vld [vmem:[%s1631 + $0xc] sm:$0xf]
        %v1636 = vld [vmem:[%s1631 + $0x10] sm:$0xf]
        %v1637 = vld [vmem:[%s1631 + $0x14] sm:$0xf]
        %v1638 = vld [vmem:[%s1631 + $0x18] sm:$0xf]
        %v1639 = vld [vmem:[%s1631 + $0x1c] sm:$0xf]
        %v1640 = vld [vmem:[%s1631 + $0x20] sm:$0xf]
        %v1641 = vld [vmem:[%s1631 + $0x24] sm:$0xf]
        %v1642 = vld [vmem:[%s1631 + $0x28] sm:$0xf]
        %v1643 = vld [vmem:[%s1631 + $0x2c] sm:$0xf]
        %v1644 = vld [vmem:[%s1631 + $0x30] sm:$0xf]
        %v1645 = vld [vmem:[%s1631 + $0x34] sm:$0xf]
        %v1646 = vld [vmem:[%s1631 + $0x38] sm:$0xf]
        %v1647 = vld [vmem:[%s1631 + $0x3c] sm:$0xf]
        %v1648 = vld [vmem:[%s1631 + $0x40] sm:$0xf]
        %v1649 = vld [vmem:[%s1631 + $0x44] sm:$0xf]
        %v1650 = vld [vmem:[%s1631 + $0x48] sm:$0xf]
        %v1651 = vld [vmem:[%s1631 + $0x4c] sm:$0xf]
        %v1652 = vld [vmem:[%s1631 + $0x50] sm:$0xf]
        %v1653 = vld [vmem:[%s1631 + $0x54] sm:$0xf]
        %v1654 = vld [vmem:[%s1631 + $0x58] sm:$0xf]
        %v1655 = vld [vmem:[%s1631 + $0x5c] sm:$0xf]
        %v1656 = vld [vmem:[%s1631 + $0x60] sm:$0xf]
        %v1657 = vld [vmem:[%s1631 + $0x64] sm:$0xf]
        %v1658 = vld [vmem:[%s1631 + $0x68] sm:$0xf]
        %v1659 = vld [vmem:[%s1631 + $0x6c] sm:$0xf]
        %v1660 = vld [vmem:[%s1631 + $0x70] sm:$0xf]
        %v1661 = vld [vmem:[%s1631 + $0x74] sm:$0xf]
        %v1662 = vld [vmem:[%s1631 + $0x78] sm:$0xf]
        %v1663 = vld [vmem:[%s1631 + $0x7c] sm:$0xf]
        %v1664 = vld [vmem:[%s1631 + $0x80] sm:$0xf]
        %v1665 = vld [vmem:[%s1631 + $0x84] sm:$0xf]
        %v1666 = vld [vmem:[%s1631 + $0x88] sm:$0xf]
        %v1667 = vld [vmem:[%s1631 + $0x8c] sm:$0xf]
        %v1668 = vld [vmem:[%s1631 + $0x90] sm:$0xf]
        %v1669 = vld [vmem:[%s1631 + $0x94] sm:$0xf]
        %v1670 = vld [vmem:[%s1631 + $0x98] sm:$0xf]
        %v1671 = vld [vmem:[%s1631 + $0x9c] sm:$0xf]
        %v1672 = vld [vmem:[%s1631 + $0xa0] sm:$0xf]
        %v1673 = vld [vmem:[%s1631 + $0xa4] sm:$0xf]
        %v1674 = vld [vmem:[%s1631 + $0xa8] sm:$0xf]
        %v1675 = vld [vmem:[%s1631 + $0xac] sm:$0xf]
        %v1676 = vld [vmem:[%s1631 + $0xb0] sm:$0xf]
        %v1677 = vld [vmem:[%s1631 + $0xb4] sm:$0xf]
        %v1678 = vld [vmem:[%s1631 + $0xb8] sm:$0xf]
        %v1679 = vld [vmem:[%s1631 + $0xbc] sm:$0xf]
        %v1680 = vld [vmem:[%s1631 + $0xc0] sm:$0xf]
        %v1681 = vld [vmem:[%s1631 + $0xc4] sm:$0xf]
        %v1682 = vld [vmem:[%s1631 + $0xc8] sm:$0xf]
        %v1683 = vld [vmem:[%s1631 + $0xcc] sm:$0xf]
        %v1684 = vld [vmem:[%s1631 + $0xd0] sm:$0xf]
        %v1685 = vld [vmem:[%s1631 + $0xd4] sm:$0xf]
        %v1686 = vld [vmem:[%s1631 + $0xd8] sm:$0xf]
        %v1687 = vld [vmem:[%s1631 + $0xdc] sm:$0xf]
        %v1688 = vld [vmem:[%s1631 + $0xe0] sm:$0xf]
        %v1689 = vld [vmem:[%s1631 + $0xe4] sm:$0xf]
        %v1690 = vld [vmem:[%s1631 + $0xe8] sm:$0xf]
        %v1691 = vld [vmem:[%s1631 + $0xec] sm:$0xf]
        %v1692 = vld [vmem:[%s1631 + $0xf0] sm:$0xf]
        %v1693 = vld [vmem:[%s1631 + $0xf4] sm:$0xf]
        %v1694 = vld [vmem:[%s1631 + $0xf8] sm:$0xf]
        %v1695 = vld [vmem:[%s1631 + $0xfc] sm:$0xf]
        %v1704 = vunpack.c.l.b16 %v1623
        %v1705 = vunpack.c.h.b16 %v1623
        %v1706 = vunpack.c.l.b16 %v1624
        %v1707 = vunpack.c.h.b16 %v1624
        %v1708 = vunpack.c.l.b16 %v1625
        %v1709 = vunpack.c.h.b16 %v1625
        %v1710 = vunpack.c.l.b16 %v1626
        %v1711 = vunpack.c.h.b16 %v1626
        %v1712 = vunpack.c.l.b16 %v1627
        %v1713 = vunpack.c.h.b16 %v1627
        %v1714 = vunpack.c.l.b16 %v1628
        %v1715 = vunpack.c.h.b16 %v1628
        %v1716 = vunpack.c.l.b16 %v1629
        %v1717 = vunpack.c.h.b16 %v1629
        %v1718 = vunpack.c.l.b16 %v1630
        %v1719 = vunpack.c.h.b16 %v1630
        %v1720 = vpack.c.b16 %v1708, %v1704
        %v1721 = vpack.c.b16 %v1709, %v1705
        %v1722 = vpack.c.b16 %v1710, %v1706
        %v1723 = vpack.c.b16 %v1711, %v1707
        %v1724 = vpack.c.b16 %v1716, %v1712
        %v1725 = vpack.c.b16 %v1717, %v1713
        %v1726 = vpack.c.b16 %v1718, %v1714
        %v1727 = vpack.c.b16 %v1719, %v1715
        %v1800 = vunpack.c.l.b16 %v1632
        %v1801 = vunpack.c.l.b16 %v1633
        %v1802 = vunpack.c.l.b16 %v1634
        %v1803 = vunpack.c.l.b16 %v1635
        %v1804 = vunpack.c.l.b16 %v1636
        %v1805 = vunpack.c.l.b16 %v1637
        %v1806 = vunpack.c.l.b16 %v1638
        %v1807 = vunpack.c.l.b16 %v1639
        %v1808 = vunpack.c.l.b16 %v1640
        %v1809 = vunpack.c.l.b16 %v1641
        %v1810 = vunpack.c.l.b16 %v1642
        %v1811 = vunpack.c.l.b16 %v1643
        %v1812 = vunpack.c.l.b16 %v1644
        %v1813 = vunpack.c.l.b16 %v1645
        %v1814 = vunpack.c.l.b16 %v1646
        %v1815 = vunpack.c.l.b16 %v1647
        %v1816 = vunpack.c.l.b16 %v1648
        %v1817 = vunpack.c.l.b16 %v1649
        %v1818 = vunpack.c.l.b16 %v1650
        %v1819 = vunpack.c.l.b16 %v1651
        %v1820 = vunpack.c.l.b16 %v1652
        %v1821 = vunpack.c.l.b16 %v1653
        %v1822 = vunpack.c.l.b16 %v1654
        %v1823 = vunpack.c.l.b16 %v1655
        %v1824 = vunpack.c.l.b16 %v1656
        %v1825 = vunpack.c.l.b16 %v1657
        %v1826 = vunpack.c.l.b16 %v1658
        %v1827 = vunpack.c.l.b16 %v1659
        %v1828 = vunpack.c.l.b16 %v1660
        %v1829 = vunpack.c.l.b16 %v1661
        %v1830 = vunpack.c.l.b16 %v1662
        %v1831 = vunpack.c.l.b16 %v1663
        %v1832 = vunpack.c.l.b16 %v1664
        %v1833 = vunpack.c.l.b16 %v1665
        %v1834 = vunpack.c.l.b16 %v1666
        %v1835 = vunpack.c.l.b16 %v1667
        %v1836 = vunpack.c.l.b16 %v1668
        %v1837 = vunpack.c.l.b16 %v1669
        %v1838 = vunpack.c.l.b16 %v1670
        %v1839 = vunpack.c.l.b16 %v1671
        %v1840 = vunpack.c.l.b16 %v1672
        %v1841 = vunpack.c.l.b16 %v1673
        %v1842 = vunpack.c.l.b16 %v1674
        %v1843 = vunpack.c.l.b16 %v1675
        %v1844 = vunpack.c.l.b16 %v1676
        %v1845 = vunpack.c.l.b16 %v1677
        %v1846 = vunpack.c.l.b16 %v1678
        %v1847 = vunpack.c.l.b16 %v1679
        %v1848 = vunpack.c.l.b16 %v1680
        %v1849 = vunpack.c.l.b16 %v1681
        %v1850 = vunpack.c.l.b16 %v1682
        %v1851 = vunpack.c.l.b16 %v1683
        %v1852 = vunpack.c.l.b16 %v1684
        %v1853 = vunpack.c.l.b16 %v1685
        %v1854 = vunpack.c.l.b16 %v1686
        %v1855 = vunpack.c.l.b16 %v1687
        %v1856 = vunpack.c.l.b16 %v1688
        %v1857 = vunpack.c.l.b16 %v1689
        %v1858 = vunpack.c.l.b16 %v1690
        %v1859 = vunpack.c.l.b16 %v1691
        %v1860 = vunpack.c.l.b16 %v1692
        %v1861 = vunpack.c.l.b16 %v1693
        %v1862 = vunpack.c.l.b16 %v1694
        %v1863 = vunpack.c.l.b16 %v1695
        %v1864 = vpack.c.b16 %v1801, %v1800
        %v1865 = vpack.c.b16 %v1803, %v1802
        %v1866 = vpack.c.b16 %v1805, %v1804
        %v1867 = vpack.c.b16 %v1807, %v1806
        %v1868 = vpack.c.b16 %v1809, %v1808
        %v1869 = vpack.c.b16 %v1811, %v1810
        %v1870 = vpack.c.b16 %v1813, %v1812
        %v1871 = vpack.c.b16 %v1815, %v1814
        %v1872 = vpack.c.b16 %v1817, %v1816
        %v1873 = vpack.c.b16 %v1819, %v1818
        %v1874 = vpack.c.b16 %v1821, %v1820
        %v1875 = vpack.c.b16 %v1823, %v1822
        %v1876 = vpack.c.b16 %v1825, %v1824
        %v1877 = vpack.c.b16 %v1827, %v1826
        %v1878 = vpack.c.b16 %v1829, %v1828
        %v1879 = vpack.c.b16 %v1831, %v1830
        %v1880 = vpack.c.b16 %v1833, %v1832
        %v1881 = vpack.c.b16 %v1835, %v1834
        %v1882 = vpack.c.b16 %v1837, %v1836
        %v1883 = vpack.c.b16 %v1839, %v1838
        %v1884 = vpack.c.b16 %v1841, %v1840
        %v1885 = vpack.c.b16 %v1843, %v1842
        %v1886 = vpack.c.b16 %v1845, %v1844
        %v1887 = vpack.c.b16 %v1847, %v1846
        %v1888 = vpack.c.b16 %v1849, %v1848
        %v1889 = vpack.c.b16 %v1851, %v1850
        %v1890 = vpack.c.b16 %v1853, %v1852
        %v1891 = vpack.c.b16 %v1855, %v1854
        %v1892 = vpack.c.b16 %v1857, %v1856
        %v1893 = vpack.c.b16 %v1859, %v1858
        %v1894 = vpack.c.b16 %v1861, %v1860
        %v1895 = vpack.c.b16 %v1863, %v1862
        %1928 = vmatprep.subr.bf16.mxu0 0
        %1929 = vmatpush1.bf16.msra.mxu0 %v1864
        %1930 = vmatprep.subr.bf16.mxu0 0
        %1931 = vmatpush1.bf16.msra.mxu0 %v1865
        %1932 = vmatprep.subr.bf16.mxu0 0
        %1933 = vmatpush1.bf16.msra.mxu0 %v1866
        %1934 = vmatprep.subr.bf16.mxu0 0
        %1935 = vmatpush1.bf16.msra.mxu0 %v1867
        %1936 = vmatprep.subr.bf16.mxu0 0
        %1937 = vmatpush1.bf16.msra.mxu0 %v1868
        %1938 = vmatprep.subr.bf16.mxu0 0
        %1939 = vmatpush1.bf16.msra.mxu0 %v1869
        %1940 = vmatprep.subr.bf16.mxu0 0
        %1941 = vmatpush1.bf16.msra.mxu0 %v1870
        %1942 = vmatprep.subr.bf16.mxu0 0
        %1943 = vmatpush1.bf16.msra.mxu0 %v1871
        %1944 = vmatprep.subr.bf16.mxu0 0
        %1945 = vmatpush1.bf16.msra.mxu0 %v1872
        %1946 = vmatprep.subr.bf16.mxu0 0
        %1947 = vmatpush1.bf16.msra.mxu0 %v1873
        %1948 = vmatprep.subr.bf16.mxu0 0
        %1949 = vmatpush1.bf16.msra.mxu0 %v1874
        %1950 = vmatprep.subr.bf16.mxu0 0
        %1951 = vmatpush1.bf16.msra.mxu0 %v1875
        %1952 = vmatprep.subr.bf16.mxu0 0
        %1953 = vmatpush1.bf16.msra.mxu0 %v1876
        %1954 = vmatprep.subr.bf16.mxu0 0
        %1955 = vmatpush1.bf16.msra.mxu0 %v1877
        %1956 = vmatprep.subr.bf16.mxu0 0
        %1957 = vmatpush1.bf16.msra.mxu0 %v1878
        %1958 = vmatprep.subr.bf16.mxu0 0
        %1959 = vmatpush1.bf16.msra.mxu0 %v1879
        %1960 = vmatprep.mubr.bf16.mxu0 %v1721
        %1961 = vmatmul.mubr.bf16.gmra.mrb[0].mxu0 %v1720
        %v1962 = vpop.f32.mrb[0].mxu0
        %v1963 = vadd.f32 0.0, %v1962
        %v1964 = vpop.f32.mrb[0].mxu0
        %v1965 = vpop.f32.mrb[0].mxu0
        %v1966 = vadd.f32 0.0, %v1965
        %v1967 = vpop.f32.mrb[0].mxu0
        %1968 = vmatprep.mubr.bf16.mxu0 %v1725
        %1969 = vmatmul.mubr.bf16.gmra.mrb[0].mxu0 %v1724
        %v1970 = vpop.f32.mrb[0].mxu0
        %v1971 = vadd.f32 0.0, %v1970
        %v1972 = vpop.f32.mrb[0].mxu0
        %v1973 = vpop.f32.mrb[0].mxu0
        %v1974 = vadd.f32 0.0, %v1973
        %v1975 = vpop.f32.mrb[0].mxu0
        %1976 = vdwg.mxu0
        %1977 = vmatprep.subr.bf16.mxu0 0
        %1978 = vmatpush1.bf16.msra.mxu0 %v1880
        %1979 = vmatprep.subr.bf16.mxu0 0
        %1980 = vmatpush1.bf16.msra.mxu0 %v1881
        %1981 = vmatprep.subr.bf16.mxu0 0
        %1982 = vmatpush1.bf16.msra.mxu0 %v1882
        %1983 = vmatprep.subr.bf16.mxu0 0
        %1984 = vmatpush1.bf16.msra.mxu0 %v1883
        %1985 = vmatprep.subr.bf16.mxu0 0
        %1986 = vmatpush1.bf16.msra.mxu0 %v1884
        %1987 = vmatprep.subr.bf16.mxu0 0
        %1988 = vmatpush1.bf16.msra.mxu0 %v1885
        %1989 = vmatprep.subr.bf16.mxu0 0
        %1990 = vmatpush1.bf16.msra.mxu0 %v1886
        %1991 = vmatprep.subr.bf16.mxu0 0
        %1992 = vmatpush1.bf16.msra.mxu0 %v1887
        %1993 = vmatprep.subr.bf16.mxu0 0
        %1994 = vmatpush1.bf16.msra.mxu0 %v1888
        %1995 = vmatprep.subr.bf16.mxu0 0
        %1996 = vmatpush1.bf16.msra.mxu0 %v1889
        %1997 = vmatprep.subr.bf16.mxu0 0
        %1998 = vmatpush1.bf16.msra.mxu0 %v1890
        %1999 = vmatprep.subr.bf16.mxu0 0
        %2000 = vmatpush1.bf16.msra.mxu0 %v1891
        %2001 = vmatprep.subr.bf16.mxu0 0
        %2002 = vmatpush1.bf16.msra.mxu0 %v1892
        %2003 = vmatprep.subr.bf16.mxu0 0
        %2004 = vmatpush1.bf16.msra.mxu0 %v1893
        %2005 = vmatprep.subr.bf16.mxu0 0
        %2006 = vmatpush1.bf16.msra.mxu0 %v1894
        %2007 = vmatprep.subr.bf16.mxu0 0
        %2008 = vmatpush1.bf16.msra.mxu0 %v1895
        %2009 = vmatprep.mubr.bf16.mxu0 %v1723
        %2010 = vmatmul.mubr.bf16.gmra.mrb[0].mxu0 %v1722
        %v2011 = vpop.f32.mrb[0].mxu0
        %v2012 = vadd.f32 %v1963, %v2011
        %v2013 = vpop.f32.mrb[0].mxu0
        %v2014 = vpop.f32.mrb[0].mxu0
        %v2015 = vadd.f32 %v1966, %v2014
        %v2016 = vpop.f32.mrb[0].mxu0
        %2017 = vmatprep.mubr.bf16.mxu0 %v1727
        %2018 = vmatmul.mubr.bf16.gmra.mrb[0].mxu0 %v1726
        %v2019 = vpop.f32.mrb[0].mxu0
        %v2020 = vadd.f32 %v1971, %v2019
        %v2021 = vpop.f32.mrb[0].mxu0
        %v2022 = vpop.f32.mrb[0].mxu0
        %v2023 = vadd.f32 %v1974, %v2022
        %v2024 = vpop.f32.mrb[0].mxu0
        %2025 = vdwg.mxu0
        %s2026 = scalar_lea.vmem [#allocation2], 96
        %2027 = vst [vmem:[%s2026] sm:$0xff] %v2012
        %2028 = vst [vmem:[%s2026 + $0x8] sm:$0xff] %v2015
        %2029 = vst [vmem:[%s2026 + $0x10] sm:$0xff] %v2020
        %2030 = vst [vmem:[%s2026 + $0x18] sm:$0xff] %v2023
        %2031 = vadd.xlane.f32.xlu0 %v2012
        %v2032 = vpop.xlane.xlu0 %2031
        %2033 = vadd.xlane.f32.xlu0 %v2015
        %v2034 = vpop.xlane.xlu0 %2033
        %2035 = vadd.xlane.f32.xlu0 %v2020
        %v2036 = vpop.xlane.xlu0 %2035
        %2037 = vadd.xlane.f32.xlu0 %v2023
        %v2038 = vpop.xlane.xlu0 %2037
        %v2039 = vmul.f32 %v2012, %v2012
        %v2040 = vmul.f32 %v2015, %v2015
        %v2041 = vmul.f32 %v2020, %v2020
        %v2042 = vmul.f32 %v2023, %v2023
        %2043 = vadd.xlane.f32.xlu0 %v2039
        %v2044 = vpop.xlane.xlu0 %2043
        %2045 = vadd.xlane.f32.xlu0 %v2040
        %v2046 = vpop.xlane.xlu0 %2045
        %2047 = vadd.xlane.f32.xlu0 %v2041
        %v2048 = vpop.xlane.xlu0 %2047
        %2049 = vadd.xlane.f32.xlu0 %v2042
        %v2050 = vpop.xlane.xlu0 %2049
        %v2051 = vadd.f32 %v1614, %v2032
        %v2052 = vadd.f32 %v1615, %v2034
        %v2053 = vadd.f32 %v1616, %v2036
        %v2054 = vadd.f32 %v1617, %v2038
        %v2055 = vadd.f32 %v1618, %v2044
        %v2056 = vadd.f32 %v1619, %v2046
        %v2057 = vadd.f32 %v1620, %v2048
        %v2058 = vadd.f32 %v1621, %v2050
        %v2059 = vmul.f32 %v2051, 0.0078125
        %v2060 = vmul.f32 %v2052, 0.0078125
        %v2061 = vmul.f32 %v2053, 0.0078125
        %v2062 = vmul.f32 %v2054, 0.0078125
        %v2063 = vmul.f32 %v2055, 0.0078125
        %v2064 = vmul.f32 %v2056, 0.0078125
        %v2065 = vmul.f32 %v2057, 0.0078125
        %v2066 = vmul.f32 %v2058, 0.0078125
        %v2067 = vmul.f32 %v2059, %v2059
        %v2068 = vmul.f32 %v2060, %v2060
        %v2069 = vmul.f32 %v2061, %v2061
        %v2070 = vmul.f32 %v2062, %v2062
        %v2071 = vsub.f32 %v2063, %v2067
        %v2072 = vsub.f32 %v2064, %v2068
        %v2073 = vsub.f32 %v2065, %v2069
        %v2074 = vsub.f32 %v2066, %v2070
        %v2075 = vmax.f32 %v2071, 0.0
        %v2076 = vmax.f32 %v2072, 0.0
        %v2077 = vmax.f32 %v2073, 0.0
        %v2078 = vmax.f32 %v2074, 0.0
        %v2079 = vld [vmem:[%s312] sm:$0xff]
        %v2080 = vld [vmem:[%s312 + $0x8] sm:$0xff]
        %v2081 = vld [vmem:[%s312 + $0x10] sm:$0xff]
        %v2082 = vld [vmem:[%s312 + $0x18] sm:$0xff]
        %v2083 = vadd.f32 %v2075, 1e-05
        %v2084 = vadd.f32 %v2076, 1e-05
        %v2085 = vadd.f32 %v2077, 1e-05
        %v2086 = vadd.f32 %v2078, 1e-05
        %v2087 = vrsqrt.pop %v2083
        %v2088 = vrsqrt.pop %v2084
        %v2089 = vrsqrt.pop %v2085
        %v2090 = vrsqrt.pop %v2086
        %v2091 = vmul.f32 %v2079, %v2087
        %v2092 = vmul.f32 %v2080, %v2088
        %v2093 = vmul.f32 %v2081, %v2089
        %v2094 = vmul.f32 %v2082, %v2090
        %v2095 = vld [vmem:[%s318] sm:$0xff]
        %v2096 = vld [vmem:[%s318 + $0x8] sm:$0xff]
        %v2097 = vld [vmem:[%s318 + $0x10] sm:$0xff]
        %v2098 = vld [vmem:[%s318 + $0x18] sm:$0xff]
        %v2099 = vmul.f32 %v2059, %v2091
        %v2100 = vmul.f32 %v2060, %v2092
        %v2101 = vmul.f32 %v2061, %v2093
        %v2102 = vmul.f32 %v2062, %v2094
        %v2103 = vsub.f32 %v2095, %v2099
        %v2104 = vsub.f32 %v2096, %v2100
        %v2105 = vsub.f32 %v2097, %v2101
        %v2106 = vsub.f32 %v2098, %v2102
        %v2107 = vld [vmem:[#allocation2] sm:$0xff]
        %v2108 = vld [vmem:[#allocation2 + $0x8] sm:$0xff]
        %v2109 = vld [vmem:[#allocation2 + $0x10] sm:$0xff]
        %v2110 = vld [vmem:[#allocation2 + $0x18] sm:$0xff]
        %2112 = vset.pattern.permute.xlu0 0
        %2113 = vperm.xlu0 %2112, %v2091
        %v2114 = vpop.permute.xlu0 %2113
        %2117 = vset.pattern.permute.xlu0 0
        %2118 = vperm.xlu0 %2117, %v2092
        %v2119 = vpop.permute.xlu0 %2118
        %2122 = vset.pattern.permute.xlu0 0
        %2123 = vperm.xlu0 %2122, %v2093
        %v2124 = vpop.permute.xlu0 %2123
        %2127 = vset.pattern.permute.xlu0 0
        %2128 = vperm.xlu0 %2127, %v2094
        %v2129 = vpop.permute.xlu0 %2128
        %v2131 = vmul.f32 %v2107, %v2114
        %v2132 = vmul.f32 %v2108, %v2119
        %v2133 = vmul.f32 %v2109, %v2124
        %v2134 = vmul.f32 %v2110, %v2129
        %2136 = vset.pattern.permute.xlu0 0
        %2137 = vperm.xlu0 %2136, %v2103
        %v2138 = vpop.permute.xlu0 %2137
        %2141 = vset.pattern.permute.xlu0 0
        %2142 = vperm.xlu0 %2141, %v2104
        %v2143 = vpop.permute.xlu0 %2142
        %2146 = vset.pattern.permute.xlu0 0
        %2147 = vperm.xlu0 %2146, %v2105
        %v2148 = vpop.permute.xlu0 %2147
        %2151 = vset.pattern.permute.xlu0 0
        %2152 = vperm.xlu0 %2151, %v2106
        %v2153 = vpop.permute.xlu0 %2152
        %v2155 = vadd.f32 %v2131, %v2138
        %v2156 = vadd.f32 %v2132, %v2143
        %v2157 = vadd.f32 %v2133, %v2148
        %v2158 = vadd.f32 %v2134, %v2153
        %v2159 = vmax.f32 %v2155, 0.0
        %v2160 = vmax.f32 %v2156, 0.0
        %v2161 = vmax.f32 %v2157, 0.0
        %v2162 = vmax.f32 %v2158, 0.0
        %v2163 = vpack.c.bf16 %v2160, %v2159
        %v2164 = vpack.c.bf16 %v2162, %v2161
        %v2167 = vunpack.c.l.b16 %v2163
        %v2168 = vunpack.c.h.b16 %v2163
        %v2169 = vunpack.c.l.b16 %v2164
        %v2170 = vunpack.c.h.b16 %v2164
        %v2171 = vpack.c.b16 %v2167, %v2167
        %v2172 = vpack.c.b16 %v2168, %v2168
        %v2173 = vpack.c.b16 %v2169, %v2169
        %v2174 = vpack.c.b16 %v2170, %v2170
        %2179 = vst [vmem:[%s306] sm:$0xf] %v2171
        %2180 = vst [vmem:[%s306 + $0x4] sm:$0xf] %v2172
        %2181 = vst [vmem:[%s306 + $0x8] sm:$0xf] %v2173
        %2182 = vst [vmem:[%s306 + $0xc] sm:$0xf] %v2174
        %v2183 = vld [vmem:[%s1152] sm:$0xff]
        %v2184 = vld [vmem:[%s1152 + $0x8] sm:$0xff]
        %v2185 = vld [vmem:[%s1152 + $0x10] sm:$0xff]
        %v2186 = vld [vmem:[%s1152 + $0x18] sm:$0xff]
        %v2187 = vmul.f32 %v2183, %v2114
        %v2188 = vmul.f32 %v2184, %v2119
        %v2189 = vmul.f32 %v2185, %v2124
        %v2190 = vmul.f32 %v2186, %v2129
        %v2191 = vadd.f32 %v2187, %v2138
        %v2192 = vadd.f32 %v2188, %v2143
        %v2193 = vadd.f32 %v2189, %v2148
        %v2194 = vadd.f32 %v2190, %v2153
        %v2195 = vmax.f32 %v2191, 0.0
        %v2196 = vmax.f32 %v2192, 0.0
        %v2197 = vmax.f32 %v2193, 0.0
        %v2198 = vmax.f32 %v2194, 0.0
        %v2199 = vpack.c.bf16 %v2196, %v2195
        %v2200 = vpack.c.bf16 %v2198, %v2197
        %v2203 = vunpack.c.l.b16 %v2199
        %v2204 = vunpack.c.h.b16 %v2199
        %v2205 = vunpack.c.l.b16 %v2200
        %v2206 = vunpack.c.h.b16 %v2200
        %v2207 = vpack.c.b16 %v2203, %v2203
        %v2208 = vpack.c.b16 %v2204, %v2204
        %v2209 = vpack.c.b16 %v2205, %v2205
        %v2210 = vpack.c.b16 %v2206, %v2206
        %s2215 = scalar_lea.vmem %s306, 16 [#allocation4]
        %2216 = vst [vmem:[%s2215] sm:$0xf] %v2207
        %2217 = vst [vmem:[%s2215 + $0x4] sm:$0xf] %v2208
        %2218 = vst [vmem:[%s2215 + $0x8] sm:$0xf] %v2209
        %2219 = vst [vmem:[%s2215 + $0xc] sm:$0xf] %v2210
        %v2220 = vld [vmem:[%s1589] sm:$0xff]
        %v2221 = vld [vmem:[%s1589 + $0x8] sm:$0xff]
        %v2222 = vld [vmem:[%s1589 + $0x10] sm:$0xff]
        %v2223 = vld [vmem:[%s1589 + $0x18] sm:$0xff]
        %v2224 = vmul.f32 %v2220, %v2114
        %v2225 = vmul.f32 %v2221, %v2119
        %v2226 = vmul.f32 %v2222, %v2124
        %v2227 = vmul.f32 %v2223, %v2129
        %v2228 = vadd.f32 %v2224, %v2138
        %v2229 = vadd.f32 %v2225, %v2143
        %v2230 = vadd.f32 %v2226, %v2148
        %v2231 = vadd.f32 %v2227, %v2153
        %v2232 = vmax.f32 %v2228, 0.0
        %v2233 = vmax.f32 %v2229, 0.0
        %v2234 = vmax.f32 %v2230, 0.0
        %v2235 = vmax.f32 %v2231, 0.0
        %v2236 = vpack.c.bf16 %v2233, %v2232
        %v2237 = vpack.c.bf16 %v2235, %v2234
        %v2240 = vunpack.c.l.b16 %v2236
        %v2241 = vunpack.c.h.b16 %v2236
        %v2242 = vunpack.c.l.b16 %v2237
        %v2243 = vunpack.c.h.b16 %v2237
        %v2244 = vpack.c.b16 %v2240, %v2240
        %v2245 = vpack.c.b16 %v2241, %v2241
        %v2246 = vpack.c.b16 %v2242, %v2242
        %v2247 = vpack.c.b16 %v2243, %v2243
        %s2252 = scalar_lea.vmem %s306, 32 [#allocation4]
        %2253 = vst [vmem:[%s2252] sm:$0xf] %v2244
        %2254 = vst [vmem:[%s2252 + $0x4] sm:$0xf] %v2245
        %2255 = vst [vmem:[%s2252 + $0x8] sm:$0xf] %v2246
        %2256 = vst [vmem:[%s2252 + $0xc] sm:$0xf] %v2247
        %v2257 = vld [vmem:[%s2026] sm:$0xff]
        %v2258 = vld [vmem:[%s2026 + $0x8] sm:$0xff]
        %v2259 = vld [vmem:[%s2026 + $0x10] sm:$0xff]
        %v2260 = vld [vmem:[%s2026 + $0x18] sm:$0xff]
        %v2261 = vmul.f32 %v2257, %v2114
        %v2262 = vmul.f32 %v2258, %v2119
        %v2263 = vmul.f32 %v2259, %v2124
        %v2264 = vmul.f32 %v2260, %v2129
        %v2265 = vadd.f32 %v2261, %v2138
        %v2266 = vadd.f32 %v2262, %v2143
        %v2267 = vadd.f32 %v2263, %v2148
        %v2268 = vadd.f32 %v2264, %v2153
        %v2269 = vmax.f32 %v2265, 0.0
        %v2270 = vmax.f32 %v2266, 0.0
        %v2271 = vmax.f32 %v2267, 0.0
        %v2272 = vmax.f32 %v2268, 0.0
        %v2273 = vpack.c.bf16 %v2270, %v2269
        %v2274 = vpack.c.bf16 %v2272, %v2271
        %v2277 = vunpack.c.l.b16 %v2273
        %v2278 = vunpack.c.h.b16 %v2273
        %v2279 = vunpack.c.l.b16 %v2274
        %v2280 = vunpack.c.h.b16 %v2274
        %v2281 = vpack.c.b16 %v2277, %v2277
        %v2282 = vpack.c.b16 %v2278, %v2278
        %v2283 = vpack.c.b16 %v2279, %v2279
        %v2284 = vpack.c.b16 %v2280, %v2280
        %s2289 = scalar_lea.vmem %s306, 48 [#allocation4]
        %2290 = vst [vmem:[%s2289] sm:$0xf] %v2281
        %2291 = vst [vmem:[%s2289 + $0x4] sm:$0xf] %v2282
        %2292 = vst [vmem:[%s2289 + $0x8] sm:$0xf] %v2283
        %2293 = vst [vmem:[%s2289 + $0xc] sm:$0xf] %v2284
        %s2294 = sand.u32 %s122, 1
        %s2295 = sand.u32 %s122, 1
        %s2296 = smul.addr %s2295, 64
        %s2297 = scalar_lea.vmem [#allocation4], %s2296
        // Predicated region
        $region60: #{generator_forward.6} parent=54 // pred_check
          %p2298 = pneg %p132
        $region61: #{generator_forward.6} parent=54 // pred_check_branch
          %2300 = sbr.rel (%p2298) target = $region63
        $region62: #{generator_forward.6} parent=54 // pred_region
          %s2301 = smul.u32 4, %s15
          %s2302 = smul.addr %s2301, 4
          %s2303 = scalar_lea.vmem %s4, %s2302
          // Predicated region
          $region64: #{generator_forward.6} parent=62 // pred_check
            _
          $region65: #{generator_forward.6} parent=62 // pred_check_branch
            %2305 = sbr.rel (0) target = $region67
          $region66: #{generator_forward.6} parent=62 // pred_region
            // Predicated region
            $region68: #{generator_forward.6} parent=66 // pred_check
              _
            $region69: #{generator_forward.6} parent=66 // pred_check_branch
              %2307 = sbr.rel target = $region71
            $region70: #{generator_forward.6} parent=66 // pred_region
              // Predicated region
              $region83: #{generator_forward.6} parent=70 // pred_check
                _
              $region84: #{generator_forward.6} parent=70 // pred_check_branch
                %2352 = sbr.rel (0) target = $region86
              $region85: #{generator_forward.6} parent=70 // pred_region
                loop: start=0, step=1, limit=1
                $region87: #{generator_forward.6} parent=85 // loop_pre_header
                  _
                $region88: #{generator_forward.6} parent=85 // loop_header
                  %s2354 = sphi 0, %s2358
                  %p2355 = scmp.ge.s32.totalorder %s2354, 1
                  %s2359 = sphi %s2297, %s2297
                  %s2360 = sphi %s2303, %s2303
                $region89: #{generator_forward.6} parent=85 // loop_header_branch
                  %2357 = sbr.rel (%p2355) target = $region93
                $region90: #{generator_forward.6} parent=85 // loop_body
                  _
                $region91: #{generator_forward.6} parent=85 // loop_footer
                  %s2358 = sadd.s32 1, %s2354
                $region92: #{generator_forward.6} parent=85 // loop_footer_branch
                  %2353 = sbr.rel target = $region88
                $region93: #{generator_forward.6} parent=85 // loop_exit
                  _
                loop: start=0, step=1, limit=1
                $region94: #{generator_forward.6} parent=85 // loop_pre_header
                  _
                $region95: #{generator_forward.6} parent=85 // loop_header
                  %s2363 = sphi 0, %s2367
                  %p2364 = scmp.ge.s32.totalorder %s2363, 1
                  %s2368 = sphi %s2297, %s2297
                  %s2369 = sphi %s2303, %s2303
                $region96: #{generator_forward.6} parent=85 // loop_header_branch
                  %2366 = sbr.rel (%p2364) target = $region100
                $region97: #{generator_forward.6} parent=85 // loop_body
                  %v2370 = vld [vmem:[%s2368] sm:$0xf]
                  %2371 = vst [vmem:[%s2369] sm:$0xf] %v2370
                  %v2372 = vld [vmem:[%s2368 + $0x4] sm:$0xf]
                  %2373 = vst [vmem:[%s2369 + $0x4] sm:$0xf] %v2372
                  %v2374 = vld [vmem:[%s2368 + $0x8] sm:$0xf]
                  %2375 = vst [vmem:[%s2369 + $0x8] sm:$0xf] %v2374
                  %v2376 = vld [vmem:[%s2368 + $0xc] sm:$0xf]
                  %2377 = vst [vmem:[%s2369 + $0xc] sm:$0xf] %v2376
                  %v2378 = vld [vmem:[%s2368 + $0x10] sm:$0xf]
                  %2379 = vst [vmem:[%s2369 + $0x20] sm:$0xf] %v2378
                  %v2380 = vld [vmem:[%s2368 + $0x14] sm:$0xf]
                  %2381 = vst [vmem:[%s2369 + $0x24] sm:$0xf] %v2380
                  %v2382 = vld [vmem:[%s2368 + $0x18] sm:$0xf]
                  %2383 = vst [vmem:[%s2369 + $0x28] sm:$0xf] %v2382
                  %v2384 = vld [vmem:[%s2368 + $0x1c] sm:$0xf]
                  %2385 = vst [vmem:[%s2369 + $0x2c] sm:$0xf] %v2384
                  %v2386 = vld [vmem:[%s2368 + $0x20] sm:$0xf]
                  %2387 = vst [vmem:[%s2369 + $0x40] sm:$0xf] %v2386
                  %v2388 = vld [vmem:[%s2368 + $0x24] sm:$0xf]
                  %2389 = vst [vmem:[%s2369 + $0x44] sm:$0xf] %v2388
                  %v2390 = vld [vmem:[%s2368 + $0x28] sm:$0xf]
                  %2391 = vst [vmem:[%s2369 + $0x48] sm:$0xf] %v2390
                  %v2392 = vld [vmem:[%s2368 + $0x2c] sm:$0xf]
                  %2393 = vst [vmem:[%s2369 + $0x4c] sm:$0xf] %v2392
                  %v2394 = vld [vmem:[%s2368 + $0x30] sm:$0xf]
                  %2395 = vst [vmem:[%s2369 + $0x60] sm:$0xf] %v2394
                  %v2396 = vld [vmem:[%s2368 + $0x34] sm:$0xf]
                  %2397 = vst [vmem:[%s2369 + $0x64] sm:$0xf] %v2396
                  %v2398 = vld [vmem:[%s2368 + $0x38] sm:$0xf]
                  %2399 = vst [vmem:[%s2369 + $0x68] sm:$0xf] %v2398
                  %v2400 = vld [vmem:[%s2368 + $0x3c] sm:$0xf]
                  %2401 = vst [vmem:[%s2369 + $0x6c] sm:$0xf] %v2400
                $region98: #{generator_forward.6} parent=85 // loop_footer
                  %s2367 = sadd.s32 1, %s2363
                $region99: #{generator_forward.6} parent=85 // loop_footer_branch
                  %2362 = sbr.rel target = $region95
                $region100: #{generator_forward.6} parent=85 // loop_exit
                  _
              $region86: #{generator_forward.6} parent=70 // pred_fallthru
                _
            $region71: #{generator_forward.6} parent=66 // pred_fallthru
              _
            // Predicated region
            $region72: #{generator_forward.6} parent=66 // pred_check
              _
            $region73: #{generator_forward.6} parent=66 // pred_check_branch
              %2309 = sbr.rel (0) target = $region75
            $region74: #{generator_forward.6} parent=66 // pred_region
              loop: start=0, step=1, limit=1
              $region76: #{generator_forward.6} parent=74 // loop_pre_header
                _
              $region77: #{generator_forward.6} parent=74 // loop_header
                %s2312 = sphi 0, %s2316
                %p2313 = scmp.ge.s32.totalorder %s2312, 1
                %s2317 = sphi %s2297, %s2297
                %s2318 = sphi %s2303, %s2303
              $region78: #{generator_forward.6} parent=74 // loop_header_branch
                %2315 = sbr.rel (%p2313) target = $region82
              $region79: #{generator_forward.6} parent=74 // loop_body
                %v2319 = vld [vmem:[%s2317] sm:$0xf]
                %2320 = vst [vmem:[%s2318] sm:$0xf] %v2319
                %v2321 = vld [vmem:[%s2317 + $0x4] sm:$0xf]
                %2322 = vst [vmem:[%s2318 + $0x4] sm:$0xf] %v2321
                %v2323 = vld [vmem:[%s2317 + $0x8] sm:$0xf]
                %2324 = vst [vmem:[%s2318 + $0x8] sm:$0xf] %v2323
                %v2325 = vld [vmem:[%s2317 + $0xc] sm:$0xf]
                %2326 = vst [vmem:[%s2318 + $0xc] sm:$0xf] %v2325
                %v2327 = vld [vmem:[%s2317 + $0x10] sm:$0xf]
                %2328 = vst [vmem:[%s2318 + $0x20] sm:$0xf] %v2327
                %v2329 = vld [vmem:[%s2317 + $0x14] sm:$0xf]
                %2330 = vst [vmem:[%s2318 + $0x24] sm:$0xf] %v2329
                %v2331 = vld [vmem:[%s2317 + $0x18] sm:$0xf]
                %2332 = vst [vmem:[%s2318 + $0x28] sm:$0xf] %v2331
                %v2333 = vld [vmem:[%s2317 + $0x1c] sm:$0xf]
                %2334 = vst [vmem:[%s2318 + $0x2c] sm:$0xf] %v2333
                %v2335 = vld [vmem:[%s2317 + $0x20] sm:$0xf]
                %2336 = vst [vmem:[%s2318 + $0x40] sm:$0xf] %v2335
                %v2337 = vld [vmem:[%s2317 + $0x24] sm:$0xf]
                %2338 = vst [vmem:[%s2318 + $0x44] sm:$0xf] %v2337
                %v2339 = vld [vmem:[%s2317 + $0x28] sm:$0xf]
                %2340 = vst [vmem:[%s2318 + $0x48] sm:$0xf] %v2339
                %v2341 = vld [vmem:[%s2317 + $0x2c] sm:$0xf]
                %2342 = vst [vmem:[%s2318 + $0x4c] sm:$0xf] %v2341
                %v2343 = vld [vmem:[%s2317 + $0x30] sm:$0xf]
                %2344 = vst [vmem:[%s2318 + $0x60] sm:$0xf] %v2343
                %v2345 = vld [vmem:[%s2317 + $0x34] sm:$0xf]
                %2346 = vst [vmem:[%s2318 + $0x64] sm:$0xf] %v2345
                %v2347 = vld [vmem:[%s2317 + $0x38] sm:$0xf]
                %2348 = vst [vmem:[%s2318 + $0x68] sm:$0xf] %v2347
                %v2349 = vld [vmem:[%s2317 + $0x3c] sm:$0xf]
                %2350 = vst [vmem:[%s2318 + $0x6c] sm:$0xf] %v2349
              $region80: #{generator_forward.6} parent=74 // loop_footer
                %s2316 = sadd.s32 1, %s2312
              $region81: #{generator_forward.6} parent=74 // loop_footer_branch
                %2311 = sbr.rel target = $region77
              $region82: #{generator_forward.6} parent=74 // loop_exit
                _
            $region75: #{generator_forward.6} parent=66 // pred_fallthru
              _
          $region67: #{generator_forward.6} parent=62 // pred_fallthru
            _
          %2402 = vnop
        $region63: #{generator_forward.6} parent=54 // pred_fallthru
          _
      $region55: #{generator_forward.6} parent=5 // pred_fallthru
        _
      %p2403 = scmp.le.s32.totalorder 2, %s10
      // Predicated region
      $region101: #{generator_forward.6} parent=5 // pred_check
        %p2404 = pneg %p2403
      $region102: #{generator_forward.6} parent=5 // pred_check_branch
        %2406 = sbr.rel (%p2404) target = $region104
      $region103: #{generator_forward.6} parent=5 // pred_region
        %s2407 = ssub.s32 %s10, 2
        // Predicated region
        $region105: #{generator_forward.6} parent=103 // pred_check
          %p2408 = pneg %p138
        $region106: #{generator_forward.6} parent=103 // pred_check_branch
          %2410 = sbr.rel (%p2408) target = $region108
        $region107: #{generator_forward.6} parent=103 // pred_region
          %s2411 = sand.u32 %s123, 1
          %s2412 = sand.u32 %s123, 1
          %s2413 = smul.addr %s2412, 64
          %s2414 = scalar_lea.vmem [#allocation4], %s2413
        $region108: #{generator_forward.6} parent=103 // pred_fallthru
          _
      $region104: #{generator_forward.6} parent=5 // pred_fallthru
        _
    $region6: #{generator_forward.6} parent=1 // loop_footer
      %s14 = sadd.s32 1, %s10
    $region7: #{generator_forward.6} parent=1 // loop_footer_branch
      %9 = sbr.rel target = $region3
    $region8: #{generator_forward.6} parent=1 // loop_exit
      _

// kernel: generator_forward.7
$region0: #{generator_forward.7}
  #allocation0 [shape = 'u32[]', space=smem, size = 0x4, offset = 0x4, fixed_abs, tag = 'smem constant byte address 0x4 - core index']
  #allocation1 [shape = 'u32[144,128]{1,0:T(1,128)}', space=vmem, size = 0x12000, scoped, tag = 'internal scratch']
  #allocation2 [shape = 'f32[4,16,128]{2,1,0:T(8,128)}', space=vmem, size = 0x8000, scoped, tag = 'scratch operand']
  %s0 = inlined_call_operand.vmem [shape: bf16[4,32,256], index: 0, kind: input, shape index: {}]
  %s1 = inlined_call_operand.vmem [shape: bf16[4,256,128], index: 1, kind: input, shape index: {}]
  %s2 = inlined_call_operand.vmem [shape: f32[32,1], index: 2, kind: input, shape index: {}]
  %s3 = inlined_call_operand.vmem [shape: f32[32,1], index: 3, kind: input, shape index: {}]
  %s4 = inlined_call_operand.vmem [shape: bf16[4,32,128], index: 4, kind: output, shape index: {}]
  %s5 = sld [smem:[#allocation0]]
  $region124: #{generator_forward.7} parent=0
    _
  %s7 = ssub.s32 1, %s5
  %s8 = scalar_select 0, %s7, %s5
  $region1: #{generator_forward.7} parent=0
    #allocation3 [shape = 'u8[65536]{0}', space=vmem, size = 0x10000, scoped, tag = 'input window, operand 0']
    #allocation4 [shape = 'u8[32768]{0}', space=vmem, size = 0x8000, scoped, tag = 'output window, operand 0']
    loop: start=0, step=1, limit=4
    $region2: #{generator_forward.7} parent=1 // loop_pre_header
      _
    $region3: #{generator_forward.7} parent=1 // loop_header
      %s10 = sphi 0, %s14
      %p11 = scmp.ge.s32.totalorder %s10, 4
      %s20 = sphi 0, %s22
      %s23 = sphi 0, %s20
      %s24 = sphi 0, %s23
      %s40 = sphi 0, %s24
      %s44 = sphi 0, %s44
      %s46 = sphi 0, %s44
      %s47 = sphi 0, %s46
      %s61 = sphi 0, %s47
      %s67 = sphi 0, %s69
      %s70 = sphi 0, %s67
      %s71 = sphi 0, %s70
      %s87 = sphi 0, %s71
      %s93 = sphi 0, %s95
      %s96 = sphi 0, %s93
      %s97 = sphi 0, %s96
      %s113 = sphi 0, %s97
      %s119 = sphi 0, %s121
      %s122 = sphi 0, %s119
      %s123 = sphi 0, %s122
      %s139 = sphi 0, %s123
    $region4: #{generator_forward.7} parent=1 // loop_header_branch
      %13 = sbr.rel (%p11) target = $region8
    $region5: #{generator_forward.7} parent=1 // loop_body
      %s15 = ssub.s32 %s10, 1
      %s16 = ssub.s32 %s10, 2
      %s17 = sadd.s32 %s10, 1
      %s18 = ssub.s32 %s10, %s17
      %p19 = scmp.eq.s32.totalorder %s18, 0
      %s21 = sadd.s32 %s20, 1
      %s22 = scalar_select %p19, %s20, %s21
      %p25 = pneg %p19
      %p26 = scmp.eq.s32.totalorder %s10, 1
      %p27 = por %p25, %p26
      %p28 = scmp.ne.s32.totalorder %s20, %s23
      %p29 = scmp.eq.s32.totalorder %s10, 0
      %p30 = por %p28, %p29
      %p31 = scmp.ne.s32.totalorder %s20, %s23
      %p32 = scmp.eq.s32.totalorder %s15, 1
      %p33 = por %p31, %p32
      %p34 = scmp.ne.s32.totalorder %s23, %s24
      %p35 = scmp.eq.s32.totalorder %s15, 0
      %p36 = por %p34, %p35
      %p37 = scmp.ne.s32.totalorder %s23, %s24
      %p38 = scmp.eq.s32.totalorder %s16, 1
      %p39 = por %p37, %p38
      %p41 = scmp.ne.s32.totalorder %s24, %s40
      %p42 = scmp.eq.s32.totalorder %s16, 0
      %p43 = por %p41, %p42
      %s45 = sadd.s32 %s44, 1
      %p48 = scmp.eq.s32.totalorder %s10, 1
      %p49 = scmp.ne.s32.totalorder %s44, %s46
      %p50 = scmp.eq.s32.totalorder %s10, 0
      %p51 = por %p49, %p50
      %p52 = scmp.ne.s32.totalorder %s44, %s46
      %p53 = scmp.eq.s32.totalorder %s15, 1
      %p54 = por %p52, %p53
      %p55 = scmp.ne.s32.totalorder %s46, %s47
      %p56 = scmp.eq.s32.totalorder %s15, 0
      %p57 = por %p55, %p56
      %p58 = scmp.ne.s32.totalorder %s46, %s47
      %p59 = scmp.eq.s32.totalorder %s16, 1
      %p60 = por %p58, %p59
      %p62 = scmp.ne.s32.totalorder %s47, %s61
      %p63 = scmp.eq.s32.totalorder %s16, 0
      %p64 = por %p62, %p63
      %s65 = ssub.s32 %s10, %s17
      %p66 = scmp.eq.s32.totalorder %s65, 0
      %s68 = sadd.s32 %s67, 1
      %s69 = scalar_select %p66, %s67, %s68
      %p72 = pneg %p66
      %p73 = scmp.eq.s32.totalorder %s10, 1
      %p74 = por %p72, %p73
      %p75 = scmp.ne.s32.totalorder %s67, %s70
      %p76 = scmp.eq.s32.totalorder %s10, 0
      %p77 = por %p75, %p76
      %p78 = scmp.ne.s32.totalorder %s67, %s70
      %p79 = scmp.eq.s32.totalorder %s15, 1
      %p80 = por %p78, %p79
      %p81 = scmp.ne.s32.totalorder %s70, %s71
      %p82 = scmp.eq.s32.totalorder %s15, 0
      %p83 = por %p81, %p82
      %p84 = scmp.ne.s32.totalorder %s70, %s71
      %p85 = scmp.eq.s32.totalorder %s16, 1
      %p86 = por %p84, %p85
      %p88 = scmp.ne.s32.totalorder %s71, %s87
      %p89 = scmp.eq.s32.totalorder %s16, 0
      %p90 = por %p88, %p89
      %s91 = ssub.s32 %s10, %s17
      %p92 = scmp.eq.s32.totalorder %s91, 0
      %s94 = sadd.s32 %s93, 1
      %s95 = scalar_select %p92, %s93, %s94
      %p98 = pneg %p92
      %p99 = scmp.eq.s32.totalorder %s10, 1
      %p100 = por %p98, %p99
      %p101 = scmp.ne.s32.totalorder %s93, %s96
      %p102 = scmp.eq.s32.totalorder %s10, 0
      %p103 = por %p101, %p102
      %p104 = scmp.ne.s32.totalorder %s93, %s96
      %p105 = scmp.eq.s32.totalorder %s15, 1
      %p106 = por %p104, %p105
      %p107 = scmp.ne.s32.totalorder %s96, %s97
      %p108 = scmp.eq.s32.totalorder %s15, 0
      %p109 = por %p107, %p108
      %p110 = scmp.ne.s32.totalorder %s96, %s97
      %p111 = scmp.eq.s32.totalorder %s16, 1
      %p112 = por %p110, %p111
      %p114 = scmp.ne.s32.totalorder %s97, %s113
      %p115 = scmp.eq.s32.totalorder %s16, 0
      %p116 = por %p114, %p115
      %s117 = ssub.s32 %s10, %s17
      %p118 = scmp.eq.s32.totalorder %s117, 0
      %s120 = sadd.s32 %s119, 1
      %s121 = scalar_select %p118, %s119, %s120
      %p124 = pneg %p118
      %p125 = scmp.eq.s32.totalorder %s10, 1
      %p126 = por %p124, %p125
      %p127 = scmp.ne.s32.totalorder %s119, %s122
      %p128 = scmp.eq.s32.totalorder %s10, 0
      %p129 = por %p127, %p128
      %p130 = scmp.ne.s32.totalorder %s119, %s122
      %p131 = scmp.eq.s32.totalorder %s15, 1
      %p132 = por %p130, %p131
      %p133 = scmp.ne.s32.totalorder %s122, %s123
      %p134 = scmp.eq.s32.totalorder %s15, 0
      %p135 = por %p133, %p134
      %p136 = scmp.ne.s32.totalorder %s122, %s123
      %p137 = scmp.eq.s32.totalorder %s16, 1
      %p138 = por %p136, %p137
      %p140 = scmp.ne.s32.totalorder %s123, %s139
      %p141 = scmp.eq.s32.totalorder %s16, 0
      %p142 = por %p140, %p141
      %p143 = scmp.le.s32.totalorder 1, %s10
      %p144 = scmp.lt.s32.totalorder %s10, 3
      %p145 = pnand %p143, %p144
      %p146 = pneg %p145
      // Predicated region
      $region9: #{generator_forward.7} parent=5 // pred_check
        _
      $region10: #{generator_forward.7} parent=5 // pred_check_branch
        %148 = sbr.rel (%p145) target = $region12
      $region11: #{generator_forward.7} parent=5 // pred_region
        %s149 = ssub.s32 %s10, 1
        // Predicated region
        $region13: #{generator_forward.7} parent=11 // pred_check
          %p150 = pneg %p57
        $region14: #{generator_forward.7} parent=11 // pred_check_branch
          %152 = sbr.rel (%p150) target = $region16
        $region15: #{generator_forward.7} parent=11 // pred_region
          _
        $region16: #{generator_forward.7} parent=11 // pred_fallthru
          _
      $region12: #{generator_forward.7} parent=5 // pred_fallthru
        _
      %p153 = scmp.lt.s32.totalorder %s10, 2
      // Predicated region
      $region17: #{generator_forward.7} parent=5 // pred_check
        %p154 = pneg %p153
      $region18: #{generator_forward.7} parent=5 // pred_check_branch
        %156 = sbr.rel (%p154) target = $region20
      $region19: #{generator_forward.7} parent=5 // pred_region
        // Predicated region
        $region21: #{generator_forward.7} parent=19 // pred_check
          %p157 = pneg %p30
        $region22: #{generator_forward.7} parent=19 // pred_check_branch
          %159 = sbr.rel (%p157) target = $region24
        $region23: #{generator_forward.7} parent=19 // pred_region
          %s160 = sand.u32 %s20, 1
          %s161 = sand.u32 %s20, 1
          %s162 = smul.addr %s161, 64
          %s163 = scalar_lea.vmem [#allocation3], %s162
          %s164 = smul.u32 2, %s10
          %s165 = smul.addr %s164, 2
          %s166 = smul.addr %s165, 4
          %s167 = scalar_lea.vmem %s0, %s166
          // Predicated region
          $region25: #{generator_forward.7} parent=23 // pred_check
            _
          $region26: #{generator_forward.7} parent=23 // pred_check_branch
            %169 = sbr.rel (0) target = $region28
          $region27: #{generator_forward.7} parent=23 // pred_region
            // Predicated region
            $region29: #{generator_forward.7} parent=27 // pred_check
              _
            $region30: #{generator_forward.7} parent=27 // pred_check_branch
              %171 = sbr.rel (0) target = $region32
            $region31: #{generator_forward.7} parent=27 // pred_region
              // Predicated region
              $region44: #{generator_forward.7} parent=31 // pred_check
                _
              $region45: #{generator_forward.7} parent=31 // pred_check_branch
                %200 = sbr.rel (0) target = $region47
              $region46: #{generator_forward.7} parent=31 // pred_region
                loop: start=0, step=1, limit=1
                $region48: #{generator_forward.7} parent=46 // loop_pre_header
                  _
                $region49: #{generator_forward.7} parent=46 // loop_header
                  %s202 = sphi 0, %s206
                  %p203 = scmp.ge.s32.totalorder %s202, 1
                  %s207 = sphi %s167, %s167
                  %s208 = sphi %s163, %s163
                $region50: #{generator_forward.7} parent=46 // loop_header_branch
                  %205 = sbr.rel (%p203) target = $region54
                $region51: #{generator_forward.7} parent=46 // loop_body
                  %v209 = vld [vmem:[%s207] sm:$0xff]
                  %210 = vst [vmem:[%s208] sm:$0xff] %v209
                  %v211 = vld [vmem:[%s207 + $0x8] sm:$0xff]
                  %212 = vst [vmem:[%s208 + $0x8] sm:$0xff] %v211
                  %v213 = vld [vmem:[%s207 + $0x20] sm:$0xff]
                  %214 = vst [vmem:[%s208 + $0x10] sm:$0xff] %v213
                  %v215 = vld [vmem:[%s207 + $0x28] sm:$0xff]
                  %216 = vst [vmem:[%s208 + $0x18] sm:$0xff] %v215
                  %v217 = vld [vmem:[%s207 + $0x40] sm:$0xff]
                  %218 = vst [vmem:[%s208 + $0x20] sm:$0xff] %v217
                  %v219 = vld [vmem:[%s207 + $0x48] sm:$0xff]
                  %220 = vst [vmem:[%s208 + $0x28] sm:$0xff] %v219
                  %v221 = vld [vmem:[%s207 + $0x60] sm:$0xff]
                  %222 = vst [vmem:[%s208 + $0x30] sm:$0xff] %v221
                  %v223 = vld [vmem:[%s207 + $0x68] sm:$0xff]
                  %224 = vst [vmem:[%s208 + $0x38] sm:$0xff] %v223
                $region52: #{generator_forward.7} parent=46 // loop_footer
                  %s206 = sadd.s32 1, %s202
                $region53: #{generator_forward.7} parent=46 // loop_footer_branch
                  %201 = sbr.rel target = $region49
                $region54: #{generator_forward.7} parent=46 // loop_exit
                  _
              $region47: #{generator_forward.7} parent=31 // pred_fallthru
                _
              // Predicated region
              $region55: #{generator_forward.7} parent=31 // pred_check
                _
              $region56: #{generator_forward.7} parent=31 // pred_check_branch
                %226 = sbr.rel target = $region58
              $region57: #{generator_forward.7} parent=31 // pred_region
                _
              $region58: #{generator_forward.7} parent=31 // pred_fallthru
                _
            $region32: #{generator_forward.7} parent=27 // pred_fallthru
              _
            // Predicated region
            $region33: #{generator_forward.7} parent=27 // pred_check
              _
            $region34: #{generator_forward.7} parent=27 // pred_check_branch
              %173 = sbr.rel target = $region36
            $region35: #{generator_forward.7} parent=27 // pred_region
              loop: start=0, step=1, limit=1
              $region37: #{generator_forward.7} parent=35 // loop_pre_header
                _
              $region38: #{generator_forward.7} parent=35 // loop_header
                %s176 = sphi 0, %s180
                %p177 = scmp.ge.s32.totalorder %s176, 1
                %s181 = sphi %s167, %s167
                %s182 = sphi %s163, %s163
              $region39: #{generator_forward.7} parent=35 // loop_header_branch
                %179 = sbr.rel (%p177) target = $region43
              $region40: #{generator_forward.7} parent=35 // loop_body
                %v183 = vld [vmem:[%s181] sm:$0xff]
                %184 = vst [vmem:[%s182] sm:$0xff] %v183
                %v185 = vld [vmem:[%s181 + $0x8] sm:$0xff]
                %186 = vst [vmem:[%s182 + $0x8] sm:$0xff] %v185
                %v187 = vld [vmem:[%s181 + $0x20] sm:$0xff]
                %188 = vst [vmem:[%s182 + $0x10] sm:$0xff] %v187
                %v189 = vld [vmem:[%s181 + $0x28] sm:$0xff]
                %190 = vst [vmem:[%s182 + $0x18] sm:$0xff] %v189
                %v191 = vld [vmem:[%s181 + $0x40] sm:$0xff]
                %192 = vst [vmem:[%s182 + $0x20] sm:$0xff] %v191
                %v193 = vld [vmem:[%s181 + $0x48] sm:$0xff]
                %194 = vst [vmem:[%s182 + $0x28] sm:$0xff] %v193
                %v195 = vld [vmem:[%s181 + $0x60] sm:$0xff]
                %196 = vst [vmem:[%s182 + $0x30] sm:$0xff] %v195
                %v197 = vld [vmem:[%s181 + $0x68] sm:$0xff]
                %198 = vst [vmem:[%s182 + $0x38] sm:$0xff] %v197
              $region41: #{generator_forward.7} parent=35 // loop_footer
                %s180 = sadd.s32 1, %s176
              $region42: #{generator_forward.7} parent=35 // loop_footer_branch
                %175 = sbr.rel target = $region38
              $region43: #{generator_forward.7} parent=35 // loop_exit
                _
            $region36: #{generator_forward.7} parent=27 // pred_fallthru
              _
          $region28: #{generator_forward.7} parent=23 // pred_fallthru
            _
          %227 = vnop
        $region24: #{generator_forward.7} parent=19 // pred_fallthru
          _
        // Predicated region
        $region59: #{generator_forward.7} parent=19 // pred_check
          %p228 = pneg %p77
        $region60: #{generator_forward.7} parent=19 // pred_check_branch
          %230 = sbr.rel (%p228) target = $region62
        $region61: #{generator_forward.7} parent=19 // pred_region
          %s231 = smul.u32 2, %s10
          %p232 = scmp.lt.s32.totalorder %s231, 3
          %s233 = scalar_select %p232, %s231, 3
          %s234 = smul.addr %s233, 8
          %s235 = scalar_lea.vmem %s2, %s234
          %s236 = smul.u32 2, %s10
        $region62: #{generator_forward.7} parent=19 // pred_fallthru
          _
        // Predicated region
        $region63: #{generator_forward.7} parent=19 // pred_check
          %p237 = pneg %p103
        $region64: #{generator_forward.7} parent=19 // pred_check_branch
          %239 = sbr.rel (%p237) target = $region66
        $region65: #{generator_forward.7} parent=19 // pred_region
          %s240 = smul.u32 2, %s10
          %p241 = scmp.lt.s32.totalorder %s240, 3
          %s242 = scalar_select %p241, %s240, 3
          %s243 = smul.addr %s242, 8
          %s244 = scalar_lea.vmem %s3, %s243
          %s245 = smul.u32 2, %s10
        $region66: #{generator_forward.7} parent=19 // pred_fallthru
          _
      $region20: #{generator_forward.7} parent=5 // pred_fallthru
        _
      %p246 = scmp.le.s32.totalorder 1, %s10
      %p247 = scmp.lt.s32.totalorder %s10, 3
      %p248 = pnand %p246, %p247
      %p249 = pneg %p248
      // Predicated region
      $region67: #{generator_forward.7} parent=5 // pred_check
        _
      $region68: #{generator_forward.7} parent=5 // pred_check_branch
        %251 = sbr.rel (%p248) target = $region70
      $region69: #{generator_forward.7} parent=5 // pred_region
        %s252 = ssub.s32 %s10, 1
        %s253 = sand.u32 %s23, 1
        %s254 = sand.u32 %s23, 1
        %s255 = smul.addr %s254, 64
        %s256 = scalar_lea.vmem [#allocation3], %s255
        // Predicated region
        $region71: #{generator_forward.7} parent=69 // pred_check
          %p257 = pneg %p36
        $region72: #{generator_forward.7} parent=69 // pred_check_branch
          %259 = sbr.rel (%p257) target = $region74
        $region73: #{generator_forward.7} parent=69 // pred_region
          _
        $region74: #{generator_forward.7} parent=69 // pred_fallthru
          _
        %s260 = sand.u32 %s23, 1
        %s261 = sand.u32 %s23, 1
        %s262 = smul.addr %s261, 64
        %s263 = scalar_lea.vmem [#allocation3], %s262
        %p264 = pneg %p36
        %p265 = pneg %p33
        %p266 = pneg %p57
        %p267 = pneg %p54
        %s268 = smul.u32 2, %s15
        %p269 = scmp.lt.s32.totalorder %s268, 3
        %s270 = scalar_select %p269, %s268, 3
        %s271 = smul.addr %s270, 8
        %s272 = scalar_lea.vmem %s2, %s271
        %p273 = pneg %p83
        %p274 = pneg %p80
        %s275 = smul.u32 2, %s15
        %p276 = scmp.lt.s32.totalorder %s275, 3
        %s277 = scalar_select %p276, %s275, 3
        %s278 = smul.addr %s277, 8
        %s279 = scalar_lea.vmem %s3, %s278
        %p280 = pneg %p109
        %p281 = pneg %p106
        %p282 = pneg %p135
        %p283 = pneg %p132
        %s284 = sand.u32 %s122, 1
        %s285 = sand.u32 %s122, 1
        %s286 = smul.addr %s285, 32
        %s287 = scalar_lea.vmem [#allocation4], %s286
        %s288 = smul.u32 2, %s15
        %s289 = smul.u32 2, %s15
        %p290 = scmp.lt.s32.totalorder %s289, 3
        %s291 = scalar_select %p290, %s289, 3
        %s292 = smul.addr %s291, 8
        %s293 = scalar_lea.vmem %s2, %s292
        %s294 = smul.u32 2, %s15
        %s295 = smul.u32 2, %s15
        %p296 = scmp.lt.s32.totalorder %s295, 3
        %s297 = scalar_select %p296, %s295, 3
        %s298 = smul.addr %s297, 8
        %s299 = scalar_lea.vmem %s3, %s298
        %s300 = smul.u32 2, %s15
        %s301 = smul.u32 2, %s15
        %v303 = vld [vmem:[%s256] sm:$0xff]
        %v304 = vld [vmem:[%s256 + $0x8] sm:$0xff]
        %v305 = vld [vmem:[%s1] sm:$0xf]
        %v306 = vld [vmem:[%s1 + $0x4] sm:$0xf]
        %v307 = vld [vmem:[%s1 + $0x8] sm:$0xf]
        %v308 = vld [vmem:[%s1 + $0xc] sm:$0xf]
        %v309 = vld [vmem:[%s1 + $0x10] sm:$0xf]
        %v310 = vld [vmem:[%s1 + $0x14] sm:$0xf]
        %v311 = vld [vmem:[%s1 + $0x18] sm:$0xf]
        %v312 = vld [vmem:[%s1 + $0x1c] sm:$0xf]
        %v313 = vld [vmem:[%s1 + $0x20] sm:$0xf]
        %v314 = vld [vmem:[%s1 + $0x24] sm:$0xf]
        %v315 = vld [vmem:[%s1 + $0x28] sm:$0xf]
        %v316 = vld [vmem:[%s1 + $0x2c] sm:$0xf]
        %v317 = vld [vmem:[%s1 + $0x30] sm:$0xf]
        %v318 = vld [vmem:[%s1 + $0x34] sm:$0xf]
        %v319 = vld [vmem:[%s1 + $0x38] sm:$0xf]
        %v320 = vld [vmem:[%s1 + $0x3c] sm:$0xf]
        %v321 = vld [vmem:[%s1 + $0x40] sm:$0xf]
        %v322 = vld [vmem:[%s1 + $0x44] sm:$0xf]
        %v323 = vld [vmem:[%s1 + $0x48] sm:$0xf]
        %v324 = vld [vmem:[%s1 + $0x4c] sm:$0xf]
        %v325 = vld [vmem:[%s1 + $0x50] sm:$0xf]
        %v326 = vld [vmem:[%s1 + $0x54] sm:$0xf]
        %v327 = vld [vmem:[%s1 + $0x58] sm:$0xf]
        %v328 = vld [vmem:[%s1 + $0x5c] sm:$0xf]
        %v329 = vld [vmem:[%s1 + $0x60] sm:$0xf]
        %v330 = vld [vmem:[%s1 + $0x64] sm:$0xf]
        %v331 = vld [vmem:[%s1 + $0x68] sm:$0xf]
        %v332 = vld [vmem:[%s1 + $0x6c] sm:$0xf]
        %v333 = vld [vmem:[%s1 + $0x70] sm:$0xf]
        %v334 = vld [vmem:[%s1 + $0x74] sm:$0xf]
        %v335 = vld [vmem:[%s1 + $0x78] sm:$0xf]
        %v336 = vld [vmem:[%s1 + $0x7c] sm:$0xf]
        %v339 = vunpack.c.l.b16 %v303
        %v340 = vunpack.c.h.b16 %v303
        %v341 = vunpack.c.l.b16 %v304
        %v342 = vunpack.c.h.b16 %v304
        %v343 = vpack.c.b16 %v341, %v339
        %v344 = vpack.c.b16 %v342, %v340
        %v379 = vunpack.c.l.b16 %v305
        %v380 = vunpack.c.l.b16 %v306
        %v381 = vunpack.c.l.b16 %v307
        %v382 = vunpack.c.l.b16 %v308
        %v383 = vunpack.c.l.b16 %v309
        %v384 = vunpack.c.l.b16 %v310
        %v385 = vunpack.c.l.b16 %v311
        %v386 = vunpack.c.l.b16 %v312
        %v387 = vunpack.c.l.b16 %v313
        %v388 = vunpack.c.l.b16 %v314
        %v389 = vunpack.c.l.b16 %v315
        %v390 = vunpack.c.l.b16 %v316
        %v391 = vunpack.c.l.b16 %v317
        %v392 = vunpack.c.l.b16 %v318
        %v393 = vunpack.c.l.b16 %v319
        %v394 = vunpack.c.l.b16 %v320
        %v395 = vunpack.c.l.b16 %v321
        %v396 = vunpack.c.l.b16 %v322
        %v397 = vunpack.c.l.b16 %v323
        %v398 = vunpack.c.l.b16 %v324
        %v399 = vunpack.c.l.b16 %v325
        %v400 = vunpack.c.l.b16 %v326
        %v401 = vunpack.c.l.b16 %v327
        %v402 = vunpack.c.l.b16 %v328
        %v403 = vunpack.c.l.b16 %v329
        %v404 = vunpack.c.l.b16 %v330
        %v405 = vunpack.c.l.b16 %v331
        %v406 = vunpack.c.l.b16 %v332
        %v407 = vunpack.c.l.b16 %v333
        %v408 = vunpack.c.l.b16 %v334
        %v409 = vunpack.c.l.b16 %v335
        %v410 = vunpack.c.l.b16 %v336
        %v411 = vpack.c.b16 %v380, %v379
        %v412 = vpack.c.b16 %v382, %v381
        %v413 = vpack.c.b16 %v384, %v383
        %v414 = vpack.c.b16 %v386, %v385
        %v415 = vpack.c.b16 %v388, %v387
        %v416 = vpack.c.b16 %v390, %v389
        %v417 = vpack.c.b16 %v392, %v391
        %v418 = vpack.c.b16 %v394, %v393
        %v419 = vpack.c.b16 %v396, %v395
        %v420 = vpack.c.b16 %v398, %v397
        %v421 = vpack.c.b16 %v400, %v399
        %v422 = vpack.c.b16 %v402, %v401
        %v423 = vpack.c.b16 %v404, %v403
        %v424 = vpack.c.b16 %v406, %v405
        %v425 = vpack.c.b16 %v408, %v407
        %v426 = vpack.c.b16 %v410, %v409
        %443 = vmatprep.subr.bf16.mxu0 0
        %444 = vmatpush1.bf16.msra.mxu0 %v411
        %445 = vmatprep.subr.bf16.mxu0 0
        %446 = vmatpush1.bf16.msra.mxu0 %v412
        %447 = vmatprep.subr.bf16.mxu0 0
        %448 = vmatpush1.bf16.msra.mxu0 %v413
        %449 = vmatprep.subr.bf16.mxu0 0
        %450 = vmatpush1.bf16.msra.mxu0 %v414
        %451 = vmatprep.subr.bf16.mxu0 0
        %452 = vmatpush1.bf16.msra.mxu0 %v415
        %453 = vmatprep.subr.bf16.mxu0 0
        %454 = vmatpush1.bf16.msra.mxu0 %v416
        %455 = vmatprep.subr.bf16.mxu0 0
        %456 = vmatpush1.bf16.msra.mxu0 %v417
        %457 = vmatprep.subr.bf16.mxu0 0
        %458 = vmatpush1.bf16.msra.mxu0 %v418
        %459 = vmatprep.subr.bf16.mxu0 0
        %460 = vmatpush1.bf16.msra.mxu0 %v419
        %461 = vmatprep.subr.bf16.mxu0 0
        %462 = vmatpush1.bf16.msra.mxu0 %v420
        %463 = vmatprep.subr.bf16.mxu0 0
        %464 = vmatpush1.bf16.msra.mxu0 %v421
        %465 = vmatprep.subr.bf16.mxu0 0
        %466 = vmatpush1.bf16.msra.mxu0 %v422
        %467 = vmatprep.subr.bf16.mxu0 0
        %468 = vmatpush1.bf16.msra.mxu0 %v423
        %469 = vmatprep.subr.bf16.mxu0 0
        %470 = vmatpush1.bf16.msra.mxu0 %v424
        %471 = vmatprep.subr.bf16.mxu0 0
        %472 = vmatpush1.bf16.msra.mxu0 %v425
        %473 = vmatprep.subr.bf16.mxu0 0
        %474 = vmatpush1.bf16.msra.mxu0 %v426
        %475 = vmatprep.mubr.bf16.mxu0 %v344
        %476 = vmatmul.mubr.bf16.gmra.mrb[0].mxu0 %v343
        %v477 = vpop.f32.mrb[0].mxu0
        %v478 = vadd.f32 0.0, %v477
        %v479 = vpop.f32.mrb[0].mxu0
        %v480 = vpop.f32.mrb[0].mxu0
        %v481 = vadd.f32 0.0, %v480
        %v482 = vpop.f32.mrb[0].mxu0
        %483 = vdwg.mxu0
        %484 = vst [vmem:[#allocation2] sm:$0xff] %v478
        %485 = vst [vmem:[#allocation2 + $0x8] sm:$0xff] %v481
        %486 = vadd.xlane.f32.xlu0 %v478
        %v487 = vpop.xlane.xlu0 %486
        %488 = vadd.xlane.f32.xlu0 %v481
        %v489 = vpop.xlane.xlu0 %488
        %v490 = vmul.f32 %v478, %v478
        %v491 = vmul.f32 %v481, %v481
        %492 = vadd.xlane.f32.xlu0 %v490
        %v493 = vpop.xlane.xlu0 %492
        %494 = vadd.xlane.f32.xlu0 %v491
        %v495 = vpop.xlane.xlu0 %494
        %s496 = scalar_lea.vmem %s256, 16 [#allocation3]
        %v497 = vld [vmem:[%s496] sm:$0xff]
        %v498 = vld [vmem:[%s496 + $0x8] sm:$0xff]
        %s499 = scalar_lea.vmem %s1, 128
        %v500 = vld [vmem:[%s499] sm:$0xf]
        %v501 = vld [vmem:[%s499 + $0x4] sm:$0xf]
        %v502 = vld [vmem:[%s499 + $0x8] sm:$0xf]
        %v503 = vld [vmem:[%s499 + $0xc] sm:$0xf]
        %v504 = vld [vmem:[%s499 + $0x10] sm:$0xf]
        %v505 = vld [vmem:[%s499 + $0x14] sm:$0xf]
        %v506 = vld [vmem:[%s499 + $0x18] sm:$0xf]
        %v507 = vld [vmem:[%s499 + $0x1c] sm:$0xf]
        %v508 = vld [vmem:[%s499 + $0x20] sm:$0xf]
        %v509 = vld [vmem:[%s499 + $0x24] sm:$0xf]
        %v510 = vld [vmem:[%s499 + $0x28] sm:$0xf]
        %v511 = vld [vmem:[%s499 + $0x2c] sm:$0xf]
        %v512 = vld [vmem:[%s499 + $0x30] sm:$0xf]
        %v513 = vld [vmem:[%s499 + $0x34] sm:$0xf]
        %v514 = vld [vmem:[%s499 + $0x38] sm:$0xf]
        %v515 = vld [vmem:[%s499 + $0x3c] sm:$0xf]
        %v516 = vld [vmem:[%s499 + $0x40] sm:$0xf]
        %v517 = vld [vmem:[%s499 + $0x44] sm:$0xf]
        %v518 = vld [vmem:[%s499 + $0x48] sm:$0xf]
        %v519 = vld [vmem:[%s499 + $0x4c] sm:$0xf]
        %v520 = vld [vmem:[%s499 + $0x50] sm:$0xf]
        %v521 = vld [vmem:[%s499 + $0x54] sm:$0xf]
        %v522 = vld [vmem:[%s499 + $0x58] sm:$0xf]
        %v523 = vld [vmem:[%s499 + $0x5c] sm:$0xf]
        %v524 = vld [vmem:[%s499 + $0x60] sm:$0xf]
        %v525 = vld [vmem:[%s499 + $0x64] sm:$0xf]
        %v526 = vld [vmem:[%s499 + $0x68] sm:$0xf]
        %v527 = vld [vmem:[%s499 + $0x6c] sm:$0xf]
        %v528 = vld [vmem:[%s499 + $0x70] sm:$0xf]
        %v529 = vld [vmem:[%s499 + $0x74] sm:$0xf]
        %v530 = vld [vmem:[%s499 + $0x78] sm:$0xf]
        %v531 = vld [vmem:[%s499 + $0x7c] sm:$0xf]
        %v534 = vunpack.c.l.b16 %v497
        %v535 = vunpack.c.h.b16 %v497
        %v536 = vunpack.c.l.b16 %v498
        %v537 = vunpack.c.h.b16 %v498
        %v538 = vpack.c.b16 %v536, %v534
        %v539 = vpack.c.b16 %v537, %v535
        %v574 = vunpack.c.l.b16 %v500
        %v575 = vunpack.c.l.b16 %v501
        %v576 = vunpack.c.l.b16 %v502
        %v577 = vunpack.c.l.b16 %v503
        %v578 = vunpack.c.l.b16 %v504
        %v579 = vunpack.c.l.b16 %v505
        %v580 = vunpack.c.l.b16 %v506
        %v581 = vunpack.c.l.b16 %v507
        %v582 = vunpack.c.l.b16 %v508
        %v583 = vunpack.c.l.b16 %v509
        %v584 = vunpack.c.l.b16 %v510
        %v585 = vunpack.c.l.b16 %v511
        %v586 = vunpack.c.l.b16 %v512
        %v587 = vunpack.c.l.b16 %v513
        %v588 = vunpack.c.l.b16 %v514
        %v589 = vunpack.c.l.b16 %v515
        %v590 = vunpack.c.l.b16 %v516
        %v591 = vunpack.c.l.b16 %v517
        %v592 = vunpack.c.l.b16 %v518
        %v593 = vunpack.c.l.b16 %v519
        %v594 = vunpack.c.l.b16 %v520
        %v595 = vunpack.c.l.b16 %v521
        %v596 = vunpack.c.l.b16 %v522
        %v597 = vunpack.c.l.b16 %v523
        %v598 = vunpack.c.l.b16 %v524
        %v599 = vunpack.c.l.b16 %v525
        %v600 = vunpack.c.l.b16 %v526
        %v601 = vunpack.c.l.b16 %v527
        %v602 = vunpack.c.l.b16 %v528
        %v603 = vunpack.c.l.b16 %v529
        %v604 = vunpack.c.l.b16 %v530
        %v605 = vunpack.c.l.b16 %v531
        %v606 = vpack.c.b16 %v575, %v574
        %v607 = vpack.c.b16 %v577, %v576
        %v608 = vpack.c.b16 %v579, %v578
        %v609 = vpack.c.b16 %v581, %v580
        %v610 = vpack.c.b16 %v583, %v582
        %v611 = vpack.c.b16 %v585, %v584
        %v612 = vpack.c.b16 %v587, %v586
        %v613 = vpack.c.b16 %v589, %v588
        %v614 = vpack.c.b16 %v591, %v590
        %v615 = vpack.c.b16 %v593, %v592
        %v616 = vpack.c.b16 %v595, %v594
        %v617 = vpack.c.b16 %v597, %v596
        %v618 = vpack.c.b16 %v599, %v598
        %v619 = vpack.c.b16 %v601, %v600
        %v620 = vpack.c.b16 %v603, %v602
        %v621 = vpack.c.b16 %v605, %v604
        %638 = vmatprep.subr.bf16.mxu0 0
        %639 = vmatpush1.bf16.msra.mxu0 %v606
        %640 = vmatprep.subr.bf16.mxu0 0
        %641 = vmatpush1.bf16.msra.mxu0 %v607
        %642 = vmatprep.subr.bf16.mxu0 0
        %643 = vmatpush1.bf16.msra.mxu0 %v608
        %644 = vmatprep.subr.bf16.mxu0 0
        %645 = vmatpush1.bf16.msra.mxu0 %v609
        %646 = vmatprep.subr.bf16.mxu0 0
        %647 = vmatpush1.bf16.msra.mxu0 %v610
        %648 = vmatprep.subr.bf16.mxu0 0
        %649 = vmatpush1.bf16.msra.mxu0 %v611
        %650 = vmatprep.subr.bf16.mxu0 0
        %651 = vmatpush1.bf16.msra.mxu0 %v612
        %652 = vmatprep.subr.bf16.mxu0 0
        %653 = vmatpush1.bf16.msra.mxu0 %v613
        %654 = vmatprep.subr.bf16.mxu0 0
        %655 = vmatpush1.bf16.msra.mxu0 %v614
        %656 = vmatprep.subr.bf16.mxu0 0
        %657 = vmatpush1.bf16.msra.mxu0 %v615
        %658 = vmatprep.subr.bf16.mxu0 0
        %659 = vmatpush1.bf16.msra.mxu0 %v616
        %660 = vmatprep.subr.bf16.mxu0 0
        %661 = vmatpush1.bf16.msra.mxu0 %v617
        %662 = vmatprep.subr.bf16.mxu0 0
        %663 = vmatpush1.bf16.msra.mxu0 %v618
        %664 = vmatprep.subr.bf16.mxu0 0
        %665 = vmatpush1.bf16.msra.mxu0 %v619
        %666 = vmatprep.subr.bf16.mxu0 0
        %667 = vmatpush1.bf16.msra.mxu0 %v620
        %668 = vmatprep.subr.bf16.mxu0 0
        %669 = vmatpush1.bf16.msra.mxu0 %v621
        %670 = vmatprep.mubr.bf16.mxu0 %v539
        %671 = vmatmul.mubr.bf16.gmra.mrb[0].mxu0 %v538
        %v672 = vpop.f32.mrb[0].mxu0
        %v673 = vadd.f32 0.0, %v672
        %v674 = vpop.f32.mrb[0].mxu0
        %v675 = vpop.f32.mrb[0].mxu0
        %v676 = vadd.f32 0.0, %v675
        %v677 = vpop.f32.mrb[0].mxu0
        %678 = vdwg.mxu0
        %s679 = scalar_lea.vmem [#allocation2], 16
        %680 = vst [vmem:[%s679] sm:$0xff] %v673
        %681 = vst [vmem:[%s679 + $0x8] sm:$0xff] %v676
        %682 = vadd.xlane.f32.xlu0 %v673
        %v683 = vpop.xlane.xlu0 %682
        %684 = vadd.xlane.f32.xlu0 %v676
        %v685 = vpop.xlane.xlu0 %684
        %v686 = vmul.f32 %v673, %v673
        %v687 = vmul.f32 %v676, %v676
        %688 = vadd.xlane.f32.xlu0 %v686
        %v689 = vpop.xlane.xlu0 %688
        %690 = vadd.xlane.f32.xlu0 %v687
        %v691 = vpop.xlane.xlu0 %690
        %v692 = vadd.f32 %v487, %v683
        %v693 = vadd.f32 %v489, %v685
        %v694 = vadd.f32 %v493, %v689
        %v695 = vadd.f32 %v495, %v691
        %s696 = scalar_lea.vmem %s256, 32 [#allocation3]
        %v697 = vld [vmem:[%s696] sm:$0xff]
        %v698 = vld [vmem:[%s696 + $0x8] sm:$0xff]
        %s699 = scalar_lea.vmem %s1, 256
        %v700 = vld [vmem:[%s699] sm:$0xf]
        %v701 = vld [vmem:[%s699 + $0x4] sm:$0xf]
        %v702 = vld [vmem:[%s699 + $0x8] sm:$0xf]
        %v703 = vld [vmem:[%s699 + $0xc] sm:$0xf]
        %v704 = vld [vmem:[%s699 + $0x10] sm:$0xf]
        %v705 = vld [vmem:[%s699 + $0x14] sm:$0xf]
        %v706 = vld [vmem:[%s699 + $0x18] sm:$0xf]
        %v707 = vld [vmem:[%s699 + $0x1c] sm:$0xf]
        %v708 = vld [vmem:[%s699 + $0x20] sm:$0xf]
        %v709 = vld [vmem:[%s699 + $0x24] sm:$0xf]
        %v710 = vld [vmem:[%s699 + $0x28] sm:$0xf]
        %v711 = vld [vmem:[%s699 + $0x2c] sm:$0xf]
        %v712 = vld [vmem:[%s699 + $0x30] sm:$0xf]
        %v713 = vld [vmem:[%s699 + $0x34] sm:$0xf]
        %v714 = vld [vmem:[%s699 + $0x38] sm:$0xf]
        %v715 = vld [vmem:[%s699 + $0x3c] sm:$0xf]
        %v716 = vld [vmem:[%s699 + $0x40] sm:$0xf]
        %v717 = vld [vmem:[%s699 + $0x44] sm:$0xf]
        %v718 = vld [vmem:[%s699 + $0x48] sm:$0xf]
        %v719 = vld [vmem:[%s699 + $0x4c] sm:$0xf]
        %v720 = vld [vmem:[%s699 + $0x50] sm:$0xf]
        %v721 = vld [vmem:[%s699 + $0x54] sm:$0xf]
        %v722 = vld [vmem:[%s699 + $0x58] sm:$0xf]
        %v723 = vld [vmem:[%s699 + $0x5c] sm:$0xf]
        %v724 = vld [vmem:[%s699 + $0x60] sm:$0xf]
        %v725 = vld [vmem:[%s699 + $0x64] sm:$0xf]
        %v726 = vld [vmem:[%s699 + $0x68] sm:$0xf]
        %v727 = vld [vmem:[%s699 + $0x6c] sm:$0xf]
        %v728 = vld [vmem:[%s699 + $0x70] sm:$0xf]
        %v729 = vld [vmem:[%s699 + $0x74] sm:$0xf]
        %v730 = vld [vmem:[%s699 + $0x78] sm:$0xf]
        %v731 = vld [vmem:[%s699 + $0x7c] sm:$0xf]
        %v734 = vunpack.c.l.b16 %v697
        %v735 = vunpack.c.h.b16 %v697
        %v736 = vunpack.c.l.b16 %v698
        %v737 = vunpack.c.h.b16 %v698
        %v738 = vpack.c.b16 %v736, %v734
        %v739 = vpack.c.b16 %v737, %v735
        %v774 = vunpack.c.l.b16 %v700
        %v775 = vunpack.c.l.b16 %v701
        %v776 = vunpack.c.l.b16 %v702
        %v777 = vunpack.c.l.b16 %v703
        %v778 = vunpack.c.l.b16 %v704
        %v779 = vunpack.c.l.b16 %v705
        %v780 = vunpack.c.l.b16 %v706
        %v781 = vunpack.c.l.b16 %v707
        %v782 = vunpack.c.l.b16 %v708
        %v783 = vunpack.c.l.b16 %v709
        %v784 = vunpack.c.l.b16 %v710
        %v785 = vunpack.c.l.b16 %v711
        %v786 = vunpack.c.l.b16 %v712
        %v787 = vunpack.c.l.b16 %v713
        %v788 = vunpack.c.l.b16 %v714
        %v789 = vunpack.c.l.b16 %v715
        %v790 = vunpack.c.l.b16 %v716
        %v791 = vunpack.c.l.b16 %v717
        %v792 = vunpack.c.l.b16 %v718
        %v793 = vunpack.c.l.b16 %v719
        %v794 = vunpack.c.l.b16 %v720
        %v795 = vunpack.c.l.b16 %v721
        %v796 = vunpack.c.l.b16 %v722
        %v797 = vunpack.c.l.b16 %v723
        %v798 = vunpack.c.l.b16 %v724
        %v799 = vunpack.c.l.b16 %v725
        %v800 = vunpack.c.l.b16 %v726
        %v801 = vunpack.c.l.b16 %v727
        %v802 = vunpack.c.l.b16 %v728
        %v803 = vunpack.c.l.b16 %v729
        %v804 = vunpack.c.l.b16 %v730
        %v805 = vunpack.c.l.b16 %v731
        %v806 = vpack.c.b16 %v775, %v774
        %v807 = vpack.c.b16 %v777, %v776
        %v808 = vpack.c.b16 %v779, %v778
        %v809 = vpack.c.b16 %v781, %v780
        %v810 = vpack.c.b16 %v783, %v782
        %v811 = vpack.c.b16 %v785, %v784
        %v812 = vpack.c.b16 %v787, %v786
        %v813 = vpack.c.b16 %v789, %v788
        %v814 = vpack.c.b16 %v791, %v790
        %v815 = vpack.c.b16 %v793, %v792
        %v816 = vpack.c.b16 %v795, %v794
        %v817 = vpack.c.b16 %v797, %v796
        %v818 = vpack.c.b16 %v799, %v798
        %v819 = vpack.c.b16 %v801, %v800
        %v820 = vpack.c.b16 %v803, %v802
        %v821 = vpack.c.b16 %v805, %v804
        %838 = vmatprep.subr.bf16.mxu0 0
        %839 = vmatpush1.bf16.msra.mxu0 %v806
        %840 = vmatprep.subr.bf16.mxu0 0
        %841 = vmatpush1.bf16.msra.mxu0 %v807
        %842 = vmatprep.subr.bf16.mxu0 0
        %843 = vmatpush1.bf16.msra.mxu0 %v808
        %844 = vmatprep.subr.bf16.mxu0 0
        %845 = vmatpush1.bf16.msra.mxu0 %v809
        %846 = vmatprep.subr.bf16.mxu0 0
        %847 = vmatpush1.bf16.msra.mxu0 %v810
        %848 = vmatprep.subr.bf16.mxu0 0
        %849 = vmatpush1.bf16.msra.mxu0 %v811
        %850 = vmatprep.subr.bf16.mxu0 0
        %851 = vmatpush1.bf16.msra.mxu0 %v812
        %852 = vmatprep.subr.bf16.mxu0 0
        %853 = vmatpush1.bf16.msra.mxu0 %v813
        %854 = vmatprep.subr.bf16.mxu0 0
        %855 = vmatpush1.bf16.msra.mxu0 %v814
        %856 = vmatprep.subr.bf16.mxu0 0
        %857 = vmatpush1.bf16.msra.mxu0 %v815
        %858 = vmatprep.subr.bf16.mxu0 0
        %859 = vmatpush1.bf16.msra.mxu0 %v816
        %860 = vmatprep.subr.bf16.mxu0 0
        %861 = vmatpush1.bf16.msra.mxu0 %v817
        %862 = vmatprep.subr.bf16.mxu0 0
        %863 = vmatpush1.bf16.msra.mxu0 %v818
        %864 = vmatprep.subr.bf16.mxu0 0
        %865 = vmatpush1.bf16.msra.mxu0 %v819
        %866 = vmatprep.subr.bf16.mxu0 0
        %867 = vmatpush1.bf16.msra.mxu0 %v820
        %868 = vmatprep.subr.bf16.mxu0 0
        %869 = vmatpush1.bf16.msra.mxu0 %v821
        %870 = vmatprep.mubr.bf16.mxu0 %v739
        %871 = vmatmul.mubr.bf16.gmra.mrb[0].mxu0 %v738
        %v872 = vpop.f32.mrb[0].mxu0
        %v873 = vadd.f32 0.0, %v872
        %v874 = vpop.f32.mrb[0].mxu0
        %v875 = vpop.f32.mrb[0].mxu0
        %v876 = vadd.f32 0.0, %v875
        %v877 = vpop.f32.mrb[0].mxu0
        %878 = vdwg.mxu0
        %s879 = scalar_lea.vmem [#allocation2], 32
        %880 = vst [vmem:[%s879] sm:$0xff] %v873
        %881 = vst [vmem:[%s879 + $0x8] sm:$0xff] %v876
        %882 = vadd.xlane.f32.xlu0 %v873
        %v883 = vpop.xlane.xlu0 %882
        %884 = vadd.xlane.f32.xlu0 %v876
        %v885 = vpop.xlane.xlu0 %884
        %v886 = vmul.f32 %v873, %v873
        %v887 = vmul.f32 %v876, %v876
        %888 = vadd.xlane.f32.xlu0 %v886
        %v889 = vpop.xlane.xlu0 %888
        %890 = vadd.xlane.f32.xlu0 %v887
        %v891 = vpop.xlane.xlu0 %890
        %v892 = vadd.f32 %v692, %v883
        %v893 = vadd.f32 %v693, %v885
        %v894 = vadd.f32 %v694, %v889
        %v895 = vadd.f32 %v695, %v891
        %s896 = scalar_lea.vmem %s256, 48 [#allocation3]
        %v897 = vld [vmem:[%s896] sm:$0xff]
        %v898 = vld [vmem:[%s896 + $0x8] sm:$0xff]
        %s899 = scalar_lea.vmem %s1, 384
        %v900 = vld [vmem:[%s899] sm:$0xf]
        %v901 = vld [vmem:[%s899 + $0x4] sm:$0xf]
        %v902 = vld [vmem:[%s899 + $0x8] sm:$0xf]
        %v903 = vld [vmem:[%s899 + $0xc] sm:$0xf]
        %v904 = vld [vmem:[%s899 + $0x10] sm:$0xf]
        %v905 = vld [vmem:[%s899 + $0x14] sm:$0xf]
        %v906 = vld [vmem:[%s899 + $0x18] sm:$0xf]
        %v907 = vld [vmem:[%s899 + $0x1c] sm:$0xf]
        %v908 = vld [vmem:[%s899 + $0x20] sm:$0xf]
        %v909 = vld [vmem:[%s899 + $0x24] sm:$0xf]
        %v910 = vld [vmem:[%s899 + $0x28] sm:$0xf]
        %v911 = vld [vmem:[%s899 + $0x2c] sm:$0xf]
        %v912 = vld [vmem:[%s899 + $0x30] sm:$0xf]
        %v913 = vld [vmem:[%s899 + $0x34] sm:$0xf]
        %v914 = vld [vmem:[%s899 + $0x38] sm:$0xf]
        %v915 = vld [vmem:[%s899 + $0x3c] sm:$0xf]
        %v916 = vld [vmem:[%s899 + $0x40] sm:$0xf]
        %v917 = vld [vmem:[%s899 + $0x44] sm:$0xf]
        %v918 = vld [vmem:[%s899 + $0x48] sm:$0xf]
        %v919 = vld [vmem:[%s899 + $0x4c] sm:$0xf]
        %v920 = vld [vmem:[%s899 + $0x50] sm:$0xf]
        %v921 = vld [vmem:[%s899 + $0x54] sm:$0xf]
        %v922 = vld [vmem:[%s899 + $0x58] sm:$0xf]
        %v923 = vld [vmem:[%s899 + $0x5c] sm:$0xf]
        %v924 = vld [vmem:[%s899 + $0x60] sm:$0xf]
        %v925 = vld [vmem:[%s899 + $0x64] sm:$0xf]
        %v926 = vld [vmem:[%s899 + $0x68] sm:$0xf]
        %v927 = vld [vmem:[%s899 + $0x6c] sm:$0xf]
        %v928 = vld [vmem:[%s899 + $0x70] sm:$0xf]
        %v929 = vld [vmem:[%s899 + $0x74] sm:$0xf]
        %v930 = vld [vmem:[%s899 + $0x78] sm:$0xf]
        %v931 = vld [vmem:[%s899 + $0x7c] sm:$0xf]
        %v934 = vunpack.c.l.b16 %v897
        %v935 = vunpack.c.h.b16 %v897
        %v936 = vunpack.c.l.b16 %v898
        %v937 = vunpack.c.h.b16 %v898
        %v938 = vpack.c.b16 %v936, %v934
        %v939 = vpack.c.b16 %v937, %v935
        %v974 = vunpack.c.l.b16 %v900
        %v975 = vunpack.c.l.b16 %v901
        %v976 = vunpack.c.l.b16 %v902
        %v977 = vunpack.c.l.b16 %v903
        %v978 = vunpack.c.l.b16 %v904
        %v979 = vunpack.c.l.b16 %v905
        %v980 = vunpack.c.l.b16 %v906
        %v981 = vunpack.c.l.b16 %v907
        %v982 = vunpack.c.l.b16 %v908
        %v983 = vunpack.c.l.b16 %v909
        %v984 = vunpack.c.l.b16 %v910
        %v985 = vunpack.c.l.b16 %v911
        %v986 = vunpack.c.l.b16 %v912
        %v987 = vunpack.c.l.b16 %v913
        %v988 = vunpack.c.l.b16 %v914
        %v989 = vunpack.c.l.b16 %v915
        %v990 = vunpack.c.l.b16 %v916
        %v991 = vunpack.c.l.b16 %v917
        %v992 = vunpack.c.l.b16 %v918
        %v993 = vunpack.c.l.b16 %v919
        %v994 = vunpack.c.l.b16 %v920
        %v995 = vunpack.c.l.b16 %v921
        %v996 = vunpack.c.l.b16 %v922
        %v997 = vunpack.c.l.b16 %v923
        %v998 = vunpack.c.l.b16 %v924
        %v999 = vunpack.c.l.b16 %v925
        %v1000 = vunpack.c.l.b16 %v926
        %v1001 = vunpack.c.l.b16 %v927
        %v1002 = vunpack.c.l.b16 %v928
        %v1003 = vunpack.c.l.b16 %v929
        %v1004 = vunpack.c.l.b16 %v930
        %v1005 = vunpack.c.l.b16 %v931
        %v1006 = vpack.c.b16 %v975, %v974
        %v1007 = vpack.c.b16 %v977, %v976
        %v1008 = vpack.c.b16 %v979, %v978
        %v1009 = vpack.c.b16 %v981, %v980
        %v1010 = vpack.c.b16 %v983, %v982
        %v1011 = vpack.c.b16 %v985, %v984
        %v1012 = vpack.c.b16 %v987, %v986
        %v1013 = vpack.c.b16 %v989, %v988
        %v1014 = vpack.c.b16 %v991, %v990
        %v1015 = vpack.c.b16 %v993, %v992
        %v1016 = vpack.c.b16 %v995, %v994
        %v1017 = vpack.c.b16 %v997, %v996
        %v1018 = vpack.c.b16 %v999, %v998
        %v1019 = vpack.c.b16 %v1001, %v1000
        %v1020 = vpack.c.b16 %v1003, %v1002
        %v1021 = vpack.c.b16 %v1005, %v1004
        %1038 = vmatprep.subr.bf16.mxu0 0
        %1039 = vmatpush1.bf16.msra.mxu0 %v1006
        %1040 = vmatprep.subr.bf16.mxu0 0
        %1041 = vmatpush1.bf16.msra.mxu0 %v1007
        %1042 = vmatprep.subr.bf16.mxu0 0
        %1043 = vmatpush1.bf16.msra.mxu0 %v1008
        %1044 = vmatprep.subr.bf16.mxu0 0
        %1045 = vmatpush1.bf16.msra.mxu0 %v1009
        %1046 = vmatprep.subr.bf16.mxu0 0
        %1047 = vmatpush1.bf16.msra.mxu0 %v1010
        %1048 = vmatprep.subr.bf16.mxu0 0
        %1049 = vmatpush1.bf16.msra.mxu0 %v1011
        %1050 = vmatprep.subr.bf16.mxu0 0
        %1051 = vmatpush1.bf16.msra.mxu0 %v1012
        %1052 = vmatprep.subr.bf16.mxu0 0
        %1053 = vmatpush1.bf16.msra.mxu0 %v1013
        %1054 = vmatprep.subr.bf16.mxu0 0
        %1055 = vmatpush1.bf16.msra.mxu0 %v1014
        %1056 = vmatprep.subr.bf16.mxu0 0
        %1057 = vmatpush1.bf16.msra.mxu0 %v1015
        %1058 = vmatprep.subr.bf16.mxu0 0
        %1059 = vmatpush1.bf16.msra.mxu0 %v1016
        %1060 = vmatprep.subr.bf16.mxu0 0
        %1061 = vmatpush1.bf16.msra.mxu0 %v1017
        %1062 = vmatprep.subr.bf16.mxu0 0
        %1063 = vmatpush1.bf16.msra.mxu0 %v1018
        %1064 = vmatprep.subr.bf16.mxu0 0
        %1065 = vmatpush1.bf16.msra.mxu0 %v1019
        %1066 = vmatprep.subr.bf16.mxu0 0
        %1067 = vmatpush1.bf16.msra.mxu0 %v1020
        %1068 = vmatprep.subr.bf16.mxu0 0
        %1069 = vmatpush1.bf16.msra.mxu0 %v1021
        %1070 = vmatprep.mubr.bf16.mxu0 %v939
        %1071 = vmatmul.mubr.bf16.gmra.mrb[0].mxu0 %v938
        %v1072 = vpop.f32.mrb[0].mxu0
        %v1073 = vadd.f32 0.0, %v1072
        %v1074 = vpop.f32.mrb[0].mxu0
        %v1075 = vpop.f32.mrb[0].mxu0
        %v1076 = vadd.f32 0.0, %v1075
        %v1077 = vpop.f32.mrb[0].mxu0
        %1078 = vdwg.mxu0
        %s1079 = scalar_lea.vmem [#allocation2], 48
        %1080 = vst [vmem:[%s1079] sm:$0xff] %v1073
        %1081 = vst [vmem:[%s1079 + $0x8] sm:$0xff] %v1076
        %1082 = vadd.xlane.f32.xlu0 %v1073
        %v1083 = vpop.xlane.xlu0 %1082
        %1084 = vadd.xlane.f32.xlu0 %v1076
        %v1085 = vpop.xlane.xlu0 %1084
        %v1086 = vmul.f32 %v1073, %v1073
        %v1087 = vmul.f32 %v1076, %v1076
        %1088 = vadd.xlane.f32.xlu0 %v1086
        %v1089 = vpop.xlane.xlu0 %1088
        %1090 = vadd.xlane.f32.xlu0 %v1087
        %v1091 = vpop.xlane.xlu0 %1090
        %v1092 = vadd.f32 %v892, %v1083
        %v1093 = vadd.f32 %v893, %v1085
        %v1094 = vadd.f32 %v894, %v1089
        %v1095 = vadd.f32 %v895, %v1091
        %v1096 = vmul.f32 %v1092, 0.001953125
        %v1097 = vmul.f32 %v1093, 0.001953125
        %v1098 = vmul.f32 %v1094, 0.001953125
        %v1099 = vmul.f32 %v1095, 0.001953125
        %v1100 = vmul.f32 %v1096, %v1096
        %v1101 = vmul.f32 %v1097, %v1097
        %v1102 = vsub.f32 %v1098, %v1100
        %v1103 = vsub.f32 %v1099, %v1101
        %v1104 = vmax.f32 %v1102, 0.0
        %v1105 = vmax.f32 %v1103, 0.0
        %v1106 = vld [vmem:[%s293] sm:$0xff]
        %v1107 = vld [vmem:[%s293 + $0x8] sm:$0xff]
        %v1108 = vadd.f32 %v1104, 1e-05
        %v1109 = vadd.f32 %v1105, 1e-05
        %v1110 = vrsqrt.pop %v1108
        %v1111 = vrsqrt.pop %v1109
        %v1112 = vmul.f32 %v1106, %v1110
        %v1113 = vmul.f32 %v1107, %v1111
        %v1114 = vld [vmem:[%s299] sm:$0xff]
        %v1115 = vld [vmem:[%s299 + $0x8] sm:$0xff]
        %v1116 = vmul.f32 %v1096, %v1112
        %v1117 = vmul.f32 %v1097, %v1113
        %v1118 = vsub.f32 %v1114, %v1116
        %v1119 = vsub.f32 %v1115, %v1117
        %v1120 = vld [vmem:[#allocation2] sm:$0xff]
        %v1121 = vld [vmem:[#allocation2 + $0x8] sm:$0xff]
        %1123 = vset.pattern.permute.xlu0 0
        %1124 = vperm.xlu0 %1123, %v1112
        %v1125 = vpop.permute.xlu0 %1124
        %1128 = vset.pattern.permute.xlu0 0
        %1129 = vperm.xlu0 %1128, %v1113
        %v1130 = vpop.permute.xlu0 %1129
        %v1132 = vmul.f32 %v1120, %v1125
        %v1133 = vmul.f32 %v1121, %v1130
        %1135 = vset.pattern.permute.xlu0 0
        %1136 = vperm.xlu0 %1135, %v1118
        %v1137 = vpop.permute.xlu0 %1136
        %1140 = vset.pattern.permute.xlu0 0
        %1141 = vperm.xlu0 %1140, %v1119
        %v1142 = vpop.permute.xlu0 %1141
        %v1144 = vadd.f32 %v1132, %v1137
        %v1145 = vadd.f32 %v1133, %v1142
        %v1146 = vmax.f32 %v1144, 0.0
        %v1147 = vmax.f32 %v1145, 0.0
        %v1148 = vpack.c.bf16 %v1147, %v1146
        %v1150 = vunpack.c.l.b16 %v1148
        %v1151 = vunpack.c.h.b16 %v1148
        %v1152 = vpack.c.b16 %v1150, %v1150
        %v1153 = vpack.c.b16 %v1151, %v1151
        %1156 = vst [vmem:[%s287] sm:$0xf] %v1152
        %1157 = vst [vmem:[%s287 + $0x4] sm:$0xf] %v1153
        %v1158 = vld [vmem:[%s679] sm:$0xff]
        %v1159 = vld [vmem:[%s679 + $0x8] sm:$0xff]
        %v1160 = vmul.f32 %v1158, %v1125
        %v1161 = vmul.f32 %v1159, %v1130
        %v1162 = vadd.f32 %v1160, %v1137
        %v1163 = vadd.f32 %v1161, %v1142
        %v1164 = vmax.f32 %v1162, 0.0
        %v1165 = vmax.f32 %v1163, 0.0
        %v1166 = vpack.c.bf16 %v1165, %v1164
        %v1168 = vunpack.c.l.b16 %v1166
        %v1169 = vunpack.c.h.b16 %v1166
        %v1170 = vpack.c.b16 %v1168, %v1168
        %v1171 = vpack.c.b16 %v1169, %v1169
        %s1174 = scalar_lea.vmem %s287, 8 [#allocation4]
        %1175 = vst [vmem:[%s1174] sm:$0xf] %v1170
        %1176 = vst [vmem:[%s1174 + $0x4] sm:$0xf] %v1171
        %v1177 = vld [vmem:[%s879] sm:$0xff]
        %v1178 = vld [vmem:[%s879 + $0x8] sm:$0xff]
        %v1179 = vmul.f32 %v1177, %v1125
        %v1180 = vmul.f32 %v1178, %v1130
        %v1181 = vadd.f32 %v1179, %v1137
        %v1182 = vadd.f32 %v1180, %v1142
        %v1183 = vmax.f32 %v1181, 0.0
        %v1184 = vmax.f32 %v1182, 0.0
        %v1185 = vpack.c.bf16 %v1184, %v1183
        %v1187 = vunpack.c.l.b16 %v1185
        %v1188 = vunpack.c.h.b16 %v1185
        %v1189 = vpack.c.b16 %v1187, %v1187
        %v1190 = vpack.c.b16 %v1188, %v1188
        %s1193 = scalar_lea.vmem %s287, 16 [#allocation4]
        %1194 = vst [vmem:[%s1193] sm:$0xf] %v1189
        %1195 = vst [vmem:[%s1193 + $0x4] sm:$0xf] %v1190
        %v1196 = vld [vmem:[%s1079] sm:$0xff]
        %v1197 = vld [vmem:[%s1079 + $0x8] sm:$0xff]
        %v1198 = vmul.f32 %v1196, %v1125
        %v1199 = vmul.f32 %v1197, %v1130
        %v1200 = vadd.f32 %v1198, %v1137
        %v1201 = vadd.f32 %v1199, %v1142
        %v1202 = vmax.f32 %v1200, 0.0
        %v1203 = vmax.f32 %v1201, 0.0
        %v1204 = vpack.c.bf16 %v1203, %v1202
        %v1206 = vunpack.c.l.b16 %v1204
        %v1207 = vunpack.c.h.b16 %v1204
        %v1208 = vpack.c.b16 %v1206, %v1206
        %v1209 = vpack.c.b16 %v1207, %v1207
        %s1212 = scalar_lea.vmem %s287, 24 [#allocation4]
        %1213 = vst [vmem:[%s1212] sm:$0xf] %v1208
        %1214 = vst [vmem:[%s1212 + $0x4] sm:$0xf] %v1209
        %s1215 = sand.u32 %s122, 1
        %s1216 = sand.u32 %s122, 1
        %s1217 = smul.addr %s1216, 32
        %s1218 = scalar_lea.vmem [#allocation4], %s1217
        // Predicated region
        $region75: #{generator_forward.7} parent=69 // pred_check
          %p1219 = pneg %p132
        $region76: #{generator_forward.7} parent=69 // pred_check_branch
          %1221 = sbr.rel (%p1219) target = $region78
        $region77: #{generator_forward.7} parent=69 // pred_region
          %s1222 = smul.u32 2, %s15
          %s1223 = smul.addr %s1222, 4
          %s1224 = scalar_lea.vmem %s4, %s1223
          // Predicated region
          $region79: #{generator_forward.7} parent=77 // pred_check
            _
          $region80: #{generator_forward.7} parent=77 // pred_check_branch
            %1226 = sbr.rel (0) target = $region82
          $region81: #{generator_forward.7} parent=77 // pred_region
            // Predicated region
            $region83: #{generator_forward.7} parent=81 // pred_check
              _
            $region84: #{generator_forward.7} parent=81 // pred_check_branch
              %1228 = sbr.rel target = $region86
            $region85: #{generator_forward.7} parent=81 // pred_region
              // Predicated region
              $region98: #{generator_forward.7} parent=85 // pred_check
                _
              $region99: #{generator_forward.7} parent=85 // pred_check_branch
                %1257 = sbr.rel (0) target = $region101
              $region100: #{generator_forward.7} parent=85 // pred_region
                loop: start=0, step=1, limit=1
                $region102: #{generator_forward.7} parent=100 // loop_pre_header
                  _
                $region103: #{generator_forward.7} parent=100 // loop_header
                  %s1259 = sphi 0, %s1263
                  %p1260 = scmp.ge.s32.totalorder %s1259, 1
                  %s1264 = sphi %s1218, %s1218
                  %s1265 = sphi %s1224, %s1224
                $region104: #{generator_forward.7} parent=100 // loop_header_branch
                  %1262 = sbr.rel (%p1260) target = $region108
                $region105: #{generator_forward.7} parent=100 // loop_body
                  _
                $region106: #{generator_forward.7} parent=100 // loop_footer
                  %s1263 = sadd.s32 1, %s1259
                $region107: #{generator_forward.7} parent=100 // loop_footer_branch
                  %1258 = sbr.rel target = $region103
                $region108: #{generator_forward.7} parent=100 // loop_exit
                  _
                loop: start=0, step=1, limit=1
                $region109: #{generator_forward.7} parent=100 // loop_pre_header
                  _
                $region110: #{generator_forward.7} parent=100 // loop_header
                  %s1268 = sphi 0, %s1272
                  %p1269 = scmp.ge.s32.totalorder %s1268, 1
                  %s1273 = sphi %s1218, %s1218
                  %s1274 = sphi %s1224, %s1224
                $region111: #{generator_forward.7} parent=100 // loop_header_branch
                  %1271 = sbr.rel (%p1269) target = $region115
                $region112: #{generator_forward.7} parent=100 // loop_body
                  %v1275 = vld [vmem:[%s1273] sm:$0xf]
                  %1276 = vst [vmem:[%s1274] sm:$0xf] %v1275
                  %v1277 = vld [vmem:[%s1273 + $0x4] sm:$0xf]
                  %1278 = vst [vmem:[%s1274 + $0x4] sm:$0xf] %v1277
                  %v1279 = vld [vmem:[%s1273 + $0x8] sm:$0xf]
                  %1280 = vst [vmem:[%s1274 + $0x10] sm:$0xf] %v1279
                  %v1281 = vld [vmem:[%s1273 + $0xc] sm:$0xf]
                  %1282 = vst [vmem:[%s1274 + $0x14] sm:$0xf] %v1281
                  %v1283 = vld [vmem:[%s1273 + $0x10] sm:$0xf]
                  %1284 = vst [vmem:[%s1274 + $0x20] sm:$0xf] %v1283
                  %v1285 = vld [vmem:[%s1273 + $0x14] sm:$0xf]
                  %1286 = vst [vmem:[%s1274 + $0x24] sm:$0xf] %v1285
                  %v1287 = vld [vmem:[%s1273 + $0x18] sm:$0xf]
                  %1288 = vst [vmem:[%s1274 + $0x30] sm:$0xf] %v1287
                  %v1289 = vld [vmem:[%s1273 + $0x1c] sm:$0xf]
                  %1290 = vst [vmem:[%s1274 + $0x34] sm:$0xf] %v1289
                $region113: #{generator_forward.7} parent=100 // loop_footer
                  %s1272 = sadd.s32 1, %s1268
                $region114: #{generator_forward.7} parent=100 // loop_footer_branch
                  %1267 = sbr.rel target = $region110
                $region115: #{generator_forward.7} parent=100 // loop_exit
                  _
              $region101: #{generator_forward.7} parent=85 // pred_fallthru
                _
            $region86: #{generator_forward.7} parent=81 // pred_fallthru
              _
            // Predicated region
            $region87: #{generator_forward.7} parent=81 // pred_check
              _
            $region88: #{generator_forward.7} parent=81 // pred_check_branch
              %1230 = sbr.rel (0) target = $region90
            $region89: #{generator_forward.7} parent=81 // pred_region
              loop: start=0, step=1, limit=1
              $region91: #{generator_forward.7} parent=89 // loop_pre_header
                _
              $region92: #{generator_forward.7} parent=89 // loop_header
                %s1233 = sphi 0, %s1237
                %p1234 = scmp.ge.s32.totalorder %s1233, 1
                %s1238 = sphi %s1218, %s1218
                %s1239 = sphi %s1224, %s1224
              $region93: #{generator_forward.7} parent=89 // loop_header_branch
                %1236 = sbr.rel (%p1234) target = $region97
              $region94: #{generator_forward.7} parent=89 // loop_body
                %v1240 = vld [vmem:[%s1238] sm:$0xf]
                %1241 = vst [vmem:[%s1239] sm:$0xf] %v1240
                %v1242 = vld [vmem:[%s1238 + $0x4] sm:$0xf]
                %1243 = vst [vmem:[%s1239 + $0x4] sm:$0xf] %v1242
                %v1244 = vld [vmem:[%s1238 + $0x8] sm:$0xf]
                %1245 = vst [vmem:[%s1239 + $0x10] sm:$0xf] %v1244
                %v1246 = vld [vmem:[%s1238 + $0xc] sm:$0xf]
                %1247 = vst [vmem:[%s1239 + $0x14] sm:$0xf] %v1246
                %v1248 = vld [vmem:[%s1238 + $0x10] sm:$0xf]
                %1249 = vst [vmem:[%s1239 + $0x20] sm:$0xf] %v1248
                %v1250 = vld [vmem:[%s1238 + $0x14] sm:$0xf]
                %1251 = vst [vmem:[%s1239 + $0x24] sm:$0xf] %v1250
                %v1252 = vld [vmem:[%s1238 + $0x18] sm:$0xf]
                %1253 = vst [vmem:[%s1239 + $0x30] sm:$0xf] %v1252
                %v1254 = vld [vmem:[%s1238 + $0x1c] sm:$0xf]
                %1255 = vst [vmem:[%s1239 + $0x34] sm:$0xf] %v1254
              $region95: #{generator_forward.7} parent=89 // loop_footer
                %s1237 = sadd.s32 1, %s1233
              $region96: #{generator_forward.7} parent=89 // loop_footer_branch
                %1232 = sbr.rel target = $region92
              $region97: #{generator_forward.7} parent=89 // loop_exit
                _
            $region90: #{generator_forward.7} parent=81 // pred_fallthru
              _
          $region82: #{generator_forward.7} parent=77 // pred_fallthru
            _
          %1291 = vnop
        $region78: #{generator_forward.7} parent=69 // pred_fallthru
          _
      $region70: #{generator_forward.7} parent=5 // pred_fallthru
        _
      %p1292 = scmp.le.s32.totalorder 2, %s10
      // Predicated region
      $region116: #{generator_forward.7} parent=5 // pred_check
        %p1293 = pneg %p1292
      $region117: #{generator_forward.7} parent=5 // pred_check_branch
        %1295 = sbr.rel (%p1293) target = $region119
      $region118: #{generator_forward.7} parent=5 // pred_region
        %s1296 = ssub.s32 %s10, 2
        // Predicated region
        $region120: #{generator_forward.7} parent=118 // pred_check
          %p1297 = pneg %p138
        $region121: #{generator_forward.7} parent=118 // pred_check_branch
          %1299 = sbr.rel (%p1297) target = $region123
        $region122: #{generator_forward.7} parent=118 // pred_region
          %s1300 = sand.u32 %s123, 1
          %s1301 = sand.u32 %s123, 1
          %s1302 = smul.addr %s1301, 32
          %s1303 = scalar_lea.vmem [#allocation4], %s1302
        $region123: #{generator_forward.7} parent=118 // pred_fallthru
          _
      $region119: #{generator_forward.7} parent=5 // pred_fallthru
        _
    $region6: #{generator_forward.7} parent=1 // loop_footer
      %s14 = sadd.s32 1, %s10
    $region7: #{generator_forward.7} parent=1 // loop_footer_branch
      %9 = sbr.rel target = $region3
    $region8: #{generator_forward.7} parent=1 // loop_exit
      _

// kernel: generator_forward.8
$region0: #{generator_forward.8}
  #allocation0 [shape = 'u32[]', space=smem, size = 0x4, offset = 0x4, fixed_abs, tag = 'smem constant byte address 0x4 - core index']
  #allocation1 [shape = 'u32[144,128]{1,0:T(1,128)}', space=vmem, size = 0x12000, scoped, tag = 'internal scratch']
  #allocation2 [shape = 'f32[4,8,512]{2,1,0:T(8,128)}', space=vmem, size = 0x10000, scoped, tag = 'scratch operand']
  %s0 = inlined_call_operand.vmem [shape: bf16[4,16,128], index: 0, kind: input, shape index: {}]
  %s1 = inlined_call_operand.vmem [shape: bf16[4,128,512], index: 1, kind: input, shape index: {}]
  %s2 = inlined_call_operand.vmem [shape: f32[16,1], index: 2, kind: input, shape index: {}]
  %s3 = inlined_call_operand.vmem [shape: f32[16,1], index: 3, kind: input, shape index: {}]
  %s4 = inlined_call_operand.vmem [shape: bf16[4,16,512], index: 4, kind: output, shape index: {}]
  %s5 = sld [smem:[#allocation0]]
  $region109: #{generator_forward.8} parent=0
    _
  %s7 = ssub.s32 1, %s5
  %s8 = scalar_select 0, %s7, %s5
  $region1: #{generator_forward.8} parent=0
    #allocation3 [shape = 'u8[16384]{0}', space=vmem, size = 0x4000, scoped, tag = 'input window, operand 0']
    #allocation4 [shape = 'u8[65536]{0}', space=vmem, size = 0x10000, scoped, tag = 'output window, operand 0']
    loop: start=0, step=1, limit=4
    $region2: #{generator_forward.8} parent=1 // loop_pre_header
      _
    $region3: #{generator_forward.8} parent=1 // loop_header
      %s10 = sphi 0, %s14
      %p11 = scmp.ge.s32.totalorder %s10, 4
      %s20 = sphi 0, %s22
      %s23 = sphi 0, %s20
      %s24 = sphi 0, %s23
      %s40 = sphi 0, %s24
      %s44 = sphi 0, %s44
      %s46 = sphi 0, %s44
      %s47 = sphi 0, %s46
      %s61 = sphi 0, %s47
      %s67 = sphi 0, %s69
      %s70 = sphi 0, %s67
      %s71 = sphi 0, %s70
      %s87 = sphi 0, %s71
      %s93 = sphi 0, %s95
      %s96 = sphi 0, %s93
      %s97 = sphi 0, %s96
      %s113 = sphi 0, %s97
      %s119 = sphi 0, %s121
      %s122 = sphi 0, %s119
      %s123 = sphi 0, %s122
      %s139 = sphi 0, %s123
    $region4: #{generator_forward.8} parent=1 // loop_header_branch
      %13 = sbr.rel (%p11) target = $region8
    $region5: #{generator_forward.8} parent=1 // loop_body
      %s15 = ssub.s32 %s10, 1
      %s16 = ssub.s32 %s10, 2
      %s17 = sadd.s32 %s10, 1
      %s18 = ssub.s32 %s10, %s17
      %p19 = scmp.eq.s32.totalorder %s18, 0
      %s21 = sadd.s32 %s20, 1
      %s22 = scalar_select %p19, %s20, %s21
      %p25 = pneg %p19
      %p26 = scmp.eq.s32.totalorder %s10, 1
      %p27 = por %p25, %p26
      %p28 = scmp.ne.s32.totalorder %s20, %s23
      %p29 = scmp.eq.s32.totalorder %s10, 0
      %p30 = por %p28, %p29
      %p31 = scmp.ne.s32.totalorder %s20, %s23
      %p32 = scmp.eq.s32.totalorder %s15, 1
      %p33 = por %p31, %p32
      %p34 = scmp.ne.s32.totalorder %s23, %s24
      %p35 = scmp.eq.s32.totalorder %s15, 0
      %p36 = por %p34, %p35
      %p37 = scmp.ne.s32.totalorder %s23, %s24
      %p38 = scmp.eq.s32.totalorder %s16, 1
      %p39 = por %p37, %p38
      %p41 = scmp.ne.s32.totalorder %s24, %s40
      %p42 = scmp.eq.s32.totalorder %s16, 0
      %p43 = por %p41, %p42
      %s45 = sadd.s32 %s44, 1
      %p48 = scmp.eq.s32.totalorder %s10, 1
      %p49 = scmp.ne.s32.totalorder %s44, %s46
      %p50 = scmp.eq.s32.totalorder %s10, 0
      %p51 = por %p49, %p50
      %p52 = scmp.ne.s32.totalorder %s44, %s46
      %p53 = scmp.eq.s32.totalorder %s15, 1
      %p54 = por %p52, %p53
      %p55 = scmp.ne.s32.totalorder %s46, %s47
      %p56 = scmp.eq.s32.totalorder %s15, 0
      %p57 = por %p55, %p56
      %p58 = scmp.ne.s32.totalorder %s46, %s47
      %p59 = scmp.eq.s32.totalorder %s16, 1
      %p60 = por %p58, %p59
      %p62 = scmp.ne.s32.totalorder %s47, %s61
      %p63 = scmp.eq.s32.totalorder %s16, 0
      %p64 = por %p62, %p63
      %s65 = ssub.s32 %s10, %s17
      %p66 = scmp.eq.s32.totalorder %s65, 0
      %s68 = sadd.s32 %s67, 1
      %s69 = scalar_select %p66, %s67, %s68
      %p72 = pneg %p66
      %p73 = scmp.eq.s32.totalorder %s10, 1
      %p74 = por %p72, %p73
      %p75 = scmp.ne.s32.totalorder %s67, %s70
      %p76 = scmp.eq.s32.totalorder %s10, 0
      %p77 = por %p75, %p76
      %p78 = scmp.ne.s32.totalorder %s67, %s70
      %p79 = scmp.eq.s32.totalorder %s15, 1
      %p80 = por %p78, %p79
      %p81 = scmp.ne.s32.totalorder %s70, %s71
      %p82 = scmp.eq.s32.totalorder %s15, 0
      %p83 = por %p81, %p82
      %p84 = scmp.ne.s32.totalorder %s70, %s71
      %p85 = scmp.eq.s32.totalorder %s16, 1
      %p86 = por %p84, %p85
      %p88 = scmp.ne.s32.totalorder %s71, %s87
      %p89 = scmp.eq.s32.totalorder %s16, 0
      %p90 = por %p88, %p89
      %s91 = ssub.s32 %s10, %s17
      %p92 = scmp.eq.s32.totalorder %s91, 0
      %s94 = sadd.s32 %s93, 1
      %s95 = scalar_select %p92, %s93, %s94
      %p98 = pneg %p92
      %p99 = scmp.eq.s32.totalorder %s10, 1
      %p100 = por %p98, %p99
      %p101 = scmp.ne.s32.totalorder %s93, %s96
      %p102 = scmp.eq.s32.totalorder %s10, 0
      %p103 = por %p101, %p102
      %p104 = scmp.ne.s32.totalorder %s93, %s96
      %p105 = scmp.eq.s32.totalorder %s15, 1
      %p106 = por %p104, %p105
      %p107 = scmp.ne.s32.totalorder %s96, %s97
      %p108 = scmp.eq.s32.totalorder %s15, 0
      %p109 = por %p107, %p108
      %p110 = scmp.ne.s32.totalorder %s96, %s97
      %p111 = scmp.eq.s32.totalorder %s16, 1
      %p112 = por %p110, %p111
      %p114 = scmp.ne.s32.totalorder %s97, %s113
      %p115 = scmp.eq.s32.totalorder %s16, 0
      %p116 = por %p114, %p115
      %s117 = ssub.s32 %s10, %s17
      %p118 = scmp.eq.s32.totalorder %s117, 0
      %s120 = sadd.s32 %s119, 1
      %s121 = scalar_select %p118, %s119, %s120
      %p124 = pneg %p118
      %p125 = scmp.eq.s32.totalorder %s10, 1
      %p126 = por %p124, %p125
      %p127 = scmp.ne.s32.totalorder %s119, %s122
      %p128 = scmp.eq.s32.totalorder %s10, 0
      %p129 = por %p127, %p128
      %p130 = scmp.ne.s32.totalorder %s119, %s122
      %p131 = scmp.eq.s32.totalorder %s15, 1
      %p132 = por %p130, %p131
      %p133 = scmp.ne.s32.totalorder %s122, %s123
      %p134 = scmp.eq.s32.totalorder %s15, 0
      %p135 = por %p133, %p134
      %p136 = scmp.ne.s32.totalorder %s122, %s123
      %p137 = scmp.eq.s32.totalorder %s16, 1
      %p138 = por %p136, %p137
      %p140 = scmp.ne.s32.totalorder %s123, %s139
      %p141 = scmp.eq.s32.totalorder %s16, 0
      %p142 = por %p140, %p141
      %p143 = scmp.le.s32.totalorder 1, %s10
      %p144 = scmp.lt.s32.totalorder %s10, 3
      %p145 = pnand %p143, %p144
      %p146 = pneg %p145
      // Predicated region
      $region9: #{generator_forward.8} parent=5 // pred_check
        _
      $region10: #{generator_forward.8} parent=5 // pred_check_branch
        %148 = sbr.rel (%p145) target = $region12
      $region11: #{generator_forward.8} parent=5 // pred_region
        %s149 = ssub.s32 %s10, 1
        // Predicated region
        $region13: #{generator_forward.8} parent=11 // pred_check
          %p150 = pneg %p57
        $region14: #{generator_forward.8} parent=11 // pred_check_branch
          %152 = sbr.rel (%p150) target = $region16
        $region15: #{generator_forward.8} parent=11 // pred_region
          _
        $region16: #{generator_forward.8} parent=11 // pred_fallthru
          _
      $region12: #{generator_forward.8} parent=5 // pred_fallthru
        _
      %p153 = scmp.lt.s32.totalorder %s10, 2
      // Predicated region
      $region17: #{generator_forward.8} parent=5 // pred_check
        %p154 = pneg %p153
      $region18: #{generator_forward.8} parent=5 // pred_check_branch
        %156 = sbr.rel (%p154) target = $region20
      $region19: #{generator_forward.8} parent=5 // pred_region
        // Predicated region
        $region21: #{generator_forward.8} parent=19 // pred_check
          %p157 = pneg %p30
        $region22: #{generator_forward.8} parent=19 // pred_check_branch
          %159 = sbr.rel (%p157) target = $region24
        $region23: #{generator_forward.8} parent=19 // pred_region
          %s160 = sand.u32 %s20, 1
          %s161 = sand.u32 %s20, 1
          %s162 = smul.addr %s161, 16
          %s163 = scalar_lea.vmem [#allocation3], %s162
          %s164 = smul.addr %s10, 4
          %s165 = scalar_lea.vmem %s0, %s164
          // Predicated region
          $region25: #{generator_forward.8} parent=23 // pred_check
            _
          $region26: #{generator_forward.8} parent=23 // pred_check_branch
            %167 = sbr.rel (0) target = $region28
          $region27: #{generator_forward.8} parent=23 // pred_region
            // Predicated region
            $region29: #{generator_forward.8} parent=27 // pred_check
              _
            $region30: #{generator_forward.8} parent=27 // pred_check_branch
              %169 = sbr.rel target = $region32
            $region31: #{generator_forward.8} parent=27 // pred_region
              // Predicated region
              $region44: #{generator_forward.8} parent=31 // pred_check
                _
              $region45: #{generator_forward.8} parent=31 // pred_check_branch
                %190 = sbr.rel (0) target = $region47
              $region46: #{generator_forward.8} parent=31 // pred_region
                loop: start=0, step=1, limit=1
                $region48: #{generator_forward.8} parent=46 // loop_pre_header
                  _
                $region49: #{generator_forward.8} parent=46 // loop_header
                  %s192 = sphi 0, %s196
                  %p193 = scmp.ge.s32.totalorder %s192, 1
                  %s197 = sphi %s165, %s165
                  %s198 = sphi %s163, %s163
                $region50: #{generator_forward.8} parent=46 // loop_header_branch
                  %195 = sbr.rel (%p193) target = $region54
                $region51: #{generator_forward.8} parent=46 // loop_body
                  _
                $region52: #{generator_forward.8} parent=46 // loop_footer
                  %s196 = sadd.s32 1, %s192
                $region53: #{generator_forward.8} parent=46 // loop_footer_branch
                  %191 = sbr.rel target = $region49
                $region54: #{generator_forward.8} parent=46 // loop_exit
                  _
                loop: start=0, step=1, limit=1
                $region55: #{generator_forward.8} parent=46 // loop_pre_header
                  _
                $region56: #{generator_forward.8} parent=46 // loop_header
                  %s201 = sphi 0, %s205
                  %p202 = scmp.ge.s32.totalorder %s201, 1
                  %s206 = sphi %s165, %s165
                  %s207 = sphi %s163, %s163
                $region57: #{generator_forward.8} parent=46 // loop_header_branch
                  %204 = sbr.rel (%p202) target = $region61
                $region58: #{generator_forward.8} parent=46 // loop_body
                  %v208 = vld [vmem:[%s206] sm:$0xf]
                  %209 = vst [vmem:[%s207] sm:$0xf] %v208
                  %v210 = vld [vmem:[%s206 + $0x8] sm:$0xf]
                  %211 = vst [vmem:[%s207 + $0x4] sm:$0xf] %v210
                  %v212 = vld [vmem:[%s206 + $0x10] sm:$0xf]
                  %213 = vst [vmem:[%s207 + $0x8] sm:$0xf] %v212
                  %v214 = vld [vmem:[%s206 + $0x18] sm:$0xf]
                  %215 = vst [vmem:[%s207 + $0xc] sm:$0xf] %v214
                $region59: #{generator_forward.8} parent=46 // loop_footer
                  %s205 = sadd.s32 1, %s201
                $region60: #{generator_forward.8} parent=46 // loop_footer_branch
                  %200 = sbr.rel target = $region56
                $region61: #{generator_forward.8} parent=46 // loop_exit
                  _
              $region47: #{generator_forward.8} parent=31 // pred_fallthru
                _
            $region32: #{generator_forward.8} parent=27 // pred_fallthru
              _
            // Predicated region
            $region33: #{generator_forward.8} parent=27 // pred_check
              _
            $region34: #{generator_forward.8} parent=27 // pred_check_branch
              %171 = sbr.rel (0) target = $region36
            $region35: #{generator_forward.8} parent=27 // pred_region
              loop: start=0, step=1, limit=1
              $region37: #{generator_forward.8} parent=35 // loop_pre_header
                _
              $region38: #{generator_forward.8} parent=35 // loop_header
                %s174 = sphi 0, %s178
                %p175 = scmp.ge.s32.totalorder %s174, 1
                %s179 = sphi %s165, %s165
                %s180 = sphi %s163, %s163
              $region39: #{generator_forward.8} parent=35 // loop_header_branch
                %177 = sbr.rel (%p175) target = $region43
              $region40: #{generator_forward.8} parent=35 // loop_body
                %v181 = vld [vmem:[%s179] sm:$0xf]
                %182 = vst [vmem:[%s180] sm:$0xf] %v181
                %v183 = vld [vmem:[%s179 + $0x8] sm:$0xf]
                %184 = vst [vmem:[%s180 + $0x4] sm:$0xf] %v183
                %v185 = vld [vmem:[%s179 + $0x10] sm:$0xf]
                %186 = vst [vmem:[%s180 + $0x8] sm:$0xf] %v185
                %v187 = vld [vmem:[%s179 + $0x18] sm:$0xf]
                %188 = vst [vmem:[%s180 + $0xc] sm:$0xf] %v187
              $region41: #{generator_forward.8} parent=35 // loop_footer
                %s178 = sadd.s32 1, %s174
              $region42: #{generator_forward.8} parent=35 // loop_footer_branch
                %173 = sbr.rel target = $region38
              $region43: #{generator_forward.8} parent=35 // loop_exit
                _
            $region36: #{generator_forward.8} parent=27 // pred_fallthru
              _
          $region28: #{generator_forward.8} parent=23 // pred_fallthru
            _
          %216 = vnop
        $region24: #{generator_forward.8} parent=19 // pred_fallthru
          _
        // Predicated region
        $region62: #{generator_forward.8} parent=19 // pred_check
          %p217 = pneg %p77
        $region63: #{generator_forward.8} parent=19 // pred_check_branch
          %219 = sbr.rel (%p217) target = $region65
        $region64: #{generator_forward.8} parent=19 // pred_region
          %p220 = scmp.lt.s32.totalorder %s10, 1
          %s221 = scalar_select %p220, %s10, 1
          %s222 = smul.addr %s221, 8
          %s223 = scalar_lea.vmem %s2, %s222
        $region65: #{generator_forward.8} parent=19 // pred_fallthru
          _
        // Predicated region
        $region66: #{generator_forward.8} parent=19 // pred_check
          %p224 = pneg %p103
        $region67: #{generator_forward.8} parent=19 // pred_check_branch
          %226 = sbr.rel (%p224) target = $region69
        $region68: #{generator_forward.8} parent=19 // pred_region
          %p227 = scmp.lt.s32.totalorder %s10, 1
          %s228 = scalar_select %p227, %s10, 1
          %s229 = smul.addr %s228, 8
          %s230 = scalar_lea.vmem %s3, %s229
        $region69: #{generator_forward.8} parent=19 // pred_fallthru
          _
      $region20: #{generator_forward.8} parent=5 // pred_fallthru
        _
      %p231 = scmp.le.s32.totalorder 1, %s10
      %p232 = scmp.lt.s32.totalorder %s10, 3
      %p233 = pnand %p231, %p232
      %p234 = pneg %p233
      // Predicated region
      $region70: #{generator_forward.8} parent=5 // pred_check
        _
      $region71: #{generator_forward.8} parent=5 // pred_check_branch
        %236 = sbr.rel (%p233) target = $region73
      $region72: #{generator_forward.8} parent=5 // pred_region
        %s237 = ssub.s32 %s10, 1
        %s238 = sand.u32 %s23, 1
        %s239 = sand.u32 %s23, 1
        %s240 = smul.addr %s239, 16
        %s241 = scalar_lea.vmem [#allocation3], %s240
        // Predicated region
        $region74: #{generator_forward.8} parent=72 // pred_check
          %p242 = pneg %p36
        $region75: #{generator_forward.8} parent=72 // pred_check_branch
          %244 = sbr.rel (%p242) target = $region77
        $region76: #{generator_forward.8} parent=72 // pred_region
          _
        $region77: #{generator_forward.8} parent=72 // pred_fallthru
          _
        %s245 = sand.u32 %s23, 1
        %s246 = sand.u32 %s23, 1
        %s247 = smul.addr %s246, 16
        %s248 = scalar_lea.vmem [#allocation3], %s247
        %p249 = pneg %p36
        %p250 = pneg %p33
        %p251 = pneg %p57
        %p252 = pneg %p54
        %p253 = scmp.lt.s32.totalorder %s15, 1
        %s254 = scalar_select %p253, %s15, 1
        %s255 = smul.addr %s254, 8
        %s256 = scalar_lea.vmem %s2, %s255
        %p257 = pneg %p83
        %p258 = pneg %p80
        %p259 = scmp.lt.s32.totalorder %s15, 1
        %s260 = scalar_select %p259, %s15, 1
        %s261 = smul.addr %s260, 8
        %s262 = scalar_lea.vmem %s3, %s261
        %p263 = pneg %p109
        %p264 = pneg %p106
        %p265 = pneg %p135
        %p266 = pneg %p132
        %s267 = sand.u32 %s122, 1
        %s268 = sand.u32 %s122, 1
        %s269 = smul.addr %s268, 64
        %s270 = scalar_lea.vmem [#allocation4], %s269
        %p271 = scmp.lt.s32.totalorder %s15, 1
        %s272 = scalar_select %p271, %s15, 1
        %s273 = smul.addr %s272, 8
        %s274 = scalar_lea.vmem %s2, %s273
        %p275 = scmp.lt.s32.totalorder %s15, 1
        %s276 = scalar_select %p275, %s15, 1
        %s277 = smul.addr %s276, 8
        %s278 = scalar_lea.vmem %s3, %s277
        %v280 = vld [vmem:[%s241] sm:$0xf]
        %v281 = vld [vmem:[%s1] sm:$0xff]
        %v282 = vld [vmem:[%s1 + $0x8] sm:$0xff]
        %v283 = vld [vmem:[%s1 + $0x10] sm:$0xff]
        %v284 = vld [vmem:[%s1 + $0x18] sm:$0xff]
        %v285 = vld [vmem:[%s1 + $0x20] sm:$0xff]
        %v286 = vld [vmem:[%s1 + $0x28] sm:$0xff]
        %v287 = vld [vmem:[%s1 + $0x30] sm:$0xff]
        %v288 = vld [vmem:[%s1 + $0x38] sm:$0xff]
        %v289 = vld [vmem:[%s1 + $0x40] sm:$0xff]
        %v290 = vld [vmem:[%s1 + $0x48] sm:$0xff]
        %v291 = vld [vmem:[%s1 + $0x50] sm:$0xff]
        %v292 = vld [vmem:[%s1 + $0x58] sm:$0xff]
        %v293 = vld [vmem:[%s1 + $0x60] sm:$0xff]
        %v294 = vld [vmem:[%s1 + $0x68] sm:$0xff]
        %v295 = vld [vmem:[%s1 + $0x70] sm:$0xff]
        %v296 = vld [vmem:[%s1 + $0x78] sm:$0xff]
        %v297 = vld [vmem:[%s1 + $0x80] sm:$0xff]
        %v298 = vld [vmem:[%s1 + $0x88] sm:$0xff]
        %v299 = vld [vmem:[%s1 + $0x90] sm:$0xff]
        %v300 = vld [vmem:[%s1 + $0x98] sm:$0xff]
        %v301 = vld [vmem:[%s1 + $0xa0] sm:$0xff]
        %v302 = vld [vmem:[%s1 + $0xa8] sm:$0xff]
        %v303 = vld [vmem:[%s1 + $0xb0] sm:$0xff]
        %v304 = vld [vmem:[%s1 + $0xb8] sm:$0xff]
        %v305 = vld [vmem:[%s1 + $0xc0] sm:$0xff]
        %v306 = vld [vmem:[%s1 + $0xc8] sm:$0xff]
        %v307 = vld [vmem:[%s1 + $0xd0] sm:$0xff]
        %v308 = vld [vmem:[%s1 + $0xd8] sm:$0xff]
        %v309 = vld [vmem:[%s1 + $0xe0] sm:$0xff]
        %v310 = vld [vmem:[%s1 + $0xe8] sm:$0xff]
        %v311 = vld [vmem:[%s1 + $0xf0] sm:$0xff]
        %v312 = vld [vmem:[%s1 + $0xf8] sm:$0xff]
        %v345 = vunpack.c.l.b16 %v281
        %v346 = vunpack.c.h.b16 %v281
        %v347 = vunpack.c.l.b16 %v282
        %v348 = vunpack.c.h.b16 %v282
        %v349 = vunpack.c.l.b16 %v283
        %v350 = vunpack.c.h.b16 %v283
        %v351 = vunpack.c.l.b16 %v284
        %v352 = vunpack.c.h.b16 %v284
        %v353 = vunpack.c.l.b16 %v285
        %v354 = vunpack.c.h.b16 %v285
        %v355 = vunpack.c.l.b16 %v286
        %v356 = vunpack.c.h.b16 %v286
        %v357 = vunpack.c.l.b16 %v287
        %v358 = vunpack.c.h.b16 %v287
        %v359 = vunpack.c.l.b16 %v288
        %v360 = vunpack.c.h.b16 %v288
        %v361 = vunpack.c.l.b16 %v289
        %v362 = vunpack.c.h.b16 %v289
        %v363 = vunpack.c.l.b16 %v290
        %v364 = vunpack.c.h.b16 %v290
        %v365 = vunpack.c.l.b16 %v291
        %v366 = vunpack.c.h.b16 %v291
        %v367 = vunpack.c.l.b16 %v292
        %v368 = vunpack.c.h.b16 %v292
        %v369 = vunpack.c.l.b16 %v293
        %v370 = vunpack.c.h.b16 %v293
        %v371 = vunpack.c.l.b16 %v294
        %v372 = vunpack.c.h.b16 %v294
        %v373 = vunpack.c.l.b16 %v295
        %v374 = vunpack.c.h.b16 %v295
        %v375 = vunpack.c.l.b16 %v296
        %v376 = vunpack.c.h.b16 %v296
        %v377 = vunpack.c.l.b16 %v297
        %v378 = vunpack.c.h.b16 %v297
        %v379 = vunpack.c.l.b16 %v298
        %v380 = vunpack.c.h.b16 %v298
        %v381 = vunpack.c.l.b16 %v299
        %v382 = vunpack.c.h.b16 %v299
        %v383 = vunpack.c.l.b16 %v300
        %v384 = vunpack.c.h.b16 %v300
        %v385 = vunpack.c.l.b16 %v301
        %v386 = vunpack.c.h.b16 %v301
        %v387 = vunpack.c.l.b16 %v302
        %v388 = vunpack.c.h.b16 %v302
        %v389 = vunpack.c.l.b16 %v303
        %v390 = vunpack.c.h.b16 %v303
        %v391 = vunpack.c.l.b16 %v304
        %v392 = vunpack.c.h.b16 %v304
        %v393 = vunpack.c.l.b16 %v305
        %v394 = vunpack.c.h.b16 %v305
        %v395 = vunpack.c.l.b16 %v306
        %v396 = vunpack.c.h.b16 %v306
        %v397 = vunpack.c.l.b16 %v307
        %v398 = vunpack.c.h.b16 %v307
        %v399 = vunpack.c.l.b16 %v308
        %v400 = vunpack.c.h.b16 %v308
        %v401 = vunpack.c.l.b16 %v309
        %v402 = vunpack.c.h.b16 %v309
        %v403 = vunpack.c.l.b16 %v310
        %v404 = vunpack.c.h.b16 %v310
        %v405 = vunpack.c.l.b16 %v311
        %v406 = vunpack.c.h.b16 %v311
        %v407 = vunpack.c.l.b16 %v312
        %v408 = vunpack.c.h.b16 %v312
        %v409 = vpack.c.b16 %v349, %v345
        %v410 = vpack.c.b16 %v350, %v346
        %v411 = vpack.c.b16 %v351, %v347
        %v412 = vpack.c.b16 %v352, %v348
        %v413 = vpack.c.b16 %v357, %v353
        %v414 = vpack.c.b16 %v358, %v354
        %v415 = vpack.c.b16 %v359, %v355
        %v416 = vpack.c.b16 %v360, %v356
        %v417 = vpack.c.b16 %v365, %v361
        %v418 = vpack.c.b16 %v366, %v362
        %v419 = vpack.c.b16 %v367, %v363
        %v420 = vpack.c.b16 %v368, %v364
        %v421 = vpack.c.b16 %v373, %v369
        %v422 = vpack.c.b16 %v374, %v370
        %v423 = vpack.c.b16 %v375, %v371
        %v424 = vpack.c.b16 %v376, %v372
        %v425 = vpack.c.b16 %v381, %v377
        %v426 = vpack.c.b16 %v382, %v378
        %v427 = vpack.c.b16 %v383, %v379
        %v428 = vpack.c.b16 %v384, %v380
        %v429 = vpack.c.b16 %v389, %v385
        %v430 = vpack.c.b16 %v390, %v386
        %v431 = vpack.c.b16 %v391, %v387
        %v432 = vpack.c.b16 %v392, %v388
        %v433 = vpack.c.b16 %v397, %v393
        %v434 = vpack.c.b16 %v398, %v394
        %v435 = vpack.c.b16 %v399, %v395
        %v436 = vpack.c.b16 %v400, %v396
        %v437 = vpack.c.b16 %v405, %v401
        %v438 = vpack.c.b16 %v406, %v402
        %v439 = vpack.c.b16 %v407, %v403
        %v440 = vpack.c.b16 %v408, %v404
        %473 = vmatprep.subr.bf16.mxu0 %v410
        %474 = vmatpush1.bf16.msra.mxu0 %v409
        %475 = vmatprep.subr.bf16.mxu0 %v414
        %476 = vmatpush1.bf16.msra.mxu0 %v413
        %477 = vmatprep.subr.bf16.mxu0 %v418
        %478 = vmatpush1.bf16.msra.mxu0 %v417
        %479 = vmatprep.subr.bf16.mxu0 %v422
        %480 = vmatpush1.bf16.msra.mxu0 %v421
        %481 = vmatprep.subr.bf16.mxu0 %v426
        %482 = vmatpush1.bf16.msra.mxu0 %v425
        %483 = vmatprep.subr.bf16.mxu0 %v430
        %484 = vmatpush1.bf16.msra.mxu0 %v429
        %485 = vmatprep.subr.bf16.mxu0 %v434
        %486 = vmatpush1.bf16.msra.mxu0 %v433
        %487 = vmatprep.subr.bf16.mxu0 %v438
        %488 = vmatpush1.bf16.msra.mxu0 %v437
        %489 = vmatprep.subr.bf16.mxu0 0
        %490 = vmatpush1.bf16.msra.mxu0 0
        %491 = vmatprep.subr.bf16.mxu0 0
        %492 = vmatpush1.bf16.msra.mxu0 0
        %493 = vmatprep.subr.bf16.mxu0 0
        %494 = vmatpush1.bf16.msra.mxu0 0
        %495 = vmatprep.subr.bf16.mxu0 0
        %496 = vmatpush1.bf16.msra.mxu0 0
        %497 = vmatprep.subr.bf16.mxu0 0
        %498 = vmatpush1.bf16.msra.mxu0 0
        %499 = vmatprep.subr.bf16.mxu0 0
        %500 = vmatpush1.bf16.msra.mxu0 0
        %501 = vmatprep.subr.bf16.mxu0 0
        %502 = vmatpush1.bf16.msra.mxu0 0
        %503 = vmatprep.subr.bf16.mxu0 0
        %504 = vmatpush1.bf16.msra.mxu0 0
        %505 = vmatprep.mubr.bf16.mxu0 0
        %506 = vmatmul.mubr.bf16.gmra.mrb[0].mxu0 %v280
        %v507 = vpop.f32.mrb[0].mxu0
        %v508 = vadd.f32 0.0, %v507
        %v509 = vpop.f32.mrb[0].mxu0
        %v510 = vadd.f32 0.0, %v509
        %v511 = vpop.f32.mrb[0].mxu0
        %v512 = vpop.f32.mrb[0].mxu0
        %513 = vdwg.mxu0
        %514 = vmatprep.subr.bf16.mxu0 %v412
        %515 = vmatpush1.bf16.msra.mxu0 %v411
        %516 = vmatprep.subr.bf16.mxu0 %v416
        %517 = vmatpush1.bf16.msra.mxu0 %v415
        %518 = vmatprep.subr.bf16.mxu0 %v420
        %519 = vmatpush1.bf16.msra.mxu0 %v419
        %520 = vmatprep.subr.bf16.mxu0 %v424
        %521 = vmatpush1.bf16.msra.mxu0 %v423
        %522 = vmatprep.subr.bf16.mxu0 %v428
        %523 = vmatpush1.bf16.msra.mxu0 %v427
        %524 = vmatprep.subr.bf16.mxu0 %v432
        %525 = vmatpush1.bf16.msra.mxu0 %v431
        %526 = vmatprep.subr.bf16.mxu0 %v436
        %527 = vmatpush1.bf16.msra.mxu0 %v435
        %528 = vmatprep.subr.bf16.mxu0 %v440
        %529 = vmatpush1.bf16.msra.mxu0 %v439
        %530 = vmatprep.subr.bf16.mxu0 0
        %531 = vmatpush1.bf16.msra.mxu0 0
        %532 = vmatprep.subr.bf16.mxu0 0
        %533 = vmatpush1.bf16.msra.mxu0 0
        %534 = vmatprep.subr.bf16.mxu0 0
        %535 = vmatpush1.bf16.msra.mxu0 0
        %536 = vmatprep.subr.bf16.mxu0 0
        %537 = vmatpush1.bf16.msra.mxu0 0
        %538 = vmatprep.subr.bf16.mxu0 0
        %539 = vmatpush1.bf16.msra.mxu0 0
        %540 = vmatprep.subr.bf16.mxu0 0
        %541 = vmatpush1.bf16.msra.mxu0 0
        %542 = vmatprep.subr.bf16.mxu0 0
        %543 = vmatpush1.bf16.msra.mxu0 0
        %544 = vmatprep.subr.bf16.mxu0 0
        %545 = vmatpush1.bf16.msra.mxu0 0
        %546 = vmatprep.mubr.bf16.mxu0 0
        %547 = vmatmul.mubr.bf16.gmra.mrb[0].mxu0 %v280
        %v548 = vpop.f32.mrb[0].mxu0
        %v549 = vadd.f32 0.0, %v548
        %v550 = vpop.f32.mrb[0].mxu0
        %v551 = vadd.f32 0.0, %v550
        %v552 = vpop.f32.mrb[0].mxu0
        %v553 = vpop.f32.mrb[0].mxu0
        %554 = vdwg.mxu0
        %555 = vst [vmem:[#allocation2] sm:$0xff] %v508
        %556 = vst [vmem:[#allocation2 + $0x8] sm:$0xff] %v510
        %557 = vst [vmem:[#allocation2 + $0x10] sm:$0xff] %v549
        %558 = vst [vmem:[#allocation2 + $0x18] sm:$0xff] %v551
        %v559 = vadd.f32 %v508, %v510
        %v560 = vadd.f32 %v559, %v549
        %v561 = vadd.f32 %v560, %v551
        %562 = vadd.xlane.f32.xlu0 %v561
        %v563 = vpop.xlane.xlu0 %562
        %v564 = vmul.f32 %v508, %v508
        %v565 = vmul.f32 %v510, %v510
        %v566 = vmul.f32 %v549, %v549
        %v567 = vmul.f32 %v551, %v551
        %v568 = vadd.f32 %v564, %v565
        %v569 = vadd.f32 %v568, %v566
        %v570 = vadd.f32 %v569, %v567
        %571 = vadd.xlane.f32.xlu0 %v570
        %v572 = vpop.xlane.xlu0 %571
        %s573 = scalar_lea.vmem %s241, 4 [#allocation3]
        %v574 = vld [vmem:[%s573] sm:$0xf]
        %s575 = scalar_lea.vmem %s1, 256
        %v576 = vld [vmem:[%s575] sm:$0xff]
        %v577 = vld [vmem:[%s575 + $0x8] sm:$0xff]
        %v578 = vld [vmem:[%s575 + $0x10] sm:$0xff]
        %v579 = vld [vmem:[%s575 + $0x18] sm:$0xff]
        %v580 = vld [vmem:[%s575 + $0x20] sm:$0xff]
        %v581 = vld [vmem:[%s575 + $0x28] sm:$0xff]
        %v582 = vld [vmem:[%s575 + $0x30] sm:$0xff]
        %v583 = vld [vmem:[%s575 + $0x38] sm:$0xff]
        %v584 = vld [vmem:[%s575 + $0x40] sm:$0xff]
        %v585 = vld [vmem:[%s575 + $0x48] sm:$0xff]
        %v586 = vld [vmem:[%s575 + $0x50] sm:$0xff]
        %v587 = vld [vmem:[%s575 + $0x58] sm:$0xff]
        %v588 = vld [vmem:[%s575 + $0x60] sm:$0xff]
        %v589 = vld [vmem:[%s575 + $0x68] sm:$0xff]
        %v590 = vld [vmem:[%s575 + $0x70] sm:$0xff]
        %v591 = vld [vmem:[%s575 + $0x78] sm:$0xff]
        %v592 = vld [vmem:[%s575 + $0x80] sm:$0xff]
        %v593 = vld [vmem:[%s575 + $0x88] sm:$0xff]
        %v594 = vld [vmem:[%s575 + $0x90] sm:$0xff]
        %v595 = vld [vmem:[%s575 + $0x98] sm:$0xff]
        %v596 = vld [vmem:[%s575 + $0xa0] sm:$0xff]
        %v597 = vld [vmem:[%s575 + $0xa8] sm:$0xff]
        %v598 = vld [vmem:[%s575 + $0xb0] sm:$0xff]
        %v599 = vld [vmem:[%s575 + $0xb8] sm:$0xff]
        %v600 = vld [vmem:[%s575 + $0xc0] sm:$0xff]
        %v601 = vld [vmem:[%s575 + $0xc8] sm:$0xff]
        %v602 = vld [vmem:[%s575 + $0xd0] sm:$0xff]
        %v603 = vld [vmem:[%s575 + $0xd8] sm:$0xff]
        %v604 = vld [vmem:[%s575 + $0xe0] sm:$0xff]
        %v605 = vld [vmem:[%s575 + $0xe8] sm:$0xff]
        %v606 = vld [vmem:[%s575 + $0xf0] sm:$0xff]
        %v607 = vld [vmem:[%s575 + $0xf8] sm:$0xff]
        %v640 = vunpack.c.l.b16 %v576
        %v641 = vunpack.c.h.b16 %v576
        %v642 = vunpack.c.l.b16 %v577
        %v643 = vunpack.c.h.b16 %v577
        %v644 = vunpack.c.l.b16 %v578
        %v645 = vunpack.c.h.b16 %v578
        %v646 = vunpack.c.l.b16 %v579
        %v647 = vunpack.c.h.b16 %v579
        %v648 = vunpack.c.l.b16 %v580
        %v649 = vunpack.c.h.b16 %v580
        %v650 = vunpack.c.l.b16 %v581
        %v651 = vunpack.c.h.b16 %v581
        %v652 = vunpack.c.l.b16 %v582
        %v653 = vunpack.c.h.b16 %v582
        %v654 = vunpack.c.l.b16 %v583
        %v655 = vunpack.c.h.b16 %v583
        %v656 = vunpack.c.l.b16 %v584
        %v657 = vunpack.c.h.b16 %v584
        %v658 = vunpack.c.l.b16 %v585
        %v659 = vunpack.c.h.b16 %v585
        %v660 = vunpack.c.l.b16 %v586
        %v661 = vunpack.c.h.b16 %v586
        %v662 = vunpack.c.l.b16 %v587
        %v663 = vunpack.c.h.b16 %v587
        %v664 = vunpack.c.l.b16 %v588
        %v665 = vunpack.c.h.b16 %v588
        %v666 = vunpack.c.l.b16 %v589
        %v667 = vunpack.c.h.b16 %v589
        %v668 = vunpack.c.l.b16 %v590
        %v669 = vunpack.c.h.b16 %v590
        %v670 = vunpack.c.l.b16 %v591
        %v671 = vunpack.c.h.b16 %v591
        %v672 = vunpack.c.l.b16 %v592
        %v673 = vunpack.c.h.b16 %v592
        %v674 = vunpack.c.l.b16 %v593
        %v675 = vunpack.c.h.b16 %v593
        %v676 = vunpack.c.l.b16 %v594
        %v677 = vunpack.c.h.b16 %v594
        %v678 = vunpack.c.l.b16 %v595
        %v679 = vunpack.c.h.b16 %v595
        %v680 = vunpack.c.l.b16 %v596
        %v681 = vunpack.c.h.b16 %v596
        %v682 = vunpack.c.l.b16 %v597
        %v683 = vunpack.c.h.b16 %v597
        %v684 = vunpack.c.l.b16 %v598
        %v685 = vunpack.c.h.b16 %v598
        %v686 = vunpack.c.l.b16 %v599
        %v687 = vunpack.c.h.b16 %v599
        %v688 = vunpack.c.l.b16 %v600
        %v689 = vunpack.c.h.b16 %v600
        %v690 = vunpack.c.l.b16 %v601
        %v691 = vunpack.c.h.b16 %v601
        %v692 = vunpack.c.l.b16 %v602
        %v693 = vunpack.c.h.b16 %v602
        %v694 = vunpack.c.l.b16 %v603
        %v695 = vunpack.c.h.b16 %v603
        %v696 = vunpack.c.l.b16 %v604
        %v697 = vunpack.c.h.b16 %v604
        %v698 = vunpack.c.l.b16 %v605
        %v699 = vunpack.c.h.b16 %v605
        %v700 = vunpack.c.l.b16 %v606
        %v701 = vunpack.c.h.b16 %v606
        %v702 = vunpack.c.l.b16 %v607
        %v703 = vunpack.c.h.b16 %v607
        %v704 = vpack.c.b16 %v644, %v640
        %v705 = vpack.c.b16 %v645, %v641
        %v706 = vpack.c.b16 %v646, %v642
        %v707 = vpack.c.b16 %v647, %v643
        %v708 = vpack.c.b16 %v652, %v648
        %v709 = vpack.c.b16 %v653, %v649
        %v710 = vpack.c.b16 %v654, %v650
        %v711 = vpack.c.b16 %v655, %v651
        %v712 = vpack.c.b16 %v660, %v656
        %v713 = vpack.c.b16 %v661, %v657
        %v714 = vpack.c.b16 %v662, %v658
        %v715 = vpack.c.b16 %v663, %v659
        %v716 = vpack.c.b16 %v668, %v664
        %v717 = vpack.c.b16 %v669, %v665
        %v718 = vpack.c.b16 %v670, %v666
        %v719 = vpack.c.b16 %v671, %v667
        %v720 = vpack.c.b16 %v676, %v672
        %v721 = vpack.c.b16 %v677, %v673
        %v722 = vpack.c.b16 %v678, %v674
        %v723 = vpack.c.b16 %v679, %v675
        %v724 = vpack.c.b16 %v684, %v680
        %v725 = vpack.c.b16 %v685, %v681
        %v726 = vpack.c.b16 %v686, %v682
        %v727 = vpack.c.b16 %v687, %v683
        %v728 = vpack.c.b16 %v692, %v688
        %v729 = vpack.c.b16 %v693, %v689
        %v730 = vpack.c.b16 %v694, %v690
        %v731 = vpack.c.b16 %v695, %v691
        %v732 = vpack.c.b16 %v700, %v696
        %v733 = vpack.c.b16 %v701, %v697
        %v734 = vpack.c.b16 %v702, %v698
        %v735 = vpack.c.b16 %v703, %v699
        %768 = vmatprep.subr.bf16.mxu0 %v705
        %769 = vmatpush1.bf16.msra.mxu0 %v704
        %770 = vmatprep.subr.bf16.mxu0 %v709
        %771 = vmatpush1.bf16.msra.mxu0 %v708
        %772 = vmatprep.subr.bf16.mxu0 %v713
        %773 = vmatpush1.bf16.msra.mxu0 %v712
        %774 = vmatprep.subr.bf16.mxu0 %v717
        %775 = vmatpush1.bf16.msra.mxu0 %v716
        %776 = vmatprep.subr.bf16.mxu0 %v721
        %777 = vmatpush1.bf16.msra.mxu0 %v720
        %778 = vmatprep.subr.bf16.mxu0 %v725
        %779 = vmatpush1.bf16.msra.mxu0 %v724
        %780 = vmatprep.subr.bf16.mxu0 %v729
        %781 = vmatpush1.bf16.msra.mxu0 %v728
        %782 = vmatprep.subr.bf16.mxu0 %v733
        %783 = vmatpush1.bf16.msra.mxu0 %v732
        %784 = vmatprep.subr.bf16.mxu0 0
        %785 = vmatpush1.bf16.msra.mxu0 0
        %786 = vmatprep.subr.bf16.mxu0 0
        %787 = vmatpush1.bf16.msra.mxu0 0
        %788 = vmatprep.subr.bf16.mxu0 0
        %789 = vmatpush1.bf16.msra.mxu0 0
        %790 = vmatprep.subr.bf16.mxu0 0
        %791 = vmatpush1.bf16.msra.mxu0 0
        %792 = vmatprep.subr.bf16.mxu0 0
        %793 = vmatpush1.bf16.msra.mxu0 0
        %794 = vmatprep.subr.bf16.mxu0 0
        %795 = vmatpush1.bf16.msra.mxu0 0
        %796 = vmatprep.subr.bf16.mxu0 0
        %797 = vmatpush1.bf16.msra.mxu0 0
        %798 = vmatprep.subr.bf16.mxu0 0
        %799 = vmatpush1.bf16.msra.mxu0 0
        %800 = vmatprep.mubr.bf16.mxu0 0
        %801 = vmatmul.mubr.bf16.gmra.mrb[0].mxu0 %v574
        %v802 = vpop.f32.mrb[0].mxu0
        %v803 = vadd.f32 0.0, %v802
        %v804 = vpop.f32.mrb[0].mxu0
        %v805 = vadd.f32 0.0, %v804
        %v806 = vpop.f32.mrb[0].mxu0
        %v807 = vpop.f32.mrb[0].mxu0
        %808 = vdwg.mxu0
        %809 = vmatprep.subr.bf16.mxu0 %v707
        %810 = vmatpush1.bf16.msra.mxu0 %v706
        %811 = vmatprep.subr.bf16.mxu0 %v711
        %812 = vmatpush1.bf16.msra.mxu0 %v710
        %813 = vmatprep.subr.bf16.mxu0 %v715
        %814 = vmatpush1.bf16.msra.mxu0 %v714
        %815 = vmatprep.subr.bf16.mxu0 %v719
        %816 = vmatpush1.bf16.msra.mxu0 %v718
        %817 = vmatprep.subr.bf16.mxu0 %v723
        %818 = vmatpush1.bf16.msra.mxu0 %v722
        %819 = vmatprep.subr.bf16.mxu0 %v727
        %820 = vmatpush1.bf16.msra.mxu0 %v726
        %821 = vmatprep.subr.bf16.mxu0 %v731
        %822 = vmatpush1.bf16.msra.mxu0 %v730
        %823 = vmatprep.subr.bf16.mxu0 %v735
        %824 = vmatpush1.bf16.msra.mxu0 %v734
        %825 = vmatprep.subr.bf16.mxu0 0
        %826 = vmatpush1.bf16.msra.mxu0 0
        %827 = vmatprep.subr.bf16.mxu0 0
        %828 = vmatpush1.bf16.msra.mxu0 0
        %829 = vmatprep.subr.bf16.mxu0 0
        %830 = vmatpush1.bf16.msra.mxu0 0
        %831 = vmatprep.subr.bf16.mxu0 0
        %832 = vmatpush1.bf16.msra.mxu0 0
        %833 = vmatprep.subr.bf16.mxu0 0
        %834 = vmatpush1.bf16.msra.mxu0 0
        %835 = vmatprep.subr.bf16.mxu0 0
        %836 = vmatpush1.bf16.msra.mxu0 0
        %837 = vmatprep.subr.bf16.mxu0 0
        %838 = vmatpush1.bf16.msra.mxu0 0
        %839 = vmatprep.subr.bf16.mxu0 0
        %840 = vmatpush1.bf16.msra.mxu0 0
        %841 = vmatprep.mubr.bf16.mxu0 0
        %842 = vmatmul.mubr.bf16.gmra.mrb[0].mxu0 %v574
        %v843 = vpop.f32.mrb[0].mxu0
        %v844 = vadd.f32 0.0, %v843
        %v845 = vpop.f32.mrb[0].mxu0
        %v846 = vadd.f32 0.0, %v845
        %v847 = vpop.f32.mrb[0].mxu0
        %v848 = vpop.f32.mrb[0].mxu0
        %849 = vdwg.mxu0
        %s850 = scalar_lea.vmem [#allocation2], 32
        %851 = vst [vmem:[%s850] sm:$0xff] %v803
        %852 = vst [vmem:[%s850 + $0x8] sm:$0xff] %v805
        %853 = vst [vmem:[%s850 + $0x10] sm:$0xff] %v844
        %854 = vst [vmem:[%s850 + $0x18] sm:$0xff] %v846
        %v855 = vadd.f32 %v803, %v805
        %v856 = vadd.f32 %v855, %v844
        %v857 = vadd.f32 %v856, %v846
        %858 = vadd.xlane.f32.xlu0 %v857
        %v859 = vpop.xlane.xlu0 %858
        %v860 = vmul.f32 %v803, %v803
        %v861 = vmul.f32 %v805, %v805
        %v862 = vmul.f32 %v844, %v844
        %v863 = vmul.f32 %v846, %v846
        %v864 = vadd.f32 %v860, %v861
        %v865 = vadd.f32 %v864, %v862
        %v866 = vadd.f32 %v865, %v863
        %867 = vadd.xlane.f32.xlu0 %v866
        %v868 = vpop.xlane.xlu0 %867
        %v869 = vadd.f32 %v563, %v859
        %v870 = vadd.f32 %v572, %v868
        %s871 = scalar_lea.vmem %s241, 8 [#allocation3]
        %v872 = vld [vmem:[%s871] sm:$0xf]
        %s873 = scalar_lea.vmem %s1, 512
        %v874 = vld [vmem:[%s873] sm:$0xff]
        %v875 = vld [vmem:[%s873 + $0x8] sm:$0xff]
        %v876 = vld [vmem:[%s873 + $0x10] sm:$0xff]
        %v877 = vld [vmem:[%s873 + $0x18] sm:$0xff]
        %v878 = vld [vmem:[%s873 + $0x20] sm:$0xff]
        %v879 = vld [vmem:[%s873 + $0x28] sm:$0xff]
        %v880 = vld [vmem:[%s873 + $0x30] sm:$0xff]
        %v881 = vld [vmem:[%s873 + $0x38] sm:$0xff]
        %v882 = vld [vmem:[%s873 + $0x40] sm:$0xff]
        %v883 = vld [vmem:[%s873 + $0x48] sm:$0xff]
        %v884 = vld [vmem:[%s873 + $0x50] sm:$0xff]
        %v885 = vld [vmem:[%s873 + $0x58] sm:$0xff]
        %v886 = vld [vmem:[%s873 + $0x60] sm:$0xff]
        %v887 = vld [vmem:[%s873 + $0x68] sm:$0xff]
        %v888 = vld [vmem:[%s873 + $0x70] sm:$0xff]
        %v889 = vld [vmem:[%s873 + $0x78] sm:$0xff]
        %v890 = vld [vmem:[%s873 + $0x80] sm:$0xff]
        %v891 = vld [vmem:[%s873 + $0x88] sm:$0xff]
        %v892 = vld [vmem:[%s873 + $0x90] sm:$0xff]
        %v893 = vld [vmem:[%s873 + $0x98] sm:$0xff]
        %v894 = vld [vmem:[%s873 + $0xa0] sm:$0xff]
        %v895 = vld [vmem:[%s873 + $0xa8] sm:$0xff]
        %v896 = vld [vmem:[%s873 + $0xb0] sm:$0xff]
        %v897 = vld [vmem:[%s873 + $0xb8] sm:$0xff]
        %v898 = vld [vmem:[%s873 + $0xc0] sm:$0xff]
        %v899 = vld [vmem:[%s873 + $0xc8] sm:$0xff]
        %v900 = vld [vmem:[%s873 + $0xd0] sm:$0xff]
        %v901 = vld [vmem:[%s873 + $0xd8] sm:$0xff]
        %v902 = vld [vmem:[%s873 + $0xe0] sm:$0xff]
        %v903 = vld [vmem:[%s873 + $0xe8] sm:$0xff]
        %v904 = vld [vmem:[%s873 + $0xf0] sm:$0xff]
        %v905 = vld [vmem:[%s873 + $0xf8] sm:$0xff]
        %v938 = vunpack.c.l.b16 %v874
        %v939 = vunpack.c.h.b16 %v874
        %v940 = vunpack.c.l.b16 %v875
        %v941 = vunpack.c.h.b16 %v875
        %v942 = vunpack.c.l.b16 %v876
        %v943 = vunpack.c.h.b16 %v876
        %v944 = vunpack.c.l.b16 %v877
        %v945 = vunpack.c.h.b16 %v877
        %v946 = vunpack.c.l.b16 %v878
        %v947 = vunpack.c.h.b16 %v878
        %v948 = vunpack.c.l.b16 %v879
        %v949 = vunpack.c.h.b16 %v879
        %v950 = vunpack.c.l.b16 %v880
        %v951 = vunpack.c.h.b16 %v880
        %v952 = vunpack.c.l.b16 %v881
        %v953 = vunpack.c.h.b16 %v881
        %v954 = vunpack.c.l.b16 %v882
        %v955 = vunpack.c.h.b16 %v882
        %v956 = vunpack.c.l.b16 %v883
        %v957 = vunpack.c.h.b16 %v883
        %v958 = vunpack.c.l.b16 %v884
        %v959 = vunpack.c.h.b16 %v884
        %v960 = vunpack.c.l.b16 %v885
        %v961 = vunpack.c.h.b16 %v885
        %v962 = vunpack.c.l.b16 %v886
        %v963 = vunpack.c.h.b16 %v886
        %v964 = vunpack.c.l.b16 %v887
        %v965 = vunpack.c.h.b16 %v887
        %v966 = vunpack.c.l.b16 %v888
        %v967 = vunpack.c.h.b16 %v888
        %v968 = vunpack.c.l.b16 %v889
        %v969 = vunpack.c.h.b16 %v889
        %v970 = vunpack.c.l.b16 %v890
        %v971 = vunpack.c.h.b16 %v890
        %v972 = vunpack.c.l.b16 %v891
        %v973 = vunpack.c.h.b16 %v891
        %v974 = vunpack.c.l.b16 %v892
        %v975 = vunpack.c.h.b16 %v892
        %v976 = vunpack.c.l.b16 %v893
        %v977 = vunpack.c.h.b16 %v893
        %v978 = vunpack.c.l.b16 %v894
        %v979 = vunpack.c.h.b16 %v894
        %v980 = vunpack.c.l.b16 %v895
        %v981 = vunpack.c.h.b16 %v895
        %v982 = vunpack.c.l.b16 %v896
        %v983 = vunpack.c.h.b16 %v896
        %v984 = vunpack.c.l.b16 %v897
        %v985 = vunpack.c.h.b16 %v897
        %v986 = vunpack.c.l.b16 %v898
        %v987 = vunpack.c.h.b16 %v898
        %v988 = vunpack.c.l.b16 %v899
        %v989 = vunpack.c.h.b16 %v899
        %v990 = vunpack.c.l.b16 %v900
        %v991 = vunpack.c.h.b16 %v900
        %v992 = vunpack.c.l.b16 %v901
        %v993 = vunpack.c.h.b16 %v901
        %v994 = vunpack.c.l.b16 %v902
        %v995 = vunpack.c.h.b16 %v902
        %v996 = vunpack.c.l.b16 %v903
        %v997 = vunpack.c.h.b16 %v903
        %v998 = vunpack.c.l.b16 %v904
        %v999 = vunpack.c.h.b16 %v904
        %v1000 = vunpack.c.l.b16 %v905
        %v1001 = vunpack.c.h.b16 %v905
        %v1002 = vpack.c.b16 %v942, %v938
        %v1003 = vpack.c.b16 %v943, %v939
        %v1004 = vpack.c.b16 %v944, %v940
        %v1005 = vpack.c.b16 %v945, %v941
        %v1006 = vpack.c.b16 %v950, %v946
        %v1007 = vpack.c.b16 %v951, %v947
        %v1008 = vpack.c.b16 %v952, %v948
        %v1009 = vpack.c.b16 %v953, %v949
        %v1010 = vpack.c.b16 %v958, %v954
        %v1011 = vpack.c.b16 %v959, %v955
        %v1012 = vpack.c.b16 %v960, %v956
        %v1013 = vpack.c.b16 %v961, %v957
        %v1014 = vpack.c.b16 %v966, %v962
        %v1015 = vpack.c.b16 %v967, %v963
        %v1016 = vpack.c.b16 %v968, %v964
        %v1017 = vpack.c.b16 %v969, %v965
        %v1018 = vpack.c.b16 %v974, %v970
        %v1019 = vpack.c.b16 %v975, %v971
        %v1020 = vpack.c.b16 %v976, %v972
        %v1021 = vpack.c.b16 %v977, %v973
        %v1022 = vpack.c.b16 %v982, %v978
        %v1023 = vpack.c.b16 %v983, %v979
        %v1024 = vpack.c.b16 %v984, %v980
        %v1025 = vpack.c.b16 %v985, %v981
        %v1026 = vpack.c.b16 %v990, %v986
        %v1027 = vpack.c.b16 %v991, %v987
        %v1028 = vpack.c.b16 %v992, %v988
        %v1029 = vpack.c.b16 %v993, %v989
        %v1030 = vpack.c.b16 %v998, %v994
        %v1031 = vpack.c.b16 %v999, %v995
        %v1032 = vpack.c.b16 %v1000, %v996
        %v1033 = vpack.c.b16 %v1001, %v997
        %1066 = vmatprep.subr.bf16.mxu0 %v1003
        %1067 = vmatpush1.bf16.msra.mxu0 %v1002
        %1068 = vmatprep.subr.bf16.mxu0 %v1007
        %1069 = vmatpush1.bf16.msra.mxu0 %v1006
        %1070 = vmatprep.subr.bf16.mxu0 %v1011
        %1071 = vmatpush1.bf16.msra.mxu0 %v1010
        %1072 = vmatprep.subr.bf16.mxu0 %v1015
        %1073 = vmatpush1.bf16.msra.mxu0 %v1014
        %1074 = vmatprep.subr.bf16.mxu0 %v1019
        %1075 = vmatpush1.bf16.msra.mxu0 %v1018
        %1076 = vmatprep.subr.bf16.mxu0 %v1023
        %1077 = vmatpush1.bf16.msra.mxu0 %v1022
        %1078 = vmatprep.subr.bf16.mxu0 %v1027
        %1079 = vmatpush1.bf16.msra.mxu0 %v1026
        %1080 = vmatprep.subr.bf16.mxu0 %v1031
        %1081 = vmatpush1.bf16.msra.mxu0 %v1030
        %1082 = vmatprep.subr.bf16.mxu0 0
        %1083 = vmatpush1.bf16.msra.mxu0 0
        %1084 = vmatprep.subr.bf16.mxu0 0
        %1085 = vmatpush1.bf16.msra.mxu0 0
        %1086 = vmatprep.subr.bf16.mxu0 0
        %1087 = vmatpush1.bf16.msra.mxu0 0
        %1088 = vmatprep.subr.bf16.mxu0 0
        %1089 = vmatpush1.bf16.msra.mxu0 0
        %1090 = vmatprep.subr.bf16.mxu0 0
        %1091 = vmatpush1.bf16.msra.mxu0 0
        %1092 = vmatprep.subr.bf16.mxu0 0
        %1093 = vmatpush1.bf16.msra.mxu0 0
        %1094 = vmatprep.subr.bf16.mxu0 0
        %1095 = vmatpush1.bf16.msra.mxu0 0
        %1096 = vmatprep.subr.bf16.mxu0 0
        %1097 = vmatpush1.bf16.msra.mxu0 0
        %1098 = vmatprep.mubr.bf16.mxu0 0
        %1099 = vmatmul.mubr.bf16.gmra.mrb[0].mxu0 %v872
        %v1100 = vpop.f32.mrb[0].mxu0
        %v1101 = vadd.f32 0.0, %v1100
        %v1102 = vpop.f32.mrb[0].mxu0
        %v1103 = vadd.f32 0.0, %v1102
        %v1104 = vpop.f32.mrb[0].mxu0
        %v1105 = vpop.f32.mrb[0].mxu0
        %1106 = vdwg.mxu0
        %1107 = vmatprep.subr.bf16.mxu0 %v1005
        %1108 = vmatpush1.bf16.msra.mxu0 %v1004
        %1109 = vmatprep.subr.bf16.mxu0 %v1009
        %1110 = vmatpush1.bf16.msra.mxu0 %v1008
        %1111 = vmatprep.subr.bf16.mxu0 %v1013
        %1112 = vmatpush1.bf16.msra.mxu0 %v1012
        %1113 = vmatprep.subr.bf16.mxu0 %v1017
        %1114 = vmatpush1.bf16.msra.mxu0 %v1016
        %1115 = vmatprep.subr.bf16.mxu0 %v1021
        %1116 = vmatpush1.bf16.msra.mxu0 %v1020
        %1117 = vmatprep.subr.bf16.mxu0 %v1025
        %1118 = vmatpush1.bf16.msra.mxu0 %v1024
        %1119 = vmatprep.subr.bf16.mxu0 %v1029
        %1120 = vmatpush1.bf16.msra.mxu0 %v1028
        %1121 = vmatprep.subr.bf16.mxu0 %v1033
        %1122 = vmatpush1.bf16.msra.mxu0 %v1032
        %1123 = vmatprep.subr.bf16.mxu0 0
        %1124 = vmatpush1.bf16.msra.mxu0 0
        %1125 = vmatprep.subr.bf16.mxu0 0
        %1126 = vmatpush1.bf16.msra.mxu0 0
        %1127 = vmatprep.subr.bf16.mxu0 0
        %1128 = vmatpush1.bf16.msra.mxu0 0
        %1129 = vmatprep.subr.bf16.mxu0 0
        %1130 = vmatpush1.bf16.msra.mxu0 0
        %1131 = vmatprep.subr.bf16.mxu0 0
        %1132 = vmatpush1.bf16.msra.mxu0 0
        %1133 = vmatprep.subr.bf16.mxu0 0
        %1134 = vmatpush1.bf16.msra.mxu0 0
        %1135 = vmatprep.subr.bf16.mxu0 0
        %1136 = vmatpush1.bf16.msra.mxu0 0
        %1137 = vmatprep.subr.bf16.mxu0 0
        %1138 = vmatpush1.bf16.msra.mxu0 0
        %1139 = vmatprep.mubr.bf16.mxu0 0
        %1140 = vmatmul.mubr.bf16.gmra.mrb[0].mxu0 %v872
        %v1141 = vpop.f32.mrb[0].mxu0
        %v1142 = vadd.f32 0.0, %v1141
        %v1143 = vpop.f32.mrb[0].mxu0
        %v1144 = vadd.f32 0.0, %v1143
        %v1145 = vpop.f32.mrb[0].mxu0
        %v1146 = vpop.f32.mrb[0].mxu0
        %1147 = vdwg.mxu0
        %s1148 = scalar_lea.vmem [#allocation2], 64
        %1149 = vst [vmem:[%s1148] sm:$0xff] %v1101
        %1150 = vst [vmem:[%s1148 + $0x8] sm:$0xff] %v1103
        %1151 = vst [vmem:[%s1148 + $0x10] sm:$0xff] %v1142
        %1152 = vst [vmem:[%s1148 + $0x18] sm:$0xff] %v1144
        %v1153 = vadd.f32 %v1101, %v1103
        %v1154 = vadd.f32 %v1153, %v1142
        %v1155 = vadd.f32 %v1154, %v1144
        %1156 = vadd.xlane.f32.xlu0 %v1155
        %v1157 = vpop.xlane.xlu0 %1156
        %v1158 = vmul.f32 %v1101, %v1101
        %v1159 = vmul.f32 %v1103, %v1103
        %v1160 = vmul.f32 %v1142, %v1142
        %v1161 = vmul.f32 %v1144, %v1144
        %v1162 = vadd.f32 %v1158, %v1159
        %v1163 = vadd.f32 %v1162, %v1160
        %v1164 = vadd.f32 %v1163, %v1161
        %1165 = vadd.xlane.f32.xlu0 %v1164
        %v1166 = vpop.xlane.xlu0 %1165
        %v1167 = vadd.f32 %v869, %v1157
        %v1168 = vadd.f32 %v870, %v1166
        %s1169 = scalar_lea.vmem %s241, 12 [#allocation3]
        %v1170 = vld [vmem:[%s1169] sm:$0xf]
        %s1171 = scalar_lea.vmem %s1, 768
        %v1172 = vld [vmem:[%s1171] sm:$0xff]
        %v1173 = vld [vmem:[%s1171 + $0x8] sm:$0xff]
        %v1174 = vld [vmem:[%s1171 + $0x10] sm:$0xff]
        %v1175 = vld [vmem:[%s1171 + $0x18] sm:$0xff]
        %v1176 = vld [vmem:[%s1171 + $0x20] sm:$0xff]
        %v1177 = vld [vmem:[%s1171 + $0x28] sm:$0xff]
        %v1178 = vld [vmem:[%s1171 + $0x30] sm:$0xff]
        %v1179 = vld [vmem:[%s1171 + $0x38] sm:$0xff]
        %v1180 = vld [vmem:[%s1171 + $0x40] sm:$0xff]
        %v1181 = vld [vmem:[%s1171 + $0x48] sm:$0xff]
        %v1182 = vld [vmem:[%s1171 + $0x50] sm:$0xff]
        %v1183 = vld [vmem:[%s1171 + $0x58] sm:$0xff]
        %v1184 = vld [vmem:[%s1171 + $0x60] sm:$0xff]
        %v1185 = vld [vmem:[%s1171 + $0x68] sm:$0xff]
        %v1186 = vld [vmem:[%s1171 + $0x70] sm:$0xff]
        %v1187 = vld [vmem:[%s1171 + $0x78] sm:$0xff]
        %v1188 = vld [vmem:[%s1171 + $0x80] sm:$0xff]
        %v1189 = vld [vmem:[%s1171 + $0x88] sm:$0xff]
        %v1190 = vld [vmem:[%s1171 + $0x90] sm:$0xff]
        %v1191 = vld [vmem:[%s1171 + $0x98] sm:$0xff]
        %v1192 = vld [vmem:[%s1171 + $0xa0] sm:$0xff]
        %v1193 = vld [vmem:[%s1171 + $0xa8] sm:$0xff]
        %v1194 = vld [vmem:[%s1171 + $0xb0] sm:$0xff]
        %v1195 = vld [vmem:[%s1171 + $0xb8] sm:$0xff]
        %v1196 = vld [vmem:[%s1171 + $0xc0] sm:$0xff]
        %v1197 = vld [vmem:[%s1171 + $0xc8] sm:$0xff]
        %v1198 = vld [vmem:[%s1171 + $0xd0] sm:$0xff]
        %v1199 = vld [vmem:[%s1171 + $0xd8] sm:$0xff]
        %v1200 = vld [vmem:[%s1171 + $0xe0] sm:$0xff]
        %v1201 = vld [vmem:[%s1171 + $0xe8] sm:$0xff]
        %v1202 = vld [vmem:[%s1171 + $0xf0] sm:$0xff]
        %v1203 = vld [vmem:[%s1171 + $0xf8] sm:$0xff]
        %v1236 = vunpack.c.l.b16 %v1172
        %v1237 = vunpack.c.h.b16 %v1172
        %v1238 = vunpack.c.l.b16 %v1173
        %v1239 = vunpack.c.h.b16 %v1173
        %v1240 = vunpack.c.l.b16 %v1174
        %v1241 = vunpack.c.h.b16 %v1174
        %v1242 = vunpack.c.l.b16 %v1175
        %v1243 = vunpack.c.h.b16 %v1175
        %v1244 = vunpack.c.l.b16 %v1176
        %v1245 = vunpack.c.h.b16 %v1176
        %v1246 = vunpack.c.l.b16 %v1177
        %v1247 = vunpack.c.h.b16 %v1177
        %v1248 = vunpack.c.l.b16 %v1178
        %v1249 = vunpack.c.h.b16 %v1178
        %v1250 = vunpack.c.l.b16 %v1179
        %v1251 = vunpack.c.h.b16 %v1179
        %v1252 = vunpack.c.l.b16 %v1180
        %v1253 = vunpack.c.h.b16 %v1180
        %v1254 = vunpack.c.l.b16 %v1181
        %v1255 = vunpack.c.h.b16 %v1181
        %v1256 = vunpack.c.l.b16 %v1182
        %v1257 = vunpack.c.h.b16 %v1182
        %v1258 = vunpack.c.l.b16 %v1183
        %v1259 = vunpack.c.h.b16 %v1183
        %v1260 = vunpack.c.l.b16 %v1184
        %v1261 = vunpack.c.h.b16 %v1184
        %v1262 = vunpack.c.l.b16 %v1185
        %v1263 = vunpack.c.h.b16 %v1185
        %v1264 = vunpack.c.l.b16 %v1186
        %v1265 = vunpack.c.h.b16 %v1186
        %v1266 = vunpack.c.l.b16 %v1187
        %v1267 = vunpack.c.h.b16 %v1187
        %v1268 = vunpack.c.l.b16 %v1188
        %v1269 = vunpack.c.h.b16 %v1188
        %v1270 = vunpack.c.l.b16 %v1189
        %v1271 = vunpack.c.h.b16 %v1189
        %v1272 = vunpack.c.l.b16 %v1190
        %v1273 = vunpack.c.h.b16 %v1190
        %v1274 = vunpack.c.l.b16 %v1191
        %v1275 = vunpack.c.h.b16 %v1191
        %v1276 = vunpack.c.l.b16 %v1192
        %v1277 = vunpack.c.h.b16 %v1192
        %v1278 = vunpack.c.l.b16 %v1193
        %v1279 = vunpack.c.h.b16 %v1193
        %v1280 = vunpack.c.l.b16 %v1194
        %v1281 = vunpack.c.h.b16 %v1194
        %v1282 = vunpack.c.l.b16 %v1195
        %v1283 = vunpack.c.h.b16 %v1195
        %v1284 = vunpack.c.l.b16 %v1196
        %v1285 = vunpack.c.h.b16 %v1196
        %v1286 = vunpack.c.l.b16 %v1197
        %v1287 = vunpack.c.h.b16 %v1197
        %v1288 = vunpack.c.l.b16 %v1198
        %v1289 = vunpack.c.h.b16 %v1198
        %v1290 = vunpack.c.l.b16 %v1199
        %v1291 = vunpack.c.h.b16 %v1199
        %v1292 = vunpack.c.l.b16 %v1200
        %v1293 = vunpack.c.h.b16 %v1200
        %v1294 = vunpack.c.l.b16 %v1201
        %v1295 = vunpack.c.h.b16 %v1201
        %v1296 = vunpack.c.l.b16 %v1202
        %v1297 = vunpack.c.h.b16 %v1202
        %v1298 = vunpack.c.l.b16 %v1203
        %v1299 = vunpack.c.h.b16 %v1203
        %v1300 = vpack.c.b16 %v1240, %v1236
        %v1301 = vpack.c.b16 %v1241, %v1237
        %v1302 = vpack.c.b16 %v1242, %v1238
        %v1303 = vpack.c.b16 %v1243, %v1239
        %v1304 = vpack.c.b16 %v1248, %v1244
        %v1305 = vpack.c.b16 %v1249, %v1245
        %v1306 = vpack.c.b16 %v1250, %v1246
        %v1307 = vpack.c.b16 %v1251, %v1247
        %v1308 = vpack.c.b16 %v1256, %v1252
        %v1309 = vpack.c.b16 %v1257, %v1253
        %v1310 = vpack.c.b16 %v1258, %v1254
        %v1311 = vpack.c.b16 %v1259, %v1255
        %v1312 = vpack.c.b16 %v1264, %v1260
        %v1313 = vpack.c.b16 %v1265, %v1261
        %v1314 = vpack.c.b16 %v1266, %v1262
        %v1315 = vpack.c.b16 %v1267, %v1263
        %v1316 = vpack.c.b16 %v1272, %v1268
        %v1317 = vpack.c.b16 %v1273, %v1269
        %v1318 = vpack.c.b16 %v1274, %v1270
        %v1319 = vpack.c.b16 %v1275, %v1271
        %v1320 = vpack.c.b16 %v1280, %v1276
        %v1321 = vpack.c.b16 %v1281, %v1277
        %v1322 = vpack.c.b16 %v1282, %v1278
        %v1323 = vpack.c.b16 %v1283, %v1279
        %v1324 = vpack.c.b16 %v1288, %v1284
        %v1325 = vpack.c.b16 %v1289, %v1285
        %v1326 = vpack.c.b16 %v1290, %v1286
        %v1327 = vpack.c.b16 %v1291, %v1287
        %v1328 = vpack.c.b16 %v1296, %v1292
        %v1329 = vpack.c.b16 %v1297, %v1293
        %v1330 = vpack.c.b16 %v1298, %v1294
        %v1331 = vpack.c.b16 %v1299, %v1295
        %1364 = vmatprep.subr.bf16.mxu0 %v1301
        %1365 = vmatpush1.bf16.msra.mxu0 %v1300
        %1366 = vmatprep.subr.bf16.mxu0 %v1305
        %1367 = vmatpush1.bf16.msra.mxu0 %v1304
        %1368 = vmatprep.subr.bf16.mxu0 %v1309
        %1369 = vmatpush1.bf16.msra.mxu0 %v1308
        %1370 = vmatprep.subr.bf16.mxu0 %v1313
        %1371 = vmatpush1.bf16.msra.mxu0 %v1312
        %1372 = vmatprep.subr.bf16.mxu0 %v1317
        %1373 = vmatpush1.bf16.msra.mxu0 %v1316
        %1374 = vmatprep.subr.bf16.mxu0 %v1321
        %1375 = vmatpush1.bf16.msra.mxu0 %v1320
        %1376 = vmatprep.subr.bf16.mxu0 %v1325
        %1377 = vmatpush1.bf16.msra.mxu0 %v1324
        %1378 = vmatprep.subr.bf16.mxu0 %v1329
        %1379 = vmatpush1.bf16.msra.mxu0 %v1328
        %1380 = vmatprep.subr.bf16.mxu0 0
        %1381 = vmatpush1.bf16.msra.mxu0 0
        %1382 = vmatprep.subr.bf16.mxu0 0
        %1383 = vmatpush1.bf16.msra.mxu0 0
        %1384 = vmatprep.subr.bf16.mxu0 0
        %1385 = vmatpush1.bf16.msra.mxu0 0
        %1386 = vmatprep.subr.bf16.mxu0 0
        %1387 = vmatpush1.bf16.msra.mxu0 0
        %1388 = vmatprep.subr.bf16.mxu0 0
        %1389 = vmatpush1.bf16.msra.mxu0 0
        %1390 = vmatprep.subr.bf16.mxu0 0
        %1391 = vmatpush1.bf16.msra.mxu0 0
        %1392 = vmatprep.subr.bf16.mxu0 0
        %1393 = vmatpush1.bf16.msra.mxu0 0
        %1394 = vmatprep.subr.bf16.mxu0 0
        %1395 = vmatpush1.bf16.msra.mxu0 0
        %1396 = vmatprep.mubr.bf16.mxu0 0
        %1397 = vmatmul.mubr.bf16.gmra.mrb[0].mxu0 %v1170
        %v1398 = vpop.f32.mrb[0].mxu0
        %v1399 = vadd.f32 0.0, %v1398
        %v1400 = vpop.f32.mrb[0].mxu0
        %v1401 = vadd.f32 0.0, %v1400
        %v1402 = vpop.f32.mrb[0].mxu0
        %v1403 = vpop.f32.mrb[0].mxu0
        %1404 = vdwg.mxu0
        %1405 = vmatprep.subr.bf16.mxu0 %v1303
        %1406 = vmatpush1.bf16.msra.mxu0 %v1302
        %1407 = vmatprep.subr.bf16.mxu0 %v1307
        %1408 = vmatpush1.bf16.msra.mxu0 %v1306
        %1409 = vmatprep.subr.bf16.mxu0 %v1311
        %1410 = vmatpush1.bf16.msra.mxu0 %v1310
        %1411 = vmatprep.subr.bf16.mxu0 %v1315
        %1412 = vmatpush1.bf16.msra.mxu0 %v1314
        %1413 = vmatprep.subr.bf16.mxu0 %v1319
        %1414 = vmatpush1.bf16.msra.mxu0 %v1318
        %1415 = vmatprep.subr.bf16.mxu0 %v1323
        %1416 = vmatpush1.bf16.msra.mxu0 %v1322
        %1417 = vmatprep.subr.bf16.mxu0 %v1327
        %1418 = vmatpush1.bf16.msra.mxu0 %v1326
        %1419 = vmatprep.subr.bf16.mxu0 %v1331
        %1420 = vmatpush1.bf16.msra.mxu0 %v1330
        %1421 = vmatprep.subr.bf16.mxu0 0
        %1422 = vmatpush1.bf16.msra.mxu0 0
        %1423 = vmatprep.subr.bf16.mxu0 0
        %1424 = vmatpush1.bf16.msra.mxu0 0
        %1425 = vmatprep.subr.bf16.mxu0 0
        %1426 = vmatpush1.bf16.msra.mxu0 0
        %1427 = vmatprep.subr.bf16.mxu0 0
        %1428 = vmatpush1.bf16.msra.mxu0 0
        %1429 = vmatprep.subr.bf16.mxu0 0
        %1430 = vmatpush1.bf16.msra.mxu0 0
        %1431 = vmatprep.subr.bf16.mxu0 0
        %1432 = vmatpush1.bf16.msra.mxu0 0
        %1433 = vmatprep.subr.bf16.mxu0 0
        %1434 = vmatpush1.bf16.msra.mxu0 0
        %1435 = vmatprep.subr.bf16.mxu0 0
        %1436 = vmatpush1.bf16.msra.mxu0 0
        %1437 = vmatprep.mubr.bf16.mxu0 0
        %1438 = vmatmul.mubr.bf16.gmra.mrb[0].mxu0 %v1170
        %v1439 = vpop.f32.mrb[0].mxu0
        %v1440 = vadd.f32 0.0, %v1439
        %v1441 = vpop.f32.mrb[0].mxu0
        %v1442 = vadd.f32 0.0, %v1441
        %v1443 = vpop.f32.mrb[0].mxu0
        %v1444 = vpop.f32.mrb[0].mxu0
        %1445 = vdwg.mxu0
        %s1446 = scalar_lea.vmem [#allocation2], 96
        %1447 = vst [vmem:[%s1446] sm:$0xff] %v1399
        %1448 = vst [vmem:[%s1446 + $0x8] sm:$0xff] %v1401
        %1449 = vst [vmem:[%s1446 + $0x10] sm:$0xff] %v1440
        %1450 = vst [vmem:[%s1446 + $0x18] sm:$0xff] %v1442
        %v1451 = vadd.f32 %v1399, %v1401
        %v1452 = vadd.f32 %v1451, %v1440
        %v1453 = vadd.f32 %v1452, %v1442
        %1454 = vadd.xlane.f32.xlu0 %v1453
        %v1455 = vpop.xlane.xlu0 %1454
        %v1456 = vmul.f32 %v1399, %v1399
        %v1457 = vmul.f32 %v1401, %v1401
        %v1458 = vmul.f32 %v1440, %v1440
        %v1459 = vmul.f32 %v1442, %v1442
        %v1460 = vadd.f32 %v1456, %v1457
        %v1461 = vadd.f32 %v1460, %v1458
        %v1462 = vadd.f32 %v1461, %v1459
        %1463 = vadd.xlane.f32.xlu0 %v1462
        %v1464 = vpop.xlane.xlu0 %1463
        %v1465 = vadd.f32 %v1167, %v1455
        %v1466 = vadd.f32 %v1168, %v1464
        %v1467 = vmul.f32 %v1465, 0.00048828125
        %v1468 = vmul.f32 %v1466, 0.00048828125
        %v1469 = vmul.f32 %v1467, %v1467
        %v1470 = vsub.f32 %v1468, %v1469
        %v1471 = vmax.f32 %v1470, 0.0
        %v1472 = vld [vmem:[%s274] sm:$0xff]
        %v1473 = vadd.f32 %v1471, 1e-05
        %v1474 = vrsqrt.pop %v1473
        %v1475 = vmul.f32 %v1472, %v1474
        %v1476 = vld [vmem:[%s278] sm:$0xff]
        %v1477 = vmul.f32 %v1467, %v1475
        %v1478 = vsub.f32 %v1476, %v1477
        %v1479 = vld [vmem:[#allocation2] sm:$0xff]
        %v1480 = vld [vmem:[#allocation2 + $0x8] sm:$0xff]
        %v1481 = vld [vmem:[#allocation2 + $0x10] sm:$0xff]
        %v1482 = vld [vmem:[#allocation2 + $0x18] sm:$0xff]
        %1484 = vset.pattern.permute.xlu0 0
        %1485 = vperm.xlu0 %1484, %v1475
        %v1486 = vpop.permute.xlu0 %1485
        %v1488 = vmul.f32 %v1479, %v1486
        %v1489 = vmul.f32 %v1480, %v1486
        %v1490 = vmul.f32 %v1481, %v1486
        %v1491 = vmul.f32 %v1482, %v1486
        %1493 = vset.pattern.permute.xlu0 0
        %1494 = vperm.xlu0 %1493, %v1478
        %v1495 = vpop.permute.xlu0 %1494
        %v1497 = vadd.f32 %v1488, %v1495
        %v1498 = vadd.f32 %v1489, %v1495
        %v1499 = vadd.f32 %v1490, %v1495
        %v1500 = vadd.f32 %v1491, %v1495
        %v1501 = vmax.f32 %v1497, 0.0
        %v1502 = vmax.f32 %v1498, 0.0
        %v1503 = vmax.f32 %v1499, 0.0
        %v1504 = vmax.f32 %v1500, 0.0
        %v1505 = vpack.c.bf16 %v1501, %v1501
        %v1506 = vpack.c.bf16 %v1502, %v1502
        %v1507 = vpack.c.bf16 %v1503, %v1503
        %v1508 = vpack.c.bf16 %v1504, %v1504
        %v1513 = vunpack.c.l.b16 %v1505
        %v1514 = vunpack.c.l.b16 %v1506
        %v1515 = vunpack.c.l.b16 %v1507
        %v1516 = vunpack.c.l.b16 %v1508
        %v1517 = vpack.c.b16 %v1514, %v1513
        %v1518 = vpack.c.b16 %v1516, %v1515
        %1521 = vst [vmem:[%s270] sm:$0xff] %v1517
        %1522 = vst [vmem:[%s270 + $0x8] sm:$0xff] %v1518
        %v1523 = vld [vmem:[%s850] sm:$0xff]
        %v1524 = vld [vmem:[%s850 + $0x8] sm:$0xff]
        %v1525 = vld [vmem:[%s850 + $0x10] sm:$0xff]
        %v1526 = vld [vmem:[%s850 + $0x18] sm:$0xff]
        %v1527 = vmul.f32 %v1523, %v1486
        %v1528 = vmul.f32 %v1524, %v1486
        %v1529 = vmul.f32 %v1525, %v1486
        %v1530 = vmul.f32 %v1526, %v1486
        %v1531 = vadd.f32 %v1527, %v1495
        %v1532 = vadd.f32 %v1528, %v1495
        %v1533 = vadd.f32 %v1529, %v1495
        %v1534 = vadd.f32 %v1530, %v1495
        %v1535 = vmax.f32 %v1531, 0.0
        %v1536 = vmax.f32 %v1532, 0.0
        %v1537 = vmax.f32 %v1533, 0.0
        %v1538 = vmax.f32 %v1534, 0.0
        %v1539 = vpack.c.bf16 %v1535, %v1535
        %v1540 = vpack.c.bf16 %v1536, %v1536
        %v1541 = vpack.c.bf16 %v1537, %v1537
        %v1542 = vpack.c.bf16 %v1538, %v1538
        %v1547 = vunpack.c.l.b16 %v1539
        %v1548 = vunpack.c.l.b16 %v1540
        %v1549 = vunpack.c.l.b16 %v1541
        %v1550 = vunpack.c.l.b16 %v1542
        %v1551 = vpack.c.b16 %v1548, %v1547
        %v1552 = vpack.c.b16 %v1550, %v1549
        %s1555 = scalar_lea.vmem %s270, 16 [#allocation4]
        %1556 = vst [vmem:[%s1555] sm:$0xff] %v1551
        %1557 = vst [vmem:[%s1555 + $0x8] sm:$0xff] %v1552
        %v1558 = vld [vmem:[%s1148] sm:$0xff]
        %v1559 = vld [vmem:[%s1148 + $0x8] sm:$0xff]
        %v1560 = vld [vmem:[%s1148 + $0x10] sm:$0xff]
        %v1561 = vld [vmem:[%s1148 + $0x18] sm:$0xff]
        %v1562 = vmul.f32 %v1558, %v1486
        %v1563 = vmul.f32 %v1559, %v1486
        %v1564 = vmul.f32 %v1560, %v1486
        %v1565 = vmul.f32 %v1561, %v1486
        %v1566 = vadd.f32 %v1562, %v1495
        %v1567 = vadd.f32 %v1563, %v1495
        %v1568 = vadd.f32 %v1564, %v1495
        %v1569 = vadd.f32 %v1565, %v1495
        %v1570 = vmax.f32 %v1566, 0.0
        %v1571 = vmax.f32 %v1567, 0.0
        %v1572 = vmax.f32 %v1568, 0.0
        %v1573 = vmax.f32 %v1569, 0.0
        %v1574 = vpack.c.bf16 %v1570, %v1570
        %v1575 = vpack.c.bf16 %v1571, %v1571
        %v1576 = vpack.c.bf16 %v1572, %v1572
        %v1577 = vpack.c.bf16 %v1573, %v1573
        %v1582 = vunpack.c.l.b16 %v1574
        %v1583 = vunpack.c.l.b16 %v1575
        %v1584 = vunpack.c.l.b16 %v1576
        %v1585 = vunpack.c.l.b16 %v1577
        %v1586 = vpack.c.b16 %v1583, %v1582
        %v1587 = vpack.c.b16 %v1585, %v1584
        %s1590 = scalar_lea.vmem %s270, 32 [#allocation4]
        %1591 = vst [vmem:[%s1590] sm:$0xff] %v1586
        %1592 = vst [vmem:[%s1590 + $0x8] sm:$0xff] %v1587
        %v1593 = vld [vmem:[%s1446] sm:$0xff]
        %v1594 = vld [vmem:[%s1446 + $0x8] sm:$0xff]
        %v1595 = vld [vmem:[%s1446 + $0x10] sm:$0xff]
        %v1596 = vld [vmem:[%s1446 + $0x18] sm:$0xff]
        %v1597 = vmul.f32 %v1593, %v1486
        %v1598 = vmul.f32 %v1594, %v1486
        %v1599 = vmul.f32 %v1595, %v1486
        %v1600 = vmul.f32 %v1596, %v1486
        %v1601 = vadd.f32 %v1597, %v1495
        %v1602 = vadd.f32 %v1598, %v1495
        %v1603 = vadd.f32 %v1599, %v1495
        %v1604 = vadd.f32 %v1600, %v1495
        %v1605 = vmax.f32 %v1601, 0.0
        %v1606 = vmax.f32 %v1602, 0.0
        %v1607 = vmax.f32 %v1603, 0.0
        %v1608 = vmax.f32 %v1604, 0.0
        %v1609 = vpack.c.bf16 %v1605, %v1605
        %v1610 = vpack.c.bf16 %v1606, %v1606
        %v1611 = vpack.c.bf16 %v1607, %v1607
        %v1612 = vpack.c.bf16 %v1608, %v1608
        %v1617 = vunpack.c.l.b16 %v1609
        %v1618 = vunpack.c.l.b16 %v1610
        %v1619 = vunpack.c.l.b16 %v1611
        %v1620 = vunpack.c.l.b16 %v1612
        %v1621 = vpack.c.b16 %v1618, %v1617
        %v1622 = vpack.c.b16 %v1620, %v1619
        %s1625 = scalar_lea.vmem %s270, 48 [#allocation4]
        %1626 = vst [vmem:[%s1625] sm:$0xff] %v1621
        %1627 = vst [vmem:[%s1625 + $0x8] sm:$0xff] %v1622
        %s1628 = sand.u32 %s122, 1
        %s1629 = sand.u32 %s122, 1
        %s1630 = smul.addr %s1629, 64
        %s1631 = scalar_lea.vmem [#allocation4], %s1630
        // Predicated region
        $region78: #{generator_forward.8} parent=72 // pred_check
          %p1632 = pneg %p132
        $region79: #{generator_forward.8} parent=72 // pred_check_branch
          %1634 = sbr.rel (%p1632) target = $region81
        $region80: #{generator_forward.8} parent=72 // pred_region
          %s1635 = smul.addr %s15, 4
          %s1636 = smul.addr %s1635, 4
          %s1637 = scalar_lea.vmem %s4, %s1636
          // Predicated region
          $region82: #{generator_forward.8} parent=80 // pred_check
            _
          $region83: #{generator_forward.8} parent=80 // pred_check_branch
            %1639 = sbr.rel (0) target = $region85
          $region84: #{generator_forward.8} parent=80 // pred_region
            // Predicated region
            $region86: #{generator_forward.8} parent=84 // pred_check
              _
            $region87: #{generator_forward.8} parent=84 // pred_check_branch
              %1641 = sbr.rel (0) target = $region89
            $region88: #{generator_forward.8} parent=84 // pred_region
              loop: start=0, step=1, limit=1
              $region90: #{generator_forward.8} parent=88 // loop_pre_header
                _
              $region91: #{generator_forward.8} parent=88 // loop_header
                %s1643 = sphi 0, %s1647
                %p1644 = scmp.ge.s32.totalorder %s1643, 1
                %s1648 = sphi %s1631, %s1631
                %s1649 = sphi %s1637, %s1637
              $region92: #{generator_forward.8} parent=88 // loop_header_branch
                %1646 = sbr.rel (%p1644) target = $region96
              $region93: #{generator_forward.8} parent=88 // loop_body
                %v1650 = vld [vmem:[%s1648] sm:$0xff]
                %1651 = vst [vmem:[%s1649] sm:$0xff] %v1650
                %v1652 = vld [vmem:[%s1648 + $0x8] sm:$0xff]
                %1653 = vst [vmem:[%s1649 + $0x8] sm:$0xff] %v1652
                %v1654 = vld [vmem:[%s1648 + $0x10] sm:$0xff]
                %1655 = vst [vmem:[%s1649 + $0x20] sm:$0xff] %v1654
                %v1656 = vld [vmem:[%s1648 + $0x18] sm:$0xff]
                %1657 = vst [vmem:[%s1649 + $0x28] sm:$0xff] %v1656
                %v1658 = vld [vmem:[%s1648 + $0x20] sm:$0xff]
                %1659 = vst [vmem:[%s1649 + $0x40] sm:$0xff] %v1658
                %v1660 = vld [vmem:[%s1648 + $0x28] sm:$0xff]
                %1661 = vst [vmem:[%s1649 + $0x48] sm:$0xff] %v1660
                %v1662 = vld [vmem:[%s1648 + $0x30] sm:$0xff]
                %1663 = vst [vmem:[%s1649 + $0x60] sm:$0xff] %v1662
                %v1664 = vld [vmem:[%s1648 + $0x38] sm:$0xff]
                %1665 = vst [vmem:[%s1649 + $0x68] sm:$0xff] %v1664
              $region94: #{generator_forward.8} parent=88 // loop_footer
                %s1647 = sadd.s32 1, %s1643
              $region95: #{generator_forward.8} parent=88 // loop_footer_branch
                %1642 = sbr.rel target = $region91
              $region96: #{generator_forward.8} parent=88 // loop_exit
                _
            $region89: #{generator_forward.8} parent=84 // pred_fallthru
              _
            // Predicated region
            $region97: #{generator_forward.8} parent=84 // pred_check
              _
            $region98: #{generator_forward.8} parent=84 // pred_check_branch
              %1667 = sbr.rel target = $region100
            $region99: #{generator_forward.8} parent=84 // pred_region
              _
            $region100: #{generator_forward.8} parent=84 // pred_fallthru
              _
          $region85: #{generator_forward.8} parent=80 // pred_fallthru
            _
          %1668 = vnop
        $region81: #{generator_forward.8} parent=72 // pred_fallthru
          _
      $region73: #{generator_forward.8} parent=5 // pred_fallthru
        _
      %p1669 = scmp.le.s32.totalorder 2, %s10
      // Predicated region
      $region101: #{generator_forward.8} parent=5 // pred_check
        %p1670 = pneg %p1669
      $region102: #{generator_forward.8} parent=5 // pred_check_branch
        %1672 = sbr.rel (%p1670) target = $region104
      $region103: #{generator_forward.8} parent=5 // pred_region
        %s1673 = ssub.s32 %s10, 2
        // Predicated region
        $region105: #{generator_forward.8} parent=103 // pred_check
          %p1674 = pneg %p138
        $region106: #{generator_forward.8} parent=103 // pred_check_branch
          %1676 = sbr.rel (%p1674) target = $region108
        $region107: #{generator_forward.8} parent=103 // pred_region
          %s1677 = sand.u32 %s123, 1
          %s1678 = sand.u32 %s123, 1
          %s1679 = smul.addr %s1678, 64
          %s1680 = scalar_lea.vmem [#allocation4], %s1679
        $region108: #{generator_forward.8} parent=103 // pred_fallthru
          _
      $region104: #{generator_forward.8} parent=5 // pred_fallthru
        _
    $region6: #{generator_forward.8} parent=1 // loop_footer
      %s14 = sadd.s32 1, %s10
    $region7: #{generator_forward.8} parent=1 // loop_footer_branch
      %9 = sbr.rel target = $region3
    $region8: #{generator_forward.8} parent=1 // loop_exit
      _

// kernel: generator_forward.9
$region0: #{generator_forward.9}
  #allocation0 [shape = 'u32[]', space=smem, size = 0x4, offset = 0x4, fixed_abs, tag = 'smem constant byte address 0x4 - core index']
  #allocation1 [shape = 'u32[144,128]{1,0:T(1,128)}', space=vmem, size = 0x12000, scoped, tag = 'internal scratch']
  %s0 = inlined_call_operand.vmem [shape: bf16[4,3,64], index: 0, kind: input, shape index: {}]
  %s1 = inlined_call_operand.vmem [shape: bf16[4,64,2048], index: 1, kind: input, shape index: {}]
  %s2 = inlined_call_operand.vmem [shape: f32[4,3,2048], index: 2, kind: output, shape index: {}]
  %s3 = sld [smem:[#allocation0]]
  $region83: #{generator_forward.9} parent=0
    _
  %s5 = ssub.s32 1, %s3
  %s6 = scalar_select 0, %s5, %s3
  $region1: #{generator_forward.9} parent=0
    #allocation2 [shape = 'u8[1048576]{0}', space=vmem, size = 0x100000, scoped, tag = 'input window, operand 1']
    #allocation3 [shape = 'u8[131072]{0}', space=vmem, size = 0x20000, scoped, tag = 'output window, operand 0']
    loop: start=0, step=1, limit=4
    $region2: #{generator_forward.9} parent=1 // loop_pre_header
      _
    $region3: #{generator_forward.9} parent=1 // loop_header
      %s8 = sphi 0, %s12
      %p9 = scmp.ge.s32.totalorder %s8, 4
      %s16 = sphi 0, %s16
      %s18 = sphi 0, %s16
      %s19 = sphi 0, %s18
      %s33 = sphi 0, %s19
      %s39 = sphi 0, %s41
      %s42 = sphi 0, %s39
      %s43 = sphi 0, %s42
      %s59 = sphi 0, %s43
      %s65 = sphi 0, %s67
      %s68 = sphi 0, %s65
      %s69 = sphi 0, %s68
      %s85 = sphi 0, %s69
    $region4: #{generator_forward.9} parent=1 // loop_header_branch
      %11 = sbr.rel (%p9) target = $region8
    $region5: #{generator_forward.9} parent=1 // loop_body
      %s13 = ssub.s32 %s8, 1
      %s14 = ssub.s32 %s8, 2
      %s15 = sadd.s32 %s8, 1
      %s17 = sadd.s32 %s16, 1
      %p20 = scmp.eq.s32.totalorder %s8, 1
      %p21 = scmp.ne.s32.totalorder %s16, %s18
      %p22 = scmp.eq.s32.totalorder %s8, 0
      %p23 = por %p21, %p22
      %p24 = scmp.ne.s32.totalorder %s16, %s18
      %p25 = scmp.eq.s32.totalorder %s13, 1
      %p26 = por %p24, %p25
      %p27 = scmp.ne.s32.totalorder %s18, %s19
      %p28 = scmp.eq.s32.totalorder %s13, 0
      %p29 = por %p27, %p28
      %p30 = scmp.ne.s32.totalorder %s18, %s19
      %p31 = scmp.eq.s32.totalorder %s14, 1
      %p32 = por %p30, %p31
      %p34 = scmp.ne.s32.totalorder %s19, %s33
      %p35 = scmp.eq.s32.totalorder %s14, 0
      %p36 = por %p34, %p35
      %s37 = ssub.s32 %s8, %s15
      %p38 = scmp.eq.s32.totalorder %s37, 0
      %s40 = sadd.s32 %s39, 1
      %s41 = scalar_select %p38, %s39, %s40
      %p44 = pneg %p38
      %p45 = scmp.eq.s32.totalorder %s8, 1
      %p46 = por %p44, %p45
      %p47 = scmp.ne.s32.totalorder %s39, %s42
      %p48 = scmp.eq.s32.totalorder %s8, 0
      %p49 = por %p47, %p48
      %p50 = scmp.ne.s32.totalorder %s39, %s42
      %p51 = scmp.eq.s32.totalorder %s13, 1
      %p52 = por %p50, %p51
      %p53 = scmp.ne.s32.totalorder %s42, %s43
      %p54 = scmp.eq.s32.totalorder %s13, 0
      %p55 = por %p53, %p54
      %p56 = scmp.ne.s32.totalorder %s42, %s43
      %p57 = scmp.eq.s32.totalorder %s14, 1
      %p58 = por %p56, %p57
      %p60 = scmp.ne.s32.totalorder %s43, %s59
      %p61 = scmp.eq.s32.totalorder %s14, 0
      %p62 = por %p60, %p61
      %s63 = ssub.s32 %s8, %s15
      %p64 = scmp.eq.s32.totalorder %s63, 0
      %s66 = sadd.s32 %s65, 1
      %s67 = scalar_select %p64, %s65, %s66
      %p70 = pneg %p64
      %p71 = scmp.eq.s32.totalorder %s8, 1
      %p72 = por %p70, %p71
      %p73 = scmp.ne.s32.totalorder %s65, %s68
      %p74 = scmp.eq.s32.totalorder %s8, 0
      %p75 = por %p73, %p74
      %p76 = scmp.ne.s32.totalorder %s65, %s68
      %p77 = scmp.eq.s32.totalorder %s13, 1
      %p78 = por %p76, %p77
      %p79 = scmp.ne.s32.totalorder %s68, %s69
      %p80 = scmp.eq.s32.totalorder %s13, 0
      %p81 = por %p79, %p80
      %p82 = scmp.ne.s32.totalorder %s68, %s69
      %p83 = scmp.eq.s32.totalorder %s14, 1
      %p84 = por %p82, %p83
      %p86 = scmp.ne.s32.totalorder %s69, %s85
      %p87 = scmp.eq.s32.totalorder %s14, 0
      %p88 = por %p86, %p87
      %p89 = scmp.le.s32.totalorder 1, %s8
      %p90 = scmp.lt.s32.totalorder %s8, 3
      %p91 = pnand %p89, %p90
      %p92 = pneg %p91
      // Predicated region
      $region9: #{generator_forward.9} parent=5 // pred_check
        _
      $region10: #{generator_forward.9} parent=5 // pred_check_branch
        %94 = sbr.rel (%p91) target = $region12
      $region11: #{generator_forward.9} parent=5 // pred_region
        %s95 = ssub.s32 %s8, 1
        // Predicated region
        $region13: #{generator_forward.9} parent=11 // pred_check
          %p96 = pneg %p29
        $region14: #{generator_forward.9} parent=11 // pred_check_branch
          %98 = sbr.rel (%p96) target = $region16
        $region15: #{generator_forward.9} parent=11 // pred_region
          _
        $region16: #{generator_forward.9} parent=11 // pred_fallthru
          _
      $region12: #{generator_forward.9} parent=5 // pred_fallthru
        _
      %p99 = scmp.lt.s32.totalorder %s8, 2
      // Predicated region
      $region17: #{generator_forward.9} parent=5 // pred_check
        %p100 = pneg %p99
      $region18: #{generator_forward.9} parent=5 // pred_check_branch
        %102 = sbr.rel (%p100) target = $region20
      $region19: #{generator_forward.9} parent=5 // pred_region
        // Predicated region
        $region21: #{generator_forward.9} parent=19 // pred_check
          %p103 = pneg %p49
        $region22: #{generator_forward.9} parent=19 // pred_check_branch
          %105 = sbr.rel (%p103) target = $region24
        $region23: #{generator_forward.9} parent=19 // pred_region
          %s106 = sand.u32 %s39, 1
          %s107 = sand.u32 %s39, 1
          %s108 = smul.addr %s107, 1024
          %s109 = scalar_lea.vmem [#allocation2], %s108
          %s110 = smul.u32 8, %s8
          %s111 = smul.addr %s110, 4
          %s112 = scalar_lea.vmem %s1, %s111
          // Predicated region
          $region25: #{generator_forward.9} parent=23 // pred_check
            _
          $region26: #{generator_forward.9} parent=23 // pred_check_branch
            %114 = sbr.rel (0) target = $region28
          $region27: #{generator_forward.9} parent=23 // pred_region
            // Predicated region
            $region29: #{generator_forward.9} parent=27 // pred_check
              _
            $region30: #{generator_forward.9} parent=27 // pred_check_branch
              %116 = sbr.rel (0) target = $region32
            $region31: #{generator_forward.9} parent=27 // pred_region
              loop: start=0, step=1, limit=1
              $region33: #{generator_forward.9} parent=31 // loop_pre_header
                _
              $region34: #{generator_forward.9} parent=31 // loop_header
                %s118 = sphi 0, %s122
                %p119 = scmp.ge.s32.totalorder %s118, 1
                %s123 = sphi %s112, %s112
                %s124 = sphi %s109, %s109
              $region35: #{generator_forward.9} parent=31 // loop_header_branch
                %121 = sbr.rel (%p119) target = $region39
              $region36: #{generator_forward.9} parent=31 // loop_body
                %v125 = vld [vmem:[%s123] sm:$0xff]
                %126 = vst [vmem:[%s124] sm:$0xff] %v125
                %v127 = vld [vmem:[%s123 + $0x8] sm:$0xff]
                %128 = vst [vmem:[%s124 + $0x8] sm:$0xff] %v127
                %v129 = vld [vmem:[%s123 + $0x10] sm:$0xff]
                %130 = vst [vmem:[%s124 + $0x10] sm:$0xff] %v129
                %v131 = vld [vmem:[%s123 + $0x18] sm:$0xff]
                %132 = vst [vmem:[%s124 + $0x18] sm:$0xff] %v131
                %v133 = vld [vmem:[%s123 + $0x40] sm:$0xff]
                %134 = vst [vmem:[%s124 + $0x20] sm:$0xff] %v133
                %v135 = vld [vmem:[%s123 + $0x48] sm:$0xff]
                %136 = vst [vmem:[%s124 + $0x28] sm:$0xff] %v135
                %v137 = vld [vmem:[%s123 + $0x50] sm:$0xff]
                %138 = vst [vmem:[%s124 + $0x30] sm:$0xff] %v137
                %v139 = vld [vmem:[%s123 + $0x58] sm:$0xff]
                %140 = vst [vmem:[%s124 + $0x38] sm:$0xff] %v139
                %v141 = vld [vmem:[%s123 + $0x80] sm:$0xff]
                %142 = vst [vmem:[%s124 + $0x40] sm:$0xff] %v141
                %v143 = vld [vmem:[%s123 + $0x88] sm:$0xff]
                %144 = vst [vmem:[%s124 + $0x48] sm:$0xff] %v143
                %v145 = vld [vmem:[%s123 + $0x90] sm:$0xff]
                %146 = vst [vmem:[%s124 + $0x50] sm:$0xff] %v145
                %v147 = vld [vmem:[%s123 + $0x98] sm:$0xff]
                %148 = vst [vmem:[%s124 + $0x58] sm:$0xff] %v147
                %v149 = vld [vmem:[%s123 + $0xc0] sm:$0xff]
                %150 = vst [vmem:[%s124 + $0x60] sm:$0xff] %v149
                %v151 = vld [vmem:[%s123 + $0xc8] sm:$0xff]
                %152 = vst [vmem:[%s124 + $0x68] sm:$0xff] %v151
                %v153 = vld [vmem:[%s123 + $0xd0] sm:$0xff]
                %154 = vst [vmem:[%s124 + $0x70] sm:$0xff] %v153
                %v155 = vld [vmem:[%s123 + $0xd8] sm:$0xff]
                %156 = vst [vmem:[%s124 + $0x78] sm:$0xff] %v155
                %v157 = vld [vmem:[%s123 + $0x100] sm:$0xff]
                %158 = vst [vmem:[%s124 + $0x80] sm:$0xff] %v157
                %v159 = vld [vmem:[%s123 + $0x108] sm:$0xff]
                %160 = vst [vmem:[%s124 + $0x88] sm:$0xff] %v159
                %v161 = vld [vmem:[%s123 + $0x110] sm:$0xff]
                %162 = vst [vmem:[%s124 + $0x90] sm:$0xff] %v161
                %v163 = vld [vmem:[%s123 + $0x118] sm:$0xff]
                %164 = vst [vmem:[%s124 + $0x98] sm:$0xff] %v163
                %v165 = vld [vmem:[%s123 + $0x140] sm:$0xff]
                %166 = vst [vmem:[%s124 + $0xa0] sm:$0xff] %v165
                %v167 = vld [vmem:[%s123 + $0x148] sm:$0xff]
                %168 = vst [vmem:[%s124 + $0xa8] sm:$0xff] %v167
                %v169 = vld [vmem:[%s123 + $0x150] sm:$0xff]
                %170 = vst [vmem:[%s124 + $0xb0] sm:$0xff] %v169
                %v171 = vld [vmem:[%s123 + $0x158] sm:$0xff]
                %172 = vst [vmem:[%s124 + $0xb8] sm:$0xff] %v171
                %v173 = vld [vmem:[%s123 + $0x180] sm:$0xff]
                %174 = vst [vmem:[%s124 + $0xc0] sm:$0xff] %v173
                %v175 = vld [vmem:[%s123 + $0x188] sm:$0xff]
                %176 = vst [vmem:[%s124 + $0xc8] sm:$0xff] %v175
                %v177 = vld [vmem:[%s123 + $0x190] sm:$0xff]
                %178 = vst [vmem:[%s124 + $0xd0] sm:$0xff] %v177
                %v179 = vld [vmem:[%s123 + $0x198] sm:$0xff]
                %180 = vst [vmem:[%s124 + $0xd8] sm:$0xff] %v179
                %v181 = vld [vmem:[%s123 + $0x1c0] sm:$0xff]
                %182 = vst [vmem:[%s124 + $0xe0] sm:$0xff] %v181
                %v183 = vld [vmem:[%s123 + $0x1c8] sm:$0xff]
                %184 = vst [vmem:[%s124 + $0xe8] sm:$0xff] %v183
                %v185 = vld [vmem:[%s123 + $0x1d0] sm:$0xff]
                %186 = vst [vmem:[%s124 + $0xf0] sm:$0xff] %v185
                %v187 = vld [vmem:[%s123 + $0x1d8] sm:$0xff]
                %188 = vst [vmem:[%s124 + $0xf8] sm:$0xff] %v187
                %v189 = vld [vmem:[%s123 + $0x200] sm:$0xff]
                %190 = vst [vmem:[%s124 + $0x100] sm:$0xff] %v189
                %v191 = vld [vmem:[%s123 + $0x208] sm:$0xff]
                %192 = vst [vmem:[%s124 + $0x108] sm:$0xff] %v191
                %v193 = vld [vmem:[%s123 + $0x210] sm:$0xff]
                %194 = vst [vmem:[%s124 + $0x110] sm:$0xff] %v193
                %v195 = vld [vmem:[%s123 + $0x218] sm:$0xff]
                %196 = vst [vmem:[%s124 + $0x118] sm:$0xff] %v195
                %v197 = vld [vmem:[%s123 + $0x240] sm:$0xff]
                %198 = vst [vmem:[%s124 + $0x120] sm:$0xff] %v197
                %v199 = vld [vmem:[%s123 + $0x248] sm:$0xff]
                %200 = vst [vmem:[%s124 + $0x128] sm:$0xff] %v199
                %v201 = vld [vmem:[%s123 + $0x250] sm:$0xff]
                %202 = vst [vmem:[%s124 + $0x130] sm:$0xff] %v201
                %v203 = vld [vmem:[%s123 + $0x258] sm:$0xff]
                %204 = vst [vmem:[%s124 + $0x138] sm:$0xff] %v203
                %v205 = vld [vmem:[%s123 + $0x280] sm:$0xff]
                %206 = vst [vmem:[%s124 + $0x140] sm:$0xff] %v205
                %v207 = vld [vmem:[%s123 + $0x288] sm:$0xff]
                %208 = vst [vmem:[%s124 + $0x148] sm:$0xff] %v207
                %v209 = vld [vmem:[%s123 + $0x290] sm:$0xff]
                %210 = vst [vmem:[%s124 + $0x150] sm:$0xff] %v209
                %v211 = vld [vmem:[%s123 + $0x298] sm:$0xff]
                %212 = vst [vmem:[%s124 + $0x158] sm:$0xff] %v211
                %v213 = vld [vmem:[%s123 + $0x2c0] sm:$0xff]
                %214 = vst [vmem:[%s124 + $0x160] sm:$0xff] %v213
                %v215 = vld [vmem:[%s123 + $0x2c8] sm:$0xff]
                %216 = vst [vmem:[%s124 + $0x168] sm:$0xff] %v215
                %v217 = vld [vmem:[%s123 + $0x2d0] sm:$0xff]
                %218 = vst [vmem:[%s124 + $0x170] sm:$0xff] %v217
                %v219 = vld [vmem:[%s123 + $0x2d8] sm:$0xff]
                %220 = vst [vmem:[%s124 + $0x178] sm:$0xff] %v219
                %v221 = vld [vmem:[%s123 + $0x300] sm:$0xff]
                %222 = vst [vmem:[%s124 + $0x180] sm:$0xff] %v221
                %v223 = vld [vmem:[%s123 + $0x308] sm:$0xff]
                %224 = vst [vmem:[%s124 + $0x188] sm:$0xff] %v223
                %v225 = vld [vmem:[%s123 + $0x310] sm:$0xff]
                %226 = vst [vmem:[%s124 + $0x190] sm:$0xff] %v225
                %v227 = vld [vmem:[%s123 + $0x318] sm:$0xff]
                %228 = vst [vmem:[%s124 + $0x198] sm:$0xff] %v227
                %v229 = vld [vmem:[%s123 + $0x340] sm:$0xff]
                %230 = vst [vmem:[%s124 + $0x1a0] sm:$0xff] %v229
                %v231 = vld [vmem:[%s123 + $0x348] sm:$0xff]
                %232 = vst [vmem:[%s124 + $0x1a8] sm:$0xff] %v231
                %v233 = vld [vmem:[%s123 + $0x350] sm:$0xff]
                %234 = vst [vmem:[%s124 + $0x1b0] sm:$0xff] %v233
                %v235 = vld [vmem:[%s123 + $0x358] sm:$0xff]
                %236 = vst [vmem:[%s124 + $0x1b8] sm:$0xff] %v235
                %v237 = vld [vmem:[%s123 + $0x380] sm:$0xff]
                %238 = vst [vmem:[%s124 + $0x1c0] sm:$0xff] %v237
                %v239 = vld [vmem:[%s123 + $0x388] sm:$0xff]
                %240 = vst [vmem:[%s124 + $0x1c8] sm:$0xff] %v239
                %v241 = vld [vmem:[%s123 + $0x390] sm:$0xff]
                %242 = vst [vmem:[%s124 + $0x1d0] sm:$0xff] %v241
                %v243 = vld [vmem:[%s123 + $0x398] sm:$0xff]
                %244 = vst [vmem:[%s124 + $0x1d8] sm:$0xff] %v243
                %v245 = vld [vmem:[%s123 + $0x3c0] sm:$0xff]
                %246 = vst [vmem:[%s124 + $0x1e0] sm:$0xff] %v245
                %v247 = vld [vmem:[%s123 + $0x3c8] sm:$0xff]
                %248 = vst [vmem:[%s124 + $0x1e8] sm:$0xff] %v247
                %v249 = vld [vmem:[%s123 + $0x3d0] sm:$0xff]
                %250 = vst [vmem:[%s124 + $0x1f0] sm:$0xff] %v249
                %v251 = vld [vmem:[%s123 + $0x3d8] sm:$0xff]
                %252 = vst [vmem:[%s124 + $0x1f8] sm:$0xff] %v251
                %v253 = vld [vmem:[%s123 + $0x400] sm:$0xff]
                %254 = vst [vmem:[%s124 + $0x200] sm:$0xff] %v253
                %v255 = vld [vmem:[%s123 + $0x408] sm:$0xff]
                %256 = vst [vmem:[%s124 + $0x208] sm:$0xff] %v255
                %v257 = vld [vmem:[%s123 + $0x410] sm:$0xff]
                %258 = vst [vmem:[%s124 + $0x210] sm:$0xff] %v257
                %v259 = vld [vmem:[%s123 + $0x418] sm:$0xff]
                %260 = vst [vmem:[%s124 + $0x218] sm:$0xff] %v259
                %v261 = vld [vmem:[%s123 + $0x440] sm:$0xff]
                %262 = vst [vmem:[%s124 + $0x220] sm:$0xff] %v261
                %v263 = vld [vmem:[%s123 + $0x448] sm:$0xff]
                %264 = vst [vmem:[%s124 + $0x228] sm:$0xff] %v263
                %v265 = vld [vmem:[%s123 + $0x450] sm:$0xff]
                %266 = vst [vmem:[%s124 + $0x230] sm:$0xff] %v265
                %v267 = vld [vmem:[%s123 + $0x458] sm:$0xff]
                %268 = vst [vmem:[%s124 + $0x238] sm:$0xff] %v267
                %v269 = vld [vmem:[%s123 + $0x480] sm:$0xff]
                %270 = vst [vmem:[%s124 + $0x240] sm:$0xff] %v269
                %v271 = vld [vmem:[%s123 + $0x488] sm:$0xff]
                %272 = vst [vmem:[%s124 + $0x248] sm:$0xff] %v271
                %v273 = vld [vmem:[%s123 + $0x490] sm:$0xff]
                %274 = vst [vmem:[%s124 + $0x250] sm:$0xff] %v273
                %v275 = vld [vmem:[%s123 + $0x498] sm:$0xff]
                %276 = vst [vmem:[%s124 + $0x258] sm:$0xff] %v275
                %v277 = vld [vmem:[%s123 + $0x4c0] sm:$0xff]
                %278 = vst [vmem:[%s124 + $0x260] sm:$0xff] %v277
                %v279 = vld [vmem:[%s123 + $0x4c8] sm:$0xff]
                %280 = vst [vmem:[%s124 + $0x268] sm:$0xff] %v279
                %v281 = vld [vmem:[%s123 + $0x4d0] sm:$0xff]
                %282 = vst [vmem:[%s124 + $0x270] sm:$0xff] %v281
                %v283 = vld [vmem:[%s123 + $0x4d8] sm:$0xff]
                %284 = vst [vmem:[%s124 + $0x278] sm:$0xff] %v283
                %v285 = vld [vmem:[%s123 + $0x500] sm:$0xff]
                %286 = vst [vmem:[%s124 + $0x280] sm:$0xff] %v285
                %v287 = vld [vmem:[%s123 + $0x508] sm:$0xff]
                %288 = vst [vmem:[%s124 + $0x288] sm:$0xff] %v287
                %v289 = vld [vmem:[%s123 + $0x510] sm:$0xff]
                %290 = vst [vmem:[%s124 + $0x290] sm:$0xff] %v289
                %v291 = vld [vmem:[%s123 + $0x518] sm:$0xff]
                %292 = vst [vmem:[%s124 + $0x298] sm:$0xff] %v291
                %v293 = vld [vmem:[%s123 + $0x540] sm:$0xff]
                %294 = vst [vmem:[%s124 + $0x2a0] sm:$0xff] %v293
                %v295 = vld [vmem:[%s123 + $0x548] sm:$0xff]
                %296 = vst [vmem:[%s124 + $0x2a8] sm:$0xff] %v295
                %v297 = vld [vmem:[%s123 + $0x550] sm:$0xff]
                %298 = vst [vmem:[%s124 + $0x2b0] sm:$0xff] %v297
                %v299 = vld [vmem:[%s123 + $0x558] sm:$0xff]
                %300 = vst [vmem:[%s124 + $0x2b8] sm:$0xff] %v299
                %v301 = vld [vmem:[%s123 + $0x580] sm:$0xff]
                %302 = vst [vmem:[%s124 + $0x2c0] sm:$0xff] %v301
                %v303 = vld [vmem:[%s123 + $0x588] sm:$0xff]
                %304 = vst [vmem:[%s124 + $0x2c8] sm:$0xff] %v303
                %v305 = vld [vmem:[%s123 + $0x590] sm:$0xff]
                %306 = vst [vmem:[%s124 + $0x2d0] sm:$0xff] %v305
                %v307 = vld [vmem:[%s123 + $0x598] sm:$0xff]
                %308 = vst [vmem:[%s124 + $0x2d8] sm:$0xff] %v307
                %v309 = vld [vmem:[%s123 + $0x5c0] sm:$0xff]
                %310 = vst [vmem:[%s124 + $0x2e0] sm:$0xff] %v309
                %v311 = vld [vmem:[%s123 + $0x5c8] sm:$0xff]
                %312 = vst [vmem:[%s124 + $0x2e8] sm:$0xff] %v311
                %v313 = vld [vmem:[%s123 + $0x5d0] sm:$0xff]
                %314 = vst [vmem:[%s124 + $0x2f0] sm:$0xff] %v313
                %v315 = vld [vmem:[%s123 + $0x5d8] sm:$0xff]
                %316 = vst [vmem:[%s124 + $0x2f8] sm:$0xff] %v315
                %v317 = vld [vmem:[%s123 + $0x600] sm:$0xff]
                %318 = vst [vmem:[%s124 + $0x300] sm:$0xff] %v317
                %v319 = vld [vmem:[%s123 + $0x608] sm:$0xff]
                %320 = vst [vmem:[%s124 + $0x308] sm:$0xff] %v319
                %v321 = vld [vmem:[%s123 + $0x610] sm:$0xff]
                %322 = vst [vmem:[%s124 + $0x310] sm:$0xff] %v321
                %v323 = vld [vmem:[%s123 + $0x618] sm:$0xff]
                %324 = vst [vmem:[%s124 + $0x318] sm:$0xff] %v323
                %v325 = vld [vmem:[%s123 + $0x640] sm:$0xff]
                %326 = vst [vmem:[%s124 + $0x320] sm:$0xff] %v325
                %v327 = vld [vmem:[%s123 + $0x648] sm:$0xff]
                %328 = vst [vmem:[%s124 + $0x328] sm:$0xff] %v327
                %v329 = vld [vmem:[%s123 + $0x650] sm:$0xff]
                %330 = vst [vmem:[%s124 + $0x330] sm:$0xff] %v329
                %v331 = vld [vmem:[%s123 + $0x658] sm:$0xff]
                %332 = vst [vmem:[%s124 + $0x338] sm:$0xff] %v331
                %v333 = vld [vmem:[%s123 + $0x680] sm:$0xff]
                %334 = vst [vmem:[%s124 + $0x340] sm:$0xff] %v333
                %v335 = vld [vmem:[%s123 + $0x688] sm:$0xff]
                %336 = vst [vmem:[%s124 + $0x348] sm:$0xff] %v335
                %v337 = vld [vmem:[%s123 + $0x690] sm:$0xff]
                %338 = vst [vmem:[%s124 + $0x350] sm:$0xff] %v337
                %v339 = vld [vmem:[%s123 + $0x698] sm:$0xff]
                %340 = vst [vmem:[%s124 + $0x358] sm:$0xff] %v339
                %v341 = vld [vmem:[%s123 + $0x6c0] sm:$0xff]
                %342 = vst [vmem:[%s124 + $0x360] sm:$0xff] %v341
                %v343 = vld [vmem:[%s123 + $0x6c8] sm:$0xff]
                %344 = vst [vmem:[%s124 + $0x368] sm:$0xff] %v343
                %v345 = vld [vmem:[%s123 + $0x6d0] sm:$0xff]
                %346 = vst [vmem:[%s124 + $0x370] sm:$0xff] %v345
                %v347 = vld [vmem:[%s123 + $0x6d8] sm:$0xff]
                %348 = vst [vmem:[%s124 + $0x378] sm:$0xff] %v347
                %v349 = vld [vmem:[%s123 + $0x700] sm:$0xff]
                %350 = vst [vmem:[%s124 + $0x380] sm:$0xff] %v349
                %v351 = vld [vmem:[%s123 + $0x708] sm:$0xff]
                %352 = vst [vmem:[%s124 + $0x388] sm:$0xff] %v351
                %v353 = vld [vmem:[%s123 + $0x710] sm:$0xff]
                %354 = vst [vmem:[%s124 + $0x390] sm:$0xff] %v353
                %v355 = vld [vmem:[%s123 + $0x718] sm:$0xff]
                %356 = vst [vmem:[%s124 + $0x398] sm:$0xff] %v355
                %v357 = vld [vmem:[%s123 + $0x740] sm:$0xff]
                %358 = vst [vmem:[%s124 + $0x3a0] sm:$0xff] %v357
                %v359 = vld [vmem:[%s123 + $0x748] sm:$0xff]
                %360 = vst [vmem:[%s124 + $0x3a8] sm:$0xff] %v359
                %v361 = vld [vmem:[%s123 + $0x750] sm:$0xff]
                %362 = vst [vmem:[%s124 + $0x3b0] sm:$0xff] %v361
                %v363 = vld [vmem:[%s123 + $0x758] sm:$0xff]
                %364 = vst [vmem:[%s124 + $0x3b8] sm:$0xff] %v363
                %v365 = vld [vmem:[%s123 + $0x780] sm:$0xff]
                %366 = vst [vmem:[%s124 + $0x3c0] sm:$0xff] %v365
                %v367 = vld [vmem:[%s123 + $0x788] sm:$0xff]
                %368 = vst [vmem:[%s124 + $0x3c8] sm:$0xff] %v367
                %v369 = vld [vmem:[%s123 + $0x790] sm:$0xff]
                %370 = vst [vmem:[%s124 + $0x3d0] sm:$0xff] %v369
                %v371 = vld [vmem:[%s123 + $0x798] sm:$0xff]
                %372 = vst [vmem:[%s124 + $0x3d8] sm:$0xff] %v371
                %v373 = vld [vmem:[%s123 + $0x7c0] sm:$0xff]
                %374 = vst [vmem:[%s124 + $0x3e0] sm:$0xff] %v373
                %v375 = vld [vmem:[%s123 + $0x7c8] sm:$0xff]
                %376 = vst [vmem:[%s124 + $0x3e8] sm:$0xff] %v375
                %v377 = vld [vmem:[%s123 + $0x7d0] sm:$0xff]
                %378 = vst [vmem:[%s124 + $0x3f0] sm:$0xff] %v377
                %v379 = vld [vmem:[%s123 + $0x7d8] sm:$0xff]
                %380 = vst [vmem:[%s124 + $0x3f8] sm:$0xff] %v379
              $region37: #{generator_forward.9} parent=31 // loop_footer
                %s122 = sadd.s32 1, %s118
              $region38: #{generator_forward.9} parent=31 // loop_footer_branch
                %117 = sbr.rel target = $region34
              $region39: #{generator_forward.9} parent=31 // loop_exit
                _
            $region32: #{generator_forward.9} parent=27 // pred_fallthru
              _
            // Predicated region
            $region40: #{generator_forward.9} parent=27 // pred_check
              _
            $region41: #{generator_forward.9} parent=27 // pred_check_branch
              %382 = sbr.rel target = $region43
            $region42: #{generator_forward.9} parent=27 // pred_region
              _
            $region43: #{generator_forward.9} parent=27 // pred_fallthru
              _
          $region28: #{generator_forward.9} parent=23 // pred_fallthru
            _
          %383 = vnop
        $region24: #{generator_forward.9} parent=19 // pred_fallthru
          _
      $region20: #{generator_forward.9} parent=5 // pred_fallthru
        _
      %p384 = scmp.le.s32.totalorder 1, %s8
      %p385 = scmp.lt.s32.totalorder %s8, 3
      %p386 = pnand %p384, %p385
      %p387 = pneg %p386
      // Predicated region
      $region44: #{generator_forward.9} parent=5 // pred_check
        _
      $region45: #{generator_forward.9} parent=5 // pred_check_branch
        %389 = sbr.rel (%p386) target = $region47
      $region46: #{generator_forward.9} parent=5 // pred_region
        %s390 = ssub.s32 %s8, 1
        %s391 = sand.u32 %s42, 1
        %s392 = sand.u32 %s42, 1
        %s393 = smul.addr %s392, 1024
        %s394 = scalar_lea.vmem [#allocation2], %s393
        // Predicated region
        $region48: #{generator_forward.9} parent=46 // pred_check
          %p395 = pneg %p55
        $region49: #{generator_forward.9} parent=46 // pred_check_branch
          %397 = sbr.rel (%p395) target = $region51
        $region50: #{generator_forward.9} parent=46 // pred_region
          _
        $region51: #{generator_forward.9} parent=46 // pred_fallthru
          _
        %p398 = pneg %p29
        %p399 = pneg %p26
        %s400 = sand.u32 %s42, 1
        %s401 = sand.u32 %s42, 1
        %s402 = smul.addr %s401, 1024
        %s403 = scalar_lea.vmem [#allocation2], %s402
        %p404 = pneg %p55
        %p405 = pneg %p52
        %p406 = pneg %p81
        %p407 = pneg %p78
        %s408 = sand.u32 %s68, 1
        %s409 = sand.u32 %s68, 1
        %s410 = smul.addr %s409, 128
        %s411 = scalar_lea.vmem [#allocation3], %s410
        %s412 = smul.u32 8, %s13
        %s413 = smul.u32 8, %s13
        %v415 = vld [vmem:[%s0] sm:$0x3]
        %v416 = vld [vmem:[%s394] sm:$0xff]
        %v417 = vld [vmem:[%s394 + $0x8] sm:$0xff]
        %v418 = vld [vmem:[%s394 + $0x10] sm:$0xff]
        %v419 = vld [vmem:[%s394 + $0x18] sm:$0xff]
        %v420 = vld [vmem:[%s394 + $0x20] sm:$0xff]
        %v421 = vld [vmem:[%s394 + $0x28] sm:$0xff]
        %v422 = vld [vmem:[%s394 + $0x30] sm:$0xff]
        %v423 = vld [vmem:[%s394 + $0x38] sm:$0xff]
        %v424 = vld [vmem:[%s394 + $0x40] sm:$0xff]
        %v425 = vld [vmem:[%s394 + $0x48] sm:$0xff]
        %v426 = vld [vmem:[%s394 + $0x50] sm:$0xff]
        %v427 = vld [vmem:[%s394 + $0x58] sm:$0xff]
        %v428 = vld [vmem:[%s394 + $0x60] sm:$0xff]
        %v429 = vld [vmem:[%s394 + $0x68] sm:$0xff]
        %v430 = vld [vmem:[%s394 + $0x70] sm:$0xff]
        %v431 = vld [vmem:[%s394 + $0x78] sm:$0xff]
        %v432 = vld [vmem:[%s394 + $0x80] sm:$0xff]
        %v433 = vld [vmem:[%s394 + $0x88] sm:$0xff]
        %v434 = vld [vmem:[%s394 + $0x90] sm:$0xff]
        %v435 = vld [vmem:[%s394 + $0x98] sm:$0xff]
        %v436 = vld [vmem:[%s394 + $0xa0] sm:$0xff]
        %v437 = vld [vmem:[%s394 + $0xa8] sm:$0xff]
        %v438 = vld [vmem:[%s394 + $0xb0] sm:$0xff]
        %v439 = vld [vmem:[%s394 + $0xb8] sm:$0xff]
        %v440 = vld [vmem:[%s394 + $0xc0] sm:$0xff]
        %v441 = vld [vmem:[%s394 + $0xc8] sm:$0xff]
        %v442 = vld [vmem:[%s394 + $0xd0] sm:$0xff]
        %v443 = vld [vmem:[%s394 + $0xd8] sm:$0xff]
        %v444 = vld [vmem:[%s394 + $0xe0] sm:$0xff]
        %v445 = vld [vmem:[%s394 + $0xe8] sm:$0xff]
        %v446 = vld [vmem:[%s394 + $0xf0] sm:$0xff]
        %v447 = vld [vmem:[%s394 + $0xf8] sm:$0xff]
        %v480 = vunpack.c.l.b16 %v416
        %v481 = vunpack.c.h.b16 %v416
        %v482 = vunpack.c.l.b16 %v417
        %v483 = vunpack.c.h.b16 %v417
        %v484 = vunpack.c.l.b16 %v418
        %v485 = vunpack.c.h.b16 %v418
        %v486 = vunpack.c.l.b16 %v419
        %v487 = vunpack.c.h.b16 %v419
        %v488 = vunpack.c.l.b16 %v420
        %v489 = vunpack.c.h.b16 %v420
        %v490 = vunpack.c.l.b16 %v421
        %v491 = vunpack.c.h.b16 %v421
        %v492 = vunpack.c.l.b16 %v422
        %v493 = vunpack.c.h.b16 %v422
        %v494 = vunpack.c.l.b16 %v423
        %v495 = vunpack.c.h.b16 %v423
        %v496 = vunpack.c.l.b16 %v424
        %v497 = vunpack.c.h.b16 %v424
        %v498 = vunpack.c.l.b16 %v425
        %v499 = vunpack.c.h.b16 %v425
        %v500 = vunpack.c.l.b16 %v426
        %v501 = vunpack.c.h.b16 %v426
        %v502 = vunpack.c.l.b16 %v427
        %v503 = vunpack.c.h.b16 %v427
        %v504 = vunpack.c.l.b16 %v428
        %v505 = vunpack.c.h.b16 %v428
        %v506 = vunpack.c.l.b16 %v429
        %v507 = vunpack.c.h.b16 %v429
        %v508 = vunpack.c.l.b16 %v430
        %v509 = vunpack.c.h.b16 %v430
        %v510 = vunpack.c.l.b16 %v431
        %v511 = vunpack.c.h.b16 %v431
        %v512 = vunpack.c.l.b16 %v432
        %v513 = vunpack.c.h.b16 %v432
        %v514 = vunpack.c.l.b16 %v433
        %v515 = vunpack.c.h.b16 %v433
        %v516 = vunpack.c.l.b16 %v434
        %v517 = vunpack.c.h.b16 %v434
        %v518 = vunpack.c.l.b16 %v435
        %v519 = vunpack.c.h.b16 %v435
        %v520 = vunpack.c.l.b16 %v436
        %v521 = vunpack.c.h.b16 %v436
        %v522 = vunpack.c.l.b16 %v437
        %v523 = vunpack.c.h.b16 %v437
        %v524 = vunpack.c.l.b16 %v438
        %v525 = vunpack.c.h.b16 %v438
        %v526 = vunpack.c.l.b16 %v439
        %v527 = vunpack.c.h.b16 %v439
        %v528 = vunpack.c.l.b16 %v440
        %v529 = vunpack.c.h.b16 %v440
        %v530 = vunpack.c.l.b16 %v441
        %v531 = vunpack.c.h.b16 %v441
        %v532 = vunpack.c.l.b16 %v442
        %v533 = vunpack.c.h.b16 %v442
        %v534 = vunpack.c.l.b16 %v443
        %v535 = vunpack.c.h.b16 %v443
        %v536 = vunpack.c.l.b16 %v444
        %v537 = vunpack.c.h.b16 %v444
        %v538 = vunpack.c.l.b16 %v445
        %v539 = vunpack.c.h.b16 %v445
        %v540 = vunpack.c.l.b16 %v446
        %v541 = vunpack.c.h.b16 %v446
        %v542 = vunpack.c.l.b16 %v447
        %v543 = vunpack.c.h.b16 %v447
        %v544 = vpack.c.b16 %v488, %v480
        %v545 = vpack.c.b16 %v489, %v481
        %v546 = vpack.c.b16 %v490, %v482
        %v547 = vpack.c.b16 %v491, %v483
        %v548 = vpack.c.b16 %v492, %v484
        %v549 = vpack.c.b16 %v493, %v485
        %v550 = vpack.c.b16 %v494, %v486
        %v551 = vpack.c.b16 %v495, %v487
        %v552 = vpack.c.b16 %v504, %v496
        %v553 = vpack.c.b16 %v505, %v497
        %v554 = vpack.c.b16 %v506, %v498
        %v555 = vpack.c.b16 %v507, %v499
        %v556 = vpack.c.b16 %v508, %v500
        %v557 = vpack.c.b16 %v509, %v501
        %v558 = vpack.c.b16 %v510, %v502
        %v559 = vpack.c.b16 %v511, %v503
        %v560 = vpack.c.b16 %v520, %v512
        %v561 = vpack.c.b16 %v521, %v513
        %v562 = vpack.c.b16 %v522, %v514
        %v563 = vpack.c.b16 %v523, %v515
        %v564 = vpack.c.b16 %v524, %v516
        %v565 = vpack.c.b16 %v525, %v517
        %v566 = vpack.c.b16 %v526, %v518
        %v567 = vpack.c.b16 %v527, %v519
        %v568 = vpack.c.b16 %v536, %v528
        %v569 = vpack.c.b16 %v537, %v529
        %v570 = vpack.c.b16 %v538, %v530
        %v571 = vpack.c.b16 %v539, %v531
        %v572 = vpack.c.b16 %v540, %v532
        %v573 = vpack.c.b16 %v541, %v533
        %v574 = vpack.c.b16 %v542, %v534
        %v575 = vpack.c.b16 %v543, %v535
        %vm608 = vcmask 523264
        %v610 = vsel %vm608, %v415, 0
        %612 = vmatprep.subr.bf16.mxu0 %v545
        %613 = vmatpush1.bf16.msra.mxu0 %v544
        %614 = vmatprep.subr.bf16.mxu0 %v553
        %615 = vmatpush1.bf16.msra.mxu0 %v552
        %616 = vmatprep.subr.bf16.mxu0 %v561
        %617 = vmatpush1.bf16.msra.mxu0 %v560
        %618 = vmatprep.subr.bf16.mxu0 %v569
        %619 = vmatpush1.bf16.msra.mxu0 %v568
        %620 = vmatprep.subr.bf16.mxu0 0
        %621 = vmatpush1.bf16.msra.mxu0 0
        %622 = vmatprep.subr.bf16.mxu0 0
        %623 = vmatpush1.bf16.msra.mxu0 0
        %624 = vmatprep.subr.bf16.mxu0 0
        %625 = vmatpush1.bf16.msra.mxu0 0
        %626 = vmatprep.subr.bf16.mxu0 0
        %627 = vmatpush1.bf16.msra.mxu0 0
        %628 = vmatprep.subr.bf16.mxu0 0
        %629 = vmatpush1.bf16.msra.mxu0 0
        %630 = vmatprep.subr.bf16.mxu0 0
        %631 = vmatpush1.bf16.msra.mxu0 0
        %632 = vmatprep.subr.bf16.mxu0 0
        %633 = vmatpush1.bf16.msra.mxu0 0
        %634 = vmatprep.subr.bf16.mxu0 0
        %635 = vmatpush1.bf16.msra.mxu0 0
        %636 = vmatprep.subr.bf16.mxu0 0
        %637 = vmatpush1.bf16.msra.mxu0 0
        %638 = vmatprep.subr.bf16.mxu0 0
        %639 = vmatpush1.bf16.msra.mxu0 0
        %640 = vmatprep.subr.bf16.mxu0 0
        %641 = vmatpush1.bf16.msra.mxu0 0
        %642 = vmatprep.subr.bf16.mxu0 0
        %643 = vmatpush1.bf16.msra.mxu0 0
        %644 = vmatprep.mubr.bf16.mxu0 0
        %645 = vmatmul.mubr.bf16.gmra.mrb[0].mxu0 %v610
        %v646 = vpop.f32.mrb[0].mxu0
        %v647 = vadd.f32 0.0, %v646
        %v648 = vpop.f32.mrb[0].mxu0
        %v649 = vadd.f32 0.0, %v648
        %v650 = vpop.f32.mrb[0].mxu0
        %v651 = vpop.f32.mrb[0].mxu0
        %652 = vdwg.mxu0
        %653 = vmatprep.subr.bf16.mxu0 %v547
        %654 = vmatpush1.bf16.msra.mxu0 %v546
        %655 = vmatprep.subr.bf16.mxu0 %v555
        %656 = vmatpush1.bf16.msra.mxu0 %v554
        %657 = vmatprep.subr.bf16.mxu0 %v563
        %658 = vmatpush1.bf16.msra.mxu0 %v562
        %659 = vmatprep.subr.bf16.mxu0 %v571
        %660 = vmatpush1.bf16.msra.mxu0 %v570
        %661 = vmatprep.subr.bf16.mxu0 0
        %662 = vmatpush1.bf16.msra.mxu0 0
        %663 = vmatprep.subr.bf16.mxu0 0
        %664 = vmatpush1.bf16.msra.mxu0 0
        %665 = vmatprep.subr.bf16.mxu0 0
        %666 = vmatpush1.bf16.msra.mxu0 0
        %667 = vmatprep.subr.bf16.mxu0 0
        %668 = vmatpush1.bf16.msra.mxu0 0
        %669 = vmatprep.subr.bf16.mxu0 0
        %670 = vmatpush1.bf16.msra.mxu0 0
        %671 = vmatprep.subr.bf16.mxu0 0
        %672 = vmatpush1.bf16.msra.mxu0 0
        %673 = vmatprep.subr.bf16.mxu0 0
        %674 = vmatpush1.bf16.msra.mxu0 0
        %675 = vmatprep.subr.bf16.mxu0 0
        %676 = vmatpush1.bf16.msra.mxu0 0
        %677 = vmatprep.subr.bf16.mxu0 0
        %678 = vmatpush1.bf16.msra.mxu0 0
        %679 = vmatprep.subr.bf16.mxu0 0
        %680 = vmatpush1.bf16.msra.mxu0 0
        %681 = vmatprep.subr.bf16.mxu0 0
        %682 = vmatpush1.bf16.msra.mxu0 0
        %683 = vmatprep.subr.bf16.mxu0 0
        %684 = vmatpush1.bf16.msra.mxu0 0
        %685 = vmatprep.mubr.bf16.mxu0 0
        %686 = vmatmul.mubr.bf16.gmra.mrb[0].mxu0 %v610
        %v687 = vpop.f32.mrb[0].mxu0
        %v688 = vadd.f32 0.0, %v687
        %v689 = vpop.f32.mrb[0].mxu0
        %v690 = vadd.f32 0.0, %v689
        %v691 = vpop.f32.mrb[0].mxu0
        %v692 = vpop.f32.mrb[0].mxu0
        %693 = vdwg.mxu0
        %694 = vmatprep.subr.bf16.mxu0 %v549
        %695 = vmatpush1.bf16.msra.mxu0 %v548
        %696 = vmatprep.subr.bf16.mxu0 %v557
        %697 = vmatpush1.bf16.msra.mxu0 %v556
        %698 = vmatprep.subr.bf16.mxu0 %v565
        %699 = vmatpush1.bf16.msra.mxu0 %v564
        %700 = vmatprep.subr.bf16.mxu0 %v573
        %701 = vmatpush1.bf16.msra.mxu0 %v572
        %702 = vmatprep.subr.bf16.mxu0 0
        %703 = vmatpush1.bf16.msra.mxu0 0
        %704 = vmatprep.subr.bf16.mxu0 0
        %705 = vmatpush1.bf16.msra.mxu0 0
        %706 = vmatprep.subr.bf16.mxu0 0
        %707 = vmatpush1.bf16.msra.mxu0 0
        %708 = vmatprep.subr.bf16.mxu0 0
        %709 = vmatpush1.bf16.msra.mxu0 0
        %710 = vmatprep.subr.bf16.mxu0 0
        %711 = vmatpush1.bf16.msra.mxu0 0
        %712 = vmatprep.subr.bf16.mxu0 0
        %713 = vmatpush1.bf16.msra.mxu0 0
        %714 = vmatprep.subr.bf16.mxu0 0
        %715 = vmatpush1.bf16.msra.mxu0 0
        %716 = vmatprep.subr.bf16.mxu0 0
        %717 = vmatpush1.bf16.msra.mxu0 0
        %718 = vmatprep.subr.bf16.mxu0 0
        %719 = vmatpush1.bf16.msra.mxu0 0
        %720 = vmatprep.subr.bf16.mxu0 0
        %721 = vmatpush1.bf16.msra.mxu0 0
        %722 = vmatprep.subr.bf16.mxu0 0
        %723 = vmatpush1.bf16.msra.mxu0 0
        %724 = vmatprep.subr.bf16.mxu0 0
        %725 = vmatpush1.bf16.msra.mxu0 0
        %726 = vmatprep.mubr.bf16.mxu0 0
        %727 = vmatmul.mubr.bf16.gmra.mrb[0].mxu0 %v610
        %v728 = vpop.f32.mrb[0].mxu0
        %v729 = vadd.f32 0.0, %v728
        %v730 = vpop.f32.mrb[0].mxu0
        %v731 = vadd.f32 0.0, %v730
        %v732 = vpop.f32.mrb[0].mxu0
        %v733 = vpop.f32.mrb[0].mxu0
        %734 = vdwg.mxu0
        %735 = vmatprep.subr.bf16.mxu0 %v551
        %736 = vmatpush1.bf16.msra.mxu0 %v550
        %737 = vmatprep.subr.bf16.mxu0 %v559
        %738 = vmatpush1.bf16.msra.mxu0 %v558
        %739 = vmatprep.subr.bf16.mxu0 %v567
        %740 = vmatpush1.bf16.msra.mxu0 %v566
        %741 = vmatprep.subr.bf16.mxu0 %v575
        %742 = vmatpush1.bf16.msra.mxu0 %v574
        %743 = vmatprep.subr.bf16.mxu0 0
        %744 = vmatpush1.bf16.msra.mxu0 0
        %745 = vmatprep.subr.bf16.mxu0 0
        %746 = vmatpush1.bf16.msra.mxu0 0
        %747 = vmatprep.subr.bf16.mxu0 0
        %748 = vmatpush1.bf16.msra.mxu0 0
        %749 = vmatprep.subr.bf16.mxu0 0
        %750 = vmatpush1.bf16.msra.mxu0 0
        %751 = vmatprep.subr.bf16.mxu0 0
        %752 = vmatpush1.bf16.msra.mxu0 0
        %753 = vmatprep.subr.bf16.mxu0 0
        %754 = vmatpush1.bf16.msra.mxu0 0
        %755 = vmatprep.subr.bf16.mxu0 0
        %756 = vmatpush1.bf16.msra.mxu0 0
        %757 = vmatprep.subr.bf16.mxu0 0
        %758 = vmatpush1.bf16.msra.mxu0 0
        %759 = vmatprep.subr.bf16.mxu0 0
        %760 = vmatpush1.bf16.msra.mxu0 0
        %761 = vmatprep.subr.bf16.mxu0 0
        %762 = vmatpush1.bf16.msra.mxu0 0
        %763 = vmatprep.subr.bf16.mxu0 0
        %764 = vmatpush1.bf16.msra.mxu0 0
        %765 = vmatprep.subr.bf16.mxu0 0
        %766 = vmatpush1.bf16.msra.mxu0 0
        %767 = vmatprep.mubr.bf16.mxu0 0
        %768 = vmatmul.mubr.bf16.gmra.mrb[0].mxu0 %v610
        %v769 = vpop.f32.mrb[0].mxu0
        %v770 = vadd.f32 0.0, %v769
        %v771 = vpop.f32.mrb[0].mxu0
        %v772 = vadd.f32 0.0, %v771
        %v773 = vpop.f32.mrb[0].mxu0
        %v774 = vpop.f32.mrb[0].mxu0
        %775 = vdwg.mxu0
        %v776 = vtanh.pop %v647
        %v777 = vtanh.pop %v649
        %v778 = vtanh.pop %v688
        %v779 = vtanh.pop %v690
        %v780 = vtanh.pop %v729
        %v781 = vtanh.pop %v731
        %v782 = vtanh.pop %v770
        %v783 = vtanh.pop %v772
        %v792 = vcombine.low %v776, %v777
        %v793 = vcombine.low %v778, %v779
        %v794 = vcombine.low %v780, %v781
        %v795 = vcombine.low %v782, %v783
        %800 = vst [vmem:[%s411] sm:$0x77] %v792
        %801 = vst [vmem:[%s411 + $0x8] sm:$0x77] %v793
        %802 = vst [vmem:[%s411 + $0x10] sm:$0x77] %v794
        %803 = vst [vmem:[%s411 + $0x18] sm:$0x77] %v795
        %s804 = scalar_lea.vmem %s0, 2
        %v805 = vld [vmem:[%s804] sm:$0x3]
        %s806 = scalar_lea.vmem %s394, 256 [#allocation2]
        %v807 = vld [vmem:[%s806] sm:$0xff]
        %v808 = vld [vmem:[%s806 + $0x8] sm:$0xff]
        %v809 = vld [vmem:[%s806 + $0x10] sm:$0xff]
        %v810 = vld [vmem:[%s806 + $0x18] sm:$0xff]
        %v811 = vld [vmem:[%s806 + $0x20] sm:$0xff]
        %v812 = vld [vmem:[%s806 + $0x28] sm:$0xff]
        %v813 = vld [vmem:[%s806 + $0x30] sm:$0xff]
        %v814 = vld [vmem:[%s806 + $0x38] sm:$0xff]
        %v815 = vld [vmem:[%s806 + $0x40] sm:$0xff]
        %v816 = vld [vmem:[%s806 + $0x48] sm:$0xff]
        %v817 = vld [vmem:[%s806 + $0x50] sm:$0xff]
        %v818 = vld [vmem:[%s806 + $0x58] sm:$0xff]
        %v819 = vld [vmem:[%s806 + $0x60] sm:$0xff]
        %v820 = vld [vmem:[%s806 + $0x68] sm:$0xff]
        %v821 = vld [vmem:[%s806 + $0x70] sm:$0xff]
        %v822 = vld [vmem:[%s806 + $0x78] sm:$0xff]
        %v823 = vld [vmem:[%s806 + $0x80] sm:$0xff]
        %v824 = vld [vmem:[%s806 + $0x88] sm:$0xff]
        %v825 = vld [vmem:[%s806 + $0x90] sm:$0xff]
        %v826 = vld [vmem:[%s806 + $0x98] sm:$0xff]
        %v827 = vld [vmem:[%s806 + $0xa0] sm:$0xff]
        %v828 = vld [vmem:[%s806 + $0xa8] sm:$0xff]
        %v829 = vld [vmem:[%s806 + $0xb0] sm:$0xff]
        %v830 = vld [vmem:[%s806 + $0xb8] sm:$0xff]
        %v831 = vld [vmem:[%s806 + $0xc0] sm:$0xff]
        %v832 = vld [vmem:[%s806 + $0xc8] sm:$0xff]
        %v833 = vld [vmem:[%s806 + $0xd0] sm:$0xff]
        %v834 = vld [vmem:[%s806 + $0xd8] sm:$0xff]
        %v835 = vld [vmem:[%s806 + $0xe0] sm:$0xff]
        %v836 = vld [vmem:[%s806 + $0xe8] sm:$0xff]
        %v837 = vld [vmem:[%s806 + $0xf0] sm:$0xff]
        %v838 = vld [vmem:[%s806 + $0xf8] sm:$0xff]
        %v871 = vunpack.c.l.b16 %v807
        %v872 = vunpack.c.h.b16 %v807
        %v873 = vunpack.c.l.b16 %v808
        %v874 = vunpack.c.h.b16 %v808
        %v875 = vunpack.c.l.b16 %v809
        %v876 = vunpack.c.h.b16 %v809
        %v877 = vunpack.c.l.b16 %v810
        %v878 = vunpack.c.h.b16 %v810
        %v879 = vunpack.c.l.b16 %v811
        %v880 = vunpack.c.h.b16 %v811
        %v881 = vunpack.c.l.b16 %v812
        %v882 = vunpack.c.h.b16 %v812
        %v883 = vunpack.c.l.b16 %v813
        %v884 = vunpack.c.h.b16 %v813
        %v885 = vunpack.c.l.b16 %v814
        %v886 = vunpack.c.h.b16 %v814
        %v887 = vunpack.c.l.b16 %v815
        %v888 = vunpack.c.h.b16 %v815
        %v889 = vunpack.c.l.b16 %v816
        %v890 = vunpack.c.h.b16 %v816
        %v891 = vunpack.c.l.b16 %v817
        %v892 = vunpack.c.h.b16 %v817
        %v893 = vunpack.c.l.b16 %v818
        %v894 = vunpack.c.h.b16 %v818
        %v895 = vunpack.c.l.b16 %v819
        %v896 = vunpack.c.h.b16 %v819
        %v897 = vunpack.c.l.b16 %v820
        %v898 = vunpack.c.h.b16 %v820
        %v899 = vunpack.c.l.b16 %v821
        %v900 = vunpack.c.h.b16 %v821
        %v901 = vunpack.c.l.b16 %v822
        %v902 = vunpack.c.h.b16 %v822
        %v903 = vunpack.c.l.b16 %v823
        %v904 = vunpack.c.h.b16 %v823
        %v905 = vunpack.c.l.b16 %v824
        %v906 = vunpack.c.h.b16 %v824
        %v907 = vunpack.c.l.b16 %v825
        %v908 = vunpack.c.h.b16 %v825
        %v909 = vunpack.c.l.b16 %v826
        %v910 = vunpack.c.h.b16 %v826
        %v911 = vunpack.c.l.b16 %v827
        %v912 = vunpack.c.h.b16 %v827
        %v913 = vunpack.c.l.b16 %v828
        %v914 = vunpack.c.h.b16 %v828
        %v915 = vunpack.c.l.b16 %v829
        %v916 = vunpack.c.h.b16 %v829
        %v917 = vunpack.c.l.b16 %v830
        %v918 = vunpack.c.h.b16 %v830
        %v919 = vunpack.c.l.b16 %v831
        %v920 = vunpack.c.h.b16 %v831
        %v921 = vunpack.c.l.b16 %v832
        %v922 = vunpack.c.h.b16 %v832
        %v923 = vunpack.c.l.b16 %v833
        %v924 = vunpack.c.h.b16 %v833
        %v925 = vunpack.c.l.b16 %v834
        %v926 = vunpack.c.h.b16 %v834
        %v927 = vunpack.c.l.b16 %v835
        %v928 = vunpack.c.h.b16 %v835
        %v929 = vunpack.c.l.b16 %v836
        %v930 = vunpack.c.h.b16 %v836
        %v931 = vunpack.c.l.b16 %v837
        %v932 = vunpack.c.h.b16 %v837
        %v933 = vunpack.c.l.b16 %v838
        %v934 = vunpack.c.h.b16 %v838
        %v935 = vpack.c.b16 %v879, %v871
        %v936 = vpack.c.b16 %v880, %v872
        %v937 = vpack.c.b16 %v881, %v873
        %v938 = vpack.c.b16 %v882, %v874
        %v939 = vpack.c.b16 %v883, %v875
        %v940 = vpack.c.b16 %v884, %v876
        %v941 = vpack.c.b16 %v885, %v877
        %v942 = vpack.c.b16 %v886, %v878
        %v943 = vpack.c.b16 %v895, %v887
        %v944 = vpack.c.b16 %v896, %v888
        %v945 = vpack.c.b16 %v897, %v889
        %v946 = vpack.c.b16 %v898, %v890
        %v947 = vpack.c.b16 %v899, %v891
        %v948 = vpack.c.b16 %v900, %v892
        %v949 = vpack.c.b16 %v901, %v893
        %v950 = vpack.c.b16 %v902, %v894
        %v951 = vpack.c.b16 %v911, %v903
        %v952 = vpack.c.b16 %v912, %v904
        %v953 = vpack.c.b16 %v913, %v905
        %v954 = vpack.c.b16 %v914, %v906
        %v955 = vpack.c.b16 %v915, %v907
        %v956 = vpack.c.b16 %v916, %v908
        %v957 = vpack.c.b16 %v917, %v909
        %v958 = vpack.c.b16 %v918, %v910
        %v959 = vpack.c.b16 %v927, %v919
        %v960 = vpack.c.b16 %v928, %v920
        %v961 = vpack.c.b16 %v929, %v921
        %v962 = vpack.c.b16 %v930, %v922
        %v963 = vpack.c.b16 %v931, %v923
        %v964 = vpack.c.b16 %v932, %v924
        %v965 = vpack.c.b16 %v933, %v925
        %v966 = vpack.c.b16 %v934, %v926
        %v1000 = vsel %vm608, %v805, 0
        %1002 = vmatprep.subr.bf16.mxu0 %v936
        %1003 = vmatpush1.bf16.msra.mxu0 %v935
        %1004 = vmatprep.subr.bf16.mxu0 %v944
        %1005 = vmatpush1.bf16.msra.mxu0 %v943
        %1006 = vmatprep.subr.bf16.mxu0 %v952
        %1007 = vmatpush1.bf16.msra.mxu0 %v951
        %1008 = vmatprep.subr.bf16.mxu0 %v960
        %1009 = vmatpush1.bf16.msra.mxu0 %v959
        %1010 = vmatprep.subr.bf16.mxu0 0
        %1011 = vmatpush1.bf16.msra.mxu0 0
        %1012 = vmatprep.subr.bf16.mxu0 0
        %1013 = vmatpush1.bf16.msra.mxu0 0
        %1014 = vmatprep.subr.bf16.mxu0 0
        %1015 = vmatpush1.bf16.msra.mxu0 0
        %1016 = vmatprep.subr.bf16.mxu0 0
        %1017 = vmatpush1.bf16.msra.mxu0 0
        %1018 = vmatprep.subr.bf16.mxu0 0
        %1019 = vmatpush1.bf16.msra.mxu0 0
        %1020 = vmatprep.subr.bf16.mxu0 0
        %1021 = vmatpush1.bf16.msra.mxu0 0
        %1022 = vmatprep.subr.bf16.mxu0 0
        %1023 = vmatpush1.bf16.msra.mxu0 0
        %1024 = vmatprep.subr.bf16.mxu0 0
        %1025 = vmatpush1.bf16.msra.mxu0 0
        %1026 = vmatprep.subr.bf16.mxu0 0
        %1027 = vmatpush1.bf16.msra.mxu0 0
        %1028 = vmatprep.subr.bf16.mxu0 0
        %1029 = vmatpush1.bf16.msra.mxu0 0
        %1030 = vmatprep.subr.bf16.mxu0 0
        %1031 = vmatpush1.bf16.msra.mxu0 0
        %1032 = vmatprep.subr.bf16.mxu0 0
        %1033 = vmatpush1.bf16.msra.mxu0 0
        %1034 = vmatprep.mubr.bf16.mxu0 0
        %1035 = vmatmul.mubr.bf16.gmra.mrb[0].mxu0 %v1000
        %v1036 = vpop.f32.mrb[0].mxu0
        %v1037 = vadd.f32 0.0, %v1036
        %v1038 = vpop.f32.mrb[0].mxu0
        %v1039 = vadd.f32 0.0, %v1038
        %v1040 = vpop.f32.mrb[0].mxu0
        %v1041 = vpop.f32.mrb[0].mxu0
        %1042 = vdwg.mxu0
        %1043 = vmatprep.subr.bf16.mxu0 %v938
        %1044 = vmatpush1.bf16.msra.mxu0 %v937
        %1045 = vmatprep.subr.bf16.mxu0 %v946
        %1046 = vmatpush1.bf16.msra.mxu0 %v945
        %1047 = vmatprep.subr.bf16.mxu0 %v954
        %1048 = vmatpush1.bf16.msra.mxu0 %v953
        %1049 = vmatprep.subr.bf16.mxu0 %v962
        %1050 = vmatpush1.bf16.msra.mxu0 %v961
        %1051 = vmatprep.subr.bf16.mxu0 0
        %1052 = vmatpush1.bf16.msra.mxu0 0
        %1053 = vmatprep.subr.bf16.mxu0 0
        %1054 = vmatpush1.bf16.msra.mxu0 0
        %1055 = vmatprep.subr.bf16.mxu0 0
        %1056 = vmatpush1.bf16.msra.mxu0 0
        %1057 = vmatprep.subr.bf16.mxu0 0
        %1058 = vmatpush1.bf16.msra.mxu0 0
        %1059 = vmatprep.subr.bf16.mxu0 0
        %1060 = vmatpush1.bf16.msra.mxu0 0
        %1061 = vmatprep.subr.bf16.mxu0 0
        %1062 = vmatpush1.bf16.msra.mxu0 0
        %1063 = vmatprep.subr.bf16.mxu0 0
        %1064 = vmatpush1.bf16.msra.mxu0 0
        %1065 = vmatprep.subr.bf16.mxu0 0
        %1066 = vmatpush1.bf16.msra.mxu0 0
        %1067 = vmatprep.subr.bf16.mxu0 0
        %1068 = vmatpush1.bf16.msra.mxu0 0
        %1069 = vmatprep.subr.bf16.mxu0 0
        %1070 = vmatpush1.bf16.msra.mxu0 0
        %1071 = vmatprep.subr.bf16.mxu0 0
        %1072 = vmatpush1.bf16.msra.mxu0 0
        %1073 = vmatprep.subr.bf16.mxu0 0
        %1074 = vmatpush1.bf16.msra.mxu0 0
        %1075 = vmatprep.mubr.bf16.mxu0 0
        %1076 = vmatmul.mubr.bf16.gmra.mrb[0].mxu0 %v1000
        %v1077 = vpop.f32.mrb[0].mxu0
        %v1078 = vadd.f32 0.0, %v1077
        %v1079 = vpop.f32.mrb[0].mxu0
        %v1080 = vadd.f32 0.0, %v1079
        %v1081 = vpop.f32.mrb[0].mxu0
        %v1082 = vpop.f32.mrb[0].mxu0
        %1083 = vdwg.mxu0
        %1084 = vmatprep.subr.bf16.mxu0 %v940
        %1085 = vmatpush1.bf16.msra.mxu0 %v939
        %1086 = vmatprep.subr.bf16.mxu0 %v948
        %1087 = vmatpush1.bf16.msra.mxu0 %v947
        %1088 = vmatprep.subr.bf16.mxu0 %v956
        %1089 = vmatpush1.bf16.msra.mxu0 %v955
        %1090 = vmatprep.subr.bf16.mxu0 %v964
        %1091 = vmatpush1.bf16.msra.mxu0 %v963
        %1092 = vmatprep.subr.bf16.mxu0 0
        %1093 = vmatpush1.bf16.msra.mxu0 0
        %1094 = vmatprep.subr.bf16.mxu0 0
        %1095 = vmatpush1.bf16.msra.mxu0 0
        %1096 = vmatprep.subr.bf16.mxu0 0
        %1097 = vmatpush1.bf16.msra.mxu0 0
        %1098 = vmatprep.subr.bf16.mxu0 0
        %1099 = vmatpush1.bf16.msra.mxu0 0
        %1100 = vmatprep.subr.bf16.mxu0 0
        %1101 = vmatpush1.bf16.msra.mxu0 0
        %1102 = vmatprep.subr.bf16.mxu0 0
        %1103 = vmatpush1.bf16.msra.mxu0 0
        %1104 = vmatprep.subr.bf16.mxu0 0
        %1105 = vmatpush1.bf16.msra.mxu0 0
        %1106 = vmatprep.subr.bf16.mxu0 0
        %1107 = vmatpush1.bf16.msra.mxu0 0
        %1108 = vmatprep.subr.bf16.mxu0 0
        %1109 = vmatpush1.bf16.msra.mxu0 0
        %1110 = vmatprep.subr.bf16.mxu0 0
        %1111 = vmatpush1.bf16.msra.mxu0 0
        %1112 = vmatprep.subr.bf16.mxu0 0
        %1113 = vmatpush1.bf16.msra.mxu0 0
        %1114 = vmatprep.subr.bf16.mxu0 0
        %1115 = vmatpush1.bf16.msra.mxu0 0
        %1116 = vmatprep.mubr.bf16.mxu0 0
        %1117 = vmatmul.mubr.bf16.gmra.mrb[0].mxu0 %v1000
        %v1118 = vpop.f32.mrb[0].mxu0
        %v1119 = vadd.f32 0.0, %v1118
        %v1120 = vpop.f32.mrb[0].mxu0
        %v1121 = vadd.f32 0.0, %v1120
        %v1122 = vpop.f32.mrb[0].mxu0
        %v1123 = vpop.f32.mrb[0].mxu0
        %1124 = vdwg.mxu0
        %1125 = vmatprep.subr.bf16.mxu0 %v942
        %1126 = vmatpush1.bf16.msra.mxu0 %v941
        %1127 = vmatprep.subr.bf16.mxu0 %v950
        %1128 = vmatpush1.bf16.msra.mxu0 %v949
        %1129 = vmatprep.subr.bf16.mxu0 %v958
        %1130 = vmatpush1.bf16.msra.mxu0 %v957
        %1131 = vmatprep.subr.bf16.mxu0 %v966
        %1132 = vmatpush1.bf16.msra.mxu0 %v965
        %1133 = vmatprep.subr.bf16.mxu0 0
        %1134 = vmatpush1.bf16.msra.mxu0 0
        %1135 = vmatprep.subr.bf16.mxu0 0
        %1136 = vmatpush1.bf16.msra.mxu0 0
        %1137 = vmatprep.subr.bf16.mxu0 0
        %1138 = vmatpush1.bf16.msra.mxu0 0
        %1139 = vmatprep.subr.bf16.mxu0 0
        %1140 = vmatpush1.bf16.msra.mxu0 0
        %1141 = vmatprep.subr.bf16.mxu0 0
        %1142 = vmatpush1.bf16.msra.mxu0 0
        %1143 = vmatprep.subr.bf16.mxu0 0
        %1144 = vmatpush1.bf16.msra.mxu0 0
        %1145 = vmatprep.subr.bf16.mxu0 0
        %1146 = vmatpush1.bf16.msra.mxu0 0
        %1147 = vmatprep.subr.bf16.mxu0 0
        %1148 = vmatpush1.bf16.msra.mxu0 0
        %1149 = vmatprep.subr.bf16.mxu0 0
        %1150 = vmatpush1.bf16.msra.mxu0 0
        %1151 = vmatprep.subr.bf16.mxu0 0
        %1152 = vmatpush1.bf16.msra.mxu0 0
        %1153 = vmatprep.subr.bf16.mxu0 0
        %1154 = vmatpush1.bf16.msra.mxu0 0
        %1155 = vmatprep.subr.bf16.mxu0 0
        %1156 = vmatpush1.bf16.msra.mxu0 0
        %1157 = vmatprep.mubr.bf16.mxu0 0
        %1158 = vmatmul.mubr.bf16.gmra.mrb[0].mxu0 %v1000
        %v1159 = vpop.f32.mrb[0].mxu0
        %v1160 = vadd.f32 0.0, %v1159
        %v1161 = vpop.f32.mrb[0].mxu0
        %v1162 = vadd.f32 0.0, %v1161
        %v1163 = vpop.f32.mrb[0].mxu0
        %v1164 = vpop.f32.mrb[0].mxu0
        %1165 = vdwg.mxu0
        %v1166 = vtanh.pop %v1037
        %v1167 = vtanh.pop %v1039
        %v1168 = vtanh.pop %v1078
        %v1169 = vtanh.pop %v1080
        %v1170 = vtanh.pop %v1119
        %v1171 = vtanh.pop %v1121
        %v1172 = vtanh.pop %v1160
        %v1173 = vtanh.pop %v1162
        %v1182 = vcombine.low %v1166, %v1167
        %v1183 = vcombine.low %v1168, %v1169
        %v1184 = vcombine.low %v1170, %v1171
        %v1185 = vcombine.low %v1172, %v1173
        %s1190 = scalar_lea.vmem %s411, 32 [#allocation3]
        %1191 = vst [vmem:[%s1190] sm:$0x77] %v1182
        %1192 = vst [vmem:[%s1190 + $0x8] sm:$0x77] %v1183
        %1193 = vst [vmem:[%s1190 + $0x10] sm:$0x77] %v1184
        %1194 = vst [vmem:[%s1190 + $0x18] sm:$0x77] %v1185
        %s1195 = scalar_lea.vmem %s0, 4
        %v1196 = vld [vmem:[%s1195] sm:$0x3]
        %s1197 = scalar_lea.vmem %s394, 512 [#allocation2]
        %v1198 = vld [vmem:[%s1197] sm:$0xff]
        %v1199 = vld [vmem:[%s1197 + $0x8] sm:$0xff]
        %v1200 = vld [vmem:[%s1197 + $0x10] sm:$0xff]
        %v1201 = vld [vmem:[%s1197 + $0x18] sm:$0xff]
        %v1202 = vld [vmem:[%s1197 + $0x20] sm:$0xff]
        %v1203 = vld [vmem:[%s1197 + $0x28] sm:$0xff]
        %v1204 = vld [vmem:[%s1197 + $0x30] sm:$0xff]
        %v1205 = vld [vmem:[%s1197 + $0x38] sm:$0xff]
        %v1206 = vld [vmem:[%s1197 + $0x40] sm:$0xff]
        %v1207 = vld [vmem:[%s1197 + $0x48] sm:$0xff]
        %v1208 = vld [vmem:[%s1197 + $0x50] sm:$0xff]
        %v1209 = vld [vmem:[%s1197 + $0x58] sm:$0xff]
        %v1210 = vld [vmem:[%s1197 + $0x60] sm:$0xff]
        %v1211 = vld [vmem:[%s1197 + $0x68] sm:$0xff]
        %v1212 = vld [vmem:[%s1197 + $0x70] sm:$0xff]
        %v1213 = vld [vmem:[%s1197 + $0x78] sm:$0xff]
        %v1214 = vld [vmem:[%s1197 + $0x80] sm:$0xff]
        %v1215 = vld [vmem:[%s1197 + $0x88] sm:$0xff]
        %v1216 = vld [vmem:[%s1197 + $0x90] sm:$0xff]
        %v1217 = vld [vmem:[%s1197 + $0x98] sm:$0xff]
        %v1218 = vld [vmem:[%s1197 + $0xa0] sm:$0xff]
        %v1219 = vld [vmem:[%s1197 + $0xa8] sm:$0xff]
        %v1220 = vld [vmem:[%s1197 + $0xb0] sm:$0xff]
        %v1221 = vld [vmem:[%s1197 + $0xb8] sm:$0xff]
        %v1222 = vld [vmem:[%s1197 + $0xc0] sm:$0xff]
        %v1223 = vld [vmem:[%s1197 + $0xc8] sm:$0xff]
        %v1224 = vld [vmem:[%s1197 + $0xd0] sm:$0xff]
        %v1225 = vld [vmem:[%s1197 + $0xd8] sm:$0xff]
        %v1226 = vld [vmem:[%s1197 + $0xe0] sm:$0xff]
        %v1227 = vld [vmem:[%s1197 + $0xe8] sm:$0xff]
        %v1228 = vld [vmem:[%s1197 + $0xf0] sm:$0xff]
        %v1229 = vld [vmem:[%s1197 + $0xf8] sm:$0xff]
        %v1262 = vunpack.c.l.b16 %v1198
        %v1263 = vunpack.c.h.b16 %v1198
        %v1264 = vunpack.c.l.b16 %v1199
        %v1265 = vunpack.c.h.b16 %v1199
        %v1266 = vunpack.c.l.b16 %v1200
        %v1267 = vunpack.c.h.b16 %v1200
        %v1268 = vunpack.c.l.b16 %v1201
        %v1269 = vunpack.c.h.b16 %v1201
        %v1270 = vunpack.c.l.b16 %v1202
        %v1271 = vunpack.c.h.b16 %v1202
        %v1272 = vunpack.c.l.b16 %v1203
        %v1273 = vunpack.c.h.b16 %v1203
        %v1274 = vunpack.c.l.b16 %v1204
        %v1275 = vunpack.c.h.b16 %v1204
        %v1276 = vunpack.c.l.b16 %v1205
        %v1277 = vunpack.c.h.b16 %v1205
        %v1278 = vunpack.c.l.b16 %v1206
        %v1279 = vunpack.c.h.b16 %v1206
        %v1280 = vunpack.c.l.b16 %v1207
        %v1281 = vunpack.c.h.b16 %v1207
        %v1282 = vunpack.c.l.b16 %v1208
        %v1283 = vunpack.c.h.b16 %v1208
        %v1284 = vunpack.c.l.b16 %v1209
        %v1285 = vunpack.c.h.b16 %v1209
        %v1286 = vunpack.c.l.b16 %v1210
        %v1287 = vunpack.c.h.b16 %v1210
        %v1288 = vunpack.c.l.b16 %v1211
        %v1289 = vunpack.c.h.b16 %v1211
        %v1290 = vunpack.c.l.b16 %v1212
        %v1291 = vunpack.c.h.b16 %v1212
        %v1292 = vunpack.c.l.b16 %v1213
        %v1293 = vunpack.c.h.b16 %v1213
        %v1294 = vunpack.c.l.b16 %v1214
        %v1295 = vunpack.c.h.b16 %v1214
        %v1296 = vunpack.c.l.b16 %v1215
        %v1297 = vunpack.c.h.b16 %v1215
        %v1298 = vunpack.c.l.b16 %v1216
        %v1299 = vunpack.c.h.b16 %v1216
        %v1300 = vunpack.c.l.b16 %v1217
        %v1301 = vunpack.c.h.b16 %v1217
        %v1302 = vunpack.c.l.b16 %v1218
        %v1303 = vunpack.c.h.b16 %v1218
        %v1304 = vunpack.c.l.b16 %v1219
        %v1305 = vunpack.c.h.b16 %v1219
        %v1306 = vunpack.c.l.b16 %v1220
        %v1307 = vunpack.c.h.b16 %v1220
        %v1308 = vunpack.c.l.b16 %v1221
        %v1309 = vunpack.c.h.b16 %v1221
        %v1310 = vunpack.c.l.b16 %v1222
        %v1311 = vunpack.c.h.b16 %v1222
        %v1312 = vunpack.c.l.b16 %v1223
        %v1313 = vunpack.c.h.b16 %v1223
        %v1314 = vunpack.c.l.b16 %v1224
        %v1315 = vunpack.c.h.b16 %v1224
        %v1316 = vunpack.c.l.b16 %v1225
        %v1317 = vunpack.c.h.b16 %v1225
        %v1318 = vunpack.c.l.b16 %v1226
        %v1319 = vunpack.c.h.b16 %v1226
        %v1320 = vunpack.c.l.b16 %v1227
        %v1321 = vunpack.c.h.b16 %v1227
        %v1322 = vunpack.c.l.b16 %v1228
        %v1323 = vunpack.c.h.b16 %v1228
        %v1324 = vunpack.c.l.b16 %v1229
        %v1325 = vunpack.c.h.b16 %v1229
        %v1326 = vpack.c.b16 %v1270, %v1262
        %v1327 = vpack.c.b16 %v1271, %v1263
        %v1328 = vpack.c.b16 %v1272, %v1264
        %v1329 = vpack.c.b16 %v1273, %v1265
        %v1330 = vpack.c.b16 %v1274, %v1266
        %v1331 = vpack.c.b16 %v1275, %v1267
        %v1332 = vpack.c.b16 %v1276, %v1268
        %v1333 = vpack.c.b16 %v1277, %v1269
        %v1334 = vpack.c.b16 %v1286, %v1278
        %v1335 = vpack.c.b16 %v1287, %v1279
        %v1336 = vpack.c.b16 %v1288, %v1280
        %v1337 = vpack.c.b16 %v1289, %v1281
        %v1338 = vpack.c.b16 %v1290, %v1282
        %v1339 = vpack.c.b16 %v1291, %v1283
        %v1340 = vpack.c.b16 %v1292, %v1284
        %v1341 = vpack.c.b16 %v1293, %v1285
        %v1342 = vpack.c.b16 %v1302, %v1294
        %v1343 = vpack.c.b16 %v1303, %v1295
        %v1344 = vpack.c.b16 %v1304, %v1296
        %v1345 = vpack.c.b16 %v1305, %v1297
        %v1346 = vpack.c.b16 %v1306, %v1298
        %v1347 = vpack.c.b16 %v1307, %v1299
        %v1348 = vpack.c.b16 %v1308, %v1300
        %v1349 = vpack.c.b16 %v1309, %v1301
        %v1350 = vpack.c.b16 %v1318, %v1310
        %v1351 = vpack.c.b16 %v1319, %v1311
        %v1352 = vpack.c.b16 %v1320, %v1312
        %v1353 = vpack.c.b16 %v1321, %v1313
        %v1354 = vpack.c.b16 %v1322, %v1314
        %v1355 = vpack.c.b16 %v1323, %v1315
        %v1356 = vpack.c.b16 %v1324, %v1316
        %v1357 = vpack.c.b16 %v1325, %v1317
        %v1391 = vsel %vm608, %v1196, 0
        %1393 = vmatprep.subr.bf16.mxu0 %v1327
        %1394 = vmatpush1.bf16.msra.mxu0 %v1326
        %1395 = vmatprep.subr.bf16.mxu0 %v1335
        %1396 = vmatpush1.bf16.msra.mxu0 %v1334
        %1397 = vmatprep.subr.bf16.mxu0 %v1343
        %1398 = vmatpush1.bf16.msra.mxu0 %v1342
        %1399 = vmatprep.subr.bf16.mxu0 %v1351
        %1400 = vmatpush1.bf16.msra.mxu0 %v1350
        %1401 = vmatprep.subr.bf16.mxu0 0
        %1402 = vmatpush1.bf16.msra.mxu0 0
        %1403 = vmatprep.subr.bf16.mxu0 0
        %1404 = vmatpush1.bf16.msra.mxu0 0
        %1405 = vmatprep.subr.bf16.mxu0 0
        %1406 = vmatpush1.bf16.msra.mxu0 0
        %1407 = vmatprep.subr.bf16.mxu0 0
        %1408 = vmatpush1.bf16.msra.mxu0 0
        %1409 = vmatprep.subr.bf16.mxu0 0
        %1410 = vmatpush1.bf16.msra.mxu0 0
        %1411 = vmatprep.subr.bf16.mxu0 0
        %1412 = vmatpush1.bf16.msra.mxu0 0
        %1413 = vmatprep.subr.bf16.mxu0 0
        %1414 = vmatpush1.bf16.msra.mxu0 0
        %1415 = vmatprep.subr.bf16.mxu0 0
        %1416 = vmatpush1.bf16.msra.mxu0 0
        %1417 = vmatprep.subr.bf16.mxu0 0
        %1418 = vmatpush1.bf16.msra.mxu0 0
        %1419 = vmatprep.subr.bf16.mxu0 0
        %1420 = vmatpush1.bf16.msra.mxu0 0
        %1421 = vmatprep.subr.bf16.mxu0 0
        %1422 = vmatpush1.bf16.msra.mxu0 0
        %1423 = vmatprep.subr.bf16.mxu0 0
        %1424 = vmatpush1.bf16.msra.mxu0 0
        %1425 = vmatprep.mubr.bf16.mxu0 0
        %1426 = vmatmul.mubr.bf16.gmra.mrb[0].mxu0 %v1391
        %v1427 = vpop.f32.mrb[0].mxu0
        %v1428 = vadd.f32 0.0, %v1427
        %v1429 = vpop.f32.mrb[0].mxu0
        %v1430 = vadd.f32 0.0, %v1429
        %v1431 = vpop.f32.mrb[0].mxu0
        %v1432 = vpop.f32.mrb[0].mxu0
        %1433 = vdwg.mxu0
        %1434 = vmatprep.subr.bf16.mxu0 %v1329
        %1435 = vmatpush1.bf16.msra.mxu0 %v1328
        %1436 = vmatprep.subr.bf16.mxu0 %v1337
        %1437 = vmatpush1.bf16.msra.mxu0 %v1336
        %1438 = vmatprep.subr.bf16.mxu0 %v1345
        %1439 = vmatpush1.bf16.msra.mxu0 %v1344
        %1440 = vmatprep.subr.bf16.mxu0 %v1353
        %1441 = vmatpush1.bf16.msra.mxu0 %v1352
        %1442 = vmatprep.subr.bf16.mxu0 0
        %1443 = vmatpush1.bf16.msra.mxu0 0
        %1444 = vmatprep.subr.bf16.mxu0 0
        %1445 = vmatpush1.bf16.msra.mxu0 0
        %1446 = vmatprep.subr.bf16.mxu0 0
        %1447 = vmatpush1.bf16.msra.mxu0 0
        %1448 = vmatprep.subr.bf16.mxu0 0
        %1449 = vmatpush1.bf16.msra.mxu0 0
        %1450 = vmatprep.subr.bf16.mxu0 0
        %1451 = vmatpush1.bf16.msra.mxu0 0
        %1452 = vmatprep.subr.bf16.mxu0 0
        %1453 = vmatpush1.bf16.msra.mxu0 0
        %1454 = vmatprep.subr.bf16.mxu0 0
        %1455 = vmatpush1.bf16.msra.mxu0 0
        %1456 = vmatprep.subr.bf16.mxu0 0
        %1457 = vmatpush1.bf16.msra.mxu0 0
        %1458 = vmatprep.subr.bf16.mxu0 0
        %1459 = vmatpush1.bf16.msra.mxu0 0
        %1460 = vmatprep.subr.bf16.mxu0 0
        %1461 = vmatpush1.bf16.msra.mxu0 0
        %1462 = vmatprep.subr.bf16.mxu0 0
        %1463 = vmatpush1.bf16.msra.mxu0 0
        %1464 = vmatprep.subr.bf16.mxu0 0
        %1465 = vmatpush1.bf16.msra.mxu0 0
        %1466 = vmatprep.mubr.bf16.mxu0 0
        %1467 = vmatmul.mubr.bf16.gmra.mrb[0].mxu0 %v1391
        %v1468 = vpop.f32.mrb[0].mxu0
        %v1469 = vadd.f32 0.0, %v1468
        %v1470 = vpop.f32.mrb[0].mxu0
        %v1471 = vadd.f32 0.0, %v1470
        %v1472 = vpop.f32.mrb[0].mxu0
        %v1473 = vpop.f32.mrb[0].mxu0
        %1474 = vdwg.mxu0
        %1475 = vmatprep.subr.bf16.mxu0 %v1331
        %1476 = vmatpush1.bf16.msra.mxu0 %v1330
        %1477 = vmatprep.subr.bf16.mxu0 %v1339
        %1478 = vmatpush1.bf16.msra.mxu0 %v1338
        %1479 = vmatprep.subr.bf16.mxu0 %v1347
        %1480 = vmatpush1.bf16.msra.mxu0 %v1346
        %1481 = vmatprep.subr.bf16.mxu0 %v1355
        %1482 = vmatpush1.bf16.msra.mxu0 %v1354
        %1483 = vmatprep.subr.bf16.mxu0 0
        %1484 = vmatpush1.bf16.msra.mxu0 0
        %1485 = vmatprep.subr.bf16.mxu0 0
        %1486 = vmatpush1.bf16.msra.mxu0 0
        %1487 = vmatprep.subr.bf16.mxu0 0
        %1488 = vmatpush1.bf16.msra.mxu0 0
        %1489 = vmatprep.subr.bf16.mxu0 0
        %1490 = vmatpush1.bf16.msra.mxu0 0
        %1491 = vmatprep.subr.bf16.mxu0 0
        %1492 = vmatpush1.bf16.msra.mxu0 0
        %1493 = vmatprep.subr.bf16.mxu0 0
        %1494 = vmatpush1.bf16.msra.mxu0 0
        %1495 = vmatprep.subr.bf16.mxu0 0
        %1496 = vmatpush1.bf16.msra.mxu0 0
        %1497 = vmatprep.subr.bf16.mxu0 0
        %1498 = vmatpush1.bf16.msra.mxu0 0
        %1499 = vmatprep.subr.bf16.mxu0 0
        %1500 = vmatpush1.bf16.msra.mxu0 0
        %1501 = vmatprep.subr.bf16.mxu0 0
        %1502 = vmatpush1.bf16.msra.mxu0 0
        %1503 = vmatprep.subr.bf16.mxu0 0
        %1504 = vmatpush1.bf16.msra.mxu0 0
        %1505 = vmatprep.subr.bf16.mxu0 0
        %1506 = vmatpush1.bf16.msra.mxu0 0
        %1507 = vmatprep.mubr.bf16.mxu0 0
        %1508 = vmatmul.mubr.bf16.gmra.mrb[0].mxu0 %v1391
        %v1509 = vpop.f32.mrb[0].mxu0
        %v1510 = vadd.f32 0.0, %v1509
        %v1511 = vpop.f32.mrb[0].mxu0
        %v1512 = vadd.f32 0.0, %v1511
        %v1513 = vpop.f32.mrb[0].mxu0
        %v1514 = vpop.f32.mrb[0].mxu0
        %1515 = vdwg.mxu0
        %1516 = vmatprep.subr.bf16.mxu0 %v1333
        %1517 = vmatpush1.bf16.msra.mxu0 %v1332
        %1518 = vmatprep.subr.bf16.mxu0 %v1341
        %1519 = vmatpush1.bf16.msra.mxu0 %v1340
        %1520 = vmatprep.subr.bf16.mxu0 %v1349
        %1521 = vmatpush1.bf16.msra.mxu0 %v1348
        %1522 = vmatprep.subr.bf16.mxu0 %v1357
        %1523 = vmatpush1.bf16.msra.mxu0 %v1356
        %1524 = vmatprep.subr.bf16.mxu0 0
        %1525 = vmatpush1.bf16.msra.mxu0 0
        %1526 = vmatprep.subr.bf16.mxu0 0
        %1527 = vmatpush1.bf16.msra.mxu0 0
        %1528 = vmatprep.subr.bf16.mxu0 0
        %1529 = vmatpush1.bf16.msra.mxu0 0
        %1530 = vmatprep.subr.bf16.mxu0 0
        %1531 = vmatpush1.bf16.msra.mxu0 0
        %1532 = vmatprep.subr.bf16.mxu0 0
        %1533 = vmatpush1.bf16.msra.mxu0 0
        %1534 = vmatprep.subr.bf16.mxu0 0
        %1535 = vmatpush1.bf16.msra.mxu0 0
        %1536 = vmatprep.subr.bf16.mxu0 0
        %1537 = vmatpush1.bf16.msra.mxu0 0
        %1538 = vmatprep.subr.bf16.mxu0 0
        %1539 = vmatpush1.bf16.msra.mxu0 0
        %1540 = vmatprep.subr.bf16.mxu0 0
        %1541 = vmatpush1.bf16.msra.mxu0 0
        %1542 = vmatprep.subr.bf16.mxu0 0
        %1543 = vmatpush1.bf16.msra.mxu0 0
        %1544 = vmatprep.subr.bf16.mxu0 0
        %1545 = vmatpush1.bf16.msra.mxu0 0
        %1546 = vmatprep.subr.bf16.mxu0 0
        %1547 = vmatpush1.bf16.msra.mxu0 0
        %1548 = vmatprep.mubr.bf16.mxu0 0
        %1549 = vmatmul.mubr.bf16.gmra.mrb[0].mxu0 %v1391
        %v1550 = vpop.f32.mrb[0].mxu0
        %v1551 = vadd.f32 0.0, %v1550
        %v1552 = vpop.f32.mrb[0].mxu0
        %v1553 = vadd.f32 0.0, %v1552
        %v1554 = vpop.f32.mrb[0].mxu0
        %v1555 = vpop.f32.mrb[0].mxu0
        %1556 = vdwg.mxu0
        %v1557 = vtanh.pop %v1428
        %v1558 = vtanh.pop %v1430
        %v1559 = vtanh.pop %v1469
        %v1560 = vtanh.pop %v1471
        %v1561 = vtanh.pop %v1510
        %v1562 = vtanh.pop %v1512
        %v1563 = vtanh.pop %v1551
        %v1564 = vtanh.pop %v1553
        %v1573 = vcombine.low %v1557, %v1558
        %v1574 = vcombine.low %v1559, %v1560
        %v1575 = vcombine.low %v1561, %v1562
        %v1576 = vcombine.low %v1563, %v1564
        %s1581 = scalar_lea.vmem %s411, 64 [#allocation3]
        %1582 = vst [vmem:[%s1581] sm:$0x77] %v1573
        %1583 = vst [vmem:[%s1581 + $0x8] sm:$0x77] %v1574
        %1584 = vst [vmem:[%s1581 + $0x10] sm:$0x77] %v1575
        %1585 = vst [vmem:[%s1581 + $0x18] sm:$0x77] %v1576
        %s1586 = scalar_lea.vmem %s0, 6
        %v1587 = vld [vmem:[%s1586] sm:$0x3]
        %s1588 = scalar_lea.vmem %s394, 768 [#allocation2]
        %v1589 = vld [vmem:[%s1588] sm:$0xff]
        %v1590 = vld [vmem:[%s1588 + $0x8] sm:$0xff]
        %v1591 = vld [vmem:[%s1588 + $0x10] sm:$0xff]
        %v1592 = vld [vmem:[%s1588 + $0x18] sm:$0xff]
        %v1593 = vld [vmem:[%s1588 + $0x20] sm:$0xff]
        %v1594 = vld [vmem:[%s1588 + $0x28] sm:$0xff]
        %v1595 = vld [vmem:[%s1588 + $0x30] sm:$0xff]
        %v1596 = vld [vmem:[%s1588 + $0x38] sm:$0xff]
        %v1597 = vld [vmem:[%s1588 + $0x40] sm:$0xff]
        %v1598 = vld [vmem:[%s1588 + $0x48] sm:$0xff]
        %v1599 = vld [vmem:[%s1588 + $0x50] sm:$0xff]
        %v1600 = vld [vmem:[%s1588 + $0x58] sm:$0xff]
        %v1601 = vld [vmem:[%s1588 + $0x60] sm:$0xff]
        %v1602 = vld [vmem:[%s1588 + $0x68] sm:$0xff]
        %v1603 = vld [vmem:[%s1588 + $0x70] sm:$0xff]
        %v1604 = vld [vmem:[%s1588 + $0x78] sm:$0xff]
        %v1605 = vld [vmem:[%s1588 + $0x80] sm:$0xff]
        %v1606 = vld [vmem:[%s1588 + $0x88] sm:$0xff]
        %v1607 = vld [vmem:[%s1588 + $0x90] sm:$0xff]
        %v1608 = vld [vmem:[%s1588 + $0x98] sm:$0xff]
        %v1609 = vld [vmem:[%s1588 + $0xa0] sm:$0xff]
        %v1610 = vld [vmem:[%s1588 + $0xa8] sm:$0xff]
        %v1611 = vld [vmem:[%s1588 + $0xb0] sm:$0xff]
        %v1612 = vld [vmem:[%s1588 + $0xb8] sm:$0xff]
        %v1613 = vld [vmem:[%s1588 + $0xc0] sm:$0xff]
        %v1614 = vld [vmem:[%s1588 + $0xc8] sm:$0xff]
        %v1615 = vld [vmem:[%s1588 + $0xd0] sm:$0xff]
        %v1616 = vld [vmem:[%s1588 + $0xd8] sm:$0xff]
        %v1617 = vld [vmem:[%s1588 + $0xe0] sm:$0xff]
        %v1618 = vld [vmem:[%s1588 + $0xe8] sm:$0xff]
        %v1619 = vld [vmem:[%s1588 + $0xf0] sm:$0xff]
        %v1620 = vld [vmem:[%s1588 + $0xf8] sm:$0xff]
        %v1653 = vunpack.c.l.b16 %v1589
        %v1654 = vunpack.c.h.b16 %v1589
        %v1655 = vunpack.c.l.b16 %v1590
        %v1656 = vunpack.c.h.b16 %v1590
        %v1657 = vunpack.c.l.b16 %v1591
        %v1658 = vunpack.c.h.b16 %v1591
        %v1659 = vunpack.c.l.b16 %v1592
        %v1660 = vunpack.c.h.b16 %v1592
        %v1661 = vunpack.c.l.b16 %v1593
        %v1662 = vunpack.c.h.b16 %v1593
        %v1663 = vunpack.c.l.b16 %v1594
        %v1664 = vunpack.c.h.b16 %v1594
        %v1665 = vunpack.c.l.b16 %v1595
        %v1666 = vunpack.c.h.b16 %v1595
        %v1667 = vunpack.c.l.b16 %v1596
        %v1668 = vunpack.c.h.b16 %v1596
        %v1669 = vunpack.c.l.b16 %v1597
        %v1670 = vunpack.c.h.b16 %v1597
        %v1671 = vunpack.c.l.b16 %v1598
        %v1672 = vunpack.c.h.b16 %v1598
        %v1673 = vunpack.c.l.b16 %v1599
        %v1674 = vunpack.c.h.b16 %v1599
        %v1675 = vunpack.c.l.b16 %v1600
        %v1676 = vunpack.c.h.b16 %v1600
        %v1677 = vunpack.c.l.b16 %v1601
        %v1678 = vunpack.c.h.b16 %v1601
        %v1679 = vunpack.c.l.b16 %v1602
        %v1680 = vunpack.c.h.b16 %v1602
        %v1681 = vunpack.c.l.b16 %v1603
        %v1682 = vunpack.c.h.b16 %v1603
        %v1683 = vunpack.c.l.b16 %v1604
        %v1684 = vunpack.c.h.b16 %v1604
        %v1685 = vunpack.c.l.b16 %v1605
        %v1686 = vunpack.c.h.b16 %v1605
        %v1687 = vunpack.c.l.b16 %v1606
        %v1688 = vunpack.c.h.b16 %v1606
        %v1689 = vunpack.c.l.b16 %v1607
        %v1690 = vunpack.c.h.b16 %v1607
        %v1691 = vunpack.c.l.b16 %v1608
        %v1692 = vunpack.c.h.b16 %v1608
        %v1693 = vunpack.c.l.b16 %v1609
        %v1694 = vunpack.c.h.b16 %v1609
        %v1695 = vunpack.c.l.b16 %v1610
        %v1696 = vunpack.c.h.b16 %v1610
        %v1697 = vunpack.c.l.b16 %v1611
        %v1698 = vunpack.c.h.b16 %v1611
        %v1699 = vunpack.c.l.b16 %v1612
        %v1700 = vunpack.c.h.b16 %v1612
        %v1701 = vunpack.c.l.b16 %v1613
        %v1702 = vunpack.c.h.b16 %v1613
        %v1703 = vunpack.c.l.b16 %v1614
        %v1704 = vunpack.c.h.b16 %v1614
        %v1705 = vunpack.c.l.b16 %v1615
        %v1706 = vunpack.c.h.b16 %v1615
        %v1707 = vunpack.c.l.b16 %v1616
        %v1708 = vunpack.c.h.b16 %v1616
        %v1709 = vunpack.c.l.b16 %v1617
        %v1710 = vunpack.c.h.b16 %v1617
        %v1711 = vunpack.c.l.b16 %v1618
        %v1712 = vunpack.c.h.b16 %v1618
        %v1713 = vunpack.c.l.b16 %v1619
        %v1714 = vunpack.c.h.b16 %v1619
        %v1715 = vunpack.c.l.b16 %v1620
        %v1716 = vunpack.c.h.b16 %v1620
        %v1717 = vpack.c.b16 %v1661, %v1653
        %v1718 = vpack.c.b16 %v1662, %v1654
        %v1719 = vpack.c.b16 %v1663, %v1655
        %v1720 = vpack.c.b16 %v1664, %v1656
        %v1721 = vpack.c.b16 %v1665, %v1657
        %v1722 = vpack.c.b16 %v1666, %v1658
        %v1723 = vpack.c.b16 %v1667, %v1659
        %v1724 = vpack.c.b16 %v1668, %v1660
        %v1725 = vpack.c.b16 %v1677, %v1669
        %v1726 = vpack.c.b16 %v1678, %v1670
        %v1727 = vpack.c.b16 %v1679, %v1671
        %v1728 = vpack.c.b16 %v1680, %v1672
        %v1729 = vpack.c.b16 %v1681, %v1673
        %v1730 = vpack.c.b16 %v1682, %v1674
        %v1731 = vpack.c.b16 %v1683, %v1675
        %v1732 = vpack.c.b16 %v1684, %v1676
        %v1733 = vpack.c.b16 %v1693, %v1685
        %v1734 = vpack.c.b16 %v1694, %v1686
        %v1735 = vpack.c.b16 %v1695, %v1687
        %v1736 = vpack.c.b16 %v1696, %v1688
        %v1737 = vpack.c.b16 %v1697, %v1689
        %v1738 = vpack.c.b16 %v1698, %v1690
        %v1739 = vpack.c.b16 %v1699, %v1691
        %v1740 = vpack.c.b16 %v1700, %v1692
        %v1741 = vpack.c.b16 %v1709, %v1701
        %v1742 = vpack.c.b16 %v1710, %v1702
        %v1743 = vpack.c.b16 %v1711, %v1703
        %v1744 = vpack.c.b16 %v1712, %v1704
        %v1745 = vpack.c.b16 %v1713, %v1705
        %v1746 = vpack.c.b16 %v1714, %v1706
        %v1747 = vpack.c.b16 %v1715, %v1707
        %v1748 = vpack.c.b16 %v1716, %v1708
        %v1782 = vsel %vm608, %v1587, 0
        %1784 = vmatprep.subr.bf16.mxu0 %v1718
        %1785 = vmatpush1.bf16.msra.mxu0 %v1717
        %1786 = vmatprep.subr.bf16.mxu0 %v1726
        %1787 = vmatpush1.bf16.msra.mxu0 %v1725
        %1788 = vmatprep.subr.bf16.mxu0 %v1734
        %1789 = vmatpush1.bf16.msra.mxu0 %v1733
        %1790 = vmatprep.subr.bf16.mxu0 %v1742
        %1791 = vmatpush1.bf16.msra.mxu0 %v1741
        %1792 = vmatprep.subr.bf16.mxu0 0
        %1793 = vmatpush1.bf16.msra.mxu0 0
        %1794 = vmatprep.subr.bf16.mxu0 0
        %1795 = vmatpush1.bf16.msra.mxu0 0
        %1796 = vmatprep.subr.bf16.mxu0 0
        %1797 = vmatpush1.bf16.msra.mxu0 0
        %1798 = vmatprep.subr.bf16.mxu0 0
        %1799 = vmatpush1.bf16.msra.mxu0 0
        %1800 = vmatprep.subr.bf16.mxu0 0
        %1801 = vmatpush1.bf16.msra.mxu0 0
        %1802 = vmatprep.subr.bf16.mxu0 0
        %1803 = vmatpush1.bf16.msra.mxu0 0
        %1804 = vmatprep.subr.bf16.mxu0 0
        %1805 = vmatpush1.bf16.msra.mxu0 0
        %1806 = vmatprep.subr.bf16.mxu0 0
        %1807 = vmatpush1.bf16.msra.mxu0 0
        %1808 = vmatprep.subr.bf16.mxu0 0
        %1809 = vmatpush1.bf16.msra.mxu0 0
        %1810 = vmatprep.subr.bf16.mxu0 0
        %1811 = vmatpush1.bf16.msra.mxu0 0
        %1812 = vmatprep.subr.bf16.mxu0 0
        %1813 = vmatpush1.bf16.msra.mxu0 0
        %1814 = vmatprep.subr.bf16.mxu0 0
        %1815 = vmatpush1.bf16.msra.mxu0 0
        %1816 = vmatprep.mubr.bf16.mxu0 0
        %1817 = vmatmul.mubr.bf16.gmra.mrb[0].mxu0 %v1782
        %v1818 = vpop.f32.mrb[0].mxu0
        %v1819 = vadd.f32 0.0, %v1818
        %v1820 = vpop.f32.mrb[0].mxu0
        %v1821 = vadd.f32 0.0, %v1820
        %v1822 = vpop.f32.mrb[0].mxu0
        %v1823 = vpop.f32.mrb[0].mxu0
        %1824 = vdwg.mxu0
        %1825 = vmatprep.subr.bf16.mxu0 %v1720
        %1826 = vmatpush1.bf16.msra.mxu0 %v1719
        %1827 = vmatprep.subr.bf16.mxu0 %v1728
        %1828 = vmatpush1.bf16.msra.mxu0 %v1727
        %1829 = vmatprep.subr.bf16.mxu0 %v1736
        %1830 = vmatpush1.bf16.msra.mxu0 %v1735
        %1831 = vmatprep.subr.bf16.mxu0 %v1744
        %1832 = vmatpush1.bf16.msra.mxu0 %v1743
        %1833 = vmatprep.subr.bf16.mxu0 0
        %1834 = vmatpush1.bf16.msra.mxu0 0
        %1835 = vmatprep.subr.bf16.mxu0 0
        %1836 = vmatpush1.bf16.msra.mxu0 0
        %1837 = vmatprep.subr.bf16.mxu0 0
        %1838 = vmatpush1.bf16.msra.mxu0 0
        %1839 = vmatprep.subr.bf16.mxu0 0
        %1840 = vmatpush1.bf16.msra.mxu0 0
        %1841 = vmatprep.subr.bf16.mxu0 0
        %1842 = vmatpush1.bf16.msra.mxu0 0
        %1843 = vmatprep.subr.bf16.mxu0 0
        %1844 = vmatpush1.bf16.msra.mxu0 0
        %1845 = vmatprep.subr.bf16.mxu0 0
        %1846 = vmatpush1.bf16.msra.mxu0 0
        %1847 = vmatprep.subr.bf16.mxu0 0
        %1848 = vmatpush1.bf16.msra.mxu0 0
        %1849 = vmatprep.subr.bf16.mxu0 0
        %1850 = vmatpush1.bf16.msra.mxu0 0
        %1851 = vmatprep.subr.bf16.mxu0 0
        %1852 = vmatpush1.bf16.msra.mxu0 0
        %1853 = vmatprep.subr.bf16.mxu0 0
        %1854 = vmatpush1.bf16.msra.mxu0 0
        %1855 = vmatprep.subr.bf16.mxu0 0
        %1856 = vmatpush1.bf16.msra.mxu0 0
        %1857 = vmatprep.mubr.bf16.mxu0 0
        %1858 = vmatmul.mubr.bf16.gmra.mrb[0].mxu0 %v1782
        %v1859 = vpop.f32.mrb[0].mxu0
        %v1860 = vadd.f32 0.0, %v1859
        %v1861 = vpop.f32.mrb[0].mxu0
        %v1862 = vadd.f32 0.0, %v1861
        %v1863 = vpop.f32.mrb[0].mxu0
        %v1864 = vpop.f32.mrb[0].mxu0
        %1865 = vdwg.mxu0
        %1866 = vmatprep.subr.bf16.mxu0 %v1722
        %1867 = vmatpush1.bf16.msra.mxu0 %v1721
        %1868 = vmatprep.subr.bf16.mxu0 %v1730
        %1869 = vmatpush1.bf16.msra.mxu0 %v1729
        %1870 = vmatprep.subr.bf16.mxu0 %v1738
        %1871 = vmatpush1.bf16.msra.mxu0 %v1737
        %1872 = vmatprep.subr.bf16.mxu0 %v1746
        %1873 = vmatpush1.bf16.msra.mxu0 %v1745
        %1874 = vmatprep.subr.bf16.mxu0 0
        %1875 = vmatpush1.bf16.msra.mxu0 0
        %1876 = vmatprep.subr.bf16.mxu0 0
        %1877 = vmatpush1.bf16.msra.mxu0 0
        %1878 = vmatprep.subr.bf16.mxu0 0
        %1879 = vmatpush1.bf16.msra.mxu0 0
        %1880 = vmatprep.subr.bf16.mxu0 0
        %1881 = vmatpush1.bf16.msra.mxu0 0
        %1882 = vmatprep.subr.bf16.mxu0 0
        %1883 = vmatpush1.bf16.msra.mxu0 0
        %1884 = vmatprep.subr.bf16.mxu0 0
        %1885 = vmatpush1.bf16.msra.mxu0 0
        %1886 = vmatprep.subr.bf16.mxu0 0
        %1887 = vmatpush1.bf16.msra.mxu0 0
        %1888 = vmatprep.subr.bf16.mxu0 0
        %1889 = vmatpush1.bf16.msra.mxu0 0
        %1890 = vmatprep.subr.bf16.mxu0 0
        %1891 = vmatpush1.bf16.msra.mxu0 0
        %1892 = vmatprep.subr.bf16.mxu0 0
        %1893 = vmatpush1.bf16.msra.mxu0 0
        %1894 = vmatprep.subr.bf16.mxu0 0
        %1895 = vmatpush1.bf16.msra.mxu0 0
        %1896 = vmatprep.subr.bf16.mxu0 0
        %1897 = vmatpush1.bf16.msra.mxu0 0
        %1898 = vmatprep.mubr.bf16.mxu0 0
        %1899 = vmatmul.mubr.bf16.gmra.mrb[0].mxu0 %v1782
        %v1900 = vpop.f32.mrb[0].mxu0
        %v1901 = vadd.f32 0.0, %v1900
        %v1902 = vpop.f32.mrb[0].mxu0
        %v1903 = vadd.f32 0.0, %v1902
        %v1904 = vpop.f32.mrb[0].mxu0
        %v1905 = vpop.f32.mrb[0].mxu0
        %1906 = vdwg.mxu0
        %1907 = vmatprep.subr.bf16.mxu0 %v1724
        %1908 = vmatpush1.bf16.msra.mxu0 %v1723
        %1909 = vmatprep.subr.bf16.mxu0 %v1732
        %1910 = vmatpush1.bf16.msra.mxu0 %v1731
        %1911 = vmatprep.subr.bf16.mxu0 %v1740
        %1912 = vmatpush1.bf16.msra.mxu0 %v1739
        %1913 = vmatprep.subr.bf16.mxu0 %v1748
        %1914 = vmatpush1.bf16.msra.mxu0 %v1747
        %1915 = vmatprep.subr.bf16.mxu0 0
        %1916 = vmatpush1.bf16.msra.mxu0 0
        %1917 = vmatprep.subr.bf16.mxu0 0
        %1918 = vmatpush1.bf16.msra.mxu0 0
        %1919 = vmatprep.subr.bf16.mxu0 0
        %1920 = vmatpush1.bf16.msra.mxu0 0
        %1921 = vmatprep.subr.bf16.mxu0 0
        %1922 = vmatpush1.bf16.msra.mxu0 0
        %1923 = vmatprep.subr.bf16.mxu0 0
        %1924 = vmatpush1.bf16.msra.mxu0 0
        %1925 = vmatprep.subr.bf16.mxu0 0
        %1926 = vmatpush1.bf16.msra.mxu0 0
        %1927 = vmatprep.subr.bf16.mxu0 0
        %1928 = vmatpush1.bf16.msra.mxu0 0
        %1929 = vmatprep.subr.bf16.mxu0 0
        %1930 = vmatpush1.bf16.msra.mxu0 0
        %1931 = vmatprep.subr.bf16.mxu0 0
        %1932 = vmatpush1.bf16.msra.mxu0 0
        %1933 = vmatprep.subr.bf16.mxu0 0
        %1934 = vmatpush1.bf16.msra.mxu0 0
        %1935 = vmatprep.subr.bf16.mxu0 0
        %1936 = vmatpush1.bf16.msra.mxu0 0
        %1937 = vmatprep.subr.bf16.mxu0 0
        %1938 = vmatpush1.bf16.msra.mxu0 0
        %1939 = vmatprep.mubr.bf16.mxu0 0
        %1940 = vmatmul.mubr.bf16.gmra.mrb[0].mxu0 %v1782
        %v1941 = vpop.f32.mrb[0].mxu0
        %v1942 = vadd.f32 0.0, %v1941
        %v1943 = vpop.f32.mrb[0].mxu0
        %v1944 = vadd.f32 0.0, %v1943
        %v1945 = vpop.f32.mrb[0].mxu0
        %v1946 = vpop.f32.mrb[0].mxu0
        %1947 = vdwg.mxu0
        %v1948 = vtanh.pop %v1819
        %v1949 = vtanh.pop %v1821
        %v1950 = vtanh.pop %v1860
        %v1951 = vtanh.pop %v1862
        %v1952 = vtanh.pop %v1901
        %v1953 = vtanh.pop %v1903
        %v1954 = vtanh.pop %v1942
        %v1955 = vtanh.pop %v1944
        %v1964 = vcombine.low %v1948, %v1949
        %v1965 = vcombine.low %v1950, %v1951
        %v1966 = vcombine.low %v1952, %v1953
        %v1967 = vcombine.low %v1954, %v1955
        %s1972 = scalar_lea.vmem %s411, 96 [#allocation3]
        %1973 = vst [vmem:[%s1972] sm:$0x77] %v1964
        %1974 = vst [vmem:[%s1972 + $0x8] sm:$0x77] %v1965
        %1975 = vst [vmem:[%s1972 + $0x10] sm:$0x77] %v1966
        %1976 = vst [vmem:[%s1972 + $0x18] sm:$0x77] %v1967
        %s1977 = sand.u32 %s68, 1
        %s1978 = sand.u32 %s68, 1
        %s1979 = smul.addr %s1978, 128
        %s1980 = scalar_lea.vmem [#allocation3], %s1979
        // Predicated region
        $region52: #{generator_forward.9} parent=46 // pred_check
          %p1981 = pneg %p78
        $region53: #{generator_forward.9} parent=46 // pred_check_branch
          %1983 = sbr.rel (%p1981) target = $region55
        $region54: #{generator_forward.9} parent=46 // pred_region
          %s1984 = smul.u32 8, %s13
          %s1985 = smul.addr %s1984, 4
          %s1986 = scalar_lea.vmem %s2, %s1985
          // Predicated region
          $region56: #{generator_forward.9} parent=54 // pred_check
            _
          $region57: #{generator_forward.9} parent=54 // pred_check_branch
            %1988 = sbr.rel (0) target = $region59
          $region58: #{generator_forward.9} parent=54 // pred_region
            // Predicated region
            $region60: #{generator_forward.9} parent=58 // pred_check
              _
            $region61: #{generator_forward.9} parent=58 // pred_check_branch
              %1990 = sbr.rel (0) target = $region63
            $region62: #{generator_forward.9} parent=58 // pred_region
              loop: start=0, step=1, limit=1
              $region64: #{generator_forward.9} parent=62 // loop_pre_header
                _
              $region65: #{generator_forward.9} parent=62 // loop_header
                %s1992 = sphi 0, %s1996
                %p1993 = scmp.ge.s32.totalorder %s1992, 1
                %s1997 = sphi %s1980, %s1980
                %s1998 = sphi %s1986, %s1986
              $region66: #{generator_forward.9} parent=62 // loop_header_branch
                %1995 = sbr.rel (%p1993) target = $region70
              $region67: #{generator_forward.9} parent=62 // loop_body
                %v1999 = vld [vmem:[%s1997] sm:$0xff]
                %2000 = vst [vmem:[%s1998] sm:$0xff] %v1999
                %v2001 = vld [vmem:[%s1997 + $0x8] sm:$0xff]
                %2002 = vst [vmem:[%s1998 + $0x8] sm:$0xff] %v2001
                %v2003 = vld [vmem:[%s1997 + $0x10] sm:$0xff]
                %2004 = vst [vmem:[%s1998 + $0x10] sm:$0xff] %v2003
                %v2005 = vld [vmem:[%s1997 + $0x18] sm:$0xff]
                %2006 = vst [vmem:[%s1998 + $0x18] sm:$0xff] %v2005
                %v2007 = vld [vmem:[%s1997 + $0x20] sm:$0xff]
                %2008 = vst [vmem:[%s1998 + $0x40] sm:$0xff] %v2007
                %v2009 = vld [vmem:[%s1997 + $0x28] sm:$0xff]
                %2010 = vst [vmem:[%s1998 + $0x48] sm:$0xff] %v2009
                %v2011 = vld [vmem:[%s1997 + $0x30] sm:$0xff]
                %2012 = vst [vmem:[%s1998 + $0x50] sm:$0xff] %v2011
                %v2013 = vld [vmem:[%s1997 + $0x38] sm:$0xff]
                %2014 = vst [vmem:[%s1998 + $0x58] sm:$0xff] %v2013
                %v2015 = vld [vmem:[%s1997 + $0x40] sm:$0xff]
                %2016 = vst [vmem:[%s1998 + $0x80] sm:$0xff] %v2015
                %v2017 = vld [vmem:[%s1997 + $0x48] sm:$0xff]
                %2018 = vst [vmem:[%s1998 + $0x88] sm:$0xff] %v2017
                %v2019 = vld [vmem:[%s1997 + $0x50] sm:$0xff]
                %2020 = vst [vmem:[%s1998 + $0x90] sm:$0xff] %v2019
                %v2021 = vld [vmem:[%s1997 + $0x58] sm:$0xff]
                %2022 = vst [vmem:[%s1998 + $0x98] sm:$0xff] %v2021
                %v2023 = vld [vmem:[%s1997 + $0x60] sm:$0xff]
                %2024 = vst [vmem:[%s1998 + $0xc0] sm:$0xff] %v2023
                %v2025 = vld [vmem:[%s1997 + $0x68] sm:$0xff]
                %2026 = vst [vmem:[%s1998 + $0xc8] sm:$0xff] %v2025
                %v2027 = vld [vmem:[%s1997 + $0x70] sm:$0xff]
                %2028 = vst [vmem:[%s1998 + $0xd0] sm:$0xff] %v2027
                %v2029 = vld [vmem:[%s1997 + $0x78] sm:$0xff]
                %2030 = vst [vmem:[%s1998 + $0xd8] sm:$0xff] %v2029
              $region68: #{generator_forward.9} parent=62 // loop_footer
                %s1996 = sadd.s32 1, %s1992
              $region69: #{generator_forward.9} parent=62 // loop_footer_branch
                %1991 = sbr.rel target = $region65
              $region70: #{generator_forward.9} parent=62 // loop_exit
                _
            $region63: #{generator_forward.9} parent=58 // pred_fallthru
              _
            // Predicated region
            $region71: #{generator_forward.9} parent=58 // pred_check
              _
            $region72: #{generator_forward.9} parent=58 // pred_check_branch
              %2032 = sbr.rel target = $region74
            $region73: #{generator_forward.9} parent=58 // pred_region
              _
            $region74: #{generator_forward.9} parent=58 // pred_fallthru
              _
          $region59: #{generator_forward.9} parent=54 // pred_fallthru
            _
          %2033 = vnop
        $region55: #{generator_forward.9} parent=46 // pred_fallthru
          _
      $region47: #{generator_forward.9} parent=5 // pred_fallthru
        _
      %p2034 = scmp.le.s32.totalorder 2, %s8
      // Predicated region
      $region75: #{generator_forward.9} parent=5 // pred_check
        %p2035 = pneg %p2034
      $region76: #{generator_forward.9} parent=5 // pred_check_branch
        %2037 = sbr.rel (%p2035) target = $region78
      $region77: #{generator_forward.9} parent=5 // pred_region
        %s2038 = ssub.s32 %s8, 2
        // Predicated region
        $region79: #{generator_forward.9} parent=77 // pred_check
          %p2039 = pneg %p84
        $region80: #{generator_forward.9} parent=77 // pred_check_branch
          %2041 = sbr.rel (%p2039) target = $region82
        $region81: #{generator_forward.9} parent=77 // pred_region
          %s2042 = sand.u32 %s69, 1
          %s2043 = sand.u32 %s69, 1
          %s2044 = smul.addr %s2043, 128
          %s2045 = scalar_lea.vmem [#allocation3], %s2044
        $region82: #{generator_forward.9} parent=77 // pred_fallthru
          _
      $region78: #{generator_forward.9} parent=5 // pred_fallthru
        _
    $region6: #{generator_forward.9} parent=1 // loop_footer
      %s12 = sadd.s32 1, %s8
    $region7: #{generator_forward.9} parent=1 // loop_footer_branch
      %7 = sbr.rel target = $region3
    $region8: #{generator_forward.9} parent=1 // loop_exit
      _

</llo_original>
